<compile_context>
chip_gen: v7x
topology: tpu7x:2x2x1
jax: 0.10.0
libtpu: 0.0.40
codegen_flags: <defaults>
</compile_context>

<pallas_src>
import numpy as np
import jax
import jax.numpy as jnp
from jax.experimental import pallas as pl
from jax.experimental.pallas import tpu as pltpu

B, H, W = 2, 7, 7            # input_shape=(2, 7, 7): 2 input channels, 7x7 spatial
S = H * W                    # 49 spatial positions
C_CAT = 80                   # channels of cat((x11, x21, x21, x22)) = 16+16+16+32
FC1_IN = C_CAT * S           # 3920, matches _get_conv_output
XOFF = S * 32                # lane offset of the x22 block in the flat fc1 input
FC1_FLAT = 2 * S * 32        # 3136 = folded fc1 contraction length

# conv2b 5x5 taps, t = di*5 + dj
TAPS = [(di, dj) for di in range(5) for dj in range(5)]


# --------------------------------------------------------------------------
# Pallas kernel: whole forward pass, no grid (single program).
# --------------------------------------------------------------------------
def rgc2sc_kernel(pA_ref, mask_ref,
                  wA_ref, bA_ref, w2b_ref, b2b_ref,
                  wfc1_ref, bfc1_ref, wfc2_ref, bfc2_ref,
                  wh_ref, bh_ref,
                  out_ref,
                  patches_ref, xflat_ref):
    f32 = jnp.float32

    # ---- conv1a + conv2a, fused via block-diagonal weight, batched over (s,b)
    xA = jnp.maximum(
        jnp.dot(pA_ref[...], wA_ref[...], preferred_element_type=f32)
        + bA_ref[...], 0.0)                                  # (B*S, 32) = [x11|x21]

    # ---- conv2b as in-kernel im2col: 25 shifted + masked copies of x21 build
    # a (B*S, 400) patch buffer, then ONE (B*S,400)@(400,32) matmul.
    patches_ref[...] = jnp.zeros_like(patches_ref)
    for t, (di, dj) in enumerate(TAPS):
        k = B * ((di - 2) * W + (dj - 2))     # static row shift (s-major rows)
        a = max(0, -k)                        # first destination row
        L = B * S - abs(k)                    # number of rows copied
        src = xA[a + k:a + k + L, 16:32]                      # shifted x21 (L, 16)
        msk = mask_ref[a:a + L, t:t + 1]                      # (L, 1) 0/1 validity
        patches_ref[a:a + L, t * 16:(t + 1) * 16] = src * msk

    x22 = jnp.maximum(
        jnp.dot(patches_ref[...], w2b_ref[...], preferred_element_type=f32)
        + b2b_ref[...], 0.0)                                 # (B*S, 32)

    # ---- stage the flat fc1 input (B, 3136):
    # lanes [0, 1568)      = [x11|x21] at lane s*32 + c
    # lanes [1568, 3136)   = x22       at lane 1568 + s*32 + c
    # (fc1 weight was pre-permuted on the host to exactly this layout)
    for s in range(S):
        xflat_ref[:, s * 32:(s + 1) * 32] = xA[s * B:(s + 1) * B, :]
        xflat_ref[:, XOFF + s * 32:XOFF + (s + 1) * 32] = x22[s * B:(s + 1) * B, :]

    # ---- fc1 as a single (B, 3136) @ (3136, 128) matmul
    h1 = jnp.maximum(
        jnp.dot(xflat_ref[...], wfc1_ref[...], preferred_element_type=f32)
        + bfc1_ref[...], 0.0)                                # (B, 128)
    h2 = jnp.maximum(
        jnp.dot(h1, wfc2_ref[...], preferred_element_type=f32)
        + bfc2_ref[...], 0.0)                                # (B, 64)

    # ---- fused heads: one (B,64)@(64,3) matmul; sigmoid only on column 2
    z = jnp.dot(h2, wh_ref[...], preferred_element_type=f32) + bh_ref[...]  # (B, 3)
    out_ref[:, 0:2] = z[:, 0:2]
    out_ref[:, 2:3] = 1.0 / (1.0 + jnp.exp(-z[:, 2:3]))      # sigmoid


# --------------------------------------------------------------------------
# Host-side glue: parameter init, layout prep, im2col of the raw input.
# --------------------------------------------------------------------------
def init_params(key):
    """Deterministic synthetic parameters in PyTorch layouts."""
    ks = jax.random.split(key, 16)

    def u(k, shape, fan_in):
        bound = 1.0 / (fan_in ** 0.5)
        return jax.random.uniform(k, shape, jnp.float32, -bound, bound)

    p = {}
    p['w1a'] = u(ks[0], (16, 1, 3, 3), 9);     p['b1a'] = u(ks[1], (16,), 9)
    p['w2a'] = u(ks[2], (16, 1, 5, 5), 25);    p['b2a'] = u(ks[3], (16,), 25)
    p['w2b'] = u(ks[4], (32, 16, 5, 5), 400);  p['b2b'] = u(ks[5], (32,), 400)
    p['wfc1'] = u(ks[6], (128, FC1_IN), FC1_IN); p['bfc1'] = u(ks[7], (128,), FC1_IN)
    p['wfc2'] = u(ks[8], (64, 128), 128);      p['bfc2'] = u(ks[9], (64,), 128)
    p['wx'] = u(ks[10], (1, 64), 64);          p['bx'] = u(ks[11], (1,), 64)
    p['wy'] = u(ks[12], (1, 64), 64);          p['by'] = u(ks[13], (1,), 64)
    p['we'] = u(ks[14], (1, 64), 64);          p['be'] = u(ks[15], (1,), 64)
    return p


def _conv2b_tap_masks():
    """mask[r, t] = 1 iff conv2b tap t is inside the image at row r = s*B + b."""
    m = np.zeros((B * S, 25), np.float32)
    for t, (di, dj) in enumerate(TAPS):
        for s in range(S):
            i, j = divmod(s, W)
            if 0 <= i + di - 2 < H and 0 <= j + dj - 2 < W:
                m[s * B:(s + 1) * B, t] = 1.0
    return jnp.asarray(m)


def prepare_kernel_params(p):
    """Rearrange PyTorch-layout weights into kernel-friendly layouts (host-side,
    hoisted out of the jitted forward so it runs once)."""
    kp = {}

    # fused conv1a/conv2a: block-diagonal (34, 32) weight over [3x3 | 5x5] patches
    w1a = p['w1a'].reshape(16, 9).T                         # (9, 16)
    w2a = p['w2a'].reshape(16, 25).T                        # (25, 16)
    wA = jnp.zeros((34, 32), jnp.float32)
    wA = wA.at[0:9, 0:16].set(w1a).at[9:34, 16:32].set(w2a)
    kp['wA'] = wA
    kp['bA'] = jnp.concatenate([p['b1a'], p['b2a']]).reshape(1, 32)

    # conv2b as a (400, 32) im2col matrix; row index = (di*5+dj)*16 + ci
    kp['w2b'] = p['w2b'].transpose(2, 3, 1, 0).reshape(25 * 16, 32)
    kp['b2b'] = p['b2b'].reshape(1, 32)

    # fc1: PyTorch flat index = c_cat*S + s with c_cat in [x11(0:16), x21(16:32),
    # x21(32:48), x22(48:80)].  Fold the duplicated x21 block and permute to the
    # kernel's flat layout: row s*32+c for [x11|x21], then 1568 + s*32+c for x22.
    wt = p['wfc1'].reshape(128, C_CAT, S).transpose(2, 1, 0)   # (S, 80, 128)
    blockA = jnp.concatenate(
        [wt[:, 0:16, :], wt[:, 16:32, :] + wt[:, 32:48, :]], axis=1
    ).reshape(S * 32, 128)                                     # (1568, 128)
    blockB = wt[:, 48:80, :].reshape(S * 32, 128)              # (1568, 128)
    kp['wfc1'] = jnp.concatenate([blockA, blockB], axis=0)     # (3136, 128)
    kp['bfc1'] = p['bfc1'].reshape(1, 128)

    kp['wfc2'] = p['wfc2'].T                                   # (128, 64)
    kp['bfc2'] = p['bfc2'].reshape(1, 64)

    # fused heads: columns = [fc_x, fc_y, fc_exist]
    kp['whead'] = jnp.concatenate([p['wx'].T, p['wy'].T, p['we'].T], axis=1)  # (64,3)
    kp['bhead'] = jnp.concatenate([p['bx'], p['by'], p['be']]).reshape(1, 3)

    kp['mask'] = _conv2b_tap_masks()                           # (B*S, 25)
    return kp


def _im2col(xc, k, pad):
    """xc: (B, H, W) single channel -> (B, S, k*k) patches (row-major spatial)."""
    xp = jnp.pad(xc, ((0, 0), (pad, pad), (pad, pad)))
    cols = [xp[:, di:di + H, dj:dj + W] for di in range(k) for dj in range(k)]
    return jnp.stack(cols, axis=-1).reshape(B, S, k * k)


@jax.jit
def rgc2sc_forward(x, kp):
    # im2col of the raw 2-channel input on the host side (depends on x only);
    # rows are ordered r = s*B + b (spatial-major, batch-minor).
    p1 = _im2col(x[:, 0], 3, 1)                               # (B, S, 9)
    p2 = _im2col(x[:, 1], 5, 2)                               # (B, S, 25)
    pA = jnp.concatenate([p1, p2], axis=-1)                   # (B, S, 34)
    pA = jnp.transpose(pA, (1, 0, 2)).reshape(B * S, 9 + 25)  # (B*S, 34)

    args = (pA, kp['mask'],
            kp['wA'], kp['bA'], kp['w2b'], kp['b2b'],
            kp['wfc1'], kp['bfc1'], kp['wfc2'], kp['bfc2'],
            kp['whead'], kp['bhead'])

    vmem = lambda: pl.BlockSpec(memory_space=pltpu.MemorySpace.VMEM)

    out = pl.pallas_call(
        rgc2sc_kernel,
        out_shape=jax.ShapeDtypeStruct((B, 3), jnp.float32),
        in_specs=[vmem() for _ in args],
        out_specs=vmem(),
        scratch_shapes=[
            pltpu.VMEM((B * S, 25 * 16), jnp.float32),   # conv2b im2col patches
            pltpu.VMEM((B, FC1_FLAT), jnp.float32),      # flat fc1 input
        ],
    )(*args)

    return out[:, 0:1], out[:, 1:2], out[:, 2:3]             # (x_out, y_out, exist)


# --------------------------------------------------------------------------
# Pure-JAX reference (mirrors the PyTorch forward, NCHW) for validation.
# --------------------------------------------------------------------------
def reference_forward(x, p):
    def conv(inp, w, bias, pad):
        out = jax.lax.conv_general_dilated(
            inp, w, window_strides=(1, 1), padding=[(pad, pad), (pad, pad)],
            dimension_numbers=('NCHW', 'OIHW', 'NCHW'))
        return out + bias[None, :, None, None]

    relu = lambda t: jnp.maximum(t, 0.0)
    x1, x2 = x[:, 0:1], x[:, 1:2]
    x11 = relu(conv(x1, p['w1a'], p['b1a'], 1))
    x21 = relu(conv(x2, p['w2a'], p['b2a'], 2))
    x22 = relu(conv(x21, p['w2b'], p['b2b'], 2))
    xcat = jnp.concatenate([x11, x21, x21, x22], axis=1)
    flat = xcat.reshape(x.shape[0], -1)
    h1 = relu(flat @ p['wfc1'].T + p['bfc1'])
    h2 = relu(h1 @ p['wfc2'].T + p['bfc2'])
    ox = h2 @ p['wx'].T + p['bx']
    oy = h2 @ p['wy'].T + p['by']
    oe = jax.nn.sigmoid(h2 @ p['we'].T + p['be'])
    return ox, oy, oe


if __name__ == "__main__":
    key = jax.random.PRNGKey(0)
    pkey, xkey = jax.random.split(key)
    params = init_params(pkey)
    kp = prepare_kernel_params(params)      # hoisted: weight permutes run once
    x = jax.random.normal(xkey, (B, 2, H, W), jnp.float32)

    outs = jax.block_until_ready(rgc2sc_forward(x, kp))
    refs = reference_forward(x, params)

    for got, want in zip(outs, refs):
        assert got.shape == want.shape and got.dtype == want.dtype
        err = float(jnp.max(jnp.abs(got - want)))
        assert err < 1e-2, (err, got, want)

    print("KERNEL_OK")
</pallas_src>

<mosaic_0001>
module attributes {stable_mosaic.version = 11 : i64} {
  func.func @rgc2sc_kernel(%arg0: memref<98x34xf32, #tpu.memory_space<vmem>>, %arg1: memref<98x25xf32, #tpu.memory_space<vmem>>, %arg2: memref<34x32xf32, #tpu.memory_space<vmem>>, %arg3: memref<1x32xf32, #tpu.memory_space<vmem>>, %arg4: memref<400x32xf32, #tpu.memory_space<vmem>>, %arg5: memref<1x32xf32, #tpu.memory_space<vmem>>, %arg6: memref<3136x128xf32, #tpu.memory_space<vmem>>, %arg7: memref<1x128xf32, #tpu.memory_space<vmem>>, %arg8: memref<128x64xf32, #tpu.memory_space<vmem>>, %arg9: memref<1x64xf32, #tpu.memory_space<vmem>>, %arg10: memref<64x3xf32, #tpu.memory_space<vmem>>, %arg11: memref<1x3xf32, #tpu.memory_space<vmem>>, %arg12: memref<2x3xf32, #tpu.memory_space<vmem>>, %arg13: memref<98x400xf32, #tpu.memory_space<vmem>>, %arg14: memref<2x3136xf32, #tpu.memory_space<vmem>>) attributes {dimension_semantics = [], scalar_prefetch = 0 : i64, scratch_operands = 2 : i64, tpu.core_type = #tpu.core_type<tc>} {
    %c0 = arith.constant 0 : index
    %c0_0 = arith.constant 0 : index
    %0 = vector.load %arg0[%c0, %c0_0] : memref<98x34xf32, #tpu.memory_space<vmem>>, vector<98x34xf32>
    %c0_1 = arith.constant 0 : index
    %c0_2 = arith.constant 0 : index
    %1 = vector.load %arg2[%c0_1, %c0_2] : memref<34x32xf32, #tpu.memory_space<vmem>>, vector<34x32xf32>
    %cst = arith.constant dense<0.000000e+00> : vector<98x32xf32>
    %2 = tpu.matmul %0, %1, %cst {dimension_numbers = #tpu.dot_dimension_numbers<[1], [0], [0], [1], [0, 0, 1, 1], [], []>} : vector<98x34xf32>, vector<34x32xf32>, vector<98x32xf32> -> vector<98x32xf32>
    %c0_3 = arith.constant 0 : index
    %c0_4 = arith.constant 0 : index
    %3 = vector.load %arg3[%c0_3, %c0_4] : memref<1x32xf32, #tpu.memory_space<vmem>>, vector<1x32xf32>
    %4 = vector.broadcast %3 : vector<1x32xf32> to vector<98x32xf32>
    %5 = arith.addf %2, %4 : vector<98x32xf32>
    %cst_5 = arith.constant 0.000000e+00 : f32
    %6 = vector.broadcast %cst_5 : f32 to vector<98x32xf32>
    %7 = arith.maximumf %5, %6 : vector<98x32xf32>
    %cst_6 = arith.constant 0.000000e+00 : f32
    %8 = vector.broadcast %cst_6 : f32 to vector<98x400xf32>
    %c0_7 = arith.constant 0 : index
    %c0_8 = arith.constant 0 : index
    %9 = vector.load %arg13[%c0_7, %c0_8] : memref<98x400xf32, #tpu.memory_space<vmem>>, vector<98x400xf32>
    tpu.vector_store %arg13[%c0_7, %c0_8], %8 {strides = array<i32>} : memref<98x400xf32, #tpu.memory_space<vmem>>, vector<98x400xf32>,
    %10 = vector.extract_strided_slice %7 {offsets = [0, 16], sizes = [66, 16], strides = [1, 1]} : vector<98x32xf32> to vector<66x16xf32>
    %c32 = arith.constant 32 : index
    %c0_9 = arith.constant 0 : index
    %11 = vector.load %arg1[%c32, %c0_9] : memref<98x25xf32, #tpu.memory_space<vmem>>, vector<66x1xf32>
    %12 = vector.broadcast %11 : vector<66x1xf32> to vector<66x16xf32>
    %13 = arith.mulf %10, %12 : vector<66x16xf32>
    %c32_10 = arith.constant 32 : index
    %c0_11 = arith.constant 0 : index
    %14 = vector.load %arg13[%c32_10, %c0_11] : memref<98x400xf32, #tpu.memory_space<vmem>>, vector<66x16xf32>
    tpu.vector_store %arg13[%c32_10, %c0_11], %13 {strides = array<i32>} : memref<98x400xf32, #tpu.memory_space<vmem>>, vector<66x16xf32>,
    %15 = vector.extract_strided_slice %7 {offsets = [0, 16], sizes = [68, 16], strides = [1, 1]} : vector<98x32xf32> to vector<68x16xf32>
    %c30 = arith.constant 30 : index
    %c1 = arith.constant 1 : index
    %16 = vector.load %arg1[%c30, %c1] : memref<98x25xf32, #tpu.memory_space<vmem>>, vector<68x1xf32>
    %17 = vector.broadcast %16 : vector<68x1xf32> to vector<68x16xf32>
    %18 = arith.mulf %15, %17 : vector<68x16xf32>
    %c30_12 = arith.constant 30 : index
    %c16 = arith.constant 16 : index
    %19 = vector.load %arg13[%c30_12, %c16] : memref<98x400xf32, #tpu.memory_space<vmem>>, vector<68x16xf32>
    tpu.vector_store %arg13[%c30_12, %c16], %18 {strides = array<i32>} : memref<98x400xf32, #tpu.memory_space<vmem>>, vector<68x16xf32>,
    %20 = vector.extract_strided_slice %7 {offsets = [0, 16], sizes = [70, 16], strides = [1, 1]} : vector<98x32xf32> to vector<70x16xf32>
    %c28 = arith.constant 28 : index
    %c2 = arith.constant 2 : index
    %21 = vector.load %arg1[%c28, %c2] : memref<98x25xf32, #tpu.memory_space<vmem>>, vector<70x1xf32>
    %22 = vector.broadcast %21 : vector<70x1xf32> to vector<70x16xf32>
    %23 = arith.mulf %20, %22 : vector<70x16xf32>
    %c28_13 = arith.constant 28 : index
    %c32_14 = arith.constant 32 : index
    %24 = vector.load %arg13[%c28_13, %c32_14] : memref<98x400xf32, #tpu.memory_space<vmem>>, vector<70x16xf32>
    tpu.vector_store %arg13[%c28_13, %c32_14], %23 {strides = array<i32>} : memref<98x400xf32, #tpu.memory_space<vmem>>, vector<70x16xf32>,
    %25 = vector.extract_strided_slice %7 {offsets = [0, 16], sizes = [72, 16], strides = [1, 1]} : vector<98x32xf32> to vector<72x16xf32>
    %c26 = arith.constant 26 : index
    %c3 = arith.constant 3 : index
    %26 = vector.load %arg1[%c26, %c3] : memref<98x25xf32, #tpu.memory_space<vmem>>, vector<72x1xf32>
    %27 = vector.broadcast %26 : vector<72x1xf32> to vector<72x16xf32>
    %28 = arith.mulf %25, %27 : vector<72x16xf32>
    %c26_15 = arith.constant 26 : index
    %c48 = arith.constant 48 : index
    %29 = vector.load %arg13[%c26_15, %c48] : memref<98x400xf32, #tpu.memory_space<vmem>>, vector<72x16xf32>
    tpu.vector_store %arg13[%c26_15, %c48], %28 {strides = array<i32>} : memref<98x400xf32, #tpu.memory_space<vmem>>, vector<72x16xf32>,
    %30 = vector.extract_strided_slice %7 {offsets = [0, 16], sizes = [74, 16], strides = [1, 1]} : vector<98x32xf32> to vector<74x16xf32>
    %c24 = arith.constant 24 : index
    %c4 = arith.constant 4 : index
    %31 = vector.load %arg1[%c24, %c4] : memref<98x25xf32, #tpu.memory_space<vmem>>, vector<74x1xf32>
    %32 = vector.broadcast %31 : vector<74x1xf32> to vector<74x16xf32>
    %33 = arith.mulf %30, %32 : vector<74x16xf32>
    %c24_16 = arith.constant 24 : index
    %c64 = arith.constant 64 : index
    %34 = vector.load %arg13[%c24_16, %c64] : memref<98x400xf32, #tpu.memory_space<vmem>>, vector<74x16xf32>
    tpu.vector_store %arg13[%c24_16, %c64], %33 {strides = array<i32>} : memref<98x400xf32, #tpu.memory_space<vmem>>, vector<74x16xf32>,
    %35 = vector.extract_strided_slice %7 {offsets = [0, 16], sizes = [80, 16], strides = [1, 1]} : vector<98x32xf32> to vector<80x16xf32>
    %c18 = arith.constant 18 : index
    %c5 = arith.constant 5 : index
    %36 = vector.load %arg1[%c18, %c5] : memref<98x25xf32, #tpu.memory_space<vmem>>, vector<80x1xf32>
    %37 = vector.broadcast %36 : vector<80x1xf32> to vector<80x16xf32>
    %38 = arith.mulf %35, %37 : vector<80x16xf32>
    %c18_17 = arith.constant 18 : index
    %c80 = arith.constant 80 : index
    %39 = vector.load %arg13[%c18_17, %c80] : memref<98x400xf32, #tpu.memory_space<vmem>>, vector<80x16xf32>
    tpu.vector_store %arg13[%c18_17, %c80], %38 {strides = array<i32>} : memref<98x400xf32, #tpu.memory_space<vmem>>, vector<80x16xf32>,
    %40 = vector.extract_strided_slice %7 {offsets = [0, 16], sizes = [82, 16], strides = [1, 1]} : vector<98x32xf32> to vector<82x16xf32>
    %c16_18 = arith.constant 16 : index
    %c6 = arith.constant 6 : index
    %41 = vector.load %arg1[%c16_18, %c6] : memref<98x25xf32, #tpu.memory_space<vmem>>, vector<82x1xf32>
    %42 = vector.broadcast %41 : vector<82x1xf32> to vector<82x16xf32>
    %43 = arith.mulf %40, %42 : vector<82x16xf32>
    %c16_19 = arith.constant 16 : index
    %c96 = arith.constant 96 : index
    %44 = vector.load %arg13[%c16_19, %c96] : memref<98x400xf32, #tpu.memory_space<vmem>>, vector<82x16xf32>
    tpu.vector_store %arg13[%c16_19, %c96], %43 {strides = array<i32>} : memref<98x400xf32, #tpu.memory_space<vmem>>, vector<82x16xf32>,
    %45 = vector.extract_strided_slice %7 {offsets = [0, 16], sizes = [84, 16], strides = [1, 1]} : vector<98x32xf32> to vector<84x16xf32>
    %c14 = arith.constant 14 : index
    %c7 = arith.constant 7 : index
    %46 = vector.load %arg1[%c14, %c7] : memref<98x25xf32, #tpu.memory_space<vmem>>, vector<84x1xf32>
    %47 = vector.broadcast %46 : vector<84x1xf32> to vector<84x16xf32>
    %48 = arith.mulf %45, %47 : vector<84x16xf32>
    %c14_20 = arith.constant 14 : index
    %c112 = arith.constant 112 : index
    %49 = vector.load %arg13[%c14_20, %c112] : memref<98x400xf32, #tpu.memory_space<vmem>>, vector<84x16xf32>
    tpu.vector_store %arg13[%c14_20, %c112], %48 {strides = array<i32>} : memref<98x400xf32, #tpu.memory_space<vmem>>, vector<84x16xf32>,
    %50 = vector.extract_strided_slice %7 {offsets = [0, 16], sizes = [86, 16], strides = [1, 1]} : vector<98x32xf32> to vector<86x16xf32>
    %c12 = arith.constant 12 : index
    %c8 = arith.constant 8 : index
    %51 = vector.load %arg1[%c12, %c8] : memref<98x25xf32, #tpu.memory_space<vmem>>, vector<86x1xf32>
    %52 = vector.broadcast %51 : vector<86x1xf32> to vector<86x16xf32>
    %53 = arith.mulf %50, %52 : vector<86x16xf32>
    %c12_21 = arith.constant 12 : index
    %c128 = arith.constant 128 : index
    %54 = vector.load %arg13[%c12_21, %c128] : memref<98x400xf32, #tpu.memory_space<vmem>>, vector<86x16xf32>
    tpu.vector_store %arg13[%c12_21, %c128], %53 {strides = array<i32>} : memref<98x400xf32, #tpu.memory_space<vmem>>, vector<86x16xf32>,
    %55 = vector.extract_strided_slice %7 {offsets = [0, 16], sizes = [88, 16], strides = [1, 1]} : vector<98x32xf32> to vector<88x16xf32>
    %c10 = arith.constant 10 : index
    %c9 = arith.constant 9 : index
    %56 = vector.load %arg1[%c10, %c9] : memref<98x25xf32, #tpu.memory_space<vmem>>, vector<88x1xf32>
    %57 = vector.broadcast %56 : vector<88x1xf32> to vector<88x16xf32>
    %58 = arith.mulf %55, %57 : vector<88x16xf32>
    %c10_22 = arith.constant 10 : index
    %c144 = arith.constant 144 : index
    %59 = vector.load %arg13[%c10_22, %c144] : memref<98x400xf32, #tpu.memory_space<vmem>>, vector<88x16xf32>
    tpu.vector_store %arg13[%c10_22, %c144], %58 {strides = array<i32>} : memref<98x400xf32, #tpu.memory_space<vmem>>, vector<88x16xf32>,
    %60 = vector.extract_strided_slice %7 {offsets = [0, 16], sizes = [94, 16], strides = [1, 1]} : vector<98x32xf32> to vector<94x16xf32>
    %c4_23 = arith.constant 4 : index
    %c10_24 = arith.constant 10 : index
    %61 = vector.load %arg1[%c4_23, %c10_24] : memref<98x25xf32, #tpu.memory_space<vmem>>, vector<94x1xf32>
    %62 = vector.broadcast %61 : vector<94x1xf32> to vector<94x16xf32>
    %63 = arith.mulf %60, %62 : vector<94x16xf32>
    %c4_25 = arith.constant 4 : index
    %c160 = arith.constant 160 : index
    %64 = vector.load %arg13[%c4_25, %c160] : memref<98x400xf32, #tpu.memory_space<vmem>>, vector<94x16xf32>
    tpu.vector_store %arg13[%c4_25, %c160], %63 {strides = array<i32>} : memref<98x400xf32, #tpu.memory_space<vmem>>, vector<94x16xf32>,
    %65 = vector.extract_strided_slice %7 {offsets = [0, 16], sizes = [96, 16], strides = [1, 1]} : vector<98x32xf32> to vector<96x16xf32>
    %c2_26 = arith.constant 2 : index
    %c11 = arith.constant 11 : index
    %66 = vector.load %arg1[%c2_26, %c11] : memref<98x25xf32, #tpu.memory_space<vmem>>, vector<96x1xf32>
    %67 = vector.broadcast %66 : vector<96x1xf32> to vector<96x16xf32>
    %68 = arith.mulf %65, %67 : vector<96x16xf32>
    %c2_27 = arith.constant 2 : index
    %c176 = arith.constant 176 : index
    %69 = vector.load %arg13[%c2_27, %c176] : memref<98x400xf32, #tpu.memory_space<vmem>>, vector<96x16xf32>
    tpu.vector_store %arg13[%c2_27, %c176], %68 {strides = array<i32>} : memref<98x400xf32, #tpu.memory_space<vmem>>, vector<96x16xf32>,
    %70 = vector.extract_strided_slice %7 {offsets = [0, 16], sizes = [98, 16], strides = [1, 1]} : vector<98x32xf32> to vector<98x16xf32>
    %c0_28 = arith.constant 0 : index
    %c12_29 = arith.constant 12 : index
    %71 = vector.load %arg1[%c0_28, %c12_29] : memref<98x25xf32, #tpu.memory_space<vmem>>, vector<98x1xf32>
    %72 = vector.broadcast %71 : vector<98x1xf32> to vector<98x16xf32>
    %73 = arith.mulf %70, %72 : vector<98x16xf32>
    %c0_30 = arith.constant 0 : index
    %c192 = arith.constant 192 : index
    %74 = vector.load %arg13[%c0_30, %c192] : memref<98x400xf32, #tpu.memory_space<vmem>>, vector<98x16xf32>
    tpu.vector_store %arg13[%c0_30, %c192], %73 {strides = array<i32>} : memref<98x400xf32, #tpu.memory_space<vmem>>, vector<98x16xf32>,
    %75 = vector.extract_strided_slice %7 {offsets = [2, 16], sizes = [96, 16], strides = [1, 1]} : vector<98x32xf32> to vector<96x16xf32>
    %c0_31 = arith.constant 0 : index
    %c13 = arith.constant 13 : index
    %76 = vector.load %arg1[%c0_31, %c13] : memref<98x25xf32, #tpu.memory_space<vmem>>, vector<96x1xf32>
    %77 = vector.broadcast %76 : vector<96x1xf32> to vector<96x16xf32>
    %78 = arith.mulf %75, %77 : vector<96x16xf32>
    %c0_32 = arith.constant 0 : index
    %c208 = arith.constant 208 : index
    %79 = vector.load %arg13[%c0_32, %c208] : memref<98x400xf32, #tpu.memory_space<vmem>>, vector<96x16xf32>
    tpu.vector_store %arg13[%c0_32, %c208], %78 {strides = array<i32>} : memref<98x400xf32, #tpu.memory_space<vmem>>, vector<96x16xf32>,
    %80 = vector.extract_strided_slice %7 {offsets = [4, 16], sizes = [94, 16], strides = [1, 1]} : vector<98x32xf32> to vector<94x16xf32>
    %c0_33 = arith.constant 0 : index
    %c14_34 = arith.constant 14 : index
    %81 = vector.load %arg1[%c0_33, %c14_34] : memref<98x25xf32, #tpu.memory_space<vmem>>, vector<94x1xf32>
    %82 = vector.broadcast %81 : vector<94x1xf32> to vector<94x16xf32>
    %83 = arith.mulf %80, %82 : vector<94x16xf32>
    %c0_35 = arith.constant 0 : index
    %c224 = arith.constant 224 : index
    %84 = vector.load %arg13[%c0_35, %c224] : memref<98x400xf32, #tpu.memory_space<vmem>>, vector<94x16xf32>
    tpu.vector_store %arg13[%c0_35, %c224], %83 {strides = array<i32>} : memref<98x400xf32, #tpu.memory_space<vmem>>, vector<94x16xf32>,
    %85 = vector.extract_strided_slice %7 {offsets = [10, 16], sizes = [88, 16], strides = [1, 1]} : vector<98x32xf32> to vector<88x16xf32>
    %c0_36 = arith.constant 0 : index
    %c15 = arith.constant 15 : index
    %86 = vector.load %arg1[%c0_36, %c15] : memref<98x25xf32, #tpu.memory_space<vmem>>, vector<88x1xf32>
    %87 = vector.broadcast %86 : vector<88x1xf32> to vector<88x16xf32>
    %88 = arith.mulf %85, %87 : vector<88x16xf32>
    %c0_37 = arith.constant 0 : index
    %c240 = arith.constant 240 : index
    %89 = vector.load %arg13[%c0_37, %c240] : memref<98x400xf32, #tpu.memory_space<vmem>>, vector<88x16xf32>
    tpu.vector_store %arg13[%c0_37, %c240], %88 {strides = array<i32>} : memref<98x400xf32, #tpu.memory_space<vmem>>, vector<88x16xf32>,
    %90 = vector.extract_strided_slice %7 {offsets = [12, 16], sizes = [86, 16], strides = [1, 1]} : vector<98x32xf32> to vector<86x16xf32>
    %c0_38 = arith.constant 0 : index
    %c16_39 = arith.constant 16 : index
    %91 = vector.load %arg1[%c0_38, %c16_39] : memref<98x25xf32, #tpu.memory_space<vmem>>, vector<86x1xf32>
    %92 = vector.broadcast %91 : vector<86x1xf32> to vector<86x16xf32>
    %93 = arith.mulf %90, %92 : vector<86x16xf32>
    %c0_40 = arith.constant 0 : index
    %c256 = arith.constant 256 : index
    %94 = vector.load %arg13[%c0_40, %c256] : memref<98x400xf32, #tpu.memory_space<vmem>>, vector<86x16xf32>
    tpu.vector_store %arg13[%c0_40, %c256], %93 {strides = array<i32>} : memref<98x400xf32, #tpu.memory_space<vmem>>, vector<86x16xf32>,
    %95 = vector.extract_strided_slice %7 {offsets = [14, 16], sizes = [84, 16], strides = [1, 1]} : vector<98x32xf32> to vector<84x16xf32>
    %c0_41 = arith.constant 0 : index
    %c17 = arith.constant 17 : index
    %96 = vector.load %arg1[%c0_41, %c17] : memref<98x25xf32, #tpu.memory_space<vmem>>, vector<84x1xf32>
    %97 = vector.broadcast %96 : vector<84x1xf32> to vector<84x16xf32>
    %98 = arith.mulf %95, %97 : vector<84x16xf32>
    %c0_42 = arith.constant 0 : index
    %c272 = arith.constant 272 : index
    %99 = vector.load %arg13[%c0_42, %c272] : memref<98x400xf32, #tpu.memory_space<vmem>>, vector<84x16xf32>
    tpu.vector_store %arg13[%c0_42, %c272], %98 {strides = array<i32>} : memref<98x400xf32, #tpu.memory_space<vmem>>, vector<84x16xf32>,
    %100 = vector.extract_strided_slice %7 {offsets = [16, 16], sizes = [82, 16], strides = [1, 1]} : vector<98x32xf32> to vector<82x16xf32>
    %c0_43 = arith.constant 0 : index
    %c18_44 = arith.constant 18 : index
    %101 = vector.load %arg1[%c0_43, %c18_44] : memref<98x25xf32, #tpu.memory_space<vmem>>, vector<82x1xf32>
    %102 = vector.broadcast %101 : vector<82x1xf32> to vector<82x16xf32>
    %103 = arith.mulf %100, %102 : vector<82x16xf32>
    %c0_45 = arith.constant 0 : index
    %c288 = arith.constant 288 : index
    %104 = vector.load %arg13[%c0_45, %c288] : memref<98x400xf32, #tpu.memory_space<vmem>>, vector<82x16xf32>
    tpu.vector_store %arg13[%c0_45, %c288], %103 {strides = array<i32>} : memref<98x400xf32, #tpu.memory_space<vmem>>, vector<82x16xf32>,
    %105 = vector.extract_strided_slice %7 {offsets = [18, 16], sizes = [80, 16], strides = [1, 1]} : vector<98x32xf32> to vector<80x16xf32>
    %c0_46 = arith.constant 0 : index
    %c19 = arith.constant 19 : index
    %106 = vector.load %arg1[%c0_46, %c19] : memref<98x25xf32, #tpu.memory_space<vmem>>, vector<80x1xf32>
    %107 = vector.broadcast %106 : vector<80x1xf32> to vector<80x16xf32>
    %108 = arith.mulf %105, %107 : vector<80x16xf32>
    %c0_47 = arith.constant 0 : index
    %c304 = arith.constant 304 : index
    %109 = vector.load %arg13[%c0_47, %c304] : memref<98x400xf32, #tpu.memory_space<vmem>>, vector<80x16xf32>
    tpu.vector_store %arg13[%c0_47, %c304], %108 {strides = array<i32>} : memref<98x400xf32, #tpu.memory_space<vmem>>, vector<80x16xf32>,
    %110 = vector.extract_strided_slice %7 {offsets = [24, 16], sizes = [74, 16], strides = [1, 1]} : vector<98x32xf32> to vector<74x16xf32>
    %c0_48 = arith.constant 0 : index
    %c20 = arith.constant 20 : index
    %111 = vector.load %arg1[%c0_48, %c20] : memref<98x25xf32, #tpu.memory_space<vmem>>, vector<74x1xf32>
    %112 = vector.broadcast %111 : vector<74x1xf32> to vector<74x16xf32>
    %113 = arith.mulf %110, %112 : vector<74x16xf32>
    %c0_49 = arith.constant 0 : index
    %c320 = arith.constant 320 : index
    %114 = vector.load %arg13[%c0_49, %c320] : memref<98x400xf32, #tpu.memory_space<vmem>>, vector<74x16xf32>
    tpu.vector_store %arg13[%c0_49, %c320], %113 {strides = array<i32>} : memref<98x400xf32, #tpu.memory_space<vmem>>, vector<74x16xf32>,
    %115 = vector.extract_strided_slice %7 {offsets = [26, 16], sizes = [72, 16], strides = [1, 1]} : vector<98x32xf32> to vector<72x16xf32>
    %c0_50 = arith.constant 0 : index
    %c21 = arith.constant 21 : index
    %116 = vector.load %arg1[%c0_50, %c21] : memref<98x25xf32, #tpu.memory_space<vmem>>, vector<72x1xf32>
    %117 = vector.broadcast %116 : vector<72x1xf32> to vector<72x16xf32>
    %118 = arith.mulf %115, %117 : vector<72x16xf32>
    %c0_51 = arith.constant 0 : index
    %c336 = arith.constant 336 : index
    %119 = vector.load %arg13[%c0_51, %c336] : memref<98x400xf32, #tpu.memory_space<vmem>>, vector<72x16xf32>
    tpu.vector_store %arg13[%c0_51, %c336], %118 {strides = array<i32>} : memref<98x400xf32, #tpu.memory_space<vmem>>, vector<72x16xf32>,
    %120 = vector.extract_strided_slice %7 {offsets = [28, 16], sizes = [70, 16], strides = [1, 1]} : vector<98x32xf32> to vector<70x16xf32>
    %c0_52 = arith.constant 0 : index
    %c22 = arith.constant 22 : index
    %121 = vector.load %arg1[%c0_52, %c22] : memref<98x25xf32, #tpu.memory_space<vmem>>, vector<70x1xf32>
    %122 = vector.broadcast %121 : vector<70x1xf32> to vector<70x16xf32>
    %123 = arith.mulf %120, %122 : vector<70x16xf32>
    %c0_53 = arith.constant 0 : index
    %c352 = arith.constant 352 : index
    %124 = vector.load %arg13[%c0_53, %c352] : memref<98x400xf32, #tpu.memory_space<vmem>>, vector<70x16xf32>
    tpu.vector_store %arg13[%c0_53, %c352], %123 {strides = array<i32>} : memref<98x400xf32, #tpu.memory_space<vmem>>, vector<70x16xf32>,
    %125 = vector.extract_strided_slice %7 {offsets = [30, 16], sizes = [68, 16], strides = [1, 1]} : vector<98x32xf32> to vector<68x16xf32>
    %c0_54 = arith.constant 0 : index
    %c23 = arith.constant 23 : index
    %126 = vector.load %arg1[%c0_54, %c23] : memref<98x25xf32, #tpu.memory_space<vmem>>, vector<68x1xf32>
    %127 = vector.broadcast %126 : vector<68x1xf32> to vector<68x16xf32>
    %128 = arith.mulf %125, %127 : vector<68x16xf32>
    %c0_55 = arith.constant 0 : index
    %c368 = arith.constant 368 : index
    %129 = vector.load %arg13[%c0_55, %c368] : memref<98x400xf32, #tpu.memory_space<vmem>>, vector<68x16xf32>
    tpu.vector_store %arg13[%c0_55, %c368], %128 {strides = array<i32>} : memref<98x400xf32, #tpu.memory_space<vmem>>, vector<68x16xf32>,
    %130 = vector.extract_strided_slice %7 {offsets = [32, 16], sizes = [66, 16], strides = [1, 1]} : vector<98x32xf32> to vector<66x16xf32>
    %c0_56 = arith.constant 0 : index
    %c24_57 = arith.constant 24 : index
    %131 = vector.load %arg1[%c0_56, %c24_57] : memref<98x25xf32, #tpu.memory_space<vmem>>, vector<66x1xf32>
    %132 = vector.broadcast %131 : vector<66x1xf32> to vector<66x16xf32>
    %133 = arith.mulf %130, %132 : vector<66x16xf32>
    %c0_58 = arith.constant 0 : index
    %c384 = arith.constant 384 : index
    %134 = vector.load %arg13[%c0_58, %c384] : memref<98x400xf32, #tpu.memory_space<vmem>>, vector<66x16xf32>
    tpu.vector_store %arg13[%c0_58, %c384], %133 {strides = array<i32>} : memref<98x400xf32, #tpu.memory_space<vmem>>, vector<66x16xf32>,
    %c0_59 = arith.constant 0 : index
    %c0_60 = arith.constant 0 : index
    %135 = vector.load %arg13[%c0_59, %c0_60] : memref<98x400xf32, #tpu.memory_space<vmem>>, vector<98x400xf32>
    %c0_61 = arith.constant 0 : index
    %c0_62 = arith.constant 0 : index
    %136 = vector.load %arg4[%c0_61, %c0_62] : memref<400x32xf32, #tpu.memory_space<vmem>>, vector<400x32xf32>
    %cst_63 = arith.constant dense<0.000000e+00> : vector<98x32xf32>
    %137 = tpu.matmul %135, %136, %cst_63 {dimension_numbers = #tpu.dot_dimension_numbers<[1], [0], [0], [1], [0, 0, 1, 1], [], []>} : vector<98x400xf32>, vector<400x32xf32>, vector<98x32xf32> -> vector<98x32xf32>
    %c0_64 = arith.constant 0 : index
    %c0_65 = arith.constant 0 : index
    %138 = vector.load %arg5[%c0_64, %c0_65] : memref<1x32xf32, #tpu.memory_space<vmem>>, vector<1x32xf32>
    %139 = vector.broadcast %138 : vector<1x32xf32> to vector<98x32xf32>
    %140 = arith.addf %137, %139 : vector<98x32xf32>
    %cst_66 = arith.constant 0.000000e+00 : f32
    %141 = vector.broadcast %cst_66 : f32 to vector<98x32xf32>
    %142 = arith.maximumf %140, %141 : vector<98x32xf32>
    %143 = vector.extract_strided_slice %7 {offsets = [0, 0], sizes = [2, 32], strides = [1, 1]} : vector<98x32xf32> to vector<2x32xf32>
    %c0_67 = arith.constant 0 : index
    %c0_68 = arith.constant 0 : index
    %144 = vector.load %arg14[%c0_67, %c0_68] : memref<2x3136xf32, #tpu.memory_space<vmem>>, vector<2x32xf32>
    tpu.vector_store %arg14[%c0_67, %c0_68], %143 {strides = array<i32>} : memref<2x3136xf32, #tpu.memory_space<vmem>>, vector<2x32xf32>,
    %145 = vector.extract_strided_slice %142 {offsets = [0, 0], sizes = [2, 32], strides = [1, 1]} : vector<98x32xf32> to vector<2x32xf32>
    %c0_69 = arith.constant 0 : index
    %c1568 = arith.constant 1568 : index
    %146 = vector.load %arg14[%c0_69, %c1568] : memref<2x3136xf32, #tpu.memory_space<vmem>>, vector<2x32xf32>
    tpu.vector_store %arg14[%c0_69, %c1568], %145 {strides = array<i32>} : memref<2x3136xf32, #tpu.memory_space<vmem>>, vector<2x32xf32>,
    %147 = vector.extract_strided_slice %7 {offsets = [2, 0], sizes = [2, 32], strides = [1, 1]} : vector<98x32xf32> to vector<2x32xf32>
    %c0_70 = arith.constant 0 : index
    %c32_71 = arith.constant 32 : index
    %148 = vector.load %arg14[%c0_70, %c32_71] : memref<2x3136xf32, #tpu.memory_space<vmem>>, vector<2x32xf32>
    tpu.vector_store %arg14[%c0_70, %c32_71], %147 {strides = array<i32>} : memref<2x3136xf32, #tpu.memory_space<vmem>>, vector<2x32xf32>,
    %149 = vector.extract_strided_slice %142 {offsets = [2, 0], sizes = [2, 32], strides = [1, 1]} : vector<98x32xf32> to vector<2x32xf32>
    %c0_72 = arith.constant 0 : index
    %c1600 = arith.constant 1600 : index
    %150 = vector.load %arg14[%c0_72, %c1600] : memref<2x3136xf32, #tpu.memory_space<vmem>>, vector<2x32xf32>
    tpu.vector_store %arg14[%c0_72, %c1600], %149 {strides = array<i32>} : memref<2x3136xf32, #tpu.memory_space<vmem>>, vector<2x32xf32>,
    %151 = vector.extract_strided_slice %7 {offsets = [4, 0], sizes = [2, 32], strides = [1, 1]} : vector<98x32xf32> to vector<2x32xf32>
    %c0_73 = arith.constant 0 : index
    %c64_74 = arith.constant 64 : index
    %152 = vector.load %arg14[%c0_73, %c64_74] : memref<2x3136xf32, #tpu.memory_space<vmem>>, vector<2x32xf32>
    tpu.vector_store %arg14[%c0_73, %c64_74], %151 {strides = array<i32>} : memref<2x3136xf32, #tpu.memory_space<vmem>>, vector<2x32xf32>,
    %153 = vector.extract_strided_slice %142 {offsets = [4, 0], sizes = [2, 32], strides = [1, 1]} : vector<98x32xf32> to vector<2x32xf32>
    %c0_75 = arith.constant 0 : index
    %c1632 = arith.constant 1632 : index
    %154 = vector.load %arg14[%c0_75, %c1632] : memref<2x3136xf32, #tpu.memory_space<vmem>>, vector<2x32xf32>
    tpu.vector_store %arg14[%c0_75, %c1632], %153 {strides = array<i32>} : memref<2x3136xf32, #tpu.memory_space<vmem>>, vector<2x32xf32>,
    %155 = vector.extract_strided_slice %7 {offsets = [6, 0], sizes = [2, 32], strides = [1, 1]} : vector<98x32xf32> to vector<2x32xf32>
    %c0_76 = arith.constant 0 : index
    %c96_77 = arith.constant 96 : index
    %156 = vector.load %arg14[%c0_76, %c96_77] : memref<2x3136xf32, #tpu.memory_space<vmem>>, vector<2x32xf32>
    tpu.vector_store %arg14[%c0_76, %c96_77], %155 {strides = array<i32>} : memref<2x3136xf32, #tpu.memory_space<vmem>>, vector<2x32xf32>,
    %157 = vector.extract_strided_slice %142 {offsets = [6, 0], sizes = [2, 32], strides = [1, 1]} : vector<98x32xf32> to vector<2x32xf32>
    %c0_78 = arith.constant 0 : index
    %c1664 = arith.constant 1664 : index
    %158 = vector.load %arg14[%c0_78, %c1664] : memref<2x3136xf32, #tpu.memory_space<vmem>>, vector<2x32xf32>
    tpu.vector_store %arg14[%c0_78, %c1664], %157 {strides = array<i32>} : memref<2x3136xf32, #tpu.memory_space<vmem>>, vector<2x32xf32>,
    %159 = vector.extract_strided_slice %7 {offsets = [8, 0], sizes = [2, 32], strides = [1, 1]} : vector<98x32xf32> to vector<2x32xf32>
    %c0_79 = arith.constant 0 : index
    %c128_80 = arith.constant 128 : index
    %160 = vector.load %arg14[%c0_79, %c128_80] : memref<2x3136xf32, #tpu.memory_space<vmem>>, vector<2x32xf32>
    tpu.vector_store %arg14[%c0_79, %c128_80], %159 {strides = array<i32>} : memref<2x3136xf32, #tpu.memory_space<vmem>>, vector<2x32xf32>,
    %161 = vector.extract_strided_slice %142 {offsets = [8, 0], sizes = [2, 32], strides = [1, 1]} : vector<98x32xf32> to vector<2x32xf32>
    %c0_81 = arith.constant 0 : index
    %c1696 = arith.constant 1696 : index
    %162 = vector.load %arg14[%c0_81, %c1696] : memref<2x3136xf32, #tpu.memory_space<vmem>>, vector<2x32xf32>
    tpu.vector_store %arg14[%c0_81, %c1696], %161 {strides = array<i32>} : memref<2x3136xf32, #tpu.memory_space<vmem>>, vector<2x32xf32>,
    %163 = vector.extract_strided_slice %7 {offsets = [10, 0], sizes = [2, 32], strides = [1, 1]} : vector<98x32xf32> to vector<2x32xf32>
    %c0_82 = arith.constant 0 : index
    %c160_83 = arith.constant 160 : index
    %164 = vector.load %arg14[%c0_82, %c160_83] : memref<2x3136xf32, #tpu.memory_space<vmem>>, vector<2x32xf32>
    tpu.vector_store %arg14[%c0_82, %c160_83], %163 {strides = array<i32>} : memref<2x3136xf32, #tpu.memory_space<vmem>>, vector<2x32xf32>,
    %165 = vector.extract_strided_slice %142 {offsets = [10, 0], sizes = [2, 32], strides = [1, 1]} : vector<98x32xf32> to vector<2x32xf32>
    %c0_84 = arith.constant 0 : index
    %c1728 = arith.constant 1728 : index
    %166 = vector.load %arg14[%c0_84, %c1728] : memref<2x3136xf32, #tpu.memory_space<vmem>>, vector<2x32xf32>
    tpu.vector_store %arg14[%c0_84, %c1728], %165 {strides = array<i32>} : memref<2x3136xf32, #tpu.memory_space<vmem>>, vector<2x32xf32>,
    %167 = vector.extract_strided_slice %7 {offsets = [12, 0], sizes = [2, 32], strides = [1, 1]} : vector<98x32xf32> to vector<2x32xf32>
    %c0_85 = arith.constant 0 : index
    %c192_86 = arith.constant 192 : index
    %168 = vector.load %arg14[%c0_85, %c192_86] : memref<2x3136xf32, #tpu.memory_space<vmem>>, vector<2x32xf32>
    tpu.vector_store %arg14[%c0_85, %c192_86], %167 {strides = array<i32>} : memref<2x3136xf32, #tpu.memory_space<vmem>>, vector<2x32xf32>,
    %169 = vector.extract_strided_slice %142 {offsets = [12, 0], sizes = [2, 32], strides = [1, 1]} : vector<98x32xf32> to vector<2x32xf32>
    %c0_87 = arith.constant 0 : index
    %c1760 = arith.constant 1760 : index
    %170 = vector.load %arg14[%c0_87, %c1760] : memref<2x3136xf32, #tpu.memory_space<vmem>>, vector<2x32xf32>
    tpu.vector_store %arg14[%c0_87, %c1760], %169 {strides = array<i32>} : memref<2x3136xf32, #tpu.memory_space<vmem>>, vector<2x32xf32>,
    %171 = vector.extract_strided_slice %7 {offsets = [14, 0], sizes = [2, 32], strides = [1, 1]} : vector<98x32xf32> to vector<2x32xf32>
    %c0_88 = arith.constant 0 : index
    %c224_89 = arith.constant 224 : index
    %172 = vector.load %arg14[%c0_88, %c224_89] : memref<2x3136xf32, #tpu.memory_space<vmem>>, vector<2x32xf32>
    tpu.vector_store %arg14[%c0_88, %c224_89], %171 {strides = array<i32>} : memref<2x3136xf32, #tpu.memory_space<vmem>>, vector<2x32xf32>,
    %173 = vector.extract_strided_slice %142 {offsets = [14, 0], sizes = [2, 32], strides = [1, 1]} : vector<98x32xf32> to vector<2x32xf32>
    %c0_90 = arith.constant 0 : index
    %c1792 = arith.constant 1792 : index
    %174 = vector.load %arg14[%c0_90, %c1792] : memref<2x3136xf32, #tpu.memory_space<vmem>>, vector<2x32xf32>
    tpu.vector_store %arg14[%c0_90, %c1792], %173 {strides = array<i32>} : memref<2x3136xf32, #tpu.memory_space<vmem>>, vector<2x32xf32>,
    %175 = vector.extract_strided_slice %7 {offsets = [16, 0], sizes = [2, 32], strides = [1, 1]} : vector<98x32xf32> to vector<2x32xf32>
    %c0_91 = arith.constant 0 : index
    %c256_92 = arith.constant 256 : index
    %176 = vector.load %arg14[%c0_91, %c256_92] : memref<2x3136xf32, #tpu.memory_space<vmem>>, vector<2x32xf32>
    tpu.vector_store %arg14[%c0_91, %c256_92], %175 {strides = array<i32>} : memref<2x3136xf32, #tpu.memory_space<vmem>>, vector<2x32xf32>,
    %177 = vector.extract_strided_slice %142 {offsets = [16, 0], sizes = [2, 32], strides = [1, 1]} : vector<98x32xf32> to vector<2x32xf32>
    %c0_93 = arith.constant 0 : index
    %c1824 = arith.constant 1824 : index
    %178 = vector.load %arg14[%c0_93, %c1824] : memref<2x3136xf32, #tpu.memory_space<vmem>>, vector<2x32xf32>
    tpu.vector_store %arg14[%c0_93, %c1824], %177 {strides = array<i32>} : memref<2x3136xf32, #tpu.memory_space<vmem>>, vector<2x32xf32>,
    %179 = vector.extract_strided_slice %7 {offsets = [18, 0], sizes = [2, 32], strides = [1, 1]} : vector<98x32xf32> to vector<2x32xf32>
    %c0_94 = arith.constant 0 : index
    %c288_95 = arith.constant 288 : index
    %180 = vector.load %arg14[%c0_94, %c288_95] : memref<2x3136xf32, #tpu.memory_space<vmem>>, vector<2x32xf32>
    tpu.vector_store %arg14[%c0_94, %c288_95], %179 {strides = array<i32>} : memref<2x3136xf32, #tpu.memory_space<vmem>>, vector<2x32xf32>,
    %181 = vector.extract_strided_slice %142 {offsets = [18, 0], sizes = [2, 32], strides = [1, 1]} : vector<98x32xf32> to vector<2x32xf32>
    %c0_96 = arith.constant 0 : index
    %c1856 = arith.constant 1856 : index
    %182 = vector.load %arg14[%c0_96, %c1856] : memref<2x3136xf32, #tpu.memory_space<vmem>>, vector<2x32xf32>
    tpu.vector_store %arg14[%c0_96, %c1856], %181 {strides = array<i32>} : memref<2x3136xf32, #tpu.memory_space<vmem>>, vector<2x32xf32>,
    %183 = vector.extract_strided_slice %7 {offsets = [20, 0], sizes = [2, 32], strides = [1, 1]} : vector<98x32xf32> to vector<2x32xf32>
    %c0_97 = arith.constant 0 : index
    %c320_98 = arith.constant 320 : index
    %184 = vector.load %arg14[%c0_97, %c320_98] : memref<2x3136xf32, #tpu.memory_space<vmem>>, vector<2x32xf32>
    tpu.vector_store %arg14[%c0_97, %c320_98], %183 {strides = array<i32>} : memref<2x3136xf32, #tpu.memory_space<vmem>>, vector<2x32xf32>,
    %185 = vector.extract_strided_slice %142 {offsets = [20, 0], sizes = [2, 32], strides = [1, 1]} : vector<98x32xf32> to vector<2x32xf32>
    %c0_99 = arith.constant 0 : index
    %c1888 = arith.constant 1888 : index
    %186 = vector.load %arg14[%c0_99, %c1888] : memref<2x3136xf32, #tpu.memory_space<vmem>>, vector<2x32xf32>
    tpu.vector_store %arg14[%c0_99, %c1888], %185 {strides = array<i32>} : memref<2x3136xf32, #tpu.memory_space<vmem>>, vector<2x32xf32>,
    %187 = vector.extract_strided_slice %7 {offsets = [22, 0], sizes = [2, 32], strides = [1, 1]} : vector<98x32xf32> to vector<2x32xf32>
    %c0_100 = arith.constant 0 : index
    %c352_101 = arith.constant 352 : index
    %188 = vector.load %arg14[%c0_100, %c352_101] : memref<2x3136xf32, #tpu.memory_space<vmem>>, vector<2x32xf32>
    tpu.vector_store %arg14[%c0_100, %c352_101], %187 {strides = array<i32>} : memref<2x3136xf32, #tpu.memory_space<vmem>>, vector<2x32xf32>,
    %189 = vector.extract_strided_slice %142 {offsets = [22, 0], sizes = [2, 32], strides = [1, 1]} : vector<98x32xf32> to vector<2x32xf32>
    %c0_102 = arith.constant 0 : index
    %c1920 = arith.constant 1920 : index
    %190 = vector.load %arg14[%c0_102, %c1920] : memref<2x3136xf32, #tpu.memory_space<vmem>>, vector<2x32xf32>
    tpu.vector_store %arg14[%c0_102, %c1920], %189 {strides = array<i32>} : memref<2x3136xf32, #tpu.memory_space<vmem>>, vector<2x32xf32>,
    %191 = vector.extract_strided_slice %7 {offsets = [24, 0], sizes = [2, 32], strides = [1, 1]} : vector<98x32xf32> to vector<2x32xf32>
    %c0_103 = arith.constant 0 : index
    %c384_104 = arith.constant 384 : index
    %192 = vector.load %arg14[%c0_103, %c384_104] : memref<2x3136xf32, #tpu.memory_space<vmem>>, vector<2x32xf32>
    tpu.vector_store %arg14[%c0_103, %c384_104], %191 {strides = array<i32>} : memref<2x3136xf32, #tpu.memory_space<vmem>>, vector<2x32xf32>,
    %193 = vector.extract_strided_slice %142 {offsets = [24, 0], sizes = [2, 32], strides = [1, 1]} : vector<98x32xf32> to vector<2x32xf32>
    %c0_105 = arith.constant 0 : index
    %c1952 = arith.constant 1952 : index
    %194 = vector.load %arg14[%c0_105, %c1952] : memref<2x3136xf32, #tpu.memory_space<vmem>>, vector<2x32xf32>
    tpu.vector_store %arg14[%c0_105, %c1952], %193 {strides = array<i32>} : memref<2x3136xf32, #tpu.memory_space<vmem>>, vector<2x32xf32>,
    %195 = vector.extract_strided_slice %7 {offsets = [26, 0], sizes = [2, 32], strides = [1, 1]} : vector<98x32xf32> to vector<2x32xf32>
    %c0_106 = arith.constant 0 : index
    %c416 = arith.constant 416 : index
    %196 = vector.load %arg14[%c0_106, %c416] : memref<2x3136xf32, #tpu.memory_space<vmem>>, vector<2x32xf32>
    tpu.vector_store %arg14[%c0_106, %c416], %195 {strides = array<i32>} : memref<2x3136xf32, #tpu.memory_space<vmem>>, vector<2x32xf32>,
    %197 = vector.extract_strided_slice %142 {offsets = [26, 0], sizes = [2, 32], strides = [1, 1]} : vector<98x32xf32> to vector<2x32xf32>
    %c0_107 = arith.constant 0 : index
    %c1984 = arith.constant 1984 : index
    %198 = vector.load %arg14[%c0_107, %c1984] : memref<2x3136xf32, #tpu.memory_space<vmem>>, vector<2x32xf32>
    tpu.vector_store %arg14[%c0_107, %c1984], %197 {strides = array<i32>} : memref<2x3136xf32, #tpu.memory_space<vmem>>, vector<2x32xf32>,
    %199 = vector.extract_strided_slice %7 {offsets = [28, 0], sizes = [2, 32], strides = [1, 1]} : vector<98x32xf32> to vector<2x32xf32>
    %c0_108 = arith.constant 0 : index
    %c448 = arith.constant 448 : index
    %200 = vector.load %arg14[%c0_108, %c448] : memref<2x3136xf32, #tpu.memory_space<vmem>>, vector<2x32xf32>
    tpu.vector_store %arg14[%c0_108, %c448], %199 {strides = array<i32>} : memref<2x3136xf32, #tpu.memory_space<vmem>>, vector<2x32xf32>,
    %201 = vector.extract_strided_slice %142 {offsets = [28, 0], sizes = [2, 32], strides = [1, 1]} : vector<98x32xf32> to vector<2x32xf32>
    %c0_109 = arith.constant 0 : index
    %c2016 = arith.constant 2016 : index
    %202 = vector.load %arg14[%c0_109, %c2016] : memref<2x3136xf32, #tpu.memory_space<vmem>>, vector<2x32xf32>
    tpu.vector_store %arg14[%c0_109, %c2016], %201 {strides = array<i32>} : memref<2x3136xf32, #tpu.memory_space<vmem>>, vector<2x32xf32>,
    %203 = vector.extract_strided_slice %7 {offsets = [30, 0], sizes = [2, 32], strides = [1, 1]} : vector<98x32xf32> to vector<2x32xf32>
    %c0_110 = arith.constant 0 : index
    %c480 = arith.constant 480 : index
    %204 = vector.load %arg14[%c0_110, %c480] : memref<2x3136xf32, #tpu.memory_space<vmem>>, vector<2x32xf32>
    tpu.vector_store %arg14[%c0_110, %c480], %203 {strides = array<i32>} : memref<2x3136xf32, #tpu.memory_space<vmem>>, vector<2x32xf32>,
    %205 = vector.extract_strided_slice %142 {offsets = [30, 0], sizes = [2, 32], strides = [1, 1]} : vector<98x32xf32> to vector<2x32xf32>
    %c0_111 = arith.constant 0 : index
    %c2048 = arith.constant 2048 : index
    %206 = vector.load %arg14[%c0_111, %c2048] : memref<2x3136xf32, #tpu.memory_space<vmem>>, vector<2x32xf32>
    tpu.vector_store %arg14[%c0_111, %c2048], %205 {strides = array<i32>} : memref<2x3136xf32, #tpu.memory_space<vmem>>, vector<2x32xf32>,
    %207 = vector.extract_strided_slice %7 {offsets = [32, 0], sizes = [2, 32], strides = [1, 1]} : vector<98x32xf32> to vector<2x32xf32>
    %c0_112 = arith.constant 0 : index
    %c512 = arith.constant 512 : index
    %208 = vector.load %arg14[%c0_112, %c512] : memref<2x3136xf32, #tpu.memory_space<vmem>>, vector<2x32xf32>
    tpu.vector_store %arg14[%c0_112, %c512], %207 {strides = array<i32>} : memref<2x3136xf32, #tpu.memory_space<vmem>>, vector<2x32xf32>,
    %209 = vector.extract_strided_slice %142 {offsets = [32, 0], sizes = [2, 32], strides = [1, 1]} : vector<98x32xf32> to vector<2x32xf32>
    %c0_113 = arith.constant 0 : index
    %c2080 = arith.constant 2080 : index
    %210 = vector.load %arg14[%c0_113, %c2080] : memref<2x3136xf32, #tpu.memory_space<vmem>>, vector<2x32xf32>
    tpu.vector_store %arg14[%c0_113, %c2080], %209 {strides = array<i32>} : memref<2x3136xf32, #tpu.memory_space<vmem>>, vector<2x32xf32>,
    %211 = vector.extract_strided_slice %7 {offsets = [34, 0], sizes = [2, 32], strides = [1, 1]} : vector<98x32xf32> to vector<2x32xf32>
    %c0_114 = arith.constant 0 : index
    %c544 = arith.constant 544 : index
    %212 = vector.load %arg14[%c0_114, %c544] : memref<2x3136xf32, #tpu.memory_space<vmem>>, vector<2x32xf32>
    tpu.vector_store %arg14[%c0_114, %c544], %211 {strides = array<i32>} : memref<2x3136xf32, #tpu.memory_space<vmem>>, vector<2x32xf32>,
    %213 = vector.extract_strided_slice %142 {offsets = [34, 0], sizes = [2, 32], strides = [1, 1]} : vector<98x32xf32> to vector<2x32xf32>
    %c0_115 = arith.constant 0 : index
    %c2112 = arith.constant 2112 : index
    %214 = vector.load %arg14[%c0_115, %c2112] : memref<2x3136xf32, #tpu.memory_space<vmem>>, vector<2x32xf32>
    tpu.vector_store %arg14[%c0_115, %c2112], %213 {strides = array<i32>} : memref<2x3136xf32, #tpu.memory_space<vmem>>, vector<2x32xf32>,
    %215 = vector.extract_strided_slice %7 {offsets = [36, 0], sizes = [2, 32], strides = [1, 1]} : vector<98x32xf32> to vector<2x32xf32>
    %c0_116 = arith.constant 0 : index
    %c576 = arith.constant 576 : index
    %216 = vector.load %arg14[%c0_116, %c576] : memref<2x3136xf32, #tpu.memory_space<vmem>>, vector<2x32xf32>
    tpu.vector_store %arg14[%c0_116, %c576], %215 {strides = array<i32>} : memref<2x3136xf32, #tpu.memory_space<vmem>>, vector<2x32xf32>,
    %217 = vector.extract_strided_slice %142 {offsets = [36, 0], sizes = [2, 32], strides = [1, 1]} : vector<98x32xf32> to vector<2x32xf32>
    %c0_117 = arith.constant 0 : index
    %c2144 = arith.constant 2144 : index
    %218 = vector.load %arg14[%c0_117, %c2144] : memref<2x3136xf32, #tpu.memory_space<vmem>>, vector<2x32xf32>
    tpu.vector_store %arg14[%c0_117, %c2144], %217 {strides = array<i32>} : memref<2x3136xf32, #tpu.memory_space<vmem>>, vector<2x32xf32>,
    %219 = vector.extract_strided_slice %7 {offsets = [38, 0], sizes = [2, 32], strides = [1, 1]} : vector<98x32xf32> to vector<2x32xf32>
    %c0_118 = arith.constant 0 : index
    %c608 = arith.constant 608 : index
    %220 = vector.load %arg14[%c0_118, %c608] : memref<2x3136xf32, #tpu.memory_space<vmem>>, vector<2x32xf32>
    tpu.vector_store %arg14[%c0_118, %c608], %219 {strides = array<i32>} : memref<2x3136xf32, #tpu.memory_space<vmem>>, vector<2x32xf32>,
    %221 = vector.extract_strided_slice %142 {offsets = [38, 0], sizes = [2, 32], strides = [1, 1]} : vector<98x32xf32> to vector<2x32xf32>
    %c0_119 = arith.constant 0 : index
    %c2176 = arith.constant 2176 : index
    %222 = vector.load %arg14[%c0_119, %c2176] : memref<2x3136xf32, #tpu.memory_space<vmem>>, vector<2x32xf32>
    tpu.vector_store %arg14[%c0_119, %c2176], %221 {strides = array<i32>} : memref<2x3136xf32, #tpu.memory_space<vmem>>, vector<2x32xf32>,
    %223 = vector.extract_strided_slice %7 {offsets = [40, 0], sizes = [2, 32], strides = [1, 1]} : vector<98x32xf32> to vector<2x32xf32>
    %c0_120 = arith.constant 0 : index
    %c640 = arith.constant 640 : index
    %224 = vector.load %arg14[%c0_120, %c640] : memref<2x3136xf32, #tpu.memory_space<vmem>>, vector<2x32xf32>
    tpu.vector_store %arg14[%c0_120, %c640], %223 {strides = array<i32>} : memref<2x3136xf32, #tpu.memory_space<vmem>>, vector<2x32xf32>,
    %225 = vector.extract_strided_slice %142 {offsets = [40, 0], sizes = [2, 32], strides = [1, 1]} : vector<98x32xf32> to vector<2x32xf32>
    %c0_121 = arith.constant 0 : index
    %c2208 = arith.constant 2208 : index
    %226 = vector.load %arg14[%c0_121, %c2208] : memref<2x3136xf32, #tpu.memory_space<vmem>>, vector<2x32xf32>
    tpu.vector_store %arg14[%c0_121, %c2208], %225 {strides = array<i32>} : memref<2x3136xf32, #tpu.memory_space<vmem>>, vector<2x32xf32>,
    %227 = vector.extract_strided_slice %7 {offsets = [42, 0], sizes = [2, 32], strides = [1, 1]} : vector<98x32xf32> to vector<2x32xf32>
    %c0_122 = arith.constant 0 : index
    %c672 = arith.constant 672 : index
    %228 = vector.load %arg14[%c0_122, %c672] : memref<2x3136xf32, #tpu.memory_space<vmem>>, vector<2x32xf32>
    tpu.vector_store %arg14[%c0_122, %c672], %227 {strides = array<i32>} : memref<2x3136xf32, #tpu.memory_space<vmem>>, vector<2x32xf32>,
    %229 = vector.extract_strided_slice %142 {offsets = [42, 0], sizes = [2, 32], strides = [1, 1]} : vector<98x32xf32> to vector<2x32xf32>
    %c0_123 = arith.constant 0 : index
    %c2240 = arith.constant 2240 : index
    %230 = vector.load %arg14[%c0_123, %c2240] : memref<2x3136xf32, #tpu.memory_space<vmem>>, vector<2x32xf32>
    tpu.vector_store %arg14[%c0_123, %c2240], %229 {strides = array<i32>} : memref<2x3136xf32, #tpu.memory_space<vmem>>, vector<2x32xf32>,
    %231 = vector.extract_strided_slice %7 {offsets = [44, 0], sizes = [2, 32], strides = [1, 1]} : vector<98x32xf32> to vector<2x32xf32>
    %c0_124 = arith.constant 0 : index
    %c704 = arith.constant 704 : index
    %232 = vector.load %arg14[%c0_124, %c704] : memref<2x3136xf32, #tpu.memory_space<vmem>>, vector<2x32xf32>
    tpu.vector_store %arg14[%c0_124, %c704], %231 {strides = array<i32>} : memref<2x3136xf32, #tpu.memory_space<vmem>>, vector<2x32xf32>,
    %233 = vector.extract_strided_slice %142 {offsets = [44, 0], sizes = [2, 32], strides = [1, 1]} : vector<98x32xf32> to vector<2x32xf32>
    %c0_125 = arith.constant 0 : index
    %c2272 = arith.constant 2272 : index
    %234 = vector.load %arg14[%c0_125, %c2272] : memref<2x3136xf32, #tpu.memory_space<vmem>>, vector<2x32xf32>
    tpu.vector_store %arg14[%c0_125, %c2272], %233 {strides = array<i32>} : memref<2x3136xf32, #tpu.memory_space<vmem>>, vector<2x32xf32>,
    %235 = vector.extract_strided_slice %7 {offsets = [46, 0], sizes = [2, 32], strides = [1, 1]} : vector<98x32xf32> to vector<2x32xf32>
    %c0_126 = arith.constant 0 : index
    %c736 = arith.constant 736 : index
    %236 = vector.load %arg14[%c0_126, %c736] : memref<2x3136xf32, #tpu.memory_space<vmem>>, vector<2x32xf32>
    tpu.vector_store %arg14[%c0_126, %c736], %235 {strides = array<i32>} : memref<2x3136xf32, #tpu.memory_space<vmem>>, vector<2x32xf32>,
    %237 = vector.extract_strided_slice %142 {offsets = [46, 0], sizes = [2, 32], strides = [1, 1]} : vector<98x32xf32> to vector<2x32xf32>
    %c0_127 = arith.constant 0 : index
    %c2304 = arith.constant 2304 : index
    %238 = vector.load %arg14[%c0_127, %c2304] : memref<2x3136xf32, #tpu.memory_space<vmem>>, vector<2x32xf32>
    tpu.vector_store %arg14[%c0_127, %c2304], %237 {strides = array<i32>} : memref<2x3136xf32, #tpu.memory_space<vmem>>, vector<2x32xf32>,
    %239 = vector.extract_strided_slice %7 {offsets = [48, 0], sizes = [2, 32], strides = [1, 1]} : vector<98x32xf32> to vector<2x32xf32>
    %c0_128 = arith.constant 0 : index
    %c768 = arith.constant 768 : index
    %240 = vector.load %arg14[%c0_128, %c768] : memref<2x3136xf32, #tpu.memory_space<vmem>>, vector<2x32xf32>
    tpu.vector_store %arg14[%c0_128, %c768], %239 {strides = array<i32>} : memref<2x3136xf32, #tpu.memory_space<vmem>>, vector<2x32xf32>,
    %241 = vector.extract_strided_slice %142 {offsets = [48, 0], sizes = [2, 32], strides = [1, 1]} : vector<98x32xf32> to vector<2x32xf32>
    %c0_129 = arith.constant 0 : index
    %c2336 = arith.constant 2336 : index
    %242 = vector.load %arg14[%c0_129, %c2336] : memref<2x3136xf32, #tpu.memory_space<vmem>>, vector<2x32xf32>
    tpu.vector_store %arg14[%c0_129, %c2336], %241 {strides = array<i32>} : memref<2x3136xf32, #tpu.memory_space<vmem>>, vector<2x32xf32>,
    %243 = vector.extract_strided_slice %7 {offsets = [50, 0], sizes = [2, 32], strides = [1, 1]} : vector<98x32xf32> to vector<2x32xf32>
    %c0_130 = arith.constant 0 : index
    %c800 = arith.constant 800 : index
    %244 = vector.load %arg14[%c0_130, %c800] : memref<2x3136xf32, #tpu.memory_space<vmem>>, vector<2x32xf32>
    tpu.vector_store %arg14[%c0_130, %c800], %243 {strides = array<i32>} : memref<2x3136xf32, #tpu.memory_space<vmem>>, vector<2x32xf32>,
    %245 = vector.extract_strided_slice %142 {offsets = [50, 0], sizes = [2, 32], strides = [1, 1]} : vector<98x32xf32> to vector<2x32xf32>
    %c0_131 = arith.constant 0 : index
    %c2368 = arith.constant 2368 : index
    %246 = vector.load %arg14[%c0_131, %c2368] : memref<2x3136xf32, #tpu.memory_space<vmem>>, vector<2x32xf32>
    tpu.vector_store %arg14[%c0_131, %c2368], %245 {strides = array<i32>} : memref<2x3136xf32, #tpu.memory_space<vmem>>, vector<2x32xf32>,
    %247 = vector.extract_strided_slice %7 {offsets = [52, 0], sizes = [2, 32], strides = [1, 1]} : vector<98x32xf32> to vector<2x32xf32>
    %c0_132 = arith.constant 0 : index
    %c832 = arith.constant 832 : index
    %248 = vector.load %arg14[%c0_132, %c832] : memref<2x3136xf32, #tpu.memory_space<vmem>>, vector<2x32xf32>
    tpu.vector_store %arg14[%c0_132, %c832], %247 {strides = array<i32>} : memref<2x3136xf32, #tpu.memory_space<vmem>>, vector<2x32xf32>,
    %249 = vector.extract_strided_slice %142 {offsets = [52, 0], sizes = [2, 32], strides = [1, 1]} : vector<98x32xf32> to vector<2x32xf32>
    %c0_133 = arith.constant 0 : index
    %c2400 = arith.constant 2400 : index
    %250 = vector.load %arg14[%c0_133, %c2400] : memref<2x3136xf32, #tpu.memory_space<vmem>>, vector<2x32xf32>
    tpu.vector_store %arg14[%c0_133, %c2400], %249 {strides = array<i32>} : memref<2x3136xf32, #tpu.memory_space<vmem>>, vector<2x32xf32>,
    %251 = vector.extract_strided_slice %7 {offsets = [54, 0], sizes = [2, 32], strides = [1, 1]} : vector<98x32xf32> to vector<2x32xf32>
    %c0_134 = arith.constant 0 : index
    %c864 = arith.constant 864 : index
    %252 = vector.load %arg14[%c0_134, %c864] : memref<2x3136xf32, #tpu.memory_space<vmem>>, vector<2x32xf32>
    tpu.vector_store %arg14[%c0_134, %c864], %251 {strides = array<i32>} : memref<2x3136xf32, #tpu.memory_space<vmem>>, vector<2x32xf32>,
    %253 = vector.extract_strided_slice %142 {offsets = [54, 0], sizes = [2, 32], strides = [1, 1]} : vector<98x32xf32> to vector<2x32xf32>
    %c0_135 = arith.constant 0 : index
    %c2432 = arith.constant 2432 : index
    %254 = vector.load %arg14[%c0_135, %c2432] : memref<2x3136xf32, #tpu.memory_space<vmem>>, vector<2x32xf32>
    tpu.vector_store %arg14[%c0_135, %c2432], %253 {strides = array<i32>} : memref<2x3136xf32, #tpu.memory_space<vmem>>, vector<2x32xf32>,
    %255 = vector.extract_strided_slice %7 {offsets = [56, 0], sizes = [2, 32], strides = [1, 1]} : vector<98x32xf32> to vector<2x32xf32>
    %c0_136 = arith.constant 0 : index
    %c896 = arith.constant 896 : index
    %256 = vector.load %arg14[%c0_136, %c896] : memref<2x3136xf32, #tpu.memory_space<vmem>>, vector<2x32xf32>
    tpu.vector_store %arg14[%c0_136, %c896], %255 {strides = array<i32>} : memref<2x3136xf32, #tpu.memory_space<vmem>>, vector<2x32xf32>,
    %257 = vector.extract_strided_slice %142 {offsets = [56, 0], sizes = [2, 32], strides = [1, 1]} : vector<98x32xf32> to vector<2x32xf32>
    %c0_137 = arith.constant 0 : index
    %c2464 = arith.constant 2464 : index
    %258 = vector.load %arg14[%c0_137, %c2464] : memref<2x3136xf32, #tpu.memory_space<vmem>>, vector<2x32xf32>
    tpu.vector_store %arg14[%c0_137, %c2464], %257 {strides = array<i32>} : memref<2x3136xf32, #tpu.memory_space<vmem>>, vector<2x32xf32>,
    %259 = vector.extract_strided_slice %7 {offsets = [58, 0], sizes = [2, 32], strides = [1, 1]} : vector<98x32xf32> to vector<2x32xf32>
    %c0_138 = arith.constant 0 : index
    %c928 = arith.constant 928 : index
    %260 = vector.load %arg14[%c0_138, %c928] : memref<2x3136xf32, #tpu.memory_space<vmem>>, vector<2x32xf32>
    tpu.vector_store %arg14[%c0_138, %c928], %259 {strides = array<i32>} : memref<2x3136xf32, #tpu.memory_space<vmem>>, vector<2x32xf32>,
    %261 = vector.extract_strided_slice %142 {offsets = [58, 0], sizes = [2, 32], strides = [1, 1]} : vector<98x32xf32> to vector<2x32xf32>
    %c0_139 = arith.constant 0 : index
    %c2496 = arith.constant 2496 : index
    %262 = vector.load %arg14[%c0_139, %c2496] : memref<2x3136xf32, #tpu.memory_space<vmem>>, vector<2x32xf32>
    tpu.vector_store %arg14[%c0_139, %c2496], %261 {strides = array<i32>} : memref<2x3136xf32, #tpu.memory_space<vmem>>, vector<2x32xf32>,
    %263 = vector.extract_strided_slice %7 {offsets = [60, 0], sizes = [2, 32], strides = [1, 1]} : vector<98x32xf32> to vector<2x32xf32>
    %c0_140 = arith.constant 0 : index
    %c960 = arith.constant 960 : index
    %264 = vector.load %arg14[%c0_140, %c960] : memref<2x3136xf32, #tpu.memory_space<vmem>>, vector<2x32xf32>
    tpu.vector_store %arg14[%c0_140, %c960], %263 {strides = array<i32>} : memref<2x3136xf32, #tpu.memory_space<vmem>>, vector<2x32xf32>,
    %265 = vector.extract_strided_slice %142 {offsets = [60, 0], sizes = [2, 32], strides = [1, 1]} : vector<98x32xf32> to vector<2x32xf32>
    %c0_141 = arith.constant 0 : index
    %c2528 = arith.constant 2528 : index
    %266 = vector.load %arg14[%c0_141, %c2528] : memref<2x3136xf32, #tpu.memory_space<vmem>>, vector<2x32xf32>
    tpu.vector_store %arg14[%c0_141, %c2528], %265 {strides = array<i32>} : memref<2x3136xf32, #tpu.memory_space<vmem>>, vector<2x32xf32>,
    %267 = vector.extract_strided_slice %7 {offsets = [62, 0], sizes = [2, 32], strides = [1, 1]} : vector<98x32xf32> to vector<2x32xf32>
    %c0_142 = arith.constant 0 : index
    %c992 = arith.constant 992 : index
    %268 = vector.load %arg14[%c0_142, %c992] : memref<2x3136xf32, #tpu.memory_space<vmem>>, vector<2x32xf32>
    tpu.vector_store %arg14[%c0_142, %c992], %267 {strides = array<i32>} : memref<2x3136xf32, #tpu.memory_space<vmem>>, vector<2x32xf32>,
    %269 = vector.extract_strided_slice %142 {offsets = [62, 0], sizes = [2, 32], strides = [1, 1]} : vector<98x32xf32> to vector<2x32xf32>
    %c0_143 = arith.constant 0 : index
    %c2560 = arith.constant 2560 : index
    %270 = vector.load %arg14[%c0_143, %c2560] : memref<2x3136xf32, #tpu.memory_space<vmem>>, vector<2x32xf32>
    tpu.vector_store %arg14[%c0_143, %c2560], %269 {strides = array<i32>} : memref<2x3136xf32, #tpu.memory_space<vmem>>, vector<2x32xf32>,
    %271 = vector.extract_strided_slice %7 {offsets = [64, 0], sizes = [2, 32], strides = [1, 1]} : vector<98x32xf32> to vector<2x32xf32>
    %c0_144 = arith.constant 0 : index
    %c1024 = arith.constant 1024 : index
    %272 = vector.load %arg14[%c0_144, %c1024] : memref<2x3136xf32, #tpu.memory_space<vmem>>, vector<2x32xf32>
    tpu.vector_store %arg14[%c0_144, %c1024], %271 {strides = array<i32>} : memref<2x3136xf32, #tpu.memory_space<vmem>>, vector<2x32xf32>,
    %273 = vector.extract_strided_slice %142 {offsets = [64, 0], sizes = [2, 32], strides = [1, 1]} : vector<98x32xf32> to vector<2x32xf32>
    %c0_145 = arith.constant 0 : index
    %c2592 = arith.constant 2592 : index
    %274 = vector.load %arg14[%c0_145, %c2592] : memref<2x3136xf32, #tpu.memory_space<vmem>>, vector<2x32xf32>
    tpu.vector_store %arg14[%c0_145, %c2592], %273 {strides = array<i32>} : memref<2x3136xf32, #tpu.memory_space<vmem>>, vector<2x32xf32>,
    %275 = vector.extract_strided_slice %7 {offsets = [66, 0], sizes = [2, 32], strides = [1, 1]} : vector<98x32xf32> to vector<2x32xf32>
    %c0_146 = arith.constant 0 : index
    %c1056 = arith.constant 1056 : index
    %276 = vector.load %arg14[%c0_146, %c1056] : memref<2x3136xf32, #tpu.memory_space<vmem>>, vector<2x32xf32>
    tpu.vector_store %arg14[%c0_146, %c1056], %275 {strides = array<i32>} : memref<2x3136xf32, #tpu.memory_space<vmem>>, vector<2x32xf32>,
    %277 = vector.extract_strided_slice %142 {offsets = [66, 0], sizes = [2, 32], strides = [1, 1]} : vector<98x32xf32> to vector<2x32xf32>
    %c0_147 = arith.constant 0 : index
    %c2624 = arith.constant 2624 : index
    %278 = vector.load %arg14[%c0_147, %c2624] : memref<2x3136xf32, #tpu.memory_space<vmem>>, vector<2x32xf32>
    tpu.vector_store %arg14[%c0_147, %c2624], %277 {strides = array<i32>} : memref<2x3136xf32, #tpu.memory_space<vmem>>, vector<2x32xf32>,
    %279 = vector.extract_strided_slice %7 {offsets = [68, 0], sizes = [2, 32], strides = [1, 1]} : vector<98x32xf32> to vector<2x32xf32>
    %c0_148 = arith.constant 0 : index
    %c1088 = arith.constant 1088 : index
    %280 = vector.load %arg14[%c0_148, %c1088] : memref<2x3136xf32, #tpu.memory_space<vmem>>, vector<2x32xf32>
    tpu.vector_store %arg14[%c0_148, %c1088], %279 {strides = array<i32>} : memref<2x3136xf32, #tpu.memory_space<vmem>>, vector<2x32xf32>,
    %281 = vector.extract_strided_slice %142 {offsets = [68, 0], sizes = [2, 32], strides = [1, 1]} : vector<98x32xf32> to vector<2x32xf32>
    %c0_149 = arith.constant 0 : index
    %c2656 = arith.constant 2656 : index
    %282 = vector.load %arg14[%c0_149, %c2656] : memref<2x3136xf32, #tpu.memory_space<vmem>>, vector<2x32xf32>
    tpu.vector_store %arg14[%c0_149, %c2656], %281 {strides = array<i32>} : memref<2x3136xf32, #tpu.memory_space<vmem>>, vector<2x32xf32>,
    %283 = vector.extract_strided_slice %7 {offsets = [70, 0], sizes = [2, 32], strides = [1, 1]} : vector<98x32xf32> to vector<2x32xf32>
    %c0_150 = arith.constant 0 : index
    %c1120 = arith.constant 1120 : index
    %284 = vector.load %arg14[%c0_150, %c1120] : memref<2x3136xf32, #tpu.memory_space<vmem>>, vector<2x32xf32>
    tpu.vector_store %arg14[%c0_150, %c1120], %283 {strides = array<i32>} : memref<2x3136xf32, #tpu.memory_space<vmem>>, vector<2x32xf32>,
    %285 = vector.extract_strided_slice %142 {offsets = [70, 0], sizes = [2, 32], strides = [1, 1]} : vector<98x32xf32> to vector<2x32xf32>
    %c0_151 = arith.constant 0 : index
    %c2688 = arith.constant 2688 : index
    %286 = vector.load %arg14[%c0_151, %c2688] : memref<2x3136xf32, #tpu.memory_space<vmem>>, vector<2x32xf32>
    tpu.vector_store %arg14[%c0_151, %c2688], %285 {strides = array<i32>} : memref<2x3136xf32, #tpu.memory_space<vmem>>, vector<2x32xf32>,
    %287 = vector.extract_strided_slice %7 {offsets = [72, 0], sizes = [2, 32], strides = [1, 1]} : vector<98x32xf32> to vector<2x32xf32>
    %c0_152 = arith.constant 0 : index
    %c1152 = arith.constant 1152 : index
    %288 = vector.load %arg14[%c0_152, %c1152] : memref<2x3136xf32, #tpu.memory_space<vmem>>, vector<2x32xf32>
    tpu.vector_store %arg14[%c0_152, %c1152], %287 {strides = array<i32>} : memref<2x3136xf32, #tpu.memory_space<vmem>>, vector<2x32xf32>,
    %289 = vector.extract_strided_slice %142 {offsets = [72, 0], sizes = [2, 32], strides = [1, 1]} : vector<98x32xf32> to vector<2x32xf32>
    %c0_153 = arith.constant 0 : index
    %c2720 = arith.constant 2720 : index
    %290 = vector.load %arg14[%c0_153, %c2720] : memref<2x3136xf32, #tpu.memory_space<vmem>>, vector<2x32xf32>
    tpu.vector_store %arg14[%c0_153, %c2720], %289 {strides = array<i32>} : memref<2x3136xf32, #tpu.memory_space<vmem>>, vector<2x32xf32>,
    %291 = vector.extract_strided_slice %7 {offsets = [74, 0], sizes = [2, 32], strides = [1, 1]} : vector<98x32xf32> to vector<2x32xf32>
    %c0_154 = arith.constant 0 : index
    %c1184 = arith.constant 1184 : index
    %292 = vector.load %arg14[%c0_154, %c1184] : memref<2x3136xf32, #tpu.memory_space<vmem>>, vector<2x32xf32>
    tpu.vector_store %arg14[%c0_154, %c1184], %291 {strides = array<i32>} : memref<2x3136xf32, #tpu.memory_space<vmem>>, vector<2x32xf32>,
    %293 = vector.extract_strided_slice %142 {offsets = [74, 0], sizes = [2, 32], strides = [1, 1]} : vector<98x32xf32> to vector<2x32xf32>
    %c0_155 = arith.constant 0 : index
    %c2752 = arith.constant 2752 : index
    %294 = vector.load %arg14[%c0_155, %c2752] : memref<2x3136xf32, #tpu.memory_space<vmem>>, vector<2x32xf32>
    tpu.vector_store %arg14[%c0_155, %c2752], %293 {strides = array<i32>} : memref<2x3136xf32, #tpu.memory_space<vmem>>, vector<2x32xf32>,
    %295 = vector.extract_strided_slice %7 {offsets = [76, 0], sizes = [2, 32], strides = [1, 1]} : vector<98x32xf32> to vector<2x32xf32>
    %c0_156 = arith.constant 0 : index
    %c1216 = arith.constant 1216 : index
    %296 = vector.load %arg14[%c0_156, %c1216] : memref<2x3136xf32, #tpu.memory_space<vmem>>, vector<2x32xf32>
    tpu.vector_store %arg14[%c0_156, %c1216], %295 {strides = array<i32>} : memref<2x3136xf32, #tpu.memory_space<vmem>>, vector<2x32xf32>,
    %297 = vector.extract_strided_slice %142 {offsets = [76, 0], sizes = [2, 32], strides = [1, 1]} : vector<98x32xf32> to vector<2x32xf32>
    %c0_157 = arith.constant 0 : index
    %c2784 = arith.constant 2784 : index
    %298 = vector.load %arg14[%c0_157, %c2784] : memref<2x3136xf32, #tpu.memory_space<vmem>>, vector<2x32xf32>
    tpu.vector_store %arg14[%c0_157, %c2784], %297 {strides = array<i32>} : memref<2x3136xf32, #tpu.memory_space<vmem>>, vector<2x32xf32>,
    %299 = vector.extract_strided_slice %7 {offsets = [78, 0], sizes = [2, 32], strides = [1, 1]} : vector<98x32xf32> to vector<2x32xf32>
    %c0_158 = arith.constant 0 : index
    %c1248 = arith.constant 1248 : index
    %300 = vector.load %arg14[%c0_158, %c1248] : memref<2x3136xf32, #tpu.memory_space<vmem>>, vector<2x32xf32>
    tpu.vector_store %arg14[%c0_158, %c1248], %299 {strides = array<i32>} : memref<2x3136xf32, #tpu.memory_space<vmem>>, vector<2x32xf32>,
    %301 = vector.extract_strided_slice %142 {offsets = [78, 0], sizes = [2, 32], strides = [1, 1]} : vector<98x32xf32> to vector<2x32xf32>
    %c0_159 = arith.constant 0 : index
    %c2816 = arith.constant 2816 : index
    %302 = vector.load %arg14[%c0_159, %c2816] : memref<2x3136xf32, #tpu.memory_space<vmem>>, vector<2x32xf32>
    tpu.vector_store %arg14[%c0_159, %c2816], %301 {strides = array<i32>} : memref<2x3136xf32, #tpu.memory_space<vmem>>, vector<2x32xf32>,
    %303 = vector.extract_strided_slice %7 {offsets = [80, 0], sizes = [2, 32], strides = [1, 1]} : vector<98x32xf32> to vector<2x32xf32>
    %c0_160 = arith.constant 0 : index
    %c1280 = arith.constant 1280 : index
    %304 = vector.load %arg14[%c0_160, %c1280] : memref<2x3136xf32, #tpu.memory_space<vmem>>, vector<2x32xf32>
    tpu.vector_store %arg14[%c0_160, %c1280], %303 {strides = array<i32>} : memref<2x3136xf32, #tpu.memory_space<vmem>>, vector<2x32xf32>,
    %305 = vector.extract_strided_slice %142 {offsets = [80, 0], sizes = [2, 32], strides = [1, 1]} : vector<98x32xf32> to vector<2x32xf32>
    %c0_161 = arith.constant 0 : index
    %c2848 = arith.constant 2848 : index
    %306 = vector.load %arg14[%c0_161, %c2848] : memref<2x3136xf32, #tpu.memory_space<vmem>>, vector<2x32xf32>
    tpu.vector_store %arg14[%c0_161, %c2848], %305 {strides = array<i32>} : memref<2x3136xf32, #tpu.memory_space<vmem>>, vector<2x32xf32>,
    %307 = vector.extract_strided_slice %7 {offsets = [82, 0], sizes = [2, 32], strides = [1, 1]} : vector<98x32xf32> to vector<2x32xf32>
    %c0_162 = arith.constant 0 : index
    %c1312 = arith.constant 1312 : index
    %308 = vector.load %arg14[%c0_162, %c1312] : memref<2x3136xf32, #tpu.memory_space<vmem>>, vector<2x32xf32>
    tpu.vector_store %arg14[%c0_162, %c1312], %307 {strides = array<i32>} : memref<2x3136xf32, #tpu.memory_space<vmem>>, vector<2x32xf32>,
    %309 = vector.extract_strided_slice %142 {offsets = [82, 0], sizes = [2, 32], strides = [1, 1]} : vector<98x32xf32> to vector<2x32xf32>
    %c0_163 = arith.constant 0 : index
    %c2880 = arith.constant 2880 : index
    %310 = vector.load %arg14[%c0_163, %c2880] : memref<2x3136xf32, #tpu.memory_space<vmem>>, vector<2x32xf32>
    tpu.vector_store %arg14[%c0_163, %c2880], %309 {strides = array<i32>} : memref<2x3136xf32, #tpu.memory_space<vmem>>, vector<2x32xf32>,
    %311 = vector.extract_strided_slice %7 {offsets = [84, 0], sizes = [2, 32], strides = [1, 1]} : vector<98x32xf32> to vector<2x32xf32>
    %c0_164 = arith.constant 0 : index
    %c1344 = arith.constant 1344 : index
    %312 = vector.load %arg14[%c0_164, %c1344] : memref<2x3136xf32, #tpu.memory_space<vmem>>, vector<2x32xf32>
    tpu.vector_store %arg14[%c0_164, %c1344], %311 {strides = array<i32>} : memref<2x3136xf32, #tpu.memory_space<vmem>>, vector<2x32xf32>,
    %313 = vector.extract_strided_slice %142 {offsets = [84, 0], sizes = [2, 32], strides = [1, 1]} : vector<98x32xf32> to vector<2x32xf32>
    %c0_165 = arith.constant 0 : index
    %c2912 = arith.constant 2912 : index
    %314 = vector.load %arg14[%c0_165, %c2912] : memref<2x3136xf32, #tpu.memory_space<vmem>>, vector<2x32xf32>
    tpu.vector_store %arg14[%c0_165, %c2912], %313 {strides = array<i32>} : memref<2x3136xf32, #tpu.memory_space<vmem>>, vector<2x32xf32>,
    %315 = vector.extract_strided_slice %7 {offsets = [86, 0], sizes = [2, 32], strides = [1, 1]} : vector<98x32xf32> to vector<2x32xf32>
    %c0_166 = arith.constant 0 : index
    %c1376 = arith.constant 1376 : index
    %316 = vector.load %arg14[%c0_166, %c1376] : memref<2x3136xf32, #tpu.memory_space<vmem>>, vector<2x32xf32>
    tpu.vector_store %arg14[%c0_166, %c1376], %315 {strides = array<i32>} : memref<2x3136xf32, #tpu.memory_space<vmem>>, vector<2x32xf32>,
    %317 = vector.extract_strided_slice %142 {offsets = [86, 0], sizes = [2, 32], strides = [1, 1]} : vector<98x32xf32> to vector<2x32xf32>
    %c0_167 = arith.constant 0 : index
    %c2944 = arith.constant 2944 : index
    %318 = vector.load %arg14[%c0_167, %c2944] : memref<2x3136xf32, #tpu.memory_space<vmem>>, vector<2x32xf32>
    tpu.vector_store %arg14[%c0_167, %c2944], %317 {strides = array<i32>} : memref<2x3136xf32, #tpu.memory_space<vmem>>, vector<2x32xf32>,
    %319 = vector.extract_strided_slice %7 {offsets = [88, 0], sizes = [2, 32], strides = [1, 1]} : vector<98x32xf32> to vector<2x32xf32>
    %c0_168 = arith.constant 0 : index
    %c1408 = arith.constant 1408 : index
    %320 = vector.load %arg14[%c0_168, %c1408] : memref<2x3136xf32, #tpu.memory_space<vmem>>, vector<2x32xf32>
    tpu.vector_store %arg14[%c0_168, %c1408], %319 {strides = array<i32>} : memref<2x3136xf32, #tpu.memory_space<vmem>>, vector<2x32xf32>,
    %321 = vector.extract_strided_slice %142 {offsets = [88, 0], sizes = [2, 32], strides = [1, 1]} : vector<98x32xf32> to vector<2x32xf32>
    %c0_169 = arith.constant 0 : index
    %c2976 = arith.constant 2976 : index
    %322 = vector.load %arg14[%c0_169, %c2976] : memref<2x3136xf32, #tpu.memory_space<vmem>>, vector<2x32xf32>
    tpu.vector_store %arg14[%c0_169, %c2976], %321 {strides = array<i32>} : memref<2x3136xf32, #tpu.memory_space<vmem>>, vector<2x32xf32>,
    %323 = vector.extract_strided_slice %7 {offsets = [90, 0], sizes = [2, 32], strides = [1, 1]} : vector<98x32xf32> to vector<2x32xf32>
    %c0_170 = arith.constant 0 : index
    %c1440 = arith.constant 1440 : index
    %324 = vector.load %arg14[%c0_170, %c1440] : memref<2x3136xf32, #tpu.memory_space<vmem>>, vector<2x32xf32>
    tpu.vector_store %arg14[%c0_170, %c1440], %323 {strides = array<i32>} : memref<2x3136xf32, #tpu.memory_space<vmem>>, vector<2x32xf32>,
    %325 = vector.extract_strided_slice %142 {offsets = [90, 0], sizes = [2, 32], strides = [1, 1]} : vector<98x32xf32> to vector<2x32xf32>
    %c0_171 = arith.constant 0 : index
    %c3008 = arith.constant 3008 : index
    %326 = vector.load %arg14[%c0_171, %c3008] : memref<2x3136xf32, #tpu.memory_space<vmem>>, vector<2x32xf32>
    tpu.vector_store %arg14[%c0_171, %c3008], %325 {strides = array<i32>} : memref<2x3136xf32, #tpu.memory_space<vmem>>, vector<2x32xf32>,
    %327 = vector.extract_strided_slice %7 {offsets = [92, 0], sizes = [2, 32], strides = [1, 1]} : vector<98x32xf32> to vector<2x32xf32>
    %c0_172 = arith.constant 0 : index
    %c1472 = arith.constant 1472 : index
    %328 = vector.load %arg14[%c0_172, %c1472] : memref<2x3136xf32, #tpu.memory_space<vmem>>, vector<2x32xf32>
    tpu.vector_store %arg14[%c0_172, %c1472], %327 {strides = array<i32>} : memref<2x3136xf32, #tpu.memory_space<vmem>>, vector<2x32xf32>,
    %329 = vector.extract_strided_slice %142 {offsets = [92, 0], sizes = [2, 32], strides = [1, 1]} : vector<98x32xf32> to vector<2x32xf32>
    %c0_173 = arith.constant 0 : index
    %c3040 = arith.constant 3040 : index
    %330 = vector.load %arg14[%c0_173, %c3040] : memref<2x3136xf32, #tpu.memory_space<vmem>>, vector<2x32xf32>
    tpu.vector_store %arg14[%c0_173, %c3040], %329 {strides = array<i32>} : memref<2x3136xf32, #tpu.memory_space<vmem>>, vector<2x32xf32>,
    %331 = vector.extract_strided_slice %7 {offsets = [94, 0], sizes = [2, 32], strides = [1, 1]} : vector<98x32xf32> to vector<2x32xf32>
    %c0_174 = arith.constant 0 : index
    %c1504 = arith.constant 1504 : index
    %332 = vector.load %arg14[%c0_174, %c1504] : memref<2x3136xf32, #tpu.memory_space<vmem>>, vector<2x32xf32>
    tpu.vector_store %arg14[%c0_174, %c1504], %331 {strides = array<i32>} : memref<2x3136xf32, #tpu.memory_space<vmem>>, vector<2x32xf32>,
    %333 = vector.extract_strided_slice %142 {offsets = [94, 0], sizes = [2, 32], strides = [1, 1]} : vector<98x32xf32> to vector<2x32xf32>
    %c0_175 = arith.constant 0 : index
    %c3072 = arith.constant 3072 : index
    %334 = vector.load %arg14[%c0_175, %c3072] : memref<2x3136xf32, #tpu.memory_space<vmem>>, vector<2x32xf32>
    tpu.vector_store %arg14[%c0_175, %c3072], %333 {strides = array<i32>} : memref<2x3136xf32, #tpu.memory_space<vmem>>, vector<2x32xf32>,
    %335 = vector.extract_strided_slice %7 {offsets = [96, 0], sizes = [2, 32], strides = [1, 1]} : vector<98x32xf32> to vector<2x32xf32>
    %c0_176 = arith.constant 0 : index
    %c1536 = arith.constant 1536 : index
    %336 = vector.load %arg14[%c0_176, %c1536] : memref<2x3136xf32, #tpu.memory_space<vmem>>, vector<2x32xf32>
    tpu.vector_store %arg14[%c0_176, %c1536], %335 {strides = array<i32>} : memref<2x3136xf32, #tpu.memory_space<vmem>>, vector<2x32xf32>,
    %337 = vector.extract_strided_slice %142 {offsets = [96, 0], sizes = [2, 32], strides = [1, 1]} : vector<98x32xf32> to vector<2x32xf32>
    %c0_177 = arith.constant 0 : index
    %c3104 = arith.constant 3104 : index
    %338 = vector.load %arg14[%c0_177, %c3104] : memref<2x3136xf32, #tpu.memory_space<vmem>>, vector<2x32xf32>
    tpu.vector_store %arg14[%c0_177, %c3104], %337 {strides = array<i32>} : memref<2x3136xf32, #tpu.memory_space<vmem>>, vector<2x32xf32>,
    %c0_178 = arith.constant 0 : index
    %c0_179 = arith.constant 0 : index
    %339 = vector.load %arg14[%c0_178, %c0_179] : memref<2x3136xf32, #tpu.memory_space<vmem>>, vector<2x3136xf32>
    %c0_180 = arith.constant 0 : index
    %c0_181 = arith.constant 0 : index
    %340 = vector.load %arg6[%c0_180, %c0_181] : memref<3136x128xf32, #tpu.memory_space<vmem>>, vector<3136x128xf32>
    %cst_182 = arith.constant dense<0.000000e+00> : vector<2x128xf32>
    %341 = tpu.matmul %339, %340, %cst_182 {dimension_numbers = #tpu.dot_dimension_numbers<[1], [0], [0], [1], [0, 0, 1, 1], [], []>} : vector<2x3136xf32>, vector<3136x128xf32>, vector<2x128xf32> -> vector<2x128xf32>
    %c0_183 = arith.constant 0 : index
    %c0_184 = arith.constant 0 : index
    %342 = vector.load %arg7[%c0_183, %c0_184] : memref<1x128xf32, #tpu.memory_space<vmem>>, vector<1x128xf32>
    %343 = vector.broadcast %342 : vector<1x128xf32> to vector<2x128xf32>
    %344 = arith.addf %341, %343 : vector<2x128xf32>
    %cst_185 = arith.constant 0.000000e+00 : f32
    %345 = vector.broadcast %cst_185 : f32 to vector<2x128xf32>
    %346 = arith.maximumf %344, %345 : vector<2x128xf32>
    %c0_186 = arith.constant 0 : index
    %c0_187 = arith.constant 0 : index
    %347 = vector.load %arg8[%c0_186, %c0_187] : memref<128x64xf32, #tpu.memory_space<vmem>>, vector<128x64xf32>
    %cst_188 = arith.constant dense<0.000000e+00> : vector<2x64xf32>
    %348 = tpu.matmul %346, %347, %cst_188 {dimension_numbers = #tpu.dot_dimension_numbers<[1], [0], [0], [1], [0, 0, 1, 1], [], []>} : vector<2x128xf32>, vector<128x64xf32>, vector<2x64xf32> -> vector<2x64xf32>
    %c0_189 = arith.constant 0 : index
    %c0_190 = arith.constant 0 : index
    %349 = vector.load %arg9[%c0_189, %c0_190] : memref<1x64xf32, #tpu.memory_space<vmem>>, vector<1x64xf32>
    %350 = vector.broadcast %349 : vector<1x64xf32> to vector<2x64xf32>
    %351 = arith.addf %348, %350 : vector<2x64xf32>
    %cst_191 = arith.constant 0.000000e+00 : f32
    %352 = vector.broadcast %cst_191 : f32 to vector<2x64xf32>
    %353 = arith.maximumf %351, %352 : vector<2x64xf32>
    %c0_192 = arith.constant 0 : index
    %c0_193 = arith.constant 0 : index
    %354 = vector.load %arg10[%c0_192, %c0_193] : memref<64x3xf32, #tpu.memory_space<vmem>>, vector<64x3xf32>
    %cst_194 = arith.constant dense<0.000000e+00> : vector<2x3xf32>
    %355 = tpu.matmul %353, %354, %cst_194 {dimension_numbers = #tpu.dot_dimension_numbers<[1], [0], [0], [1], [0, 0, 1, 1], [], []>} : vector<2x64xf32>, vector<64x3xf32>, vector<2x3xf32> -> vector<2x3xf32>
    %c0_195 = arith.constant 0 : index
    %c0_196 = arith.constant 0 : index
    %356 = vector.load %arg11[%c0_195, %c0_196] : memref<1x3xf32, #tpu.memory_space<vmem>>, vector<1x3xf32>
    %357 = vector.broadcast %356 : vector<1x3xf32> to vector<2x3xf32>
    %358 = arith.addf %355, %357 : vector<2x3xf32>
    %359 = vector.extract_strided_slice %358 {offsets = [0, 0], sizes = [2, 2], strides = [1, 1]} : vector<2x3xf32> to vector<2x2xf32>
    %c0_197 = arith.constant 0 : index
    %c0_198 = arith.constant 0 : index
    %360 = vector.load %arg12[%c0_197, %c0_198] : memref<2x3xf32, #tpu.memory_space<vmem>>, vector<2x2xf32>
    tpu.vector_store %arg12[%c0_197, %c0_198], %359 {strides = array<i32>} : memref<2x3xf32, #tpu.memory_space<vmem>>, vector<2x2xf32>,
    %361 = vector.extract_strided_slice %358 {offsets = [0, 2], sizes = [2, 1], strides = [1, 1]} : vector<2x3xf32> to vector<2x1xf32>
    %cst_199 = arith.constant 0.000000e+00 : f32
    %362 = vector.broadcast %cst_199 : f32 to vector<2x1xf32>
    %363 = arith.subf %362, %361 : vector<2x1xf32>
    %364 = math.exp %363 : vector<2x1xf32>
    %cst_200 = arith.constant 1.000000e+00 : f32
    %365 = vector.broadcast %cst_200 : f32 to vector<2x1xf32>
    %366 = arith.addf %365, %364 : vector<2x1xf32>
    %cst_201 = arith.constant 1.000000e+00 : f32
    %367 = vector.broadcast %cst_201 : f32 to vector<2x1xf32>
    %368 = arith.divf %367, %366 : vector<2x1xf32>
    %c0_202 = arith.constant 0 : index
    %c2_203 = arith.constant 2 : index
    %369 = vector.load %arg12[%c0_202, %c2_203] : memref<2x3xf32, #tpu.memory_space<vmem>>, vector<2x1xf32>
    tpu.vector_store %arg12[%c0_202, %c2_203], %368 {strides = array<i32>} : memref<2x3xf32, #tpu.memory_space<vmem>>, vector<2x1xf32>,
    return
  }
}

</mosaic_0001>

<llo_original>
// kernel: rgc2sc_forward.1
$region0: #{rgc2sc_forward.1}
  #allocation0 [shape = 'u32[]', space=smem, size = 0x4, offset = 0x4, fixed_abs, tag = 'smem constant byte address 0x4 - core index']
  #allocation1 [shape = 'u32[144,128]{1,0:T(1,128)}', space=vmem, size = 0x12000, scoped, tag = 'internal scratch']
  #allocation2 [shape = 'f32[98,400]{1,0:T(8,128)}', space=vmem, size = 0x34000, scoped, tag = 'scratch operand']
  #allocation3 [shape = 'f32[2,3136]{1,0:T(2,128)}', space=vmem, size = 0x6400, scoped, tag = 'scratch operand']
  %s0 = inlined_call_operand.vmem [shape: f32[98,34], index: 0, kind: input, shape index: {}]
  %s1 = inlined_call_operand.vmem [shape: f32[98,25], index: 1, kind: input, shape index: {}]
  %s2 = inlined_call_operand.vmem [shape: f32[34,32], index: 2, kind: input, shape index: {}]
  %s3 = inlined_call_operand.vmem [shape: f32[1,32], index: 3, kind: input, shape index: {}]
  %s4 = inlined_call_operand.vmem [shape: f32[400,32], index: 4, kind: input, shape index: {}]
  %s5 = inlined_call_operand.vmem [shape: f32[1,32], index: 5, kind: input, shape index: {}]
  %s6 = inlined_call_operand.vmem [shape: f32[3136,128], index: 6, kind: input, shape index: {}]
  %s7 = inlined_call_operand.vmem [shape: f32[1,128], index: 7, kind: input, shape index: {}]
  %s8 = inlined_call_operand.vmem [shape: f32[128,64], index: 8, kind: input, shape index: {}]
  %s9 = inlined_call_operand.vmem [shape: f32[1,64], index: 9, kind: input, shape index: {}]
  %s10 = inlined_call_operand.vmem [shape: f32[64,3], index: 10, kind: input, shape index: {}]
  %s11 = inlined_call_operand.vmem [shape: f32[1,3], index: 11, kind: input, shape index: {}]
  %s12 = inlined_call_operand.vmem [shape: f32[2,3], index: 12, kind: output, shape index: {}]
  %s13 = sld [smem:[#allocation0]]
  $region58: #{rgc2sc_forward.1} parent=0
    _
  %s15 = ssub.s32 1, %s13
  %s16 = scalar_select 0, %s15, %s13
  // Predicated region
  $region2: #{rgc2sc_forward.1} parent=0 // pred_check
    _
  $region3: #{rgc2sc_forward.1} parent=0 // pred_check_branch
    %18 = sbr.rel (0) target = $region5
  $region4: #{rgc2sc_forward.1} parent=0 // pred_region
    _
  $region5: #{rgc2sc_forward.1} parent=0 // pred_fallthru
    _
  // Predicated region
  $region6: #{rgc2sc_forward.1} parent=0 // pred_check
    _
  $region7: #{rgc2sc_forward.1} parent=0 // pred_check_branch
    %20 = sbr.rel (0) target = $region9
  $region8: #{rgc2sc_forward.1} parent=0 // pred_region
    _
  $region9: #{rgc2sc_forward.1} parent=0 // pred_fallthru
    _
  // Predicated region
  $region10: #{rgc2sc_forward.1} parent=0 // pred_check
    _
  $region11: #{rgc2sc_forward.1} parent=0 // pred_check_branch
    %22 = sbr.rel (0) target = $region13
  $region12: #{rgc2sc_forward.1} parent=0 // pred_region
    _
  $region13: #{rgc2sc_forward.1} parent=0 // pred_fallthru
    _
  // Predicated region
  $region14: #{rgc2sc_forward.1} parent=0 // pred_check
    _
  $region15: #{rgc2sc_forward.1} parent=0 // pred_check_branch
    %24 = sbr.rel (0) target = $region17
  $region16: #{rgc2sc_forward.1} parent=0 // pred_region
    _
  $region17: #{rgc2sc_forward.1} parent=0 // pred_fallthru
    _
  // Predicated region
  $region18: #{rgc2sc_forward.1} parent=0 // pred_check
    _
  $region19: #{rgc2sc_forward.1} parent=0 // pred_check_branch
    %26 = sbr.rel (0) target = $region21
  $region20: #{rgc2sc_forward.1} parent=0 // pred_region
    _
  $region21: #{rgc2sc_forward.1} parent=0 // pred_fallthru
    _
  // Predicated region
  $region22: #{rgc2sc_forward.1} parent=0 // pred_check
    _
  $region23: #{rgc2sc_forward.1} parent=0 // pred_check_branch
    %28 = sbr.rel (0) target = $region25
  $region24: #{rgc2sc_forward.1} parent=0 // pred_region
    _
  $region25: #{rgc2sc_forward.1} parent=0 // pred_fallthru
    _
  // Predicated region
  $region26: #{rgc2sc_forward.1} parent=0 // pred_check
    _
  $region27: #{rgc2sc_forward.1} parent=0 // pred_check_branch
    %30 = sbr.rel (0) target = $region29
  $region28: #{rgc2sc_forward.1} parent=0 // pred_region
    _
  $region29: #{rgc2sc_forward.1} parent=0 // pred_fallthru
    _
  // Predicated region
  $region30: #{rgc2sc_forward.1} parent=0 // pred_check
    _
  $region31: #{rgc2sc_forward.1} parent=0 // pred_check_branch
    %32 = sbr.rel (0) target = $region33
  $region32: #{rgc2sc_forward.1} parent=0 // pred_region
    _
  $region33: #{rgc2sc_forward.1} parent=0 // pred_fallthru
    _
  // Predicated region
  $region34: #{rgc2sc_forward.1} parent=0 // pred_check
    _
  $region35: #{rgc2sc_forward.1} parent=0 // pred_check_branch
    %34 = sbr.rel (0) target = $region37
  $region36: #{rgc2sc_forward.1} parent=0 // pred_region
    _
  $region37: #{rgc2sc_forward.1} parent=0 // pred_fallthru
    _
  // Predicated region
  $region38: #{rgc2sc_forward.1} parent=0 // pred_check
    _
  $region39: #{rgc2sc_forward.1} parent=0 // pred_check_branch
    %36 = sbr.rel (0) target = $region41
  $region40: #{rgc2sc_forward.1} parent=0 // pred_region
    _
  $region41: #{rgc2sc_forward.1} parent=0 // pred_fallthru
    _
  // Predicated region
  $region42: #{rgc2sc_forward.1} parent=0 // pred_check
    _
  $region43: #{rgc2sc_forward.1} parent=0 // pred_check_branch
    %38 = sbr.rel (0) target = $region45
  $region44: #{rgc2sc_forward.1} parent=0 // pred_region
    _
  $region45: #{rgc2sc_forward.1} parent=0 // pred_fallthru
    _
  // Predicated region
  $region46: #{rgc2sc_forward.1} parent=0 // pred_check
    _
  $region47: #{rgc2sc_forward.1} parent=0 // pred_check_branch
    %40 = sbr.rel (0) target = $region49
  $region48: #{rgc2sc_forward.1} parent=0 // pred_region
    _
  $region49: #{rgc2sc_forward.1} parent=0 // pred_fallthru
    _
  %v41 = vld [vmem:[%s0] sm:$0xff]
  %v42 = vld [vmem:[%s0 + $0x8] sm:$0xff]
  %v43 = vld [vmem:[%s0 + $0x10] sm:$0xff]
  %v44 = vld [vmem:[%s0 + $0x18] sm:$0xff]
  %v45 = vld [vmem:[%s0 + $0x20] sm:$0xff]
  %v46 = vld [vmem:[%s0 + $0x28] sm:$0xff]
  %v47 = vld [vmem:[%s0 + $0x30] sm:$0xff]
  %v48 = vld [vmem:[%s0 + $0x38] sm:$0xff]
  %v49 = vld [vmem:[%s0 + $0x40] sm:$0xff]
  %v50 = vld [vmem:[%s0 + $0x48] sm:$0xff]
  %v51 = vld [vmem:[%s0 + $0x50] sm:$0xff]
  %v52 = vld [vmem:[%s0 + $0x58] sm:$0xff]
  %v53 = vld [vmem:[%s0 + $0x60] sm:$0x3]
  %v54 = vld [vmem:[%s2] sm:$0xff]
  %v55 = vld [vmem:[%s2 + $0x8] sm:$0xff]
  %v56 = vld [vmem:[%s2 + $0x10] sm:$0xff]
  %v57 = vld [vmem:[%s2 + $0x18] sm:$0xff]
  %v58 = vld [vmem:[%s2 + $0x20] sm:$0x3]
  %v59 = vld [vmem:[%s3] sm:$0x1]
  %v61 = vlaneseq
  %v62 = vshrl.u32 %v61, 7
  %v63 = vsub.s32 0, %v62
  %v64 = vrot.slane %v59, %v63
  %vm66 = vcmask 277504
  %v68 = vsel %vm66, %v41, 0
  %v71 = vsel %vm66, %v42, 0
  %v74 = vsel %vm66, %v43, 0
  %v77 = vsel %vm66, %v44, 0
  %v80 = vsel %vm66, %v45, 0
  %v83 = vsel %vm66, %v46, 0
  %v86 = vsel %vm66, %v47, 0
  %v89 = vsel %vm66, %v48, 0
  %v92 = vsel %vm66, %v49, 0
  %v95 = vsel %vm66, %v50, 0
  %v98 = vsel %vm66, %v51, 0
  %v101 = vsel %vm66, %v52, 0
  %v104 = vsel %vm66, %v53, 0
  %vm106 = vcmask 1041408
  %v108 = vsel %vm106, %v58, 0
  %110 = vmatprep.subr.mxu0 0.0
  %111 = vmatpush1.msra.mxu0 %v54
  %112 = vmatprep.subr.mxu0 0.0
  %113 = vmatpush1.msra.mxu0 %v55
  %114 = vmatprep.subr.mxu0 0.0
  %115 = vmatpush1.msra.mxu0 %v56
  %116 = vmatprep.subr.mxu0 0.0
  %117 = vmatpush1.msra.mxu0 %v57
  %118 = vmatprep.subr.mxu0 0.0
  %119 = vmatpush1.msra.mxu0 %v108
  %120 = vmatprep.subr.mxu0 0.0
  %121 = vmatpush1.msra.mxu0 0.0
  %122 = vmatprep.subr.mxu0 0.0
  %123 = vmatpush1.msra.mxu0 0.0
  %124 = vmatprep.subr.mxu0 0.0
  %125 = vmatpush1.msra.mxu0 0.0
  %126 = vmatprep.subr.mxu0 0.0
  %127 = vmatpush1.msra.mxu0 0.0
  %128 = vmatprep.subr.mxu0 0.0
  %129 = vmatpush1.msra.mxu0 0.0
  %130 = vmatprep.subr.mxu0 0.0
  %131 = vmatpush1.msra.mxu0 0.0
  %132 = vmatprep.subr.mxu0 0.0
  %133 = vmatpush1.msra.mxu0 0.0
  %134 = vmatprep.subr.mxu0 0.0
  %135 = vmatpush1.msra.mxu0 0.0
  %136 = vmatprep.subr.mxu0 0.0
  %137 = vmatpush1.msra.mxu0 0.0
  %138 = vmatprep.subr.mxu0 0.0
  %139 = vmatpush1.msra.mxu0 0.0
  %140 = vmatprep.subr.mxu0 0.0
  %141 = vmatpush1.msra.mxu0 0.0
  %142 = vmatprep.subr.mxu0 0.0
  %143 = vmatpush1.msra.mxu0 0.0
  %144 = vmatprep.subr.mxu0 0.0
  %145 = vmatpush1.msra.mxu0 0.0
  %146 = vmatprep.subr.mxu0 0.0
  %147 = vmatpush1.msra.mxu0 0.0
  %148 = vmatprep.subr.mxu0 0.0
  %149 = vmatpush1.msra.mxu0 0.0
  %150 = vmatprep.subr.mxu0 0.0
  %151 = vmatpush1.msra.mxu0 0.0
  %152 = vmatprep.subr.mxu0 0.0
  %153 = vmatpush1.msra.mxu0 0.0
  %154 = vmatprep.subr.mxu0 0.0
  %155 = vmatpush1.msra.mxu0 0.0
  %156 = vmatprep.subr.mxu0 0.0
  %157 = vmatpush1.msra.mxu0 0.0
  %158 = vmatprep.subr.mxu0 0.0
  %159 = vmatpush1.msra.mxu0 0.0
  %160 = vmatprep.subr.mxu0 0.0
  %161 = vmatpush1.msra.mxu0 0.0
  %162 = vmatprep.subr.mxu0 0.0
  %163 = vmatpush1.msra.mxu0 0.0
  %164 = vmatprep.subr.mxu0 0.0
  %165 = vmatpush1.msra.mxu0 0.0
  %166 = vmatprep.subr.mxu0 0.0
  %167 = vmatpush1.msra.mxu0 0.0
  %168 = vmatprep.subr.mxu0 0.0
  %169 = vmatpush1.msra.mxu0 0.0
  %170 = vmatprep.subr.mxu0 0.0
  %171 = vmatpush1.msra.mxu0 0.0
  %172 = vmatprep.subr.mxu0 0.0
  %173 = vmatpush1.msra.mxu0 0.0
  %174 = vmatprep.mubr.f32.mxu0 0.0
  %175 = vmatmul.mubr.f32.gmra.mrb[0].mxu0 %v68
  %v176 = vpop.f32.mrb[0].mxu0
  %v177 = vadd.f32 %v64, %v176
  %v178 = vpop.f32.mrb[0].mxu0
  %179 = vmatprep.mubr.f32.mxu0 0.0
  %180 = vmatmul.mubr.f32.gmra.mrb[0].mxu0 %v71
  %v181 = vpop.f32.mrb[0].mxu0
  %v182 = vadd.f32 %v64, %v181
  %v183 = vpop.f32.mrb[0].mxu0
  %184 = vmatprep.mubr.f32.mxu0 0.0
  %185 = vmatmul.mubr.f32.gmra.mrb[0].mxu0 %v74
  %v186 = vpop.f32.mrb[0].mxu0
  %v187 = vadd.f32 %v64, %v186
  %v188 = vpop.f32.mrb[0].mxu0
  %189 = vmatprep.mubr.f32.mxu0 0.0
  %190 = vmatmul.mubr.f32.gmra.mrb[0].mxu0 %v77
  %v191 = vpop.f32.mrb[0].mxu0
  %v192 = vadd.f32 %v64, %v191
  %v193 = vpop.f32.mrb[0].mxu0
  %194 = vmatprep.mubr.f32.mxu0 0.0
  %195 = vmatmul.mubr.f32.gmra.mrb[0].mxu0 %v80
  %v196 = vpop.f32.mrb[0].mxu0
  %v197 = vadd.f32 %v64, %v196
  %v198 = vpop.f32.mrb[0].mxu0
  %199 = vmatprep.mubr.f32.mxu0 0.0
  %200 = vmatmul.mubr.f32.gmra.mrb[0].mxu0 %v83
  %v201 = vpop.f32.mrb[0].mxu0
  %v202 = vadd.f32 %v64, %v201
  %v203 = vpop.f32.mrb[0].mxu0
  %204 = vmatprep.mubr.f32.mxu0 0.0
  %205 = vmatmul.mubr.f32.gmra.mrb[0].mxu0 %v86
  %v206 = vpop.f32.mrb[0].mxu0
  %v207 = vadd.f32 %v64, %v206
  %v208 = vpop.f32.mrb[0].mxu0
  %209 = vmatprep.mubr.f32.mxu0 0.0
  %210 = vmatmul.mubr.f32.gmra.mrb[0].mxu0 %v89
  %v211 = vpop.f32.mrb[0].mxu0
  %v212 = vadd.f32 %v64, %v211
  %v213 = vpop.f32.mrb[0].mxu0
  %214 = vmatprep.mubr.f32.mxu0 0.0
  %215 = vmatmul.mubr.f32.gmra.mrb[0].mxu0 %v92
  %v216 = vpop.f32.mrb[0].mxu0
  %v217 = vadd.f32 %v64, %v216
  %v218 = vpop.f32.mrb[0].mxu0
  %219 = vmatprep.mubr.f32.mxu0 0.0
  %220 = vmatmul.mubr.f32.gmra.mrb[0].mxu0 %v95
  %v221 = vpop.f32.mrb[0].mxu0
  %v222 = vadd.f32 %v64, %v221
  %v223 = vpop.f32.mrb[0].mxu0
  %224 = vmatprep.mubr.f32.mxu0 0.0
  %225 = vmatmul.mubr.f32.gmra.mrb[0].mxu0 %v98
  %v226 = vpop.f32.mrb[0].mxu0
  %v227 = vadd.f32 %v64, %v226
  %v228 = vpop.f32.mrb[0].mxu0
  %229 = vmatprep.mubr.f32.mxu0 0.0
  %230 = vmatmul.mubr.f32.gmra.mrb[0].mxu0 %v101
  %v231 = vpop.f32.mrb[0].mxu0
  %v232 = vadd.f32 %v64, %v231
  %v233 = vpop.f32.mrb[0].mxu0
  %234 = vmatprep.mubr.f32.mxu0 0.0
  %235 = vmatmul.mubr.f32.gmra.mrb[0].mxu0 %v104
  %v236 = vpop.f32.mrb[0].mxu0
  %v237 = vadd.f32 %v64, %v236
  %v238 = vpop.f32.mrb[0].mxu0
  %239 = vdwg.mxu0
  %v240 = vmax.f32 %v177, 0.0
  %v241 = vmax.f32 %v182, 0.0
  %v242 = vmax.f32 %v187, 0.0
  %v243 = vmax.f32 %v192, 0.0
  %v244 = vmax.f32 %v197, 0.0
  %v245 = vmax.f32 %v202, 0.0
  %v246 = vmax.f32 %v207, 0.0
  %v247 = vmax.f32 %v212, 0.0
  %v248 = vmax.f32 %v217, 0.0
  %v249 = vmax.f32 %v222, 0.0
  %v250 = vmax.f32 %v227, 0.0
  %v251 = vmax.f32 %v232, 0.0
  %v252 = vmax.f32 %v237, 0.0
  %253 = vst [vmem:[#allocation2] sm:$0xff] 0.0
  %254 = vst [vmem:[#allocation2 + $0x8] sm:$0xff] 0.0
  %255 = vst [vmem:[#allocation2 + $0x10] sm:$0xff] 0.0
  %vm256 = vcmask 130048
  %257 = vst.msk [vmem:[#allocation2 + $0x18] sm:$0xff] %vm256, 0.0
  %258 = vst [vmem:[#allocation2 + $0x20] sm:$0xff] 0.0
  %259 = vst [vmem:[#allocation2 + $0x28] sm:$0xff] 0.0
  %260 = vst [vmem:[#allocation2 + $0x30] sm:$0xff] 0.0
  %261 = vst.msk [vmem:[#allocation2 + $0x38] sm:$0xff] %vm256, 0.0
  %262 = vst [vmem:[#allocation2 + $0x40] sm:$0xff] 0.0
  %263 = vst [vmem:[#allocation2 + $0x48] sm:$0xff] 0.0
  %264 = vst [vmem:[#allocation2 + $0x50] sm:$0xff] 0.0
  %265 = vst.msk [vmem:[#allocation2 + $0x58] sm:$0xff] %vm256, 0.0
  %266 = vst [vmem:[#allocation2 + $0x60] sm:$0xff] 0.0
  %267 = vst [vmem:[#allocation2 + $0x68] sm:$0xff] 0.0
  %268 = vst [vmem:[#allocation2 + $0x70] sm:$0xff] 0.0
  %269 = vst.msk [vmem:[#allocation2 + $0x78] sm:$0xff] %vm256, 0.0
  %270 = vst [vmem:[#allocation2 + $0x80] sm:$0xff] 0.0
  %271 = vst [vmem:[#allocation2 + $0x88] sm:$0xff] 0.0
  %272 = vst [vmem:[#allocation2 + $0x90] sm:$0xff] 0.0
  %273 = vst.msk [vmem:[#allocation2 + $0x98] sm:$0xff] %vm256, 0.0
  %274 = vst [vmem:[#allocation2 + $0xa0] sm:$0xff] 0.0
  %275 = vst [vmem:[#allocation2 + $0xa8] sm:$0xff] 0.0
  %276 = vst [vmem:[#allocation2 + $0xb0] sm:$0xff] 0.0
  %277 = vst.msk [vmem:[#allocation2 + $0xb8] sm:$0xff] %vm256, 0.0
  %278 = vst [vmem:[#allocation2 + $0xc0] sm:$0xff] 0.0
  %279 = vst [vmem:[#allocation2 + $0xc8] sm:$0xff] 0.0
  %280 = vst [vmem:[#allocation2 + $0xd0] sm:$0xff] 0.0
  %281 = vst.msk [vmem:[#allocation2 + $0xd8] sm:$0xff] %vm256, 0.0
  %282 = vst [vmem:[#allocation2 + $0xe0] sm:$0xff] 0.0
  %283 = vst [vmem:[#allocation2 + $0xe8] sm:$0xff] 0.0
  %284 = vst [vmem:[#allocation2 + $0xf0] sm:$0xff] 0.0
  %285 = vst.msk [vmem:[#allocation2 + $0xf8] sm:$0xff] %vm256, 0.0
  %286 = vst [vmem:[#allocation2 + $0x100] sm:$0xff] 0.0
  %287 = vst [vmem:[#allocation2 + $0x108] sm:$0xff] 0.0
  %288 = vst [vmem:[#allocation2 + $0x110] sm:$0xff] 0.0
  %289 = vst.msk [vmem:[#allocation2 + $0x118] sm:$0xff] %vm256, 0.0
  %290 = vst [vmem:[#allocation2 + $0x120] sm:$0xff] 0.0
  %291 = vst [vmem:[#allocation2 + $0x128] sm:$0xff] 0.0
  %292 = vst [vmem:[#allocation2 + $0x130] sm:$0xff] 0.0
  %293 = vst.msk [vmem:[#allocation2 + $0x138] sm:$0xff] %vm256, 0.0
  %294 = vst [vmem:[#allocation2 + $0x140] sm:$0xff] 0.0
  %295 = vst [vmem:[#allocation2 + $0x148] sm:$0xff] 0.0
  %296 = vst [vmem:[#allocation2 + $0x150] sm:$0xff] 0.0
  %297 = vst.msk [vmem:[#allocation2 + $0x158] sm:$0xff] %vm256, 0.0
  %298 = vst [vmem:[#allocation2 + $0x160] sm:$0xff] 0.0
  %299 = vst [vmem:[#allocation2 + $0x168] sm:$0xff] 0.0
  %300 = vst [vmem:[#allocation2 + $0x170] sm:$0xff] 0.0
  %301 = vst.msk [vmem:[#allocation2 + $0x178] sm:$0xff] %vm256, 0.0
  %302 = vst [vmem:[#allocation2 + $0x180] sm:$0x3] 0.0
  %303 = vst [vmem:[#allocation2 + $0x188] sm:$0x3] 0.0
  %304 = vst [vmem:[#allocation2 + $0x190] sm:$0x3] 0.0
  %vm305 = vcmask 123904
  %306 = vst.msk [vmem:[#allocation2 + $0x198] sm:$0x3] %vm305, 0.0
  %v307 = vld [vmem:[%s1 + $0x20] sm:$0xff]
  %v308 = vld [vmem:[%s1 + $0x28] sm:$0xff]
  %v309 = vld [vmem:[%s1 + $0x30] sm:$0xff]
  %v310 = vld [vmem:[%s1 + $0x38] sm:$0xff]
  %v311 = vld [vmem:[%s1 + $0x40] sm:$0xff]
  %v312 = vld [vmem:[%s1 + $0x48] sm:$0xff]
  %v313 = vld [vmem:[%s1 + $0x50] sm:$0xff]
  %v314 = vld [vmem:[%s1 + $0x58] sm:$0xff]
  %v315 = vld [vmem:[%s1 + $0x60] sm:$0x3]
  %317 = vset.pattern.permute.xlu0 0
  %318 = vperm.xlu0 %317, %v307
  %v319 = vpop.permute.xlu0 %318
  %322 = vset.pattern.permute.xlu0 0
  %323 = vperm.xlu0 %322, %v308
  %v324 = vpop.permute.xlu0 %323
  %327 = vset.pattern.permute.xlu0 0
  %328 = vperm.xlu0 %327, %v309
  %v329 = vpop.permute.xlu0 %328
  %332 = vset.pattern.permute.xlu0 0
  %333 = vperm.xlu0 %332, %v310
  %v334 = vpop.permute.xlu0 %333
  %337 = vset.pattern.permute.xlu0 0
  %338 = vperm.xlu0 %337, %v311
  %v339 = vpop.permute.xlu0 %338
  %342 = vset.pattern.permute.xlu0 0
  %343 = vperm.xlu0 %342, %v312
  %v344 = vpop.permute.xlu0 %343
  %347 = vset.pattern.permute.xlu0 0
  %348 = vperm.xlu0 %347, %v313
  %v349 = vpop.permute.xlu0 %348
  %352 = vset.pattern.permute.xlu0 0
  %353 = vperm.xlu0 %352, %v314
  %v354 = vpop.permute.xlu0 %353
  %357 = vset.pattern.permute.xlu0 0
  %358 = vperm.xlu0 %357, %v315
  %v359 = vpop.permute.xlu0 %358
  %v361 = vmul.f32 %v240, %v319
  %v362 = vmul.f32 %v241, %v324
  %v363 = vmul.f32 %v242, %v329
  %v364 = vmul.f32 %v243, %v334
  %v365 = vmul.f32 %v244, %v339
  %v366 = vmul.f32 %v245, %v344
  %v367 = vmul.f32 %v246, %v349
  %v368 = vmul.f32 %v247, %v354
  %v369 = vmul.f32 %v248, %v359
  %379 = vrot.lane.b32.xlu0 %v361, 112
  %v380 = vpop.permute.xlu0 %379
  %381 = vrot.lane.b32.xlu0 %v362, 112
  %v382 = vpop.permute.xlu0 %381
  %383 = vrot.lane.b32.xlu0 %v363, 112
  %v384 = vpop.permute.xlu0 %383
  %385 = vrot.lane.b32.xlu0 %v364, 112
  %v386 = vpop.permute.xlu0 %385
  %387 = vrot.lane.b32.xlu0 %v365, 112
  %v388 = vpop.permute.xlu0 %387
  %389 = vrot.lane.b32.xlu0 %v366, 112
  %v390 = vpop.permute.xlu0 %389
  %391 = vrot.lane.b32.xlu0 %v367, 112
  %v392 = vpop.permute.xlu0 %391
  %393 = vrot.lane.b32.xlu0 %v368, 112
  %v394 = vpop.permute.xlu0 %393
  %395 = vrot.lane.b32.xlu0 %v369, 112
  %v396 = vpop.permute.xlu0 %395
  %406 = vst.msk [vmem:[#allocation2 + $0x80] sm:$0xff] %vm256, %v380
  %407 = vst.msk [vmem:[#allocation2 + $0xa0] sm:$0xff] %vm256, %v382
  %408 = vst.msk [vmem:[#allocation2 + $0xc0] sm:$0xff] %vm256, %v384
  %409 = vst.msk [vmem:[#allocation2 + $0xe0] sm:$0xff] %vm256, %v386
  %410 = vst.msk [vmem:[#allocation2 + $0x100] sm:$0xff] %vm256, %v388
  %411 = vst.msk [vmem:[#allocation2 + $0x120] sm:$0xff] %vm256, %v390
  %412 = vst.msk [vmem:[#allocation2 + $0x140] sm:$0xff] %vm256, %v392
  %413 = vst.msk [vmem:[#allocation2 + $0x160] sm:$0xff] %vm256, %v394
  %414 = vst.msk [vmem:[#allocation2 + $0x180] sm:$0x3] %vm305, %v396
  %v415 = vld [vmem:[%s1 + $0x1e] sm:$0xff]
  %v416 = vld [vmem:[%s1 + $0x26] sm:$0xff]
  %v417 = vld [vmem:[%s1 + $0x2e] sm:$0xff]
  %v418 = vld [vmem:[%s1 + $0x36] sm:$0xff]
  %v419 = vld [vmem:[%s1 + $0x3e] sm:$0xff]
  %v420 = vld [vmem:[%s1 + $0x46] sm:$0xff]
  %v421 = vld [vmem:[%s1 + $0x4e] sm:$0xff]
  %v422 = vld [vmem:[%s1 + $0x56] sm:$0xff]
  %v423 = vld [vmem:[%s1 + $0x5e] sm:$0xf]
  %425 = vset.pattern.permute.xlu0 1
  %426 = vperm.xlu0 %425, %v415
  %v427 = vpop.permute.xlu0 %426
  %430 = vset.pattern.permute.xlu0 1
  %431 = vperm.xlu0 %430, %v416
  %v432 = vpop.permute.xlu0 %431
  %435 = vset.pattern.permute.xlu0 1
  %436 = vperm.xlu0 %435, %v417
  %v437 = vpop.permute.xlu0 %436
  %440 = vset.pattern.permute.xlu0 1
  %441 = vperm.xlu0 %440, %v418
  %v442 = vpop.permute.xlu0 %441
  %445 = vset.pattern.permute.xlu0 1
  %446 = vperm.xlu0 %445, %v419
  %v447 = vpop.permute.xlu0 %446
  %450 = vset.pattern.permute.xlu0 1
  %451 = vperm.xlu0 %450, %v420
  %v452 = vpop.permute.xlu0 %451
  %455 = vset.pattern.permute.xlu0 1
  %456 = vperm.xlu0 %455, %v421
  %v457 = vpop.permute.xlu0 %456
  %460 = vset.pattern.permute.xlu0 1
  %461 = vperm.xlu0 %460, %v422
  %v462 = vpop.permute.xlu0 %461
  %465 = vset.pattern.permute.xlu0 1
  %466 = vperm.xlu0 %465, %v423
  %v467 = vpop.permute.xlu0 %466
  %v469 = vmul.f32 %v240, %v427
  %v470 = vmul.f32 %v241, %v432
  %v471 = vmul.f32 %v242, %v437
  %v472 = vmul.f32 %v243, %v442
  %v473 = vmul.f32 %v244, %v447
  %v474 = vmul.f32 %v245, %v452
  %v475 = vmul.f32 %v246, %v457
  %v476 = vmul.f32 %v247, %v462
  %v477 = vmul.f32 %v248, %v467
  %vm487 = vcmask 1045504
  %v488 = vrot.slane %v469, 2
  %v489 = vrot.slane %v470, 2
  %v490 = vsel %vm487, %v488, %v489
  %v491 = vrot.slane %v471, 2
  %v492 = vsel %vm487, %v489, %v491
  %v493 = vrot.slane %v472, 2
  %v494 = vsel %vm487, %v491, %v493
  %v495 = vrot.slane %v473, 2
  %v496 = vsel %vm487, %v493, %v495
  %v497 = vrot.slane %v474, 2
  %v498 = vsel %vm487, %v495, %v497
  %v499 = vrot.slane %v475, 2
  %v500 = vsel %vm487, %v497, %v499
  %v501 = vrot.slane %v476, 2
  %v502 = vsel %vm487, %v499, %v501
  %v503 = vrot.slane %v477, 2
  %v504 = vsel %vm487, %v501, %v503
  %vm515 = vcmask 261254
  %516 = vst.msk [vmem:[#allocation2 + $0x60] sm:$0xc0] %vm515, %v488
  %vm517 = vcmask 261248
  %518 = vst.msk [vmem:[#allocation2 + $0x80] sm:$0xff] %vm517, %v490
  %519 = vst.msk [vmem:[#allocation2 + $0xa0] sm:$0xff] %vm517, %v492
  %520 = vst.msk [vmem:[#allocation2 + $0xc0] sm:$0xff] %vm517, %v494
  %521 = vst.msk [vmem:[#allocation2 + $0xe0] sm:$0xff] %vm517, %v496
  %522 = vst.msk [vmem:[#allocation2 + $0x100] sm:$0xff] %vm517, %v498
  %523 = vst.msk [vmem:[#allocation2 + $0x120] sm:$0xff] %vm517, %v500
  %524 = vst.msk [vmem:[#allocation2 + $0x140] sm:$0xff] %vm517, %v502
  %525 = vst.msk [vmem:[#allocation2 + $0x160] sm:$0xff] %vm517, %v504
  %vm526 = vcmask 255104
  %527 = vst.msk [vmem:[#allocation2 + $0x180] sm:$0x3] %vm526, %v503
  %v528 = vld [vmem:[%s1 + $0x1c] sm:$0xff]
  %v529 = vld [vmem:[%s1 + $0x24] sm:$0xff]
  %v530 = vld [vmem:[%s1 + $0x2c] sm:$0xff]
  %v531 = vld [vmem:[%s1 + $0x34] sm:$0xff]
  %v532 = vld [vmem:[%s1 + $0x3c] sm:$0xff]
  %v533 = vld [vmem:[%s1 + $0x44] sm:$0xff]
  %v534 = vld [vmem:[%s1 + $0x4c] sm:$0xff]
  %v535 = vld [vmem:[%s1 + $0x54] sm:$0xff]
  %v536 = vld [vmem:[%s1 + $0x5c] sm:$0x3f]
  %538 = vset.pattern.permute.xlu0 2
  %539 = vperm.xlu0 %538, %v528
  %v540 = vpop.permute.xlu0 %539
  %543 = vset.pattern.permute.xlu0 2
  %544 = vperm.xlu0 %543, %v529
  %v545 = vpop.permute.xlu0 %544
  %548 = vset.pattern.permute.xlu0 2
  %549 = vperm.xlu0 %548, %v530
  %v550 = vpop.permute.xlu0 %549
  %553 = vset.pattern.permute.xlu0 2
  %554 = vperm.xlu0 %553, %v531
  %v555 = vpop.permute.xlu0 %554
  %558 = vset.pattern.permute.xlu0 2
  %559 = vperm.xlu0 %558, %v532
  %v560 = vpop.permute.xlu0 %559
  %563 = vset.pattern.permute.xlu0 2
  %564 = vperm.xlu0 %563, %v533
  %v565 = vpop.permute.xlu0 %564
  %568 = vset.pattern.permute.xlu0 2
  %569 = vperm.xlu0 %568, %v534
  %v570 = vpop.permute.xlu0 %569
  %573 = vset.pattern.permute.xlu0 2
  %574 = vperm.xlu0 %573, %v535
  %v575 = vpop.permute.xlu0 %574
  %578 = vset.pattern.permute.xlu0 2
  %579 = vperm.xlu0 %578, %v536
  %v580 = vpop.permute.xlu0 %579
  %v582 = vmul.f32 %v240, %v540
  %v583 = vmul.f32 %v241, %v545
  %v584 = vmul.f32 %v242, %v550
  %v585 = vmul.f32 %v243, %v555
  %v586 = vmul.f32 %v244, %v560
  %v587 = vmul.f32 %v245, %v565
  %v588 = vmul.f32 %v246, %v570
  %v589 = vmul.f32 %v247, %v575
  %v590 = vmul.f32 %v248, %v580
  %vm600 = vcmask 1043456
  %v601 = vrot.slane %v582, 4
  %v602 = vrot.slane %v583, 4
  %v603 = vsel %vm600, %v601, %v602
  %v604 = vrot.slane %v584, 4
  %v605 = vsel %vm600, %v602, %v604
  %v606 = vrot.slane %v585, 4
  %v607 = vsel %vm600, %v604, %v606
  %v608 = vrot.slane %v586, 4
  %v609 = vsel %vm600, %v606, %v608
  %v610 = vrot.slane %v587, 4
  %v611 = vsel %vm600, %v608, %v610
  %v612 = vrot.slane %v588, 4
  %v613 = vsel %vm600, %v610, %v612
  %v614 = vrot.slane %v589, 4
  %v615 = vsel %vm600, %v612, %v614
  %v616 = vrot.slane %v590, 4
  %v617 = vsel %vm600, %v614, %v616
  %618 = vrot.lane.b32.xlu0 %v601, 16
  %v619 = vpop.permute.xlu0 %618
  %620 = vrot.lane.b32.xlu0 %v603, 16
  %v621 = vpop.permute.xlu0 %620
  %622 = vrot.lane.b32.xlu0 %v605, 16
  %v623 = vpop.permute.xlu0 %622
  %624 = vrot.lane.b32.xlu0 %v607, 16
  %v625 = vpop.permute.xlu0 %624
  %626 = vrot.lane.b32.xlu0 %v609, 16
  %v627 = vpop.permute.xlu0 %626
  %628 = vrot.lane.b32.xlu0 %v611, 16
  %v629 = vpop.permute.xlu0 %628
  %630 = vrot.lane.b32.xlu0 %v613, 16
  %v631 = vpop.permute.xlu0 %630
  %632 = vrot.lane.b32.xlu0 %v615, 16
  %v633 = vpop.permute.xlu0 %632
  %634 = vrot.lane.b32.xlu0 %v617, 16
  %v635 = vpop.permute.xlu0 %634
  %636 = vrot.lane.b32.xlu0 %v616, 16
  %v637 = vpop.permute.xlu0 %636
  %vm648 = vcmask 392452
  %649 = vst.msk [vmem:[#allocation2 + $0x60] sm:$0xf0] %vm648, %v619
  %vm650 = vcmask 392448
  %651 = vst.msk [vmem:[#allocation2 + $0x80] sm:$0xff] %vm650, %v621
  %652 = vst.msk [vmem:[#allocation2 + $0xa0] sm:$0xff] %vm650, %v623
  %653 = vst.msk [vmem:[#allocation2 + $0xc0] sm:$0xff] %vm650, %v625
  %654 = vst.msk [vmem:[#allocation2 + $0xe0] sm:$0xff] %vm650, %v627
  %655 = vst.msk [vmem:[#allocation2 + $0x100] sm:$0xff] %vm650, %v629
  %656 = vst.msk [vmem:[#allocation2 + $0x120] sm:$0xff] %vm650, %v631
  %657 = vst.msk [vmem:[#allocation2 + $0x140] sm:$0xff] %vm650, %v633
  %658 = vst.msk [vmem:[#allocation2 + $0x160] sm:$0xff] %vm650, %v635
  %vm659 = vcmask 386304
  %660 = vst.msk [vmem:[#allocation2 + $0x180] sm:$0x3] %vm659, %v637
  %v661 = vld [vmem:[%s1 + $0x1a] sm:$0xff]
  %v662 = vld [vmem:[%s1 + $0x22] sm:$0xff]
  %v663 = vld [vmem:[%s1 + $0x2a] sm:$0xff]
  %v664 = vld [vmem:[%s1 + $0x32] sm:$0xff]
  %v665 = vld [vmem:[%s1 + $0x3a] sm:$0xff]
  %v666 = vld [vmem:[%s1 + $0x42] sm:$0xff]
  %v667 = vld [vmem:[%s1 + $0x4a] sm:$0xff]
  %v668 = vld [vmem:[%s1 + $0x52] sm:$0xff]
  %v669 = vld [vmem:[%s1 + $0x5a] sm:$0xff]
  %671 = vset.pattern.permute.xlu0 3
  %672 = vperm.xlu0 %671, %v661
  %v673 = vpop.permute.xlu0 %672
  %676 = vset.pattern.permute.xlu0 3
  %677 = vperm.xlu0 %676, %v662
  %v678 = vpop.permute.xlu0 %677
  %681 = vset.pattern.permute.xlu0 3
  %682 = vperm.xlu0 %681, %v663
  %v683 = vpop.permute.xlu0 %682
  %686 = vset.pattern.permute.xlu0 3
  %687 = vperm.xlu0 %686, %v664
  %v688 = vpop.permute.xlu0 %687
  %691 = vset.pattern.permute.xlu0 3
  %692 = vperm.xlu0 %691, %v665
  %v693 = vpop.permute.xlu0 %692
  %696 = vset.pattern.permute.xlu0 3
  %697 = vperm.xlu0 %696, %v666
  %v698 = vpop.permute.xlu0 %697
  %701 = vset.pattern.permute.xlu0 3
  %702 = vperm.xlu0 %701, %v667
  %v703 = vpop.permute.xlu0 %702
  %706 = vset.pattern.permute.xlu0 3
  %707 = vperm.xlu0 %706, %v668
  %v708 = vpop.permute.xlu0 %707
  %711 = vset.pattern.permute.xlu0 3
  %712 = vperm.xlu0 %711, %v669
  %v713 = vpop.permute.xlu0 %712
  %v715 = vmul.f32 %v240, %v673
  %v716 = vmul.f32 %v241, %v678
  %v717 = vmul.f32 %v242, %v683
  %v718 = vmul.f32 %v243, %v688
  %v719 = vmul.f32 %v244, %v693
  %v720 = vmul.f32 %v245, %v698
  %v721 = vmul.f32 %v246, %v703
  %v722 = vmul.f32 %v247, %v708
  %v723 = vmul.f32 %v248, %v713
  %v733 = vrot.slane %v715, 6
  %v734 = vrot.slane %v716, 6
  %v735 = vsel %vm106, %v733, %v734
  %v736 = vrot.slane %v717, 6
  %v737 = vsel %vm106, %v734, %v736
  %v738 = vrot.slane %v718, 6
  %v739 = vsel %vm106, %v736, %v738
  %v740 = vrot.slane %v719, 6
  %v741 = vsel %vm106, %v738, %v740
  %v742 = vrot.slane %v720, 6
  %v743 = vsel %vm106, %v740, %v742
  %v744 = vrot.slane %v721, 6
  %v745 = vsel %vm106, %v742, %v744
  %v746 = vrot.slane %v722, 6
  %v747 = vsel %vm106, %v744, %v746
  %v748 = vrot.slane %v723, 6
  %v749 = vsel %vm106, %v746, %v748
  %750 = vrot.lane.b32.xlu0 %v733, 32
  %v751 = vpop.permute.xlu0 %750
  %752 = vrot.lane.b32.xlu0 %v735, 32
  %v753 = vpop.permute.xlu0 %752
  %754 = vrot.lane.b32.xlu0 %v737, 32
  %v755 = vpop.permute.xlu0 %754
  %756 = vrot.lane.b32.xlu0 %v739, 32
  %v757 = vpop.permute.xlu0 %756
  %758 = vrot.lane.b32.xlu0 %v741, 32
  %v759 = vpop.permute.xlu0 %758
  %760 = vrot.lane.b32.xlu0 %v743, 32
  %v761 = vpop.permute.xlu0 %760
  %762 = vrot.lane.b32.xlu0 %v745, 32
  %v763 = vpop.permute.xlu0 %762
  %764 = vrot.lane.b32.xlu0 %v747, 32
  %v765 = vpop.permute.xlu0 %764
  %766 = vrot.lane.b32.xlu0 %v749, 32
  %v767 = vpop.permute.xlu0 %766
  %768 = vrot.lane.b32.xlu0 %v748, 32
  %v769 = vpop.permute.xlu0 %768
  %vm780 = vcmask 523650
  %781 = vst.msk [vmem:[#allocation2 + $0x60] sm:$0xfc] %vm780, %v751
  %vm782 = vcmask 523648
  %783 = vst.msk [vmem:[#allocation2 + $0x80] sm:$0xff] %vm782, %v753
  %784 = vst.msk [vmem:[#allocation2 + $0xa0] sm:$0xff] %vm782, %v755
  %785 = vst.msk [vmem:[#allocation2 + $0xc0] sm:$0xff] %vm782, %v757
  %786 = vst.msk [vmem:[#allocation2 + $0xe0] sm:$0xff] %vm782, %v759
  %787 = vst.msk [vmem:[#allocation2 + $0x100] sm:$0xff] %vm782, %v761
  %788 = vst.msk [vmem:[#allocation2 + $0x120] sm:$0xff] %vm782, %v763
  %789 = vst.msk [vmem:[#allocation2 + $0x140] sm:$0xff] %vm782, %v765
  %790 = vst.msk [vmem:[#allocation2 + $0x160] sm:$0xff] %vm782, %v767
  %vm791 = vcmask 517504
  %792 = vst.msk [vmem:[#allocation2 + $0x180] sm:$0x3] %vm791, %v769
  %v793 = vld [vmem:[%s1 + $0x18] sm:$0xff]
  %v794 = vld [vmem:[%s1 + $0x20] sm:$0xff]
  %v795 = vld [vmem:[%s1 + $0x28] sm:$0xff]
  %v796 = vld [vmem:[%s1 + $0x30] sm:$0xff]
  %v797 = vld [vmem:[%s1 + $0x38] sm:$0xff]
  %v798 = vld [vmem:[%s1 + $0x40] sm:$0xff]
  %v799 = vld [vmem:[%s1 + $0x48] sm:$0xff]
  %v800 = vld [vmem:[%s1 + $0x50] sm:$0xff]
  %v801 = vld [vmem:[%s1 + $0x58] sm:$0xff]
  %v802 = vld [vmem:[%s1 + $0x60] sm:$0x3]
  %804 = vset.pattern.permute.xlu0 4
  %805 = vperm.xlu0 %804, %v793
  %v806 = vpop.permute.xlu0 %805
  %809 = vset.pattern.permute.xlu0 4
  %810 = vperm.xlu0 %809, %v794
  %v811 = vpop.permute.xlu0 %810
  %814 = vset.pattern.permute.xlu0 4
  %815 = vperm.xlu0 %814, %v795
  %v816 = vpop.permute.xlu0 %815
  %819 = vset.pattern.permute.xlu0 4
  %820 = vperm.xlu0 %819, %v796
  %v821 = vpop.permute.xlu0 %820
  %824 = vset.pattern.permute.xlu0 4
  %825 = vperm.xlu0 %824, %v797
  %v826 = vpop.permute.xlu0 %825
  %829 = vset.pattern.permute.xlu0 4
  %830 = vperm.xlu0 %829, %v798
  %v831 = vpop.permute.xlu0 %830
  %834 = vset.pattern.permute.xlu0 4
  %835 = vperm.xlu0 %834, %v799
  %v836 = vpop.permute.xlu0 %835
  %839 = vset.pattern.permute.xlu0 4
  %840 = vperm.xlu0 %839, %v800
  %v841 = vpop.permute.xlu0 %840
  %844 = vset.pattern.permute.xlu0 4
  %845 = vperm.xlu0 %844, %v801
  %v846 = vpop.permute.xlu0 %845
  %849 = vset.pattern.permute.xlu0 4
  %850 = vperm.xlu0 %849, %v802
  %v851 = vpop.permute.xlu0 %850
  %v853 = vmul.f32 %v240, %v806
  %v854 = vmul.f32 %v241, %v811
  %v855 = vmul.f32 %v242, %v816
  %v856 = vmul.f32 %v243, %v821
  %v857 = vmul.f32 %v244, %v826
  %v858 = vmul.f32 %v245, %v831
  %v859 = vmul.f32 %v246, %v836
  %v860 = vmul.f32 %v247, %v841
  %v861 = vmul.f32 %v248, %v846
  %v862 = vmul.f32 %v249, %v851
  %873 = vrot.lane.b32.xlu0 %v853, 48
  %v874 = vpop.permute.xlu0 %873
  %875 = vrot.lane.b32.xlu0 %v854, 48
  %v876 = vpop.permute.xlu0 %875
  %877 = vrot.lane.b32.xlu0 %v855, 48
  %v878 = vpop.permute.xlu0 %877
  %879 = vrot.lane.b32.xlu0 %v856, 48
  %v880 = vpop.permute.xlu0 %879
  %881 = vrot.lane.b32.xlu0 %v857, 48
  %v882 = vpop.permute.xlu0 %881
  %883 = vrot.lane.b32.xlu0 %v858, 48
  %v884 = vpop.permute.xlu0 %883
  %885 = vrot.lane.b32.xlu0 %v859, 48
  %v886 = vpop.permute.xlu0 %885
  %887 = vrot.lane.b32.xlu0 %v860, 48
  %v888 = vpop.permute.xlu0 %887
  %889 = vrot.lane.b32.xlu0 %v861, 48
  %v890 = vpop.permute.xlu0 %889
  %891 = vrot.lane.b32.xlu0 %v862, 48
  %v892 = vpop.permute.xlu0 %891
  %vm903 = vcmask 654848
  %904 = vst.msk [vmem:[#allocation2 + $0x60] sm:$0xff] %vm903, %v874
  %905 = vst.msk [vmem:[#allocation2 + $0x80] sm:$0xff] %vm903, %v876
  %906 = vst.msk [vmem:[#allocation2 + $0xa0] sm:$0xff] %vm903, %v878
  %907 = vst.msk [vmem:[#allocation2 + $0xc0] sm:$0xff] %vm903, %v880
  %908 = vst.msk [vmem:[#allocation2 + $0xe0] sm:$0xff] %vm903, %v882
  %909 = vst.msk [vmem:[#allocation2 + $0x100] sm:$0xff] %vm903, %v884
  %910 = vst.msk [vmem:[#allocation2 + $0x120] sm:$0xff] %vm903, %v886
  %911 = vst.msk [vmem:[#allocation2 + $0x140] sm:$0xff] %vm903, %v888
  %912 = vst.msk [vmem:[#allocation2 + $0x160] sm:$0xff] %vm903, %v890
  %vm913 = vcmask 648704
  %914 = vst.msk [vmem:[#allocation2 + $0x180] sm:$0x3] %vm913, %v892
  %v915 = vld [vmem:[%s1 + $0x12] sm:$0xff]
  %v916 = vld [vmem:[%s1 + $0x1a] sm:$0xff]
  %v917 = vld [vmem:[%s1 + $0x22] sm:$0xff]
  %v918 = vld [vmem:[%s1 + $0x2a] sm:$0xff]
  %v919 = vld [vmem:[%s1 + $0x32] sm:$0xff]
  %v920 = vld [vmem:[%s1 + $0x3a] sm:$0xff]
  %v921 = vld [vmem:[%s1 + $0x42] sm:$0xff]
  %v922 = vld [vmem:[%s1 + $0x4a] sm:$0xff]
  %v923 = vld [vmem:[%s1 + $0x52] sm:$0xff]
  %v924 = vld [vmem:[%s1 + $0x5a] sm:$0xff]
  %926 = vset.pattern.permute.xlu0 5
  %927 = vperm.xlu0 %926, %v915
  %v928 = vpop.permute.xlu0 %927
  %931 = vset.pattern.permute.xlu0 5
  %932 = vperm.xlu0 %931, %v916
  %v933 = vpop.permute.xlu0 %932
  %936 = vset.pattern.permute.xlu0 5
  %937 = vperm.xlu0 %936, %v917
  %v938 = vpop.permute.xlu0 %937
  %941 = vset.pattern.permute.xlu0 5
  %942 = vperm.xlu0 %941, %v918
  %v943 = vpop.permute.xlu0 %942
  %946 = vset.pattern.permute.xlu0 5
  %947 = vperm.xlu0 %946, %v919
  %v948 = vpop.permute.xlu0 %947
  %951 = vset.pattern.permute.xlu0 5
  %952 = vperm.xlu0 %951, %v920
  %v953 = vpop.permute.xlu0 %952
  %956 = vset.pattern.permute.xlu0 5
  %957 = vperm.xlu0 %956, %v921
  %v958 = vpop.permute.xlu0 %957
  %961 = vset.pattern.permute.xlu0 5
  %962 = vperm.xlu0 %961, %v922
  %v963 = vpop.permute.xlu0 %962
  %966 = vset.pattern.permute.xlu0 5
  %967 = vperm.xlu0 %966, %v923
  %v968 = vpop.permute.xlu0 %967
  %971 = vset.pattern.permute.xlu0 5
  %972 = vperm.xlu0 %971, %v924
  %v973 = vpop.permute.xlu0 %972
  %v975 = vmul.f32 %v240, %v928
  %v976 = vmul.f32 %v241, %v933
  %v977 = vmul.f32 %v242, %v938
  %v978 = vmul.f32 %v243, %v943
  %v979 = vmul.f32 %v244, %v948
  %v980 = vmul.f32 %v245, %v953
  %v981 = vmul.f32 %v246, %v958
  %v982 = vmul.f32 %v247, %v963
  %v983 = vmul.f32 %v248, %v968
  %v984 = vmul.f32 %v249, %v973
  %v995 = vrot.slane %v975, 6
  %v996 = vrot.slane %v976, 6
  %v997 = vsel %vm106, %v995, %v996
  %v998 = vrot.slane %v977, 6
  %v999 = vsel %vm106, %v996, %v998
  %v1000 = vrot.slane %v978, 6
  %v1001 = vsel %vm106, %v998, %v1000
  %v1002 = vrot.slane %v979, 6
  %v1003 = vsel %vm106, %v1000, %v1002
  %v1004 = vrot.slane %v980, 6
  %v1005 = vsel %vm106, %v1002, %v1004
  %v1006 = vrot.slane %v981, 6
  %v1007 = vsel %vm106, %v1004, %v1006
  %v1008 = vrot.slane %v982, 6
  %v1009 = vsel %vm106, %v1006, %v1008
  %v1010 = vrot.slane %v983, 6
  %v1011 = vsel %vm106, %v1008, %v1010
  %v1012 = vrot.slane %v984, 6
  %v1013 = vsel %vm106, %v1010, %v1012
  %1014 = vrot.lane.b32.xlu0 %v995, 64
  %v1015 = vpop.permute.xlu0 %1014
  %1016 = vrot.lane.b32.xlu0 %v997, 64
  %v1017 = vpop.permute.xlu0 %1016
  %1018 = vrot.lane.b32.xlu0 %v999, 64
  %v1019 = vpop.permute.xlu0 %1018
  %1020 = vrot.lane.b32.xlu0 %v1001, 64
  %v1021 = vpop.permute.xlu0 %1020
  %1022 = vrot.lane.b32.xlu0 %v1003, 64
  %v1023 = vpop.permute.xlu0 %1022
  %1024 = vrot.lane.b32.xlu0 %v1005, 64
  %v1025 = vpop.permute.xlu0 %1024
  %1026 = vrot.lane.b32.xlu0 %v1007, 64
  %v1027 = vpop.permute.xlu0 %1026
  %1028 = vrot.lane.b32.xlu0 %v1009, 64
  %v1029 = vpop.permute.xlu0 %1028
  %1030 = vrot.lane.b32.xlu0 %v1011, 64
  %v1031 = vpop.permute.xlu0 %1030
  %1032 = vrot.lane.b32.xlu0 %v1013, 64
  %v1033 = vpop.permute.xlu0 %1032
  %1034 = vrot.lane.b32.xlu0 %v1012, 64
  %v1035 = vpop.permute.xlu0 %1034
  %vm1047 = vcmask 786050
  %1048 = vst.msk [vmem:[#allocation2 + $0x40] sm:$0xfc] %vm1047, %v1015
  %vm1049 = vcmask 786048
  %1050 = vst.msk [vmem:[#allocation2 + $0x60] sm:$0xff] %vm1049, %v1017
  %1051 = vst.msk [vmem:[#allocation2 + $0x80] sm:$0xff] %vm1049, %v1019
  %1052 = vst.msk [vmem:[#allocation2 + $0xa0] sm:$0xff] %vm1049, %v1021
  %1053 = vst.msk [vmem:[#allocation2 + $0xc0] sm:$0xff] %vm1049, %v1023
  %1054 = vst.msk [vmem:[#allocation2 + $0xe0] sm:$0xff] %vm1049, %v1025
  %1055 = vst.msk [vmem:[#allocation2 + $0x100] sm:$0xff] %vm1049, %v1027
  %1056 = vst.msk [vmem:[#allocation2 + $0x120] sm:$0xff] %vm1049, %v1029
  %1057 = vst.msk [vmem:[#allocation2 + $0x140] sm:$0xff] %vm1049, %v1031
  %1058 = vst.msk [vmem:[#allocation2 + $0x160] sm:$0xff] %vm1049, %v1033
  %vm1059 = vcmask 779904
  %1060 = vst.msk [vmem:[#allocation2 + $0x180] sm:$0x3] %vm1059, %v1035
  %v1061 = vld [vmem:[%s1 + $0x10] sm:$0xff]
  %v1062 = vld [vmem:[%s1 + $0x18] sm:$0xff]
  %v1063 = vld [vmem:[%s1 + $0x20] sm:$0xff]
  %v1064 = vld [vmem:[%s1 + $0x28] sm:$0xff]
  %v1065 = vld [vmem:[%s1 + $0x30] sm:$0xff]
  %v1066 = vld [vmem:[%s1 + $0x38] sm:$0xff]
  %v1067 = vld [vmem:[%s1 + $0x40] sm:$0xff]
  %v1068 = vld [vmem:[%s1 + $0x48] sm:$0xff]
  %v1069 = vld [vmem:[%s1 + $0x50] sm:$0xff]
  %v1070 = vld [vmem:[%s1 + $0x58] sm:$0xff]
  %v1071 = vld [vmem:[%s1 + $0x60] sm:$0x3]
  %1073 = vset.pattern.permute.xlu0 6
  %1074 = vperm.xlu0 %1073, %v1061
  %v1075 = vpop.permute.xlu0 %1074
  %1078 = vset.pattern.permute.xlu0 6
  %1079 = vperm.xlu0 %1078, %v1062
  %v1080 = vpop.permute.xlu0 %1079
  %1083 = vset.pattern.permute.xlu0 6
  %1084 = vperm.xlu0 %1083, %v1063
  %v1085 = vpop.permute.xlu0 %1084
  %1088 = vset.pattern.permute.xlu0 6
  %1089 = vperm.xlu0 %1088, %v1064
  %v1090 = vpop.permute.xlu0 %1089
  %1093 = vset.pattern.permute.xlu0 6
  %1094 = vperm.xlu0 %1093, %v1065
  %v1095 = vpop.permute.xlu0 %1094
  %1098 = vset.pattern.permute.xlu0 6
  %1099 = vperm.xlu0 %1098, %v1066
  %v1100 = vpop.permute.xlu0 %1099
  %1103 = vset.pattern.permute.xlu0 6
  %1104 = vperm.xlu0 %1103, %v1067
  %v1105 = vpop.permute.xlu0 %1104
  %1108 = vset.pattern.permute.xlu0 6
  %1109 = vperm.xlu0 %1108, %v1068
  %v1110 = vpop.permute.xlu0 %1109
  %1113 = vset.pattern.permute.xlu0 6
  %1114 = vperm.xlu0 %1113, %v1069
  %v1115 = vpop.permute.xlu0 %1114
  %1118 = vset.pattern.permute.xlu0 6
  %1119 = vperm.xlu0 %1118, %v1070
  %v1120 = vpop.permute.xlu0 %1119
  %1123 = vset.pattern.permute.xlu0 6
  %1124 = vperm.xlu0 %1123, %v1071
  %v1125 = vpop.permute.xlu0 %1124
  %v1127 = vmul.f32 %v240, %v1075
  %v1128 = vmul.f32 %v241, %v1080
  %v1129 = vmul.f32 %v242, %v1085
  %v1130 = vmul.f32 %v243, %v1090
  %v1131 = vmul.f32 %v244, %v1095
  %v1132 = vmul.f32 %v245, %v1100
  %v1133 = vmul.f32 %v246, %v1105
  %v1134 = vmul.f32 %v247, %v1110
  %v1135 = vmul.f32 %v248, %v1115
  %v1136 = vmul.f32 %v249, %v1120
  %v1137 = vmul.f32 %v250, %v1125
  %1149 = vrot.lane.b32.xlu0 %v1127, 80
  %v1150 = vpop.permute.xlu0 %1149
  %1151 = vrot.lane.b32.xlu0 %v1128, 80
  %v1152 = vpop.permute.xlu0 %1151
  %1153 = vrot.lane.b32.xlu0 %v1129, 80
  %v1154 = vpop.permute.xlu0 %1153
  %1155 = vrot.lane.b32.xlu0 %v1130, 80
  %v1156 = vpop.permute.xlu0 %1155
  %1157 = vrot.lane.b32.xlu0 %v1131, 80
  %v1158 = vpop.permute.xlu0 %1157
  %1159 = vrot.lane.b32.xlu0 %v1132, 80
  %v1160 = vpop.permute.xlu0 %1159
  %1161 = vrot.lane.b32.xlu0 %v1133, 80
  %v1162 = vpop.permute.xlu0 %1161
  %1163 = vrot.lane.b32.xlu0 %v1134, 80
  %v1164 = vpop.permute.xlu0 %1163
  %1165 = vrot.lane.b32.xlu0 %v1135, 80
  %v1166 = vpop.permute.xlu0 %1165
  %1167 = vrot.lane.b32.xlu0 %v1136, 80
  %v1168 = vpop.permute.xlu0 %1167
  %1169 = vrot.lane.b32.xlu0 %v1137, 80
  %v1170 = vpop.permute.xlu0 %1169
  %vm1182 = vcmask 917248
  %1183 = vst.msk [vmem:[#allocation2 + $0x40] sm:$0xff] %vm1182, %v1150
  %1184 = vst.msk [vmem:[#allocation2 + $0x60] sm:$0xff] %vm1182, %v1152
  %1185 = vst.msk [vmem:[#allocation2 + $0x80] sm:$0xff] %vm1182, %v1154
  %1186 = vst.msk [vmem:[#allocation2 + $0xa0] sm:$0xff] %vm1182, %v1156
  %1187 = vst.msk [vmem:[#allocation2 + $0xc0] sm:$0xff] %vm1182, %v1158
  %1188 = vst.msk [vmem:[#allocation2 + $0xe0] sm:$0xff] %vm1182, %v1160
  %1189 = vst.msk [vmem:[#allocation2 + $0x100] sm:$0xff] %vm1182, %v1162
  %1190 = vst.msk [vmem:[#allocation2 + $0x120] sm:$0xff] %vm1182, %v1164
  %1191 = vst.msk [vmem:[#allocation2 + $0x140] sm:$0xff] %vm1182, %v1166
  %1192 = vst.msk [vmem:[#allocation2 + $0x160] sm:$0xff] %vm1182, %v1168
  %vm1193 = vcmask 911104
  %1194 = vst.msk [vmem:[#allocation2 + $0x180] sm:$0x3] %vm1193, %v1170
  %v1195 = vld [vmem:[%s1 + $0xe] sm:$0xff]
  %v1196 = vld [vmem:[%s1 + $0x16] sm:$0xff]
  %v1197 = vld [vmem:[%s1 + $0x1e] sm:$0xff]
  %v1198 = vld [vmem:[%s1 + $0x26] sm:$0xff]
  %v1199 = vld [vmem:[%s1 + $0x2e] sm:$0xff]
  %v1200 = vld [vmem:[%s1 + $0x36] sm:$0xff]
  %v1201 = vld [vmem:[%s1 + $0x3e] sm:$0xff]
  %v1202 = vld [vmem:[%s1 + $0x46] sm:$0xff]
  %v1203 = vld [vmem:[%s1 + $0x4e] sm:$0xff]
  %v1204 = vld [vmem:[%s1 + $0x56] sm:$0xff]
  %v1205 = vld [vmem:[%s1 + $0x5e] sm:$0xf]
  %1207 = vset.pattern.permute.xlu0 7
  %1208 = vperm.xlu0 %1207, %v1195
  %v1209 = vpop.permute.xlu0 %1208
  %1212 = vset.pattern.permute.xlu0 7
  %1213 = vperm.xlu0 %1212, %v1196
  %v1214 = vpop.permute.xlu0 %1213
  %1217 = vset.pattern.permute.xlu0 7
  %1218 = vperm.xlu0 %1217, %v1197
  %v1219 = vpop.permute.xlu0 %1218
  %1222 = vset.pattern.permute.xlu0 7
  %1223 = vperm.xlu0 %1222, %v1198
  %v1224 = vpop.permute.xlu0 %1223
  %1227 = vset.pattern.permute.xlu0 7
  %1228 = vperm.xlu0 %1227, %v1199
  %v1229 = vpop.permute.xlu0 %1228
  %1232 = vset.pattern.permute.xlu0 7
  %1233 = vperm.xlu0 %1232, %v1200
  %v1234 = vpop.permute.xlu0 %1233
  %1237 = vset.pattern.permute.xlu0 7
  %1238 = vperm.xlu0 %1237, %v1201
  %v1239 = vpop.permute.xlu0 %1238
  %1242 = vset.pattern.permute.xlu0 7
  %1243 = vperm.xlu0 %1242, %v1202
  %v1244 = vpop.permute.xlu0 %1243
  %1247 = vset.pattern.permute.xlu0 7
  %1248 = vperm.xlu0 %1247, %v1203
  %v1249 = vpop.permute.xlu0 %1248
  %1252 = vset.pattern.permute.xlu0 7
  %1253 = vperm.xlu0 %1252, %v1204
  %v1254 = vpop.permute.xlu0 %1253
  %1257 = vset.pattern.permute.xlu0 7
  %1258 = vperm.xlu0 %1257, %v1205
  %v1259 = vpop.permute.xlu0 %1258
  %v1261 = vmul.f32 %v240, %v1209
  %v1262 = vmul.f32 %v241, %v1214
  %v1263 = vmul.f32 %v242, %v1219
  %v1264 = vmul.f32 %v243, %v1224
  %v1265 = vmul.f32 %v244, %v1229
  %v1266 = vmul.f32 %v245, %v1234
  %v1267 = vmul.f32 %v246, %v1239
  %v1268 = vmul.f32 %v247, %v1244
  %v1269 = vmul.f32 %v248, %v1249
  %v1270 = vmul.f32 %v249, %v1254
  %v1271 = vmul.f32 %v250, %v1259
  %v1283 = vrot.slane %v1261, 2
  %v1284 = vrot.slane %v1262, 2
  %v1285 = vsel %vm487, %v1283, %v1284
  %v1286 = vrot.slane %v1263, 2
  %v1287 = vsel %vm487, %v1284, %v1286
  %v1288 = vrot.slane %v1264, 2
  %v1289 = vsel %vm487, %v1286, %v1288
  %v1290 = vrot.slane %v1265, 2
  %v1291 = vsel %vm487, %v1288, %v1290
  %v1292 = vrot.slane %v1266, 2
  %v1293 = vsel %vm487, %v1290, %v1292
  %v1294 = vrot.slane %v1267, 2
  %v1295 = vsel %vm487, %v1292, %v1294
  %v1296 = vrot.slane %v1268, 2
  %v1297 = vsel %vm487, %v1294, %v1296
  %v1298 = vrot.slane %v1269, 2
  %v1299 = vsel %vm487, %v1296, %v1298
  %v1300 = vrot.slane %v1270, 2
  %v1301 = vsel %vm487, %v1298, %v1300
  %v1302 = vrot.slane %v1271, 2
  %v1303 = vsel %vm487, %v1300, %v1302
  %1304 = vrot.lane.b32.xlu0 %v1283, 96
  %v1305 = vpop.permute.xlu0 %1304
  %1306 = vrot.lane.b32.xlu0 %v1285, 96
  %v1307 = vpop.permute.xlu0 %1306
  %1308 = vrot.lane.b32.xlu0 %v1287, 96
  %v1309 = vpop.permute.xlu0 %1308
  %1310 = vrot.lane.b32.xlu0 %v1289, 96
  %v1311 = vpop.permute.xlu0 %1310
  %1312 = vrot.lane.b32.xlu0 %v1291, 96
  %v1313 = vpop.permute.xlu0 %1312
  %1314 = vrot.lane.b32.xlu0 %v1293, 96
  %v1315 = vpop.permute.xlu0 %1314
  %1316 = vrot.lane.b32.xlu0 %v1295, 96
  %v1317 = vpop.permute.xlu0 %1316
  %1318 = vrot.lane.b32.xlu0 %v1297, 96
  %v1319 = vpop.permute.xlu0 %1318
  %1320 = vrot.lane.b32.xlu0 %v1299, 96
  %v1321 = vpop.permute.xlu0 %1320
  %1322 = vrot.lane.b32.xlu0 %v1301, 96
  %v1323 = vpop.permute.xlu0 %1322
  %1324 = vrot.lane.b32.xlu0 %v1303, 96
  %v1325 = vpop.permute.xlu0 %1324
  %1326 = vrot.lane.b32.xlu0 %v1302, 96
  %v1327 = vpop.permute.xlu0 %1326
  %vm1340 = vcmask 1048454
  %1341 = vst.msk [vmem:[#allocation2 + $0x20] sm:$0xc0] %vm1340, %v1305
  %vm1342 = vcmask 1048448
  %1343 = vst.msk [vmem:[#allocation2 + $0x40] sm:$0xff] %vm1342, %v1307
  %1344 = vst.msk [vmem:[#allocation2 + $0x60] sm:$0xff] %vm1342, %v1309
  %1345 = vst.msk [vmem:[#allocation2 + $0x80] sm:$0xff] %vm1342, %v1311
  %1346 = vst.msk [vmem:[#allocation2 + $0xa0] sm:$0xff] %vm1342, %v1313
  %1347 = vst.msk [vmem:[#allocation2 + $0xc0] sm:$0xff] %vm1342, %v1315
  %1348 = vst.msk [vmem:[#allocation2 + $0xe0] sm:$0xff] %vm1342, %v1317
  %1349 = vst.msk [vmem:[#allocation2 + $0x100] sm:$0xff] %vm1342, %v1319
  %1350 = vst.msk [vmem:[#allocation2 + $0x120] sm:$0xff] %vm1342, %v1321
  %1351 = vst.msk [vmem:[#allocation2 + $0x140] sm:$0xff] %vm1342, %v1323
  %1352 = vst.msk [vmem:[#allocation2 + $0x160] sm:$0xff] %vm1342, %v1325
  %vm1353 = vcmask 1042304
  %1354 = vst.msk [vmem:[#allocation2 + $0x180] sm:$0x3] %vm1353, %v1327
  %v1355 = vld [vmem:[%s1 + $0xc] sm:$0xff]
  %v1356 = vld [vmem:[%s1 + $0x14] sm:$0xff]
  %v1357 = vld [vmem:[%s1 + $0x1c] sm:$0xff]
  %v1358 = vld [vmem:[%s1 + $0x24] sm:$0xff]
  %v1359 = vld [vmem:[%s1 + $0x2c] sm:$0xff]
  %v1360 = vld [vmem:[%s1 + $0x34] sm:$0xff]
  %v1361 = vld [vmem:[%s1 + $0x3c] sm:$0xff]
  %v1362 = vld [vmem:[%s1 + $0x44] sm:$0xff]
  %v1363 = vld [vmem:[%s1 + $0x4c] sm:$0xff]
  %v1364 = vld [vmem:[%s1 + $0x54] sm:$0xff]
  %v1365 = vld [vmem:[%s1 + $0x5c] sm:$0x3f]
  %1367 = vset.pattern.permute.xlu0 8
  %1368 = vperm.xlu0 %1367, %v1355
  %v1369 = vpop.permute.xlu0 %1368
  %1372 = vset.pattern.permute.xlu0 8
  %1373 = vperm.xlu0 %1372, %v1356
  %v1374 = vpop.permute.xlu0 %1373
  %1377 = vset.pattern.permute.xlu0 8
  %1378 = vperm.xlu0 %1377, %v1357
  %v1379 = vpop.permute.xlu0 %1378
  %1382 = vset.pattern.permute.xlu0 8
  %1383 = vperm.xlu0 %1382, %v1358
  %v1384 = vpop.permute.xlu0 %1383
  %1387 = vset.pattern.permute.xlu0 8
  %1388 = vperm.xlu0 %1387, %v1359
  %v1389 = vpop.permute.xlu0 %1388
  %1392 = vset.pattern.permute.xlu0 8
  %1393 = vperm.xlu0 %1392, %v1360
  %v1394 = vpop.permute.xlu0 %1393
  %1397 = vset.pattern.permute.xlu0 8
  %1398 = vperm.xlu0 %1397, %v1361
  %v1399 = vpop.permute.xlu0 %1398
  %1402 = vset.pattern.permute.xlu0 8
  %1403 = vperm.xlu0 %1402, %v1362
  %v1404 = vpop.permute.xlu0 %1403
  %1407 = vset.pattern.permute.xlu0 8
  %1408 = vperm.xlu0 %1407, %v1363
  %v1409 = vpop.permute.xlu0 %1408
  %1412 = vset.pattern.permute.xlu0 8
  %1413 = vperm.xlu0 %1412, %v1364
  %v1414 = vpop.permute.xlu0 %1413
  %1417 = vset.pattern.permute.xlu0 8
  %1418 = vperm.xlu0 %1417, %v1365
  %v1419 = vpop.permute.xlu0 %1418
  %v1421 = vmul.f32 %v240, %v1369
  %v1422 = vmul.f32 %v241, %v1374
  %v1423 = vmul.f32 %v242, %v1379
  %v1424 = vmul.f32 %v243, %v1384
  %v1425 = vmul.f32 %v244, %v1389
  %v1426 = vmul.f32 %v245, %v1394
  %v1427 = vmul.f32 %v246, %v1399
  %v1428 = vmul.f32 %v247, %v1404
  %v1429 = vmul.f32 %v248, %v1409
  %v1430 = vmul.f32 %v249, %v1414
  %v1431 = vmul.f32 %v250, %v1419
  %v1443 = vrot.slane %v1421, 4
  %v1444 = vrot.slane %v1422, 4
  %v1445 = vsel %vm600, %v1443, %v1444
  %v1446 = vrot.slane %v1423, 4
  %v1447 = vsel %vm600, %v1444, %v1446
  %v1448 = vrot.slane %v1424, 4
  %v1449 = vsel %vm600, %v1446, %v1448
  %v1450 = vrot.slane %v1425, 4
  %v1451 = vsel %vm600, %v1448, %v1450
  %v1452 = vrot.slane %v1426, 4
  %v1453 = vsel %vm600, %v1450, %v1452
  %v1454 = vrot.slane %v1427, 4
  %v1455 = vsel %vm600, %v1452, %v1454
  %v1456 = vrot.slane %v1428, 4
  %v1457 = vsel %vm600, %v1454, %v1456
  %v1458 = vrot.slane %v1429, 4
  %v1459 = vsel %vm600, %v1456, %v1458
  %v1460 = vrot.slane %v1430, 4
  %v1461 = vsel %vm600, %v1458, %v1460
  %v1462 = vrot.slane %v1431, 4
  %v1463 = vsel %vm600, %v1460, %v1462
  %1464 = vrot.lane.b32.xlu0 %v1443, 112
  %v1465 = vpop.permute.xlu0 %1464
  %1466 = vrot.lane.b32.xlu0 %v1445, 112
  %v1467 = vpop.permute.xlu0 %1466
  %1468 = vrot.lane.b32.xlu0 %v1447, 112
  %v1469 = vpop.permute.xlu0 %1468
  %1470 = vrot.lane.b32.xlu0 %v1449, 112
  %v1471 = vpop.permute.xlu0 %1470
  %1472 = vrot.lane.b32.xlu0 %v1451, 112
  %v1473 = vpop.permute.xlu0 %1472
  %1474 = vrot.lane.b32.xlu0 %v1453, 112
  %v1475 = vpop.permute.xlu0 %1474
  %1476 = vrot.lane.b32.xlu0 %v1455, 112
  %v1477 = vpop.permute.xlu0 %1476
  %1478 = vrot.lane.b32.xlu0 %v1457, 112
  %v1479 = vpop.permute.xlu0 %1478
  %1480 = vrot.lane.b32.xlu0 %v1459, 112
  %v1481 = vpop.permute.xlu0 %1480
  %1482 = vrot.lane.b32.xlu0 %v1461, 112
  %v1483 = vpop.permute.xlu0 %1482
  %1484 = vrot.lane.b32.xlu0 %v1463, 112
  %v1485 = vpop.permute.xlu0 %1484
  %1486 = vrot.lane.b32.xlu0 %v1462, 112
  %v1487 = vpop.permute.xlu0 %1486
  %vm1500 = vcmask 130052
  %1501 = vst.msk [vmem:[#allocation2 + $0x28] sm:$0xf0] %vm1500, %v1465
  %1502 = vst.msk [vmem:[#allocation2 + $0x48] sm:$0xff] %vm256, %v1467
  %1503 = vst.msk [vmem:[#allocation2 + $0x68] sm:$0xff] %vm256, %v1469
  %1504 = vst.msk [vmem:[#allocation2 + $0x88] sm:$0xff] %vm256, %v1471
  %1505 = vst.msk [vmem:[#allocation2 + $0xa8] sm:$0xff] %vm256, %v1473
  %1506 = vst.msk [vmem:[#allocation2 + $0xc8] sm:$0xff] %vm256, %v1475
  %1507 = vst.msk [vmem:[#allocation2 + $0xe8] sm:$0xff] %vm256, %v1477
  %1508 = vst.msk [vmem:[#allocation2 + $0x108] sm:$0xff] %vm256, %v1479
  %1509 = vst.msk [vmem:[#allocation2 + $0x128] sm:$0xff] %vm256, %v1481
  %1510 = vst.msk [vmem:[#allocation2 + $0x148] sm:$0xff] %vm256, %v1483
  %1511 = vst.msk [vmem:[#allocation2 + $0x168] sm:$0xff] %vm256, %v1485
  %1512 = vst.msk [vmem:[#allocation2 + $0x188] sm:$0x3] %vm305, %v1487
  %v1513 = vld [vmem:[%s1 + $0xa] sm:$0xff]
  %v1514 = vld [vmem:[%s1 + $0x12] sm:$0xff]
  %v1515 = vld [vmem:[%s1 + $0x1a] sm:$0xff]
  %v1516 = vld [vmem:[%s1 + $0x22] sm:$0xff]
  %v1517 = vld [vmem:[%s1 + $0x2a] sm:$0xff]
  %v1518 = vld [vmem:[%s1 + $0x32] sm:$0xff]
  %v1519 = vld [vmem:[%s1 + $0x3a] sm:$0xff]
  %v1520 = vld [vmem:[%s1 + $0x42] sm:$0xff]
  %v1521 = vld [vmem:[%s1 + $0x4a] sm:$0xff]
  %v1522 = vld [vmem:[%s1 + $0x52] sm:$0xff]
  %v1523 = vld [vmem:[%s1 + $0x5a] sm:$0xff]
  %1525 = vset.pattern.permute.xlu0 9
  %1526 = vperm.xlu0 %1525, %v1513
  %v1527 = vpop.permute.xlu0 %1526
  %1530 = vset.pattern.permute.xlu0 9
  %1531 = vperm.xlu0 %1530, %v1514
  %v1532 = vpop.permute.xlu0 %1531
  %1535 = vset.pattern.permute.xlu0 9
  %1536 = vperm.xlu0 %1535, %v1515
  %v1537 = vpop.permute.xlu0 %1536
  %1540 = vset.pattern.permute.xlu0 9
  %1541 = vperm.xlu0 %1540, %v1516
  %v1542 = vpop.permute.xlu0 %1541
  %1545 = vset.pattern.permute.xlu0 9
  %1546 = vperm.xlu0 %1545, %v1517
  %v1547 = vpop.permute.xlu0 %1546
  %1550 = vset.pattern.permute.xlu0 9
  %1551 = vperm.xlu0 %1550, %v1518
  %v1552 = vpop.permute.xlu0 %1551
  %1555 = vset.pattern.permute.xlu0 9
  %1556 = vperm.xlu0 %1555, %v1519
  %v1557 = vpop.permute.xlu0 %1556
  %1560 = vset.pattern.permute.xlu0 9
  %1561 = vperm.xlu0 %1560, %v1520
  %v1562 = vpop.permute.xlu0 %1561
  %1565 = vset.pattern.permute.xlu0 9
  %1566 = vperm.xlu0 %1565, %v1521
  %v1567 = vpop.permute.xlu0 %1566
  %1570 = vset.pattern.permute.xlu0 9
  %1571 = vperm.xlu0 %1570, %v1522
  %v1572 = vpop.permute.xlu0 %1571
  %1575 = vset.pattern.permute.xlu0 9
  %1576 = vperm.xlu0 %1575, %v1523
  %v1577 = vpop.permute.xlu0 %1576
  %v1579 = vmul.f32 %v240, %v1527
  %v1580 = vmul.f32 %v241, %v1532
  %v1581 = vmul.f32 %v242, %v1537
  %v1582 = vmul.f32 %v243, %v1542
  %v1583 = vmul.f32 %v244, %v1547
  %v1584 = vmul.f32 %v245, %v1552
  %v1585 = vmul.f32 %v246, %v1557
  %v1586 = vmul.f32 %v247, %v1562
  %v1587 = vmul.f32 %v248, %v1567
  %v1588 = vmul.f32 %v249, %v1572
  %v1589 = vmul.f32 %v250, %v1577
  %v1601 = vrot.slane %v1579, 6
  %v1602 = vrot.slane %v1580, 6
  %v1603 = vsel %vm106, %v1601, %v1602
  %v1604 = vrot.slane %v1581, 6
  %v1605 = vsel %vm106, %v1602, %v1604
  %v1606 = vrot.slane %v1582, 6
  %v1607 = vsel %vm106, %v1604, %v1606
  %v1608 = vrot.slane %v1583, 6
  %v1609 = vsel %vm106, %v1606, %v1608
  %v1610 = vrot.slane %v1584, 6
  %v1611 = vsel %vm106, %v1608, %v1610
  %v1612 = vrot.slane %v1585, 6
  %v1613 = vsel %vm106, %v1610, %v1612
  %v1614 = vrot.slane %v1586, 6
  %v1615 = vsel %vm106, %v1612, %v1614
  %v1616 = vrot.slane %v1587, 6
  %v1617 = vsel %vm106, %v1614, %v1616
  %v1618 = vrot.slane %v1588, 6
  %v1619 = vsel %vm106, %v1616, %v1618
  %v1620 = vrot.slane %v1589, 6
  %v1621 = vsel %vm106, %v1618, %v1620
  %vm1634 = vcmask 261250
  %1635 = vst.msk [vmem:[#allocation2 + $0x28] sm:$0xfc] %vm1634, %v1601
  %1636 = vst.msk [vmem:[#allocation2 + $0x48] sm:$0xff] %vm517, %v1603
  %1637 = vst.msk [vmem:[#allocation2 + $0x68] sm:$0xff] %vm517, %v1605
  %1638 = vst.msk [vmem:[#allocation2 + $0x88] sm:$0xff] %vm517, %v1607
  %1639 = vst.msk [vmem:[#allocation2 + $0xa8] sm:$0xff] %vm517, %v1609
  %1640 = vst.msk [vmem:[#allocation2 + $0xc8] sm:$0xff] %vm517, %v1611
  %1641 = vst.msk [vmem:[#allocation2 + $0xe8] sm:$0xff] %vm517, %v1613
  %1642 = vst.msk [vmem:[#allocation2 + $0x108] sm:$0xff] %vm517, %v1615
  %1643 = vst.msk [vmem:[#allocation2 + $0x128] sm:$0xff] %vm517, %v1617
  %1644 = vst.msk [vmem:[#allocation2 + $0x148] sm:$0xff] %vm517, %v1619
  %1645 = vst.msk [vmem:[#allocation2 + $0x168] sm:$0xff] %vm517, %v1621
  %1646 = vst.msk [vmem:[#allocation2 + $0x188] sm:$0x3] %vm526, %v1620
  %v1647 = vld [vmem:[%s1 + $0x4] sm:$0xff]
  %v1648 = vld [vmem:[%s1 + $0xc] sm:$0xff]
  %v1649 = vld [vmem:[%s1 + $0x14] sm:$0xff]
  %v1650 = vld [vmem:[%s1 + $0x1c] sm:$0xff]
  %v1651 = vld [vmem:[%s1 + $0x24] sm:$0xff]
  %v1652 = vld [vmem:[%s1 + $0x2c] sm:$0xff]
  %v1653 = vld [vmem:[%s1 + $0x34] sm:$0xff]
  %v1654 = vld [vmem:[%s1 + $0x3c] sm:$0xff]
  %v1655 = vld [vmem:[%s1 + $0x44] sm:$0xff]
  %v1656 = vld [vmem:[%s1 + $0x4c] sm:$0xff]
  %v1657 = vld [vmem:[%s1 + $0x54] sm:$0xff]
  %v1658 = vld [vmem:[%s1 + $0x5c] sm:$0x3f]
  %1660 = vset.pattern.permute.xlu0 10
  %1661 = vperm.xlu0 %1660, %v1647
  %v1662 = vpop.permute.xlu0 %1661
  %1665 = vset.pattern.permute.xlu0 10
  %1666 = vperm.xlu0 %1665, %v1648
  %v1667 = vpop.permute.xlu0 %1666
  %1670 = vset.pattern.permute.xlu0 10
  %1671 = vperm.xlu0 %1670, %v1649
  %v1672 = vpop.permute.xlu0 %1671
  %1675 = vset.pattern.permute.xlu0 10
  %1676 = vperm.xlu0 %1675, %v1650
  %v1677 = vpop.permute.xlu0 %1676
  %1680 = vset.pattern.permute.xlu0 10
  %1681 = vperm.xlu0 %1680, %v1651
  %v1682 = vpop.permute.xlu0 %1681
  %1685 = vset.pattern.permute.xlu0 10
  %1686 = vperm.xlu0 %1685, %v1652
  %v1687 = vpop.permute.xlu0 %1686
  %1690 = vset.pattern.permute.xlu0 10
  %1691 = vperm.xlu0 %1690, %v1653
  %v1692 = vpop.permute.xlu0 %1691
  %1695 = vset.pattern.permute.xlu0 10
  %1696 = vperm.xlu0 %1695, %v1654
  %v1697 = vpop.permute.xlu0 %1696
  %1700 = vset.pattern.permute.xlu0 10
  %1701 = vperm.xlu0 %1700, %v1655
  %v1702 = vpop.permute.xlu0 %1701
  %1705 = vset.pattern.permute.xlu0 10
  %1706 = vperm.xlu0 %1705, %v1656
  %v1707 = vpop.permute.xlu0 %1706
  %1710 = vset.pattern.permute.xlu0 10
  %1711 = vperm.xlu0 %1710, %v1657
  %v1712 = vpop.permute.xlu0 %1711
  %1715 = vset.pattern.permute.xlu0 10
  %1716 = vperm.xlu0 %1715, %v1658
  %v1717 = vpop.permute.xlu0 %1716
  %v1719 = vmul.f32 %v240, %v1662
  %v1720 = vmul.f32 %v241, %v1667
  %v1721 = vmul.f32 %v242, %v1672
  %v1722 = vmul.f32 %v243, %v1677
  %v1723 = vmul.f32 %v244, %v1682
  %v1724 = vmul.f32 %v245, %v1687
  %v1725 = vmul.f32 %v246, %v1692
  %v1726 = vmul.f32 %v247, %v1697
  %v1727 = vmul.f32 %v248, %v1702
  %v1728 = vmul.f32 %v249, %v1707
  %v1729 = vmul.f32 %v250, %v1712
  %v1730 = vmul.f32 %v251, %v1717
  %v1743 = vrot.slane %v1719, 4
  %v1744 = vrot.slane %v1720, 4
  %v1745 = vsel %vm600, %v1743, %v1744
  %v1746 = vrot.slane %v1721, 4
  %v1747 = vsel %vm600, %v1744, %v1746
  %v1748 = vrot.slane %v1722, 4
  %v1749 = vsel %vm600, %v1746, %v1748
  %v1750 = vrot.slane %v1723, 4
  %v1751 = vsel %vm600, %v1748, %v1750
  %v1752 = vrot.slane %v1724, 4
  %v1753 = vsel %vm600, %v1750, %v1752
  %v1754 = vrot.slane %v1725, 4
  %v1755 = vsel %vm600, %v1752, %v1754
  %v1756 = vrot.slane %v1726, 4
  %v1757 = vsel %vm600, %v1754, %v1756
  %v1758 = vrot.slane %v1727, 4
  %v1759 = vsel %vm600, %v1756, %v1758
  %v1760 = vrot.slane %v1728, 4
  %v1761 = vsel %vm600, %v1758, %v1760
  %v1762 = vrot.slane %v1729, 4
  %v1763 = vsel %vm600, %v1760, %v1762
  %v1764 = vrot.slane %v1730, 4
  %v1765 = vsel %vm600, %v1762, %v1764
  %1766 = vrot.lane.b32.xlu0 %v1743, 16
  %v1767 = vpop.permute.xlu0 %1766
  %1768 = vrot.lane.b32.xlu0 %v1745, 16
  %v1769 = vpop.permute.xlu0 %1768
  %1770 = vrot.lane.b32.xlu0 %v1747, 16
  %v1771 = vpop.permute.xlu0 %1770
  %1772 = vrot.lane.b32.xlu0 %v1749, 16
  %v1773 = vpop.permute.xlu0 %1772
  %1774 = vrot.lane.b32.xlu0 %v1751, 16
  %v1775 = vpop.permute.xlu0 %1774
  %1776 = vrot.lane.b32.xlu0 %v1753, 16
  %v1777 = vpop.permute.xlu0 %1776
  %1778 = vrot.lane.b32.xlu0 %v1755, 16
  %v1779 = vpop.permute.xlu0 %1778
  %1780 = vrot.lane.b32.xlu0 %v1757, 16
  %v1781 = vpop.permute.xlu0 %1780
  %1782 = vrot.lane.b32.xlu0 %v1759, 16
  %v1783 = vpop.permute.xlu0 %1782
  %1784 = vrot.lane.b32.xlu0 %v1761, 16
  %v1785 = vpop.permute.xlu0 %1784
  %1786 = vrot.lane.b32.xlu0 %v1763, 16
  %v1787 = vpop.permute.xlu0 %1786
  %1788 = vrot.lane.b32.xlu0 %v1765, 16
  %v1789 = vpop.permute.xlu0 %1788
  %1790 = vrot.lane.b32.xlu0 %v1764, 16
  %v1791 = vpop.permute.xlu0 %1790
  %1805 = vst.msk [vmem:[#allocation2 + $0x8] sm:$0xf0] %vm648, %v1767
  %1806 = vst.msk [vmem:[#allocation2 + $0x28] sm:$0xff] %vm650, %v1769
  %1807 = vst.msk [vmem:[#allocation2 + $0x48] sm:$0xff] %vm650, %v1771
  %1808 = vst.msk [vmem:[#allocation2 + $0x68] sm:$0xff] %vm650, %v1773
  %1809 = vst.msk [vmem:[#allocation2 + $0x88] sm:$0xff] %vm650, %v1775
  %1810 = vst.msk [vmem:[#allocation2 + $0xa8] sm:$0xff] %vm650, %v1777
  %1811 = vst.msk [vmem:[#allocation2 + $0xc8] sm:$0xff] %vm650, %v1779
  %1812 = vst.msk [vmem:[#allocation2 + $0xe8] sm:$0xff] %vm650, %v1781
  %1813 = vst.msk [vmem:[#allocation2 + $0x108] sm:$0xff] %vm650, %v1783
  %1814 = vst.msk [vmem:[#allocation2 + $0x128] sm:$0xff] %vm650, %v1785
  %1815 = vst.msk [vmem:[#allocation2 + $0x148] sm:$0xff] %vm650, %v1787
  %1816 = vst.msk [vmem:[#allocation2 + $0x168] sm:$0xff] %vm650, %v1789
  %1817 = vst.msk [vmem:[#allocation2 + $0x188] sm:$0x3] %vm659, %v1791
  %v1818 = vld [vmem:[%s1 + $0x2] sm:$0xff]
  %v1819 = vld [vmem:[%s1 + $0xa] sm:$0xff]
  %v1820 = vld [vmem:[%s1 + $0x12] sm:$0xff]
  %v1821 = vld [vmem:[%s1 + $0x1a] sm:$0xff]
  %v1822 = vld [vmem:[%s1 + $0x22] sm:$0xff]
  %v1823 = vld [vmem:[%s1 + $0x2a] sm:$0xff]
  %v1824 = vld [vmem:[%s1 + $0x32] sm:$0xff]
  %v1825 = vld [vmem:[%s1 + $0x3a] sm:$0xff]
  %v1826 = vld [vmem:[%s1 + $0x42] sm:$0xff]
  %v1827 = vld [vmem:[%s1 + $0x4a] sm:$0xff]
  %v1828 = vld [vmem:[%s1 + $0x52] sm:$0xff]
  %v1829 = vld [vmem:[%s1 + $0x5a] sm:$0xff]
  %1831 = vset.pattern.permute.xlu0 11
  %1832 = vperm.xlu0 %1831, %v1818
  %v1833 = vpop.permute.xlu0 %1832
  %1836 = vset.pattern.permute.xlu0 11
  %1837 = vperm.xlu0 %1836, %v1819
  %v1838 = vpop.permute.xlu0 %1837
  %1841 = vset.pattern.permute.xlu0 11
  %1842 = vperm.xlu0 %1841, %v1820
  %v1843 = vpop.permute.xlu0 %1842
  %1846 = vset.pattern.permute.xlu0 11
  %1847 = vperm.xlu0 %1846, %v1821
  %v1848 = vpop.permute.xlu0 %1847
  %1851 = vset.pattern.permute.xlu0 11
  %1852 = vperm.xlu0 %1851, %v1822
  %v1853 = vpop.permute.xlu0 %1852
  %1856 = vset.pattern.permute.xlu0 11
  %1857 = vperm.xlu0 %1856, %v1823
  %v1858 = vpop.permute.xlu0 %1857
  %1861 = vset.pattern.permute.xlu0 11
  %1862 = vperm.xlu0 %1861, %v1824
  %v1863 = vpop.permute.xlu0 %1862
  %1866 = vset.pattern.permute.xlu0 11
  %1867 = vperm.xlu0 %1866, %v1825
  %v1868 = vpop.permute.xlu0 %1867
  %1871 = vset.pattern.permute.xlu0 11
  %1872 = vperm.xlu0 %1871, %v1826
  %v1873 = vpop.permute.xlu0 %1872
  %1876 = vset.pattern.permute.xlu0 11
  %1877 = vperm.xlu0 %1876, %v1827
  %v1878 = vpop.permute.xlu0 %1877
  %1881 = vset.pattern.permute.xlu0 11
  %1882 = vperm.xlu0 %1881, %v1828
  %v1883 = vpop.permute.xlu0 %1882
  %1886 = vset.pattern.permute.xlu0 11
  %1887 = vperm.xlu0 %1886, %v1829
  %v1888 = vpop.permute.xlu0 %1887
  %v1890 = vmul.f32 %v240, %v1833
  %v1891 = vmul.f32 %v241, %v1838
  %v1892 = vmul.f32 %v242, %v1843
  %v1893 = vmul.f32 %v243, %v1848
  %v1894 = vmul.f32 %v244, %v1853
  %v1895 = vmul.f32 %v245, %v1858
  %v1896 = vmul.f32 %v246, %v1863
  %v1897 = vmul.f32 %v247, %v1868
  %v1898 = vmul.f32 %v248, %v1873
  %v1899 = vmul.f32 %v249, %v1878
  %v1900 = vmul.f32 %v250, %v1883
  %v1901 = vmul.f32 %v251, %v1888
  %v1914 = vrot.slane %v1890, 6
  %v1915 = vrot.slane %v1891, 6
  %v1916 = vsel %vm106, %v1914, %v1915
  %v1917 = vrot.slane %v1892, 6
  %v1918 = vsel %vm106, %v1915, %v1917
  %v1919 = vrot.slane %v1893, 6
  %v1920 = vsel %vm106, %v1917, %v1919
  %v1921 = vrot.slane %v1894, 6
  %v1922 = vsel %vm106, %v1919, %v1921
  %v1923 = vrot.slane %v1895, 6
  %v1924 = vsel %vm106, %v1921, %v1923
  %v1925 = vrot.slane %v1896, 6
  %v1926 = vsel %vm106, %v1923, %v1925
  %v1927 = vrot.slane %v1897, 6
  %v1928 = vsel %vm106, %v1925, %v1927
  %v1929 = vrot.slane %v1898, 6
  %v1930 = vsel %vm106, %v1927, %v1929
  %v1931 = vrot.slane %v1899, 6
  %v1932 = vsel %vm106, %v1929, %v1931
  %v1933 = vrot.slane %v1900, 6
  %v1934 = vsel %vm106, %v1931, %v1933
  %v1935 = vrot.slane %v1901, 6
  %v1936 = vsel %vm106, %v1933, %v1935
  %1937 = vrot.lane.b32.xlu0 %v1914, 32
  %v1938 = vpop.permute.xlu0 %1937
  %1939 = vrot.lane.b32.xlu0 %v1916, 32
  %v1940 = vpop.permute.xlu0 %1939
  %1941 = vrot.lane.b32.xlu0 %v1918, 32
  %v1942 = vpop.permute.xlu0 %1941
  %1943 = vrot.lane.b32.xlu0 %v1920, 32
  %v1944 = vpop.permute.xlu0 %1943
  %1945 = vrot.lane.b32.xlu0 %v1922, 32
  %v1946 = vpop.permute.xlu0 %1945
  %1947 = vrot.lane.b32.xlu0 %v1924, 32
  %v1948 = vpop.permute.xlu0 %1947
  %1949 = vrot.lane.b32.xlu0 %v1926, 32
  %v1950 = vpop.permute.xlu0 %1949
  %1951 = vrot.lane.b32.xlu0 %v1928, 32
  %v1952 = vpop.permute.xlu0 %1951
  %1953 = vrot.lane.b32.xlu0 %v1930, 32
  %v1954 = vpop.permute.xlu0 %1953
  %1955 = vrot.lane.b32.xlu0 %v1932, 32
  %v1956 = vpop.permute.xlu0 %1955
  %1957 = vrot.lane.b32.xlu0 %v1934, 32
  %v1958 = vpop.permute.xlu0 %1957
  %1959 = vrot.lane.b32.xlu0 %v1936, 32
  %v1960 = vpop.permute.xlu0 %1959
  %1961 = vrot.lane.b32.xlu0 %v1935, 32
  %v1962 = vpop.permute.xlu0 %1961
  %1976 = vst.msk [vmem:[#allocation2 + $0x8] sm:$0xfc] %vm780, %v1938
  %1977 = vst.msk [vmem:[#allocation2 + $0x28] sm:$0xff] %vm782, %v1940
  %1978 = vst.msk [vmem:[#allocation2 + $0x48] sm:$0xff] %vm782, %v1942
  %1979 = vst.msk [vmem:[#allocation2 + $0x68] sm:$0xff] %vm782, %v1944
  %1980 = vst.msk [vmem:[#allocation2 + $0x88] sm:$0xff] %vm782, %v1946
  %1981 = vst.msk [vmem:[#allocation2 + $0xa8] sm:$0xff] %vm782, %v1948
  %1982 = vst.msk [vmem:[#allocation2 + $0xc8] sm:$0xff] %vm782, %v1950
  %1983 = vst.msk [vmem:[#allocation2 + $0xe8] sm:$0xff] %vm782, %v1952
  %1984 = vst.msk [vmem:[#allocation2 + $0x108] sm:$0xff] %vm782, %v1954
  %1985 = vst.msk [vmem:[#allocation2 + $0x128] sm:$0xff] %vm782, %v1956
  %1986 = vst.msk [vmem:[#allocation2 + $0x148] sm:$0xff] %vm782, %v1958
  %1987 = vst.msk [vmem:[#allocation2 + $0x168] sm:$0xff] %vm782, %v1960
  %1988 = vst.msk [vmem:[#allocation2 + $0x188] sm:$0x3] %vm791, %v1962
  %v1989 = vld [vmem:[%s1] sm:$0xff]
  %v1990 = vld [vmem:[%s1 + $0x8] sm:$0xff]
  %v1991 = vld [vmem:[%s1 + $0x10] sm:$0xff]
  %v1992 = vld [vmem:[%s1 + $0x18] sm:$0xff]
  %v1993 = vld [vmem:[%s1 + $0x20] sm:$0xff]
  %v1994 = vld [vmem:[%s1 + $0x28] sm:$0xff]
  %v1995 = vld [vmem:[%s1 + $0x30] sm:$0xff]
  %v1996 = vld [vmem:[%s1 + $0x38] sm:$0xff]
  %v1997 = vld [vmem:[%s1 + $0x40] sm:$0xff]
  %v1998 = vld [vmem:[%s1 + $0x48] sm:$0xff]
  %v1999 = vld [vmem:[%s1 + $0x50] sm:$0xff]
  %v2000 = vld [vmem:[%s1 + $0x58] sm:$0xff]
  %v2001 = vld [vmem:[%s1 + $0x60] sm:$0x3]
  %2003 = vset.pattern.permute.xlu0 12
  %2004 = vperm.xlu0 %2003, %v1989
  %v2005 = vpop.permute.xlu0 %2004
  %2008 = vset.pattern.permute.xlu0 12
  %2009 = vperm.xlu0 %2008, %v1990
  %v2010 = vpop.permute.xlu0 %2009
  %2013 = vset.pattern.permute.xlu0 12
  %2014 = vperm.xlu0 %2013, %v1991
  %v2015 = vpop.permute.xlu0 %2014
  %2018 = vset.pattern.permute.xlu0 12
  %2019 = vperm.xlu0 %2018, %v1992
  %v2020 = vpop.permute.xlu0 %2019
  %2023 = vset.pattern.permute.xlu0 12
  %2024 = vperm.xlu0 %2023, %v1993
  %v2025 = vpop.permute.xlu0 %2024
  %2028 = vset.pattern.permute.xlu0 12
  %2029 = vperm.xlu0 %2028, %v1994
  %v2030 = vpop.permute.xlu0 %2029
  %2033 = vset.pattern.permute.xlu0 12
  %2034 = vperm.xlu0 %2033, %v1995
  %v2035 = vpop.permute.xlu0 %2034
  %2038 = vset.pattern.permute.xlu0 12
  %2039 = vperm.xlu0 %2038, %v1996
  %v2040 = vpop.permute.xlu0 %2039
  %2043 = vset.pattern.permute.xlu0 12
  %2044 = vperm.xlu0 %2043, %v1997
  %v2045 = vpop.permute.xlu0 %2044
  %2048 = vset.pattern.permute.xlu0 12
  %2049 = vperm.xlu0 %2048, %v1998
  %v2050 = vpop.permute.xlu0 %2049
  %2053 = vset.pattern.permute.xlu0 12
  %2054 = vperm.xlu0 %2053, %v1999
  %v2055 = vpop.permute.xlu0 %2054
  %2058 = vset.pattern.permute.xlu0 12
  %2059 = vperm.xlu0 %2058, %v2000
  %v2060 = vpop.permute.xlu0 %2059
  %2063 = vset.pattern.permute.xlu0 12
  %2064 = vperm.xlu0 %2063, %v2001
  %v2065 = vpop.permute.xlu0 %2064
  %v2067 = vmul.f32 %v240, %v2005
  %v2068 = vmul.f32 %v241, %v2010
  %v2069 = vmul.f32 %v242, %v2015
  %v2070 = vmul.f32 %v243, %v2020
  %v2071 = vmul.f32 %v244, %v2025
  %v2072 = vmul.f32 %v245, %v2030
  %v2073 = vmul.f32 %v246, %v2035
  %v2074 = vmul.f32 %v247, %v2040
  %v2075 = vmul.f32 %v248, %v2045
  %v2076 = vmul.f32 %v249, %v2050
  %v2077 = vmul.f32 %v250, %v2055
  %v2078 = vmul.f32 %v251, %v2060
  %v2079 = vmul.f32 %v252, %v2065
  %2093 = vrot.lane.b32.xlu0 %v2067, 48
  %v2094 = vpop.permute.xlu0 %2093
  %2095 = vrot.lane.b32.xlu0 %v2068, 48
  %v2096 = vpop.permute.xlu0 %2095
  %2097 = vrot.lane.b32.xlu0 %v2069, 48
  %v2098 = vpop.permute.xlu0 %2097
  %2099 = vrot.lane.b32.xlu0 %v2070, 48
  %v2100 = vpop.permute.xlu0 %2099
  %2101 = vrot.lane.b32.xlu0 %v2071, 48
  %v2102 = vpop.permute.xlu0 %2101
  %2103 = vrot.lane.b32.xlu0 %v2072, 48
  %v2104 = vpop.permute.xlu0 %2103
  %2105 = vrot.lane.b32.xlu0 %v2073, 48
  %v2106 = vpop.permute.xlu0 %2105
  %2107 = vrot.lane.b32.xlu0 %v2074, 48
  %v2108 = vpop.permute.xlu0 %2107
  %2109 = vrot.lane.b32.xlu0 %v2075, 48
  %v2110 = vpop.permute.xlu0 %2109
  %2111 = vrot.lane.b32.xlu0 %v2076, 48
  %v2112 = vpop.permute.xlu0 %2111
  %2113 = vrot.lane.b32.xlu0 %v2077, 48
  %v2114 = vpop.permute.xlu0 %2113
  %2115 = vrot.lane.b32.xlu0 %v2078, 48
  %v2116 = vpop.permute.xlu0 %2115
  %2117 = vrot.lane.b32.xlu0 %v2079, 48
  %v2118 = vpop.permute.xlu0 %2117
  %2132 = vst.msk [vmem:[#allocation2 + $0x8] sm:$0xff] %vm903, %v2094
  %2133 = vst.msk [vmem:[#allocation2 + $0x28] sm:$0xff] %vm903, %v2096
  %2134 = vst.msk [vmem:[#allocation2 + $0x48] sm:$0xff] %vm903, %v2098
  %2135 = vst.msk [vmem:[#allocation2 + $0x68] sm:$0xff] %vm903, %v2100
  %2136 = vst.msk [vmem:[#allocation2 + $0x88] sm:$0xff] %vm903, %v2102
  %2137 = vst.msk [vmem:[#allocation2 + $0xa8] sm:$0xff] %vm903, %v2104
  %2138 = vst.msk [vmem:[#allocation2 + $0xc8] sm:$0xff] %vm903, %v2106
  %2139 = vst.msk [vmem:[#allocation2 + $0xe8] sm:$0xff] %vm903, %v2108
  %2140 = vst.msk [vmem:[#allocation2 + $0x108] sm:$0xff] %vm903, %v2110
  %2141 = vst.msk [vmem:[#allocation2 + $0x128] sm:$0xff] %vm903, %v2112
  %2142 = vst.msk [vmem:[#allocation2 + $0x148] sm:$0xff] %vm903, %v2114
  %2143 = vst.msk [vmem:[#allocation2 + $0x168] sm:$0xff] %vm903, %v2116
  %2144 = vst.msk [vmem:[#allocation2 + $0x188] sm:$0x3] %vm913, %v2118
  %v2145 = vld [vmem:[%s1] sm:$0xff]
  %v2146 = vld [vmem:[%s1 + $0x8] sm:$0xff]
  %v2147 = vld [vmem:[%s1 + $0x10] sm:$0xff]
  %v2148 = vld [vmem:[%s1 + $0x18] sm:$0xff]
  %v2149 = vld [vmem:[%s1 + $0x20] sm:$0xff]
  %v2150 = vld [vmem:[%s1 + $0x28] sm:$0xff]
  %v2151 = vld [vmem:[%s1 + $0x30] sm:$0xff]
  %v2152 = vld [vmem:[%s1 + $0x38] sm:$0xff]
  %v2153 = vld [vmem:[%s1 + $0x40] sm:$0xff]
  %v2154 = vld [vmem:[%s1 + $0x48] sm:$0xff]
  %v2155 = vld [vmem:[%s1 + $0x50] sm:$0xff]
  %v2156 = vld [vmem:[%s1 + $0x58] sm:$0xff]
  %2158 = vset.pattern.permute.xlu0 13
  %2159 = vperm.xlu0 %2158, %v2145
  %v2160 = vpop.permute.xlu0 %2159
  %2162 = vset.pattern.permute.xlu0 13
  %2163 = vperm.xlu0 %2162, %v2146
  %v2164 = vpop.permute.xlu0 %2163
  %2166 = vset.pattern.permute.xlu0 13
  %2167 = vperm.xlu0 %2166, %v2147
  %v2168 = vpop.permute.xlu0 %2167
  %2170 = vset.pattern.permute.xlu0 13
  %2171 = vperm.xlu0 %2170, %v2148
  %v2172 = vpop.permute.xlu0 %2171
  %2174 = vset.pattern.permute.xlu0 13
  %2175 = vperm.xlu0 %2174, %v2149
  %v2176 = vpop.permute.xlu0 %2175
  %2178 = vset.pattern.permute.xlu0 13
  %2179 = vperm.xlu0 %2178, %v2150
  %v2180 = vpop.permute.xlu0 %2179
  %2182 = vset.pattern.permute.xlu0 13
  %2183 = vperm.xlu0 %2182, %v2151
  %v2184 = vpop.permute.xlu0 %2183
  %2186 = vset.pattern.permute.xlu0 13
  %2187 = vperm.xlu0 %2186, %v2152
  %v2188 = vpop.permute.xlu0 %2187
  %2190 = vset.pattern.permute.xlu0 13
  %2191 = vperm.xlu0 %2190, %v2153
  %v2192 = vpop.permute.xlu0 %2191
  %2194 = vset.pattern.permute.xlu0 13
  %2195 = vperm.xlu0 %2194, %v2154
  %v2196 = vpop.permute.xlu0 %2195
  %2198 = vset.pattern.permute.xlu0 13
  %2199 = vperm.xlu0 %2198, %v2155
  %v2200 = vpop.permute.xlu0 %2199
  %2202 = vset.pattern.permute.xlu0 13
  %2203 = vperm.xlu0 %2202, %v2156
  %v2204 = vpop.permute.xlu0 %2203
  %v2205 = vrot.slane %v2160, 6
  %v2206 = vrot.slane %v2164, 6
  %v2207 = vsel %vm106, %v2205, %v2206
  %v2208 = vrot.slane %v2168, 6
  %v2209 = vsel %vm106, %v2206, %v2208
  %v2210 = vrot.slane %v2172, 6
  %v2211 = vsel %vm106, %v2208, %v2210
  %v2212 = vrot.slane %v2176, 6
  %v2213 = vsel %vm106, %v2210, %v2212
  %v2214 = vrot.slane %v2180, 6
  %v2215 = vsel %vm106, %v2212, %v2214
  %v2216 = vrot.slane %v2184, 6
  %v2217 = vsel %vm106, %v2214, %v2216
  %v2218 = vrot.slane %v2188, 6
  %v2219 = vsel %vm106, %v2216, %v2218
  %v2220 = vrot.slane %v2192, 6
  %v2221 = vsel %vm106, %v2218, %v2220
  %v2222 = vrot.slane %v2196, 6
  %v2223 = vsel %vm106, %v2220, %v2222
  %v2224 = vrot.slane %v2200, 6
  %v2225 = vsel %vm106, %v2222, %v2224
  %v2226 = vrot.slane %v2204, 6
  %v2227 = vsel %vm106, %v2224, %v2226
  %v2241 = vmul.f32 %v240, %v2205
  %v2242 = vmul.f32 %v241, %v2207
  %v2243 = vmul.f32 %v242, %v2209
  %v2244 = vmul.f32 %v243, %v2211
  %v2245 = vmul.f32 %v244, %v2213
  %v2246 = vmul.f32 %v245, %v2215
  %v2247 = vmul.f32 %v246, %v2217
  %v2248 = vmul.f32 %v247, %v2219
  %v2249 = vmul.f32 %v248, %v2221
  %v2250 = vmul.f32 %v249, %v2223
  %v2251 = vmul.f32 %v250, %v2225
  %v2252 = vmul.f32 %v251, %v2227
  %v2253 = vmul.f32 %v252, %v2226
  %v2267 = vrot.slane %v2241, 2
  %v2268 = vrot.slane %v2242, 2
  %v2269 = vsel %vm487, %v2267, %v2268
  %v2270 = vrot.slane %v2243, 2
  %v2271 = vsel %vm487, %v2268, %v2270
  %v2272 = vrot.slane %v2244, 2
  %v2273 = vsel %vm487, %v2270, %v2272
  %v2274 = vrot.slane %v2245, 2
  %v2275 = vsel %vm487, %v2272, %v2274
  %v2276 = vrot.slane %v2246, 2
  %v2277 = vsel %vm487, %v2274, %v2276
  %v2278 = vrot.slane %v2247, 2
  %v2279 = vsel %vm487, %v2276, %v2278
  %v2280 = vrot.slane %v2248, 2
  %v2281 = vsel %vm487, %v2278, %v2280
  %v2282 = vrot.slane %v2249, 2
  %v2283 = vsel %vm487, %v2280, %v2282
  %v2284 = vrot.slane %v2250, 2
  %v2285 = vsel %vm487, %v2282, %v2284
  %v2286 = vrot.slane %v2251, 2
  %v2287 = vsel %vm487, %v2284, %v2286
  %v2288 = vrot.slane %v2252, 2
  %v2289 = vsel %vm487, %v2286, %v2288
  %v2290 = vrot.slane %v2253, 2
  %v2291 = vsel %vm487, %v2288, %v2290
  %2292 = vrot.lane.b32.xlu0 %v2269, 64
  %v2293 = vpop.permute.xlu0 %2292
  %2294 = vrot.lane.b32.xlu0 %v2271, 64
  %v2295 = vpop.permute.xlu0 %2294
  %2296 = vrot.lane.b32.xlu0 %v2273, 64
  %v2297 = vpop.permute.xlu0 %2296
  %2298 = vrot.lane.b32.xlu0 %v2275, 64
  %v2299 = vpop.permute.xlu0 %2298
  %2300 = vrot.lane.b32.xlu0 %v2277, 64
  %v2301 = vpop.permute.xlu0 %2300
  %2302 = vrot.lane.b32.xlu0 %v2279, 64
  %v2303 = vpop.permute.xlu0 %2302
  %2304 = vrot.lane.b32.xlu0 %v2281, 64
  %v2305 = vpop.permute.xlu0 %2304
  %2306 = vrot.lane.b32.xlu0 %v2283, 64
  %v2307 = vpop.permute.xlu0 %2306
  %2308 = vrot.lane.b32.xlu0 %v2285, 64
  %v2309 = vpop.permute.xlu0 %2308
  %2310 = vrot.lane.b32.xlu0 %v2287, 64
  %v2311 = vpop.permute.xlu0 %2310
  %2312 = vrot.lane.b32.xlu0 %v2289, 64
  %v2313 = vpop.permute.xlu0 %2312
  %2314 = vrot.lane.b32.xlu0 %v2291, 64
  %v2315 = vpop.permute.xlu0 %2314
  %2328 = vst.msk [vmem:[#allocation2 + $0x8] sm:$0xff] %vm1049, %v2293
  %2329 = vst.msk [vmem:[#allocation2 + $0x28] sm:$0xff] %vm1049, %v2295
  %2330 = vst.msk [vmem:[#allocation2 + $0x48] sm:$0xff] %vm1049, %v2297
  %2331 = vst.msk [vmem:[#allocation2 + $0x68] sm:$0xff] %vm1049, %v2299
  %2332 = vst.msk [vmem:[#allocation2 + $0x88] sm:$0xff] %vm1049, %v2301
  %2333 = vst.msk [vmem:[#allocation2 + $0xa8] sm:$0xff] %vm1049, %v2303
  %2334 = vst.msk [vmem:[#allocation2 + $0xc8] sm:$0xff] %vm1049, %v2305
  %2335 = vst.msk [vmem:[#allocation2 + $0xe8] sm:$0xff] %vm1049, %v2307
  %2336 = vst.msk [vmem:[#allocation2 + $0x108] sm:$0xff] %vm1049, %v2309
  %2337 = vst.msk [vmem:[#allocation2 + $0x128] sm:$0xff] %vm1049, %v2311
  %2338 = vst.msk [vmem:[#allocation2 + $0x148] sm:$0xff] %vm1049, %v2313
  %2339 = vst.msk [vmem:[#allocation2 + $0x168] sm:$0xff] %vm1049, %v2315
  %v2340 = vld [vmem:[%s1] sm:$0xff]
  %v2341 = vld [vmem:[%s1 + $0x8] sm:$0xff]
  %v2342 = vld [vmem:[%s1 + $0x10] sm:$0xff]
  %v2343 = vld [vmem:[%s1 + $0x18] sm:$0xff]
  %v2344 = vld [vmem:[%s1 + $0x20] sm:$0xff]
  %v2345 = vld [vmem:[%s1 + $0x28] sm:$0xff]
  %v2346 = vld [vmem:[%s1 + $0x30] sm:$0xff]
  %v2347 = vld [vmem:[%s1 + $0x38] sm:$0xff]
  %v2348 = vld [vmem:[%s1 + $0x40] sm:$0xff]
  %v2349 = vld [vmem:[%s1 + $0x48] sm:$0xff]
  %v2350 = vld [vmem:[%s1 + $0x50] sm:$0xff]
  %v2351 = vld [vmem:[%s1 + $0x58] sm:$0x3f]
  %2353 = vset.pattern.permute.xlu0 14
  %2354 = vperm.xlu0 %2353, %v2340
  %v2355 = vpop.permute.xlu0 %2354
  %2357 = vset.pattern.permute.xlu0 14
  %2358 = vperm.xlu0 %2357, %v2341
  %v2359 = vpop.permute.xlu0 %2358
  %2361 = vset.pattern.permute.xlu0 14
  %2362 = vperm.xlu0 %2361, %v2342
  %v2363 = vpop.permute.xlu0 %2362
  %2365 = vset.pattern.permute.xlu0 14
  %2366 = vperm.xlu0 %2365, %v2343
  %v2367 = vpop.permute.xlu0 %2366
  %2369 = vset.pattern.permute.xlu0 14
  %2370 = vperm.xlu0 %2369, %v2344
  %v2371 = vpop.permute.xlu0 %2370
  %2373 = vset.pattern.permute.xlu0 14
  %2374 = vperm.xlu0 %2373, %v2345
  %v2375 = vpop.permute.xlu0 %2374
  %2377 = vset.pattern.permute.xlu0 14
  %2378 = vperm.xlu0 %2377, %v2346
  %v2379 = vpop.permute.xlu0 %2378
  %2381 = vset.pattern.permute.xlu0 14
  %2382 = vperm.xlu0 %2381, %v2347
  %v2383 = vpop.permute.xlu0 %2382
  %2385 = vset.pattern.permute.xlu0 14
  %2386 = vperm.xlu0 %2385, %v2348
  %v2387 = vpop.permute.xlu0 %2386
  %2389 = vset.pattern.permute.xlu0 14
  %2390 = vperm.xlu0 %2389, %v2349
  %v2391 = vpop.permute.xlu0 %2390
  %2393 = vset.pattern.permute.xlu0 14
  %2394 = vperm.xlu0 %2393, %v2350
  %v2395 = vpop.permute.xlu0 %2394
  %2397 = vset.pattern.permute.xlu0 14
  %2398 = vperm.xlu0 %2397, %v2351
  %v2399 = vpop.permute.xlu0 %2398
  %v2400 = vrot.slane %v2355, 4
  %v2401 = vrot.slane %v2359, 4
  %v2402 = vsel %vm600, %v2400, %v2401
  %v2403 = vrot.slane %v2363, 4
  %v2404 = vsel %vm600, %v2401, %v2403
  %v2405 = vrot.slane %v2367, 4
  %v2406 = vsel %vm600, %v2403, %v2405
  %v2407 = vrot.slane %v2371, 4
  %v2408 = vsel %vm600, %v2405, %v2407
  %v2409 = vrot.slane %v2375, 4
  %v2410 = vsel %vm600, %v2407, %v2409
  %v2411 = vrot.slane %v2379, 4
  %v2412 = vsel %vm600, %v2409, %v2411
  %v2413 = vrot.slane %v2383, 4
  %v2414 = vsel %vm600, %v2411, %v2413
  %v2415 = vrot.slane %v2387, 4
  %v2416 = vsel %vm600, %v2413, %v2415
  %v2417 = vrot.slane %v2391, 4
  %v2418 = vsel %vm600, %v2415, %v2417
  %v2419 = vrot.slane %v2395, 4
  %v2420 = vsel %vm600, %v2417, %v2419
  %v2421 = vrot.slane %v2399, 4
  %v2422 = vsel %vm600, %v2419, %v2421
  %v2436 = vmul.f32 %v240, %v2400
  %v2437 = vmul.f32 %v241, %v2402
  %v2438 = vmul.f32 %v242, %v2404
  %v2439 = vmul.f32 %v243, %v2406
  %v2440 = vmul.f32 %v244, %v2408
  %v2441 = vmul.f32 %v245, %v2410
  %v2442 = vmul.f32 %v246, %v2412
  %v2443 = vmul.f32 %v247, %v2414
  %v2444 = vmul.f32 %v248, %v2416
  %v2445 = vmul.f32 %v249, %v2418
  %v2446 = vmul.f32 %v250, %v2420
  %v2447 = vmul.f32 %v251, %v2422
  %v2448 = vmul.f32 %v252, %v2421
  %v2462 = vrot.slane %v2436, 4
  %v2463 = vrot.slane %v2437, 4
  %v2464 = vsel %vm600, %v2462, %v2463
  %v2465 = vrot.slane %v2438, 4
  %v2466 = vsel %vm600, %v2463, %v2465
  %v2467 = vrot.slane %v2439, 4
  %v2468 = vsel %vm600, %v2465, %v2467
  %v2469 = vrot.slane %v2440, 4
  %v2470 = vsel %vm600, %v2467, %v2469
  %v2471 = vrot.slane %v2441, 4
  %v2472 = vsel %vm600, %v2469, %v2471
  %v2473 = vrot.slane %v2442, 4
  %v2474 = vsel %vm600, %v2471, %v2473
  %v2475 = vrot.slane %v2443, 4
  %v2476 = vsel %vm600, %v2473, %v2475
  %v2477 = vrot.slane %v2444, 4
  %v2478 = vsel %vm600, %v2475, %v2477
  %v2479 = vrot.slane %v2445, 4
  %v2480 = vsel %vm600, %v2477, %v2479
  %v2481 = vrot.slane %v2446, 4
  %v2482 = vsel %vm600, %v2479, %v2481
  %v2483 = vrot.slane %v2447, 4
  %v2484 = vsel %vm600, %v2481, %v2483
  %v2485 = vrot.slane %v2448, 4
  %v2486 = vsel %vm600, %v2483, %v2485
  %2487 = vrot.lane.b32.xlu0 %v2464, 80
  %v2488 = vpop.permute.xlu0 %2487
  %2489 = vrot.lane.b32.xlu0 %v2466, 80
  %v2490 = vpop.permute.xlu0 %2489
  %2491 = vrot.lane.b32.xlu0 %v2468, 80
  %v2492 = vpop.permute.xlu0 %2491
  %2493 = vrot.lane.b32.xlu0 %v2470, 80
  %v2494 = vpop.permute.xlu0 %2493
  %2495 = vrot.lane.b32.xlu0 %v2472, 80
  %v2496 = vpop.permute.xlu0 %2495
  %2497 = vrot.lane.b32.xlu0 %v2474, 80
  %v2498 = vpop.permute.xlu0 %2497
  %2499 = vrot.lane.b32.xlu0 %v2476, 80
  %v2500 = vpop.permute.xlu0 %2499
  %2501 = vrot.lane.b32.xlu0 %v2478, 80
  %v2502 = vpop.permute.xlu0 %2501
  %2503 = vrot.lane.b32.xlu0 %v2480, 80
  %v2504 = vpop.permute.xlu0 %2503
  %2505 = vrot.lane.b32.xlu0 %v2482, 80
  %v2506 = vpop.permute.xlu0 %2505
  %2507 = vrot.lane.b32.xlu0 %v2484, 80
  %v2508 = vpop.permute.xlu0 %2507
  %2509 = vrot.lane.b32.xlu0 %v2486, 80
  %v2510 = vpop.permute.xlu0 %2509
  %2523 = vst.msk [vmem:[#allocation2 + $0x8] sm:$0xff] %vm1182, %v2488
  %2524 = vst.msk [vmem:[#allocation2 + $0x28] sm:$0xff] %vm1182, %v2490
  %2525 = vst.msk [vmem:[#allocation2 + $0x48] sm:$0xff] %vm1182, %v2492
  %2526 = vst.msk [vmem:[#allocation2 + $0x68] sm:$0xff] %vm1182, %v2494
  %2527 = vst.msk [vmem:[#allocation2 + $0x88] sm:$0xff] %vm1182, %v2496
  %2528 = vst.msk [vmem:[#allocation2 + $0xa8] sm:$0xff] %vm1182, %v2498
  %2529 = vst.msk [vmem:[#allocation2 + $0xc8] sm:$0xff] %vm1182, %v2500
  %2530 = vst.msk [vmem:[#allocation2 + $0xe8] sm:$0xff] %vm1182, %v2502
  %2531 = vst.msk [vmem:[#allocation2 + $0x108] sm:$0xff] %vm1182, %v2504
  %2532 = vst.msk [vmem:[#allocation2 + $0x128] sm:$0xff] %vm1182, %v2506
  %2533 = vst.msk [vmem:[#allocation2 + $0x148] sm:$0xff] %vm1182, %v2508
  %vm2534 = vcmask 915200
  %2535 = vst.msk [vmem:[#allocation2 + $0x168] sm:$0x3f] %vm2534, %v2510
  %v2536 = vld [vmem:[%s1] sm:$0xff]
  %v2537 = vld [vmem:[%s1 + $0x8] sm:$0xff]
  %v2538 = vld [vmem:[%s1 + $0x10] sm:$0xff]
  %v2539 = vld [vmem:[%s1 + $0x18] sm:$0xff]
  %v2540 = vld [vmem:[%s1 + $0x20] sm:$0xff]
  %v2541 = vld [vmem:[%s1 + $0x28] sm:$0xff]
  %v2542 = vld [vmem:[%s1 + $0x30] sm:$0xff]
  %v2543 = vld [vmem:[%s1 + $0x38] sm:$0xff]
  %v2544 = vld [vmem:[%s1 + $0x40] sm:$0xff]
  %v2545 = vld [vmem:[%s1 + $0x48] sm:$0xff]
  %v2546 = vld [vmem:[%s1 + $0x50] sm:$0xff]
  %2548 = vset.pattern.permute.xlu0 15
  %2549 = vperm.xlu0 %2548, %v2536
  %v2550 = vpop.permute.xlu0 %2549
  %2552 = vset.pattern.permute.xlu0 15
  %2553 = vperm.xlu0 %2552, %v2537
  %v2554 = vpop.permute.xlu0 %2553
  %2556 = vset.pattern.permute.xlu0 15
  %2557 = vperm.xlu0 %2556, %v2538
  %v2558 = vpop.permute.xlu0 %2557
  %2560 = vset.pattern.permute.xlu0 15
  %2561 = vperm.xlu0 %2560, %v2539
  %v2562 = vpop.permute.xlu0 %2561
  %2564 = vset.pattern.permute.xlu0 15
  %2565 = vperm.xlu0 %2564, %v2540
  %v2566 = vpop.permute.xlu0 %2565
  %2568 = vset.pattern.permute.xlu0 15
  %2569 = vperm.xlu0 %2568, %v2541
  %v2570 = vpop.permute.xlu0 %2569
  %2572 = vset.pattern.permute.xlu0 15
  %2573 = vperm.xlu0 %2572, %v2542
  %v2574 = vpop.permute.xlu0 %2573
  %2576 = vset.pattern.permute.xlu0 15
  %2577 = vperm.xlu0 %2576, %v2543
  %v2578 = vpop.permute.xlu0 %2577
  %2580 = vset.pattern.permute.xlu0 15
  %2581 = vperm.xlu0 %2580, %v2544
  %v2582 = vpop.permute.xlu0 %2581
  %2584 = vset.pattern.permute.xlu0 15
  %2585 = vperm.xlu0 %2584, %v2545
  %v2586 = vpop.permute.xlu0 %2585
  %2588 = vset.pattern.permute.xlu0 15
  %2589 = vperm.xlu0 %2588, %v2546
  %v2590 = vpop.permute.xlu0 %2589
  %v2591 = vrot.slane %v2550, 6
  %v2592 = vrot.slane %v2554, 6
  %v2593 = vsel %vm106, %v2591, %v2592
  %v2594 = vrot.slane %v2558, 6
  %v2595 = vsel %vm106, %v2592, %v2594
  %v2596 = vrot.slane %v2562, 6
  %v2597 = vsel %vm106, %v2594, %v2596
  %v2598 = vrot.slane %v2566, 6
  %v2599 = vsel %vm106, %v2596, %v2598
  %v2600 = vrot.slane %v2570, 6
  %v2601 = vsel %vm106, %v2598, %v2600
  %v2602 = vrot.slane %v2574, 6
  %v2603 = vsel %vm106, %v2600, %v2602
  %v2604 = vrot.slane %v2578, 6
  %v2605 = vsel %vm106, %v2602, %v2604
  %v2606 = vrot.slane %v2582, 6
  %v2607 = vsel %vm106, %v2604, %v2606
  %v2608 = vrot.slane %v2586, 6
  %v2609 = vsel %vm106, %v2606, %v2608
  %v2610 = vrot.slane %v2590, 6
  %v2611 = vsel %vm106, %v2608, %v2610
  %v2624 = vmul.f32 %v241, %v2591
  %v2625 = vmul.f32 %v242, %v2593
  %v2626 = vmul.f32 %v243, %v2595
  %v2627 = vmul.f32 %v244, %v2597
  %v2628 = vmul.f32 %v245, %v2599
  %v2629 = vmul.f32 %v246, %v2601
  %v2630 = vmul.f32 %v247, %v2603
  %v2631 = vmul.f32 %v248, %v2605
  %v2632 = vmul.f32 %v249, %v2607
  %v2633 = vmul.f32 %v250, %v2609
  %v2634 = vmul.f32 %v251, %v2611
  %v2635 = vmul.f32 %v252, %v2610
  %v2648 = vrot.slane %v2624, 2
  %v2649 = vrot.slane %v2625, 2
  %v2650 = vsel %vm487, %v2648, %v2649
  %v2651 = vrot.slane %v2626, 2
  %v2652 = vsel %vm487, %v2649, %v2651
  %v2653 = vrot.slane %v2627, 2
  %v2654 = vsel %vm487, %v2651, %v2653
  %v2655 = vrot.slane %v2628, 2
  %v2656 = vsel %vm487, %v2653, %v2655
  %v2657 = vrot.slane %v2629, 2
  %v2658 = vsel %vm487, %v2655, %v2657
  %v2659 = vrot.slane %v2630, 2
  %v2660 = vsel %vm487, %v2657, %v2659
  %v2661 = vrot.slane %v2631, 2
  %v2662 = vsel %vm487, %v2659, %v2661
  %v2663 = vrot.slane %v2632, 2
  %v2664 = vsel %vm487, %v2661, %v2663
  %v2665 = vrot.slane %v2633, 2
  %v2666 = vsel %vm487, %v2663, %v2665
  %v2667 = vrot.slane %v2634, 2
  %v2668 = vsel %vm487, %v2665, %v2667
  %v2669 = vrot.slane %v2635, 2
  %v2670 = vsel %vm487, %v2667, %v2669
  %2671 = vrot.lane.b32.xlu0 %v2650, 96
  %v2672 = vpop.permute.xlu0 %2671
  %2673 = vrot.lane.b32.xlu0 %v2652, 96
  %v2674 = vpop.permute.xlu0 %2673
  %2675 = vrot.lane.b32.xlu0 %v2654, 96
  %v2676 = vpop.permute.xlu0 %2675
  %2677 = vrot.lane.b32.xlu0 %v2656, 96
  %v2678 = vpop.permute.xlu0 %2677
  %2679 = vrot.lane.b32.xlu0 %v2658, 96
  %v2680 = vpop.permute.xlu0 %2679
  %2681 = vrot.lane.b32.xlu0 %v2660, 96
  %v2682 = vpop.permute.xlu0 %2681
  %2683 = vrot.lane.b32.xlu0 %v2662, 96
  %v2684 = vpop.permute.xlu0 %2683
  %2685 = vrot.lane.b32.xlu0 %v2664, 96
  %v2686 = vpop.permute.xlu0 %2685
  %2687 = vrot.lane.b32.xlu0 %v2666, 96
  %v2688 = vpop.permute.xlu0 %2687
  %2689 = vrot.lane.b32.xlu0 %v2668, 96
  %v2690 = vpop.permute.xlu0 %2689
  %2691 = vrot.lane.b32.xlu0 %v2670, 96
  %v2692 = vpop.permute.xlu0 %2691
  %2704 = vst.msk [vmem:[#allocation2 + $0x8] sm:$0xff] %vm1342, %v2672
  %2705 = vst.msk [vmem:[#allocation2 + $0x28] sm:$0xff] %vm1342, %v2674
  %2706 = vst.msk [vmem:[#allocation2 + $0x48] sm:$0xff] %vm1342, %v2676
  %2707 = vst.msk [vmem:[#allocation2 + $0x68] sm:$0xff] %vm1342, %v2678
  %2708 = vst.msk [vmem:[#allocation2 + $0x88] sm:$0xff] %vm1342, %v2680
  %2709 = vst.msk [vmem:[#allocation2 + $0xa8] sm:$0xff] %vm1342, %v2682
  %2710 = vst.msk [vmem:[#allocation2 + $0xc8] sm:$0xff] %vm1342, %v2684
  %2711 = vst.msk [vmem:[#allocation2 + $0xe8] sm:$0xff] %vm1342, %v2686
  %2712 = vst.msk [vmem:[#allocation2 + $0x108] sm:$0xff] %vm1342, %v2688
  %2713 = vst.msk [vmem:[#allocation2 + $0x128] sm:$0xff] %vm1342, %v2690
  %2714 = vst.msk [vmem:[#allocation2 + $0x148] sm:$0xff] %vm1342, %v2692
  %v2715 = vld [vmem:[%s1] sm:$0xff]
  %v2716 = vld [vmem:[%s1 + $0x8] sm:$0xff]
  %v2717 = vld [vmem:[%s1 + $0x10] sm:$0xff]
  %v2718 = vld [vmem:[%s1 + $0x18] sm:$0xff]
  %v2719 = vld [vmem:[%s1 + $0x20] sm:$0xff]
  %v2720 = vld [vmem:[%s1 + $0x28] sm:$0xff]
  %v2721 = vld [vmem:[%s1 + $0x30] sm:$0xff]
  %v2722 = vld [vmem:[%s1 + $0x38] sm:$0xff]
  %v2723 = vld [vmem:[%s1 + $0x40] sm:$0xff]
  %v2724 = vld [vmem:[%s1 + $0x48] sm:$0xff]
  %v2725 = vld [vmem:[%s1 + $0x50] sm:$0x3f]
  %2727 = vset.pattern.permute.xlu0 16
  %2728 = vperm.xlu0 %2727, %v2715
  %v2729 = vpop.permute.xlu0 %2728
  %2731 = vset.pattern.permute.xlu0 16
  %2732 = vperm.xlu0 %2731, %v2716
  %v2733 = vpop.permute.xlu0 %2732
  %2735 = vset.pattern.permute.xlu0 16
  %2736 = vperm.xlu0 %2735, %v2717
  %v2737 = vpop.permute.xlu0 %2736
  %2739 = vset.pattern.permute.xlu0 16
  %2740 = vperm.xlu0 %2739, %v2718
  %v2741 = vpop.permute.xlu0 %2740
  %2743 = vset.pattern.permute.xlu0 16
  %2744 = vperm.xlu0 %2743, %v2719
  %v2745 = vpop.permute.xlu0 %2744
  %2747 = vset.pattern.permute.xlu0 16
  %2748 = vperm.xlu0 %2747, %v2720
  %v2749 = vpop.permute.xlu0 %2748
  %2751 = vset.pattern.permute.xlu0 16
  %2752 = vperm.xlu0 %2751, %v2721
  %v2753 = vpop.permute.xlu0 %2752
  %2755 = vset.pattern.permute.xlu0 16
  %2756 = vperm.xlu0 %2755, %v2722
  %v2757 = vpop.permute.xlu0 %2756
  %2759 = vset.pattern.permute.xlu0 16
  %2760 = vperm.xlu0 %2759, %v2723
  %v2761 = vpop.permute.xlu0 %2760
  %2763 = vset.pattern.permute.xlu0 16
  %2764 = vperm.xlu0 %2763, %v2724
  %v2765 = vpop.permute.xlu0 %2764
  %2767 = vset.pattern.permute.xlu0 16
  %2768 = vperm.xlu0 %2767, %v2725
  %v2769 = vpop.permute.xlu0 %2768
  %v2770 = vrot.slane %v2729, 4
  %v2771 = vrot.slane %v2733, 4
  %v2772 = vsel %vm600, %v2770, %v2771
  %v2773 = vrot.slane %v2737, 4
  %v2774 = vsel %vm600, %v2771, %v2773
  %v2775 = vrot.slane %v2741, 4
  %v2776 = vsel %vm600, %v2773, %v2775
  %v2777 = vrot.slane %v2745, 4
  %v2778 = vsel %vm600, %v2775, %v2777
  %v2779 = vrot.slane %v2749, 4
  %v2780 = vsel %vm600, %v2777, %v2779
  %v2781 = vrot.slane %v2753, 4
  %v2782 = vsel %vm600, %v2779, %v2781
  %v2783 = vrot.slane %v2757, 4
  %v2784 = vsel %vm600, %v2781, %v2783
  %v2785 = vrot.slane %v2761, 4
  %v2786 = vsel %vm600, %v2783, %v2785
  %v2787 = vrot.slane %v2765, 4
  %v2788 = vsel %vm600, %v2785, %v2787
  %v2789 = vrot.slane %v2769, 4
  %v2790 = vsel %vm600, %v2787, %v2789
  %v2803 = vmul.f32 %v241, %v2770
  %v2804 = vmul.f32 %v242, %v2772
  %v2805 = vmul.f32 %v243, %v2774
  %v2806 = vmul.f32 %v244, %v2776
  %v2807 = vmul.f32 %v245, %v2778
  %v2808 = vmul.f32 %v246, %v2780
  %v2809 = vmul.f32 %v247, %v2782
  %v2810 = vmul.f32 %v248, %v2784
  %v2811 = vmul.f32 %v249, %v2786
  %v2812 = vmul.f32 %v250, %v2788
  %v2813 = vmul.f32 %v251, %v2790
  %v2814 = vmul.f32 %v252, %v2789
  %v2827 = vrot.slane %v2803, 4
  %v2828 = vrot.slane %v2804, 4
  %v2829 = vsel %vm600, %v2827, %v2828
  %v2830 = vrot.slane %v2805, 4
  %v2831 = vsel %vm600, %v2828, %v2830
  %v2832 = vrot.slane %v2806, 4
  %v2833 = vsel %vm600, %v2830, %v2832
  %v2834 = vrot.slane %v2807, 4
  %v2835 = vsel %vm600, %v2832, %v2834
  %v2836 = vrot.slane %v2808, 4
  %v2837 = vsel %vm600, %v2834, %v2836
  %v2838 = vrot.slane %v2809, 4
  %v2839 = vsel %vm600, %v2836, %v2838
  %v2840 = vrot.slane %v2810, 4
  %v2841 = vsel %vm600, %v2838, %v2840
  %v2842 = vrot.slane %v2811, 4
  %v2843 = vsel %vm600, %v2840, %v2842
  %v2844 = vrot.slane %v2812, 4
  %v2845 = vsel %vm600, %v2842, %v2844
  %v2846 = vrot.slane %v2813, 4
  %v2847 = vsel %vm600, %v2844, %v2846
  %v2848 = vrot.slane %v2814, 4
  %v2849 = vsel %vm600, %v2846, %v2848
  %2850 = vrot.lane.b32.xlu0 %v2829, 112
  %v2851 = vpop.permute.xlu0 %2850
  %2852 = vrot.lane.b32.xlu0 %v2831, 112
  %v2853 = vpop.permute.xlu0 %2852
  %2854 = vrot.lane.b32.xlu0 %v2833, 112
  %v2855 = vpop.permute.xlu0 %2854
  %2856 = vrot.lane.b32.xlu0 %v2835, 112
  %v2857 = vpop.permute.xlu0 %2856
  %2858 = vrot.lane.b32.xlu0 %v2837, 112
  %v2859 = vpop.permute.xlu0 %2858
  %2860 = vrot.lane.b32.xlu0 %v2839, 112
  %v2861 = vpop.permute.xlu0 %2860
  %2862 = vrot.lane.b32.xlu0 %v2841, 112
  %v2863 = vpop.permute.xlu0 %2862
  %2864 = vrot.lane.b32.xlu0 %v2843, 112
  %v2865 = vpop.permute.xlu0 %2864
  %2866 = vrot.lane.b32.xlu0 %v2845, 112
  %v2867 = vpop.permute.xlu0 %2866
  %2868 = vrot.lane.b32.xlu0 %v2847, 112
  %v2869 = vpop.permute.xlu0 %2868
  %2870 = vrot.lane.b32.xlu0 %v2849, 112
  %v2871 = vpop.permute.xlu0 %2870
  %2883 = vst.msk [vmem:[#allocation2 + $0x10] sm:$0xff] %vm256, %v2851
  %2884 = vst.msk [vmem:[#allocation2 + $0x30] sm:$0xff] %vm256, %v2853
  %2885 = vst.msk [vmem:[#allocation2 + $0x50] sm:$0xff] %vm256, %v2855
  %2886 = vst.msk [vmem:[#allocation2 + $0x70] sm:$0xff] %vm256, %v2857
  %2887 = vst.msk [vmem:[#allocation2 + $0x90] sm:$0xff] %vm256, %v2859
  %2888 = vst.msk [vmem:[#allocation2 + $0xb0] sm:$0xff] %vm256, %v2861
  %2889 = vst.msk [vmem:[#allocation2 + $0xd0] sm:$0xff] %vm256, %v2863
  %2890 = vst.msk [vmem:[#allocation2 + $0xf0] sm:$0xff] %vm256, %v2865
  %2891 = vst.msk [vmem:[#allocation2 + $0x110] sm:$0xff] %vm256, %v2867
  %2892 = vst.msk [vmem:[#allocation2 + $0x130] sm:$0xff] %vm256, %v2869
  %vm2893 = vcmask 128000
  %2894 = vst.msk [vmem:[#allocation2 + $0x150] sm:$0x3f] %vm2893, %v2871
  %v2895 = vld [vmem:[%s1] sm:$0xff]
  %v2896 = vld [vmem:[%s1 + $0x8] sm:$0xff]
  %v2897 = vld [vmem:[%s1 + $0x10] sm:$0xff]
  %v2898 = vld [vmem:[%s1 + $0x18] sm:$0xff]
  %v2899 = vld [vmem:[%s1 + $0x20] sm:$0xff]
  %v2900 = vld [vmem:[%s1 + $0x28] sm:$0xff]
  %v2901 = vld [vmem:[%s1 + $0x30] sm:$0xff]
  %v2902 = vld [vmem:[%s1 + $0x38] sm:$0xff]
  %v2903 = vld [vmem:[%s1 + $0x40] sm:$0xff]
  %v2904 = vld [vmem:[%s1 + $0x48] sm:$0xff]
  %v2905 = vld [vmem:[%s1 + $0x50] sm:$0xf]
  %2907 = vset.pattern.permute.xlu0 17
  %2908 = vperm.xlu0 %2907, %v2895
  %v2909 = vpop.permute.xlu0 %2908
  %2911 = vset.pattern.permute.xlu0 17
  %2912 = vperm.xlu0 %2911, %v2896
  %v2913 = vpop.permute.xlu0 %2912
  %2915 = vset.pattern.permute.xlu0 17
  %2916 = vperm.xlu0 %2915, %v2897
  %v2917 = vpop.permute.xlu0 %2916
  %2919 = vset.pattern.permute.xlu0 17
  %2920 = vperm.xlu0 %2919, %v2898
  %v2921 = vpop.permute.xlu0 %2920
  %2923 = vset.pattern.permute.xlu0 17
  %2924 = vperm.xlu0 %2923, %v2899
  %v2925 = vpop.permute.xlu0 %2924
  %2927 = vset.pattern.permute.xlu0 17
  %2928 = vperm.xlu0 %2927, %v2900
  %v2929 = vpop.permute.xlu0 %2928
  %2931 = vset.pattern.permute.xlu0 17
  %2932 = vperm.xlu0 %2931, %v2901
  %v2933 = vpop.permute.xlu0 %2932
  %2935 = vset.pattern.permute.xlu0 17
  %2936 = vperm.xlu0 %2935, %v2902
  %v2937 = vpop.permute.xlu0 %2936
  %2939 = vset.pattern.permute.xlu0 17
  %2940 = vperm.xlu0 %2939, %v2903
  %v2941 = vpop.permute.xlu0 %2940
  %2943 = vset.pattern.permute.xlu0 17
  %2944 = vperm.xlu0 %2943, %v2904
  %v2945 = vpop.permute.xlu0 %2944
  %2947 = vset.pattern.permute.xlu0 17
  %2948 = vperm.xlu0 %2947, %v2905
  %v2949 = vpop.permute.xlu0 %2948
  %v2950 = vrot.slane %v2909, 2
  %v2951 = vrot.slane %v2913, 2
  %v2952 = vsel %vm487, %v2950, %v2951
  %v2953 = vrot.slane %v2917, 2
  %v2954 = vsel %vm487, %v2951, %v2953
  %v2955 = vrot.slane %v2921, 2
  %v2956 = vsel %vm487, %v2953, %v2955
  %v2957 = vrot.slane %v2925, 2
  %v2958 = vsel %vm487, %v2955, %v2957
  %v2959 = vrot.slane %v2929, 2
  %v2960 = vsel %vm487, %v2957, %v2959
  %v2961 = vrot.slane %v2933, 2
  %v2962 = vsel %vm487, %v2959, %v2961
  %v2963 = vrot.slane %v2937, 2
  %v2964 = vsel %vm487, %v2961, %v2963
  %v2965 = vrot.slane %v2941, 2
  %v2966 = vsel %vm487, %v2963, %v2965
  %v2967 = vrot.slane %v2945, 2
  %v2968 = vsel %vm487, %v2965, %v2967
  %v2969 = vrot.slane %v2949, 2
  %v2970 = vsel %vm487, %v2967, %v2969
  %v2983 = vmul.f32 %v241, %v2950
  %v2984 = vmul.f32 %v242, %v2952
  %v2985 = vmul.f32 %v243, %v2954
  %v2986 = vmul.f32 %v244, %v2956
  %v2987 = vmul.f32 %v245, %v2958
  %v2988 = vmul.f32 %v246, %v2960
  %v2989 = vmul.f32 %v247, %v2962
  %v2990 = vmul.f32 %v248, %v2964
  %v2991 = vmul.f32 %v249, %v2966
  %v2992 = vmul.f32 %v250, %v2968
  %v2993 = vmul.f32 %v251, %v2970
  %v2994 = vmul.f32 %v252, %v2969
  %v3007 = vrot.slane %v2983, 6
  %v3008 = vrot.slane %v2984, 6
  %v3009 = vsel %vm106, %v3007, %v3008
  %v3010 = vrot.slane %v2985, 6
  %v3011 = vsel %vm106, %v3008, %v3010
  %v3012 = vrot.slane %v2986, 6
  %v3013 = vsel %vm106, %v3010, %v3012
  %v3014 = vrot.slane %v2987, 6
  %v3015 = vsel %vm106, %v3012, %v3014
  %v3016 = vrot.slane %v2988, 6
  %v3017 = vsel %vm106, %v3014, %v3016
  %v3018 = vrot.slane %v2989, 6
  %v3019 = vsel %vm106, %v3016, %v3018
  %v3020 = vrot.slane %v2990, 6
  %v3021 = vsel %vm106, %v3018, %v3020
  %v3022 = vrot.slane %v2991, 6
  %v3023 = vsel %vm106, %v3020, %v3022
  %v3024 = vrot.slane %v2992, 6
  %v3025 = vsel %vm106, %v3022, %v3024
  %v3026 = vrot.slane %v2993, 6
  %v3027 = vsel %vm106, %v3024, %v3026
  %v3028 = vrot.slane %v2994, 6
  %v3029 = vsel %vm106, %v3026, %v3028
  %3041 = vst.msk [vmem:[#allocation2 + $0x10] sm:$0xff] %vm517, %v3009
  %3042 = vst.msk [vmem:[#allocation2 + $0x30] sm:$0xff] %vm517, %v3011
  %3043 = vst.msk [vmem:[#allocation2 + $0x50] sm:$0xff] %vm517, %v3013
  %3044 = vst.msk [vmem:[#allocation2 + $0x70] sm:$0xff] %vm517, %v3015
  %3045 = vst.msk [vmem:[#allocation2 + $0x90] sm:$0xff] %vm517, %v3017
  %3046 = vst.msk [vmem:[#allocation2 + $0xb0] sm:$0xff] %vm517, %v3019
  %3047 = vst.msk [vmem:[#allocation2 + $0xd0] sm:$0xff] %vm517, %v3021
  %3048 = vst.msk [vmem:[#allocation2 + $0xf0] sm:$0xff] %vm517, %v3023
  %3049 = vst.msk [vmem:[#allocation2 + $0x110] sm:$0xff] %vm517, %v3025
  %3050 = vst.msk [vmem:[#allocation2 + $0x130] sm:$0xff] %vm517, %v3027
  %vm3051 = vcmask 257152
  %3052 = vst.msk [vmem:[#allocation2 + $0x150] sm:$0xf] %vm3051, %v3029
  %v3053 = vld [vmem:[%s1] sm:$0xff]
  %v3054 = vld [vmem:[%s1 + $0x8] sm:$0xff]
  %v3055 = vld [vmem:[%s1 + $0x10] sm:$0xff]
  %v3056 = vld [vmem:[%s1 + $0x18] sm:$0xff]
  %v3057 = vld [vmem:[%s1 + $0x20] sm:$0xff]
  %v3058 = vld [vmem:[%s1 + $0x28] sm:$0xff]
  %v3059 = vld [vmem:[%s1 + $0x30] sm:$0xff]
  %v3060 = vld [vmem:[%s1 + $0x38] sm:$0xff]
  %v3061 = vld [vmem:[%s1 + $0x40] sm:$0xff]
  %v3062 = vld [vmem:[%s1 + $0x48] sm:$0xff]
  %v3063 = vld [vmem:[%s1 + $0x50] sm:$0x3]
  %3065 = vset.pattern.permute.xlu0 18
  %3066 = vperm.xlu0 %3065, %v3053
  %v3067 = vpop.permute.xlu0 %3066
  %3070 = vset.pattern.permute.xlu0 18
  %3071 = vperm.xlu0 %3070, %v3054
  %v3072 = vpop.permute.xlu0 %3071
  %3075 = vset.pattern.permute.xlu0 18
  %3076 = vperm.xlu0 %3075, %v3055
  %v3077 = vpop.permute.xlu0 %3076
  %3080 = vset.pattern.permute.xlu0 18
  %3081 = vperm.xlu0 %3080, %v3056
  %v3082 = vpop.permute.xlu0 %3081
  %3085 = vset.pattern.permute.xlu0 18
  %3086 = vperm.xlu0 %3085, %v3057
  %v3087 = vpop.permute.xlu0 %3086
  %3090 = vset.pattern.permute.xlu0 18
  %3091 = vperm.xlu0 %3090, %v3058
  %v3092 = vpop.permute.xlu0 %3091
  %3095 = vset.pattern.permute.xlu0 18
  %3096 = vperm.xlu0 %3095, %v3059
  %v3097 = vpop.permute.xlu0 %3096
  %3100 = vset.pattern.permute.xlu0 18
  %3101 = vperm.xlu0 %3100, %v3060
  %v3102 = vpop.permute.xlu0 %3101
  %3105 = vset.pattern.permute.xlu0 18
  %3106 = vperm.xlu0 %3105, %v3061
  %v3107 = vpop.permute.xlu0 %3106
  %3110 = vset.pattern.permute.xlu0 18
  %3111 = vperm.xlu0 %3110, %v3062
  %v3112 = vpop.permute.xlu0 %3111
  %3115 = vset.pattern.permute.xlu0 18
  %3116 = vperm.xlu0 %3115, %v3063
  %v3117 = vpop.permute.xlu0 %3116
  %v3119 = vmul.f32 %v242, %v3067
  %v3120 = vmul.f32 %v243, %v3072
  %v3121 = vmul.f32 %v244, %v3077
  %v3122 = vmul.f32 %v245, %v3082
  %v3123 = vmul.f32 %v246, %v3087
  %v3124 = vmul.f32 %v247, %v3092
  %v3125 = vmul.f32 %v248, %v3097
  %v3126 = vmul.f32 %v249, %v3102
  %v3127 = vmul.f32 %v250, %v3107
  %v3128 = vmul.f32 %v251, %v3112
  %v3129 = vmul.f32 %v252, %v3117
  %3141 = vrot.lane.b32.xlu0 %v3119, 16
  %v3142 = vpop.permute.xlu0 %3141
  %3143 = vrot.lane.b32.xlu0 %v3120, 16
  %v3144 = vpop.permute.xlu0 %3143
  %3145 = vrot.lane.b32.xlu0 %v3121, 16
  %v3146 = vpop.permute.xlu0 %3145
  %3147 = vrot.lane.b32.xlu0 %v3122, 16
  %v3148 = vpop.permute.xlu0 %3147
  %3149 = vrot.lane.b32.xlu0 %v3123, 16
  %v3150 = vpop.permute.xlu0 %3149
  %3151 = vrot.lane.b32.xlu0 %v3124, 16
  %v3152 = vpop.permute.xlu0 %3151
  %3153 = vrot.lane.b32.xlu0 %v3125, 16
  %v3154 = vpop.permute.xlu0 %3153
  %3155 = vrot.lane.b32.xlu0 %v3126, 16
  %v3156 = vpop.permute.xlu0 %3155
  %3157 = vrot.lane.b32.xlu0 %v3127, 16
  %v3158 = vpop.permute.xlu0 %3157
  %3159 = vrot.lane.b32.xlu0 %v3128, 16
  %v3160 = vpop.permute.xlu0 %3159
  %3161 = vrot.lane.b32.xlu0 %v3129, 16
  %v3162 = vpop.permute.xlu0 %3161
  %3174 = vst.msk [vmem:[#allocation2 + $0x10] sm:$0xff] %vm650, %v3142
  %3175 = vst.msk [vmem:[#allocation2 + $0x30] sm:$0xff] %vm650, %v3144
  %3176 = vst.msk [vmem:[#allocation2 + $0x50] sm:$0xff] %vm650, %v3146
  %3177 = vst.msk [vmem:[#allocation2 + $0x70] sm:$0xff] %vm650, %v3148
  %3178 = vst.msk [vmem:[#allocation2 + $0x90] sm:$0xff] %vm650, %v3150
  %3179 = vst.msk [vmem:[#allocation2 + $0xb0] sm:$0xff] %vm650, %v3152
  %3180 = vst.msk [vmem:[#allocation2 + $0xd0] sm:$0xff] %vm650, %v3154
  %3181 = vst.msk [vmem:[#allocation2 + $0xf0] sm:$0xff] %vm650, %v3156
  %3182 = vst.msk [vmem:[#allocation2 + $0x110] sm:$0xff] %vm650, %v3158
  %3183 = vst.msk [vmem:[#allocation2 + $0x130] sm:$0xff] %vm650, %v3160
  %3184 = vst.msk [vmem:[#allocation2 + $0x150] sm:$0x3] %vm659, %v3162
  %v3185 = vld [vmem:[%s1] sm:$0xff]
  %v3186 = vld [vmem:[%s1 + $0x8] sm:$0xff]
  %v3187 = vld [vmem:[%s1 + $0x10] sm:$0xff]
  %v3188 = vld [vmem:[%s1 + $0x18] sm:$0xff]
  %v3189 = vld [vmem:[%s1 + $0x20] sm:$0xff]
  %v3190 = vld [vmem:[%s1 + $0x28] sm:$0xff]
  %v3191 = vld [vmem:[%s1 + $0x30] sm:$0xff]
  %v3192 = vld [vmem:[%s1 + $0x38] sm:$0xff]
  %v3193 = vld [vmem:[%s1 + $0x40] sm:$0xff]
  %v3194 = vld [vmem:[%s1 + $0x48] sm:$0xff]
  %3196 = vset.pattern.permute.xlu0 19
  %3197 = vperm.xlu0 %3196, %v3185
  %v3198 = vpop.permute.xlu0 %3197
  %3200 = vset.pattern.permute.xlu0 19
  %3201 = vperm.xlu0 %3200, %v3186
  %v3202 = vpop.permute.xlu0 %3201
  %3204 = vset.pattern.permute.xlu0 19
  %3205 = vperm.xlu0 %3204, %v3187
  %v3206 = vpop.permute.xlu0 %3205
  %3208 = vset.pattern.permute.xlu0 19
  %3209 = vperm.xlu0 %3208, %v3188
  %v3210 = vpop.permute.xlu0 %3209
  %3212 = vset.pattern.permute.xlu0 19
  %3213 = vperm.xlu0 %3212, %v3189
  %v3214 = vpop.permute.xlu0 %3213
  %3216 = vset.pattern.permute.xlu0 19
  %3217 = vperm.xlu0 %3216, %v3190
  %v3218 = vpop.permute.xlu0 %3217
  %3220 = vset.pattern.permute.xlu0 19
  %3221 = vperm.xlu0 %3220, %v3191
  %v3222 = vpop.permute.xlu0 %3221
  %3224 = vset.pattern.permute.xlu0 19
  %3225 = vperm.xlu0 %3224, %v3192
  %v3226 = vpop.permute.xlu0 %3225
  %3228 = vset.pattern.permute.xlu0 19
  %3229 = vperm.xlu0 %3228, %v3193
  %v3230 = vpop.permute.xlu0 %3229
  %3232 = vset.pattern.permute.xlu0 19
  %3233 = vperm.xlu0 %3232, %v3194
  %v3234 = vpop.permute.xlu0 %3233
  %v3235 = vrot.slane %v3198, 6
  %v3236 = vrot.slane %v3202, 6
  %v3237 = vsel %vm106, %v3235, %v3236
  %v3238 = vrot.slane %v3206, 6
  %v3239 = vsel %vm106, %v3236, %v3238
  %v3240 = vrot.slane %v3210, 6
  %v3241 = vsel %vm106, %v3238, %v3240
  %v3242 = vrot.slane %v3214, 6
  %v3243 = vsel %vm106, %v3240, %v3242
  %v3244 = vrot.slane %v3218, 6
  %v3245 = vsel %vm106, %v3242, %v3244
  %v3246 = vrot.slane %v3222, 6
  %v3247 = vsel %vm106, %v3244, %v3246
  %v3248 = vrot.slane %v3226, 6
  %v3249 = vsel %vm106, %v3246, %v3248
  %v3250 = vrot.slane %v3230, 6
  %v3251 = vsel %vm106, %v3248, %v3250
  %v3252 = vrot.slane %v3234, 6
  %v3253 = vsel %vm106, %v3250, %v3252
  %v3265 = vmul.f32 %v242, %v3235
  %v3266 = vmul.f32 %v243, %v3237
  %v3267 = vmul.f32 %v244, %v3239
  %v3268 = vmul.f32 %v245, %v3241
  %v3269 = vmul.f32 %v246, %v3243
  %v3270 = vmul.f32 %v247, %v3245
  %v3271 = vmul.f32 %v248, %v3247
  %v3272 = vmul.f32 %v249, %v3249
  %v3273 = vmul.f32 %v250, %v3251
  %v3274 = vmul.f32 %v251, %v3253
  %v3275 = vmul.f32 %v252, %v3252
  %v3287 = vrot.slane %v3265, 2
  %v3288 = vrot.slane %v3266, 2
  %v3289 = vsel %vm487, %v3287, %v3288
  %v3290 = vrot.slane %v3267, 2
  %v3291 = vsel %vm487, %v3288, %v3290
  %v3292 = vrot.slane %v3268, 2
  %v3293 = vsel %vm487, %v3290, %v3292
  %v3294 = vrot.slane %v3269, 2
  %v3295 = vsel %vm487, %v3292, %v3294
  %v3296 = vrot.slane %v3270, 2
  %v3297 = vsel %vm487, %v3294, %v3296
  %v3298 = vrot.slane %v3271, 2
  %v3299 = vsel %vm487, %v3296, %v3298
  %v3300 = vrot.slane %v3272, 2
  %v3301 = vsel %vm487, %v3298, %v3300
  %v3302 = vrot.slane %v3273, 2
  %v3303 = vsel %vm487, %v3300, %v3302
  %v3304 = vrot.slane %v3274, 2
  %v3305 = vsel %vm487, %v3302, %v3304
  %v3306 = vrot.slane %v3275, 2
  %v3307 = vsel %vm487, %v3304, %v3306
  %3308 = vrot.lane.b32.xlu0 %v3289, 32
  %v3309 = vpop.permute.xlu0 %3308
  %3310 = vrot.lane.b32.xlu0 %v3291, 32
  %v3311 = vpop.permute.xlu0 %3310
  %3312 = vrot.lane.b32.xlu0 %v3293, 32
  %v3313 = vpop.permute.xlu0 %3312
  %3314 = vrot.lane.b32.xlu0 %v3295, 32
  %v3315 = vpop.permute.xlu0 %3314
  %3316 = vrot.lane.b32.xlu0 %v3297, 32
  %v3317 = vpop.permute.xlu0 %3316
  %3318 = vrot.lane.b32.xlu0 %v3299, 32
  %v3319 = vpop.permute.xlu0 %3318
  %3320 = vrot.lane.b32.xlu0 %v3301, 32
  %v3321 = vpop.permute.xlu0 %3320
  %3322 = vrot.lane.b32.xlu0 %v3303, 32
  %v3323 = vpop.permute.xlu0 %3322
  %3324 = vrot.lane.b32.xlu0 %v3305, 32
  %v3325 = vpop.permute.xlu0 %3324
  %3326 = vrot.lane.b32.xlu0 %v3307, 32
  %v3327 = vpop.permute.xlu0 %3326
  %3338 = vst.msk [vmem:[#allocation2 + $0x10] sm:$0xff] %vm782, %v3309
  %3339 = vst.msk [vmem:[#allocation2 + $0x30] sm:$0xff] %vm782, %v3311
  %3340 = vst.msk [vmem:[#allocation2 + $0x50] sm:$0xff] %vm782, %v3313
  %3341 = vst.msk [vmem:[#allocation2 + $0x70] sm:$0xff] %vm782, %v3315
  %3342 = vst.msk [vmem:[#allocation2 + $0x90] sm:$0xff] %vm782, %v3317
  %3343 = vst.msk [vmem:[#allocation2 + $0xb0] sm:$0xff] %vm782, %v3319
  %3344 = vst.msk [vmem:[#allocation2 + $0xd0] sm:$0xff] %vm782, %v3321
  %3345 = vst.msk [vmem:[#allocation2 + $0xf0] sm:$0xff] %vm782, %v3323
  %3346 = vst.msk [vmem:[#allocation2 + $0x110] sm:$0xff] %vm782, %v3325
  %3347 = vst.msk [vmem:[#allocation2 + $0x130] sm:$0xff] %vm782, %v3327
  %v3348 = vld [vmem:[%s1] sm:$0xff]
  %v3349 = vld [vmem:[%s1 + $0x8] sm:$0xff]
  %v3350 = vld [vmem:[%s1 + $0x10] sm:$0xff]
  %v3351 = vld [vmem:[%s1 + $0x18] sm:$0xff]
  %v3352 = vld [vmem:[%s1 + $0x20] sm:$0xff]
  %v3353 = vld [vmem:[%s1 + $0x28] sm:$0xff]
  %v3354 = vld [vmem:[%s1 + $0x30] sm:$0xff]
  %v3355 = vld [vmem:[%s1 + $0x38] sm:$0xff]
  %v3356 = vld [vmem:[%s1 + $0x40] sm:$0xff]
  %v3357 = vld [vmem:[%s1 + $0x48] sm:$0x3]
  %3359 = vset.pattern.permute.xlu0 20
  %3360 = vperm.xlu0 %3359, %v3348
  %v3361 = vpop.permute.xlu0 %3360
  %3364 = vset.pattern.permute.xlu0 20
  %3365 = vperm.xlu0 %3364, %v3349
  %v3366 = vpop.permute.xlu0 %3365
  %3369 = vset.pattern.permute.xlu0 20
  %3370 = vperm.xlu0 %3369, %v3350
  %v3371 = vpop.permute.xlu0 %3370
  %3374 = vset.pattern.permute.xlu0 20
  %3375 = vperm.xlu0 %3374, %v3351
  %v3376 = vpop.permute.xlu0 %3375
  %3379 = vset.pattern.permute.xlu0 20
  %3380 = vperm.xlu0 %3379, %v3352
  %v3381 = vpop.permute.xlu0 %3380
  %3384 = vset.pattern.permute.xlu0 20
  %3385 = vperm.xlu0 %3384, %v3353
  %v3386 = vpop.permute.xlu0 %3385
  %3389 = vset.pattern.permute.xlu0 20
  %3390 = vperm.xlu0 %3389, %v3354
  %v3391 = vpop.permute.xlu0 %3390
  %3394 = vset.pattern.permute.xlu0 20
  %3395 = vperm.xlu0 %3394, %v3355
  %v3396 = vpop.permute.xlu0 %3395
  %3399 = vset.pattern.permute.xlu0 20
  %3400 = vperm.xlu0 %3399, %v3356
  %v3401 = vpop.permute.xlu0 %3400
  %3404 = vset.pattern.permute.xlu0 20
  %3405 = vperm.xlu0 %3404, %v3357
  %v3406 = vpop.permute.xlu0 %3405
  %v3408 = vmul.f32 %v243, %v3361
  %v3409 = vmul.f32 %v244, %v3366
  %v3410 = vmul.f32 %v245, %v3371
  %v3411 = vmul.f32 %v246, %v3376
  %v3412 = vmul.f32 %v247, %v3381
  %v3413 = vmul.f32 %v248, %v3386
  %v3414 = vmul.f32 %v249, %v3391
  %v3415 = vmul.f32 %v250, %v3396
  %v3416 = vmul.f32 %v251, %v3401
  %v3417 = vmul.f32 %v252, %v3406
  %3428 = vrot.lane.b32.xlu0 %v3408, 48
  %v3429 = vpop.permute.xlu0 %3428
  %3430 = vrot.lane.b32.xlu0 %v3409, 48
  %v3431 = vpop.permute.xlu0 %3430
  %3432 = vrot.lane.b32.xlu0 %v3410, 48
  %v3433 = vpop.permute.xlu0 %3432
  %3434 = vrot.lane.b32.xlu0 %v3411, 48
  %v3435 = vpop.permute.xlu0 %3434
  %3436 = vrot.lane.b32.xlu0 %v3412, 48
  %v3437 = vpop.permute.xlu0 %3436
  %3438 = vrot.lane.b32.xlu0 %v3413, 48
  %v3439 = vpop.permute.xlu0 %3438
  %3440 = vrot.lane.b32.xlu0 %v3414, 48
  %v3441 = vpop.permute.xlu0 %3440
  %3442 = vrot.lane.b32.xlu0 %v3415, 48
  %v3443 = vpop.permute.xlu0 %3442
  %3444 = vrot.lane.b32.xlu0 %v3416, 48
  %v3445 = vpop.permute.xlu0 %3444
  %3446 = vrot.lane.b32.xlu0 %v3417, 48
  %v3447 = vpop.permute.xlu0 %3446
  %3458 = vst.msk [vmem:[#allocation2 + $0x10] sm:$0xff] %vm903, %v3429
  %3459 = vst.msk [vmem:[#allocation2 + $0x30] sm:$0xff] %vm903, %v3431
  %3460 = vst.msk [vmem:[#allocation2 + $0x50] sm:$0xff] %vm903, %v3433
  %3461 = vst.msk [vmem:[#allocation2 + $0x70] sm:$0xff] %vm903, %v3435
  %3462 = vst.msk [vmem:[#allocation2 + $0x90] sm:$0xff] %vm903, %v3437
  %3463 = vst.msk [vmem:[#allocation2 + $0xb0] sm:$0xff] %vm903, %v3439
  %3464 = vst.msk [vmem:[#allocation2 + $0xd0] sm:$0xff] %vm903, %v3441
  %3465 = vst.msk [vmem:[#allocation2 + $0xf0] sm:$0xff] %vm903, %v3443
  %3466 = vst.msk [vmem:[#allocation2 + $0x110] sm:$0xff] %vm903, %v3445
  %3467 = vst.msk [vmem:[#allocation2 + $0x130] sm:$0x3] %vm913, %v3447
  %v3468 = vld [vmem:[%s1] sm:$0xff]
  %v3469 = vld [vmem:[%s1 + $0x8] sm:$0xff]
  %v3470 = vld [vmem:[%s1 + $0x10] sm:$0xff]
  %v3471 = vld [vmem:[%s1 + $0x18] sm:$0xff]
  %v3472 = vld [vmem:[%s1 + $0x20] sm:$0xff]
  %v3473 = vld [vmem:[%s1 + $0x28] sm:$0xff]
  %v3474 = vld [vmem:[%s1 + $0x30] sm:$0xff]
  %v3475 = vld [vmem:[%s1 + $0x38] sm:$0xff]
  %v3476 = vld [vmem:[%s1 + $0x40] sm:$0xff]
  %3478 = vset.pattern.permute.xlu0 21
  %3479 = vperm.xlu0 %3478, %v3468
  %v3480 = vpop.permute.xlu0 %3479
  %3482 = vset.pattern.permute.xlu0 21
  %3483 = vperm.xlu0 %3482, %v3469
  %v3484 = vpop.permute.xlu0 %3483
  %3486 = vset.pattern.permute.xlu0 21
  %3487 = vperm.xlu0 %3486, %v3470
  %v3488 = vpop.permute.xlu0 %3487
  %3490 = vset.pattern.permute.xlu0 21
  %3491 = vperm.xlu0 %3490, %v3471
  %v3492 = vpop.permute.xlu0 %3491
  %3494 = vset.pattern.permute.xlu0 21
  %3495 = vperm.xlu0 %3494, %v3472
  %v3496 = vpop.permute.xlu0 %3495
  %3498 = vset.pattern.permute.xlu0 21
  %3499 = vperm.xlu0 %3498, %v3473
  %v3500 = vpop.permute.xlu0 %3499
  %3502 = vset.pattern.permute.xlu0 21
  %3503 = vperm.xlu0 %3502, %v3474
  %v3504 = vpop.permute.xlu0 %3503
  %3506 = vset.pattern.permute.xlu0 21
  %3507 = vperm.xlu0 %3506, %v3475
  %v3508 = vpop.permute.xlu0 %3507
  %3510 = vset.pattern.permute.xlu0 21
  %3511 = vperm.xlu0 %3510, %v3476
  %v3512 = vpop.permute.xlu0 %3511
  %v3513 = vrot.slane %v3480, 6
  %v3514 = vrot.slane %v3484, 6
  %v3515 = vsel %vm106, %v3513, %v3514
  %v3516 = vrot.slane %v3488, 6
  %v3517 = vsel %vm106, %v3514, %v3516
  %v3518 = vrot.slane %v3492, 6
  %v3519 = vsel %vm106, %v3516, %v3518
  %v3520 = vrot.slane %v3496, 6
  %v3521 = vsel %vm106, %v3518, %v3520
  %v3522 = vrot.slane %v3500, 6
  %v3523 = vsel %vm106, %v3520, %v3522
  %v3524 = vrot.slane %v3504, 6
  %v3525 = vsel %vm106, %v3522, %v3524
  %v3526 = vrot.slane %v3508, 6
  %v3527 = vsel %vm106, %v3524, %v3526
  %v3528 = vrot.slane %v3512, 6
  %v3529 = vsel %vm106, %v3526, %v3528
  %v3540 = vmul.f32 %v243, %v3513
  %v3541 = vmul.f32 %v244, %v3515
  %v3542 = vmul.f32 %v245, %v3517
  %v3543 = vmul.f32 %v246, %v3519
  %v3544 = vmul.f32 %v247, %v3521
  %v3545 = vmul.f32 %v248, %v3523
  %v3546 = vmul.f32 %v249, %v3525
  %v3547 = vmul.f32 %v250, %v3527
  %v3548 = vmul.f32 %v251, %v3529
  %v3549 = vmul.f32 %v252, %v3528
  %v3560 = vrot.slane %v3540, 2
  %v3561 = vrot.slane %v3541, 2
  %v3562 = vsel %vm487, %v3560, %v3561
  %v3563 = vrot.slane %v3542, 2
  %v3564 = vsel %vm487, %v3561, %v3563
  %v3565 = vrot.slane %v3543, 2
  %v3566 = vsel %vm487, %v3563, %v3565
  %v3567 = vrot.slane %v3544, 2
  %v3568 = vsel %vm487, %v3565, %v3567
  %v3569 = vrot.slane %v3545, 2
  %v3570 = vsel %vm487, %v3567, %v3569
  %v3571 = vrot.slane %v3546, 2
  %v3572 = vsel %vm487, %v3569, %v3571
  %v3573 = vrot.slane %v3547, 2
  %v3574 = vsel %vm487, %v3571, %v3573
  %v3575 = vrot.slane %v3548, 2
  %v3576 = vsel %vm487, %v3573, %v3575
  %v3577 = vrot.slane %v3549, 2
  %v3578 = vsel %vm487, %v3575, %v3577
  %3579 = vrot.lane.b32.xlu0 %v3562, 64
  %v3580 = vpop.permute.xlu0 %3579
  %3581 = vrot.lane.b32.xlu0 %v3564, 64
  %v3582 = vpop.permute.xlu0 %3581
  %3583 = vrot.lane.b32.xlu0 %v3566, 64
  %v3584 = vpop.permute.xlu0 %3583
  %3585 = vrot.lane.b32.xlu0 %v3568, 64
  %v3586 = vpop.permute.xlu0 %3585
  %3587 = vrot.lane.b32.xlu0 %v3570, 64
  %v3588 = vpop.permute.xlu0 %3587
  %3589 = vrot.lane.b32.xlu0 %v3572, 64
  %v3590 = vpop.permute.xlu0 %3589
  %3591 = vrot.lane.b32.xlu0 %v3574, 64
  %v3592 = vpop.permute.xlu0 %3591
  %3593 = vrot.lane.b32.xlu0 %v3576, 64
  %v3594 = vpop.permute.xlu0 %3593
  %3595 = vrot.lane.b32.xlu0 %v3578, 64
  %v3596 = vpop.permute.xlu0 %3595
  %3606 = vst.msk [vmem:[#allocation2 + $0x10] sm:$0xff] %vm1049, %v3580
  %3607 = vst.msk [vmem:[#allocation2 + $0x30] sm:$0xff] %vm1049, %v3582
  %3608 = vst.msk [vmem:[#allocation2 + $0x50] sm:$0xff] %vm1049, %v3584
  %3609 = vst.msk [vmem:[#allocation2 + $0x70] sm:$0xff] %vm1049, %v3586
  %3610 = vst.msk [vmem:[#allocation2 + $0x90] sm:$0xff] %vm1049, %v3588
  %3611 = vst.msk [vmem:[#allocation2 + $0xb0] sm:$0xff] %vm1049, %v3590
  %3612 = vst.msk [vmem:[#allocation2 + $0xd0] sm:$0xff] %vm1049, %v3592
  %3613 = vst.msk [vmem:[#allocation2 + $0xf0] sm:$0xff] %vm1049, %v3594
  %3614 = vst.msk [vmem:[#allocation2 + $0x110] sm:$0xff] %vm1049, %v3596
  %v3615 = vld [vmem:[%s1] sm:$0xff]
  %v3616 = vld [vmem:[%s1 + $0x8] sm:$0xff]
  %v3617 = vld [vmem:[%s1 + $0x10] sm:$0xff]
  %v3618 = vld [vmem:[%s1 + $0x18] sm:$0xff]
  %v3619 = vld [vmem:[%s1 + $0x20] sm:$0xff]
  %v3620 = vld [vmem:[%s1 + $0x28] sm:$0xff]
  %v3621 = vld [vmem:[%s1 + $0x30] sm:$0xff]
  %v3622 = vld [vmem:[%s1 + $0x38] sm:$0xff]
  %v3623 = vld [vmem:[%s1 + $0x40] sm:$0x3f]
  %3625 = vset.pattern.permute.xlu0 22
  %3626 = vperm.xlu0 %3625, %v3615
  %v3627 = vpop.permute.xlu0 %3626
  %3629 = vset.pattern.permute.xlu0 22
  %3630 = vperm.xlu0 %3629, %v3616
  %v3631 = vpop.permute.xlu0 %3630
  %3633 = vset.pattern.permute.xlu0 22
  %3634 = vperm.xlu0 %3633, %v3617
  %v3635 = vpop.permute.xlu0 %3634
  %3637 = vset.pattern.permute.xlu0 22
  %3638 = vperm.xlu0 %3637, %v3618
  %v3639 = vpop.permute.xlu0 %3638
  %3641 = vset.pattern.permute.xlu0 22
  %3642 = vperm.xlu0 %3641, %v3619
  %v3643 = vpop.permute.xlu0 %3642
  %3645 = vset.pattern.permute.xlu0 22
  %3646 = vperm.xlu0 %3645, %v3620
  %v3647 = vpop.permute.xlu0 %3646
  %3649 = vset.pattern.permute.xlu0 22
  %3650 = vperm.xlu0 %3649, %v3621
  %v3651 = vpop.permute.xlu0 %3650
  %3653 = vset.pattern.permute.xlu0 22
  %3654 = vperm.xlu0 %3653, %v3622
  %v3655 = vpop.permute.xlu0 %3654
  %3657 = vset.pattern.permute.xlu0 22
  %3658 = vperm.xlu0 %3657, %v3623
  %v3659 = vpop.permute.xlu0 %3658
  %v3660 = vrot.slane %v3627, 4
  %v3661 = vrot.slane %v3631, 4
  %v3662 = vsel %vm600, %v3660, %v3661
  %v3663 = vrot.slane %v3635, 4
  %v3664 = vsel %vm600, %v3661, %v3663
  %v3665 = vrot.slane %v3639, 4
  %v3666 = vsel %vm600, %v3663, %v3665
  %v3667 = vrot.slane %v3643, 4
  %v3668 = vsel %vm600, %v3665, %v3667
  %v3669 = vrot.slane %v3647, 4
  %v3670 = vsel %vm600, %v3667, %v3669
  %v3671 = vrot.slane %v3651, 4
  %v3672 = vsel %vm600, %v3669, %v3671
  %v3673 = vrot.slane %v3655, 4
  %v3674 = vsel %vm600, %v3671, %v3673
  %v3675 = vrot.slane %v3659, 4
  %v3676 = vsel %vm600, %v3673, %v3675
  %v3687 = vmul.f32 %v243, %v3660
  %v3688 = vmul.f32 %v244, %v3662
  %v3689 = vmul.f32 %v245, %v3664
  %v3690 = vmul.f32 %v246, %v3666
  %v3691 = vmul.f32 %v247, %v3668
  %v3692 = vmul.f32 %v248, %v3670
  %v3693 = vmul.f32 %v249, %v3672
  %v3694 = vmul.f32 %v250, %v3674
  %v3695 = vmul.f32 %v251, %v3676
  %v3696 = vmul.f32 %v252, %v3675
  %v3707 = vrot.slane %v3687, 4
  %v3708 = vrot.slane %v3688, 4
  %v3709 = vsel %vm600, %v3707, %v3708
  %v3710 = vrot.slane %v3689, 4
  %v3711 = vsel %vm600, %v3708, %v3710
  %v3712 = vrot.slane %v3690, 4
  %v3713 = vsel %vm600, %v3710, %v3712
  %v3714 = vrot.slane %v3691, 4
  %v3715 = vsel %vm600, %v3712, %v3714
  %v3716 = vrot.slane %v3692, 4
  %v3717 = vsel %vm600, %v3714, %v3716
  %v3718 = vrot.slane %v3693, 4
  %v3719 = vsel %vm600, %v3716, %v3718
  %v3720 = vrot.slane %v3694, 4
  %v3721 = vsel %vm600, %v3718, %v3720
  %v3722 = vrot.slane %v3695, 4
  %v3723 = vsel %vm600, %v3720, %v3722
  %v3724 = vrot.slane %v3696, 4
  %v3725 = vsel %vm600, %v3722, %v3724
  %3726 = vrot.lane.b32.xlu0 %v3709, 80
  %v3727 = vpop.permute.xlu0 %3726
  %3728 = vrot.lane.b32.xlu0 %v3711, 80
  %v3729 = vpop.permute.xlu0 %3728
  %3730 = vrot.lane.b32.xlu0 %v3713, 80
  %v3731 = vpop.permute.xlu0 %3730
  %3732 = vrot.lane.b32.xlu0 %v3715, 80
  %v3733 = vpop.permute.xlu0 %3732
  %3734 = vrot.lane.b32.xlu0 %v3717, 80
  %v3735 = vpop.permute.xlu0 %3734
  %3736 = vrot.lane.b32.xlu0 %v3719, 80
  %v3737 = vpop.permute.xlu0 %3736
  %3738 = vrot.lane.b32.xlu0 %v3721, 80
  %v3739 = vpop.permute.xlu0 %3738
  %3740 = vrot.lane.b32.xlu0 %v3723, 80
  %v3741 = vpop.permute.xlu0 %3740
  %3742 = vrot.lane.b32.xlu0 %v3725, 80
  %v3743 = vpop.permute.xlu0 %3742
  %3753 = vst.msk [vmem:[#allocation2 + $0x10] sm:$0xff] %vm1182, %v3727
  %3754 = vst.msk [vmem:[#allocation2 + $0x30] sm:$0xff] %vm1182, %v3729
  %3755 = vst.msk [vmem:[#allocation2 + $0x50] sm:$0xff] %vm1182, %v3731
  %3756 = vst.msk [vmem:[#allocation2 + $0x70] sm:$0xff] %vm1182, %v3733
  %3757 = vst.msk [vmem:[#allocation2 + $0x90] sm:$0xff] %vm1182, %v3735
  %3758 = vst.msk [vmem:[#allocation2 + $0xb0] sm:$0xff] %vm1182, %v3737
  %3759 = vst.msk [vmem:[#allocation2 + $0xd0] sm:$0xff] %vm1182, %v3739
  %3760 = vst.msk [vmem:[#allocation2 + $0xf0] sm:$0xff] %vm1182, %v3741
  %3761 = vst.msk [vmem:[#allocation2 + $0x110] sm:$0x3f] %vm2534, %v3743
  %v3762 = vld [vmem:[%s1] sm:$0xff]
  %v3763 = vld [vmem:[%s1 + $0x8] sm:$0xff]
  %v3764 = vld [vmem:[%s1 + $0x10] sm:$0xff]
  %v3765 = vld [vmem:[%s1 + $0x18] sm:$0xff]
  %v3766 = vld [vmem:[%s1 + $0x20] sm:$0xff]
  %v3767 = vld [vmem:[%s1 + $0x28] sm:$0xff]
  %v3768 = vld [vmem:[%s1 + $0x30] sm:$0xff]
  %v3769 = vld [vmem:[%s1 + $0x38] sm:$0xff]
  %v3770 = vld [vmem:[%s1 + $0x40] sm:$0xf]
  %3772 = vset.pattern.permute.xlu0 23
  %3773 = vperm.xlu0 %3772, %v3762
  %v3774 = vpop.permute.xlu0 %3773
  %3776 = vset.pattern.permute.xlu0 23
  %3777 = vperm.xlu0 %3776, %v3763
  %v3778 = vpop.permute.xlu0 %3777
  %3780 = vset.pattern.permute.xlu0 23
  %3781 = vperm.xlu0 %3780, %v3764
  %v3782 = vpop.permute.xlu0 %3781
  %3784 = vset.pattern.permute.xlu0 23
  %3785 = vperm.xlu0 %3784, %v3765
  %v3786 = vpop.permute.xlu0 %3785
  %3788 = vset.pattern.permute.xlu0 23
  %3789 = vperm.xlu0 %3788, %v3766
  %v3790 = vpop.permute.xlu0 %3789
  %3792 = vset.pattern.permute.xlu0 23
  %3793 = vperm.xlu0 %3792, %v3767
  %v3794 = vpop.permute.xlu0 %3793
  %3796 = vset.pattern.permute.xlu0 23
  %3797 = vperm.xlu0 %3796, %v3768
  %v3798 = vpop.permute.xlu0 %3797
  %3800 = vset.pattern.permute.xlu0 23
  %3801 = vperm.xlu0 %3800, %v3769
  %v3802 = vpop.permute.xlu0 %3801
  %3804 = vset.pattern.permute.xlu0 23
  %3805 = vperm.xlu0 %3804, %v3770
  %v3806 = vpop.permute.xlu0 %3805
  %v3807 = vrot.slane %v3774, 2
  %v3808 = vrot.slane %v3778, 2
  %v3809 = vsel %vm487, %v3807, %v3808
  %v3810 = vrot.slane %v3782, 2
  %v3811 = vsel %vm487, %v3808, %v3810
  %v3812 = vrot.slane %v3786, 2
  %v3813 = vsel %vm487, %v3810, %v3812
  %v3814 = vrot.slane %v3790, 2
  %v3815 = vsel %vm487, %v3812, %v3814
  %v3816 = vrot.slane %v3794, 2
  %v3817 = vsel %vm487, %v3814, %v3816
  %v3818 = vrot.slane %v3798, 2
  %v3819 = vsel %vm487, %v3816, %v3818
  %v3820 = vrot.slane %v3802, 2
  %v3821 = vsel %vm487, %v3818, %v3820
  %v3822 = vrot.slane %v3806, 2
  %v3823 = vsel %vm487, %v3820, %v3822
  %v3834 = vmul.f32 %v243, %v3807
  %v3835 = vmul.f32 %v244, %v3809
  %v3836 = vmul.f32 %v245, %v3811
  %v3837 = vmul.f32 %v246, %v3813
  %v3838 = vmul.f32 %v247, %v3815
  %v3839 = vmul.f32 %v248, %v3817
  %v3840 = vmul.f32 %v249, %v3819
  %v3841 = vmul.f32 %v250, %v3821
  %v3842 = vmul.f32 %v251, %v3823
  %v3843 = vmul.f32 %v252, %v3822
  %v3854 = vrot.slane %v3834, 6
  %v3855 = vrot.slane %v3835, 6
  %v3856 = vsel %vm106, %v3854, %v3855
  %v3857 = vrot.slane %v3836, 6
  %v3858 = vsel %vm106, %v3855, %v3857
  %v3859 = vrot.slane %v3837, 6
  %v3860 = vsel %vm106, %v3857, %v3859
  %v3861 = vrot.slane %v3838, 6
  %v3862 = vsel %vm106, %v3859, %v3861
  %v3863 = vrot.slane %v3839, 6
  %v3864 = vsel %vm106, %v3861, %v3863
  %v3865 = vrot.slane %v3840, 6
  %v3866 = vsel %vm106, %v3863, %v3865
  %v3867 = vrot.slane %v3841, 6
  %v3868 = vsel %vm106, %v3865, %v3867
  %v3869 = vrot.slane %v3842, 6
  %v3870 = vsel %vm106, %v3867, %v3869
  %v3871 = vrot.slane %v3843, 6
  %v3872 = vsel %vm106, %v3869, %v3871
  %3873 = vrot.lane.b32.xlu0 %v3856, 96
  %v3874 = vpop.permute.xlu0 %3873
  %3875 = vrot.lane.b32.xlu0 %v3858, 96
  %v3876 = vpop.permute.xlu0 %3875
  %3877 = vrot.lane.b32.xlu0 %v3860, 96
  %v3878 = vpop.permute.xlu0 %3877
  %3879 = vrot.lane.b32.xlu0 %v3862, 96
  %v3880 = vpop.permute.xlu0 %3879
  %3881 = vrot.lane.b32.xlu0 %v3864, 96
  %v3882 = vpop.permute.xlu0 %3881
  %3883 = vrot.lane.b32.xlu0 %v3866, 96
  %v3884 = vpop.permute.xlu0 %3883
  %3885 = vrot.lane.b32.xlu0 %v3868, 96
  %v3886 = vpop.permute.xlu0 %3885
  %3887 = vrot.lane.b32.xlu0 %v3870, 96
  %v3888 = vpop.permute.xlu0 %3887
  %3889 = vrot.lane.b32.xlu0 %v3872, 96
  %v3890 = vpop.permute.xlu0 %3889
  %3900 = vst.msk [vmem:[#allocation2 + $0x10] sm:$0xff] %vm1342, %v3874
  %3901 = vst.msk [vmem:[#allocation2 + $0x30] sm:$0xff] %vm1342, %v3876
  %3902 = vst.msk [vmem:[#allocation2 + $0x50] sm:$0xff] %vm1342, %v3878
  %3903 = vst.msk [vmem:[#allocation2 + $0x70] sm:$0xff] %vm1342, %v3880
  %3904 = vst.msk [vmem:[#allocation2 + $0x90] sm:$0xff] %vm1342, %v3882
  %3905 = vst.msk [vmem:[#allocation2 + $0xb0] sm:$0xff] %vm1342, %v3884
  %3906 = vst.msk [vmem:[#allocation2 + $0xd0] sm:$0xff] %vm1342, %v3886
  %3907 = vst.msk [vmem:[#allocation2 + $0xf0] sm:$0xff] %vm1342, %v3888
  %vm3908 = vcmask 1044352
  %3909 = vst.msk [vmem:[#allocation2 + $0x110] sm:$0xf] %vm3908, %v3890
  %v3910 = vld [vmem:[%s1] sm:$0xff]
  %v3911 = vld [vmem:[%s1 + $0x8] sm:$0xff]
  %v3912 = vld [vmem:[%s1 + $0x10] sm:$0xff]
  %v3913 = vld [vmem:[%s1 + $0x18] sm:$0xff]
  %v3914 = vld [vmem:[%s1 + $0x20] sm:$0xff]
  %v3915 = vld [vmem:[%s1 + $0x28] sm:$0xff]
  %v3916 = vld [vmem:[%s1 + $0x30] sm:$0xff]
  %v3917 = vld [vmem:[%s1 + $0x38] sm:$0xff]
  %v3918 = vld [vmem:[%s1 + $0x40] sm:$0x3]
  %3920 = vset.pattern.permute.xlu0 24
  %3921 = vperm.xlu0 %3920, %v3910
  %v3922 = vpop.permute.xlu0 %3921
  %3925 = vset.pattern.permute.xlu0 24
  %3926 = vperm.xlu0 %3925, %v3911
  %v3927 = vpop.permute.xlu0 %3926
  %3930 = vset.pattern.permute.xlu0 24
  %3931 = vperm.xlu0 %3930, %v3912
  %v3932 = vpop.permute.xlu0 %3931
  %3935 = vset.pattern.permute.xlu0 24
  %3936 = vperm.xlu0 %3935, %v3913
  %v3937 = vpop.permute.xlu0 %3936
  %3940 = vset.pattern.permute.xlu0 24
  %3941 = vperm.xlu0 %3940, %v3914
  %v3942 = vpop.permute.xlu0 %3941
  %3945 = vset.pattern.permute.xlu0 24
  %3946 = vperm.xlu0 %3945, %v3915
  %v3947 = vpop.permute.xlu0 %3946
  %3950 = vset.pattern.permute.xlu0 24
  %3951 = vperm.xlu0 %3950, %v3916
  %v3952 = vpop.permute.xlu0 %3951
  %3955 = vset.pattern.permute.xlu0 24
  %3956 = vperm.xlu0 %3955, %v3917
  %v3957 = vpop.permute.xlu0 %3956
  %3960 = vset.pattern.permute.xlu0 24
  %3961 = vperm.xlu0 %3960, %v3918
  %v3962 = vpop.permute.xlu0 %3961
  %v3964 = vmul.f32 %v244, %v3922
  %v3965 = vmul.f32 %v245, %v3927
  %v3966 = vmul.f32 %v246, %v3932
  %v3967 = vmul.f32 %v247, %v3937
  %v3968 = vmul.f32 %v248, %v3942
  %v3969 = vmul.f32 %v249, %v3947
  %v3970 = vmul.f32 %v250, %v3952
  %v3971 = vmul.f32 %v251, %v3957
  %v3972 = vmul.f32 %v252, %v3962
  %3982 = vrot.lane.b32.xlu0 %v3964, 112
  %v3983 = vpop.permute.xlu0 %3982
  %3984 = vrot.lane.b32.xlu0 %v3965, 112
  %v3985 = vpop.permute.xlu0 %3984
  %3986 = vrot.lane.b32.xlu0 %v3966, 112
  %v3987 = vpop.permute.xlu0 %3986
  %3988 = vrot.lane.b32.xlu0 %v3967, 112
  %v3989 = vpop.permute.xlu0 %3988
  %3990 = vrot.lane.b32.xlu0 %v3968, 112
  %v3991 = vpop.permute.xlu0 %3990
  %3992 = vrot.lane.b32.xlu0 %v3969, 112
  %v3993 = vpop.permute.xlu0 %3992
  %3994 = vrot.lane.b32.xlu0 %v3970, 112
  %v3995 = vpop.permute.xlu0 %3994
  %3996 = vrot.lane.b32.xlu0 %v3971, 112
  %v3997 = vpop.permute.xlu0 %3996
  %3998 = vrot.lane.b32.xlu0 %v3972, 112
  %v3999 = vpop.permute.xlu0 %3998
  %4009 = vst.msk [vmem:[#allocation2 + $0x18] sm:$0xff] %vm256, %v3983
  %4010 = vst.msk [vmem:[#allocation2 + $0x38] sm:$0xff] %vm256, %v3985
  %4011 = vst.msk [vmem:[#allocation2 + $0x58] sm:$0xff] %vm256, %v3987
  %4012 = vst.msk [vmem:[#allocation2 + $0x78] sm:$0xff] %vm256, %v3989
  %4013 = vst.msk [vmem:[#allocation2 + $0x98] sm:$0xff] %vm256, %v3991
  %4014 = vst.msk [vmem:[#allocation2 + $0xb8] sm:$0xff] %vm256, %v3993
  %4015 = vst.msk [vmem:[#allocation2 + $0xd8] sm:$0xff] %vm256, %v3995
  %4016 = vst.msk [vmem:[#allocation2 + $0xf8] sm:$0xff] %vm256, %v3997
  %4017 = vst.msk [vmem:[#allocation2 + $0x118] sm:$0x3] %vm305, %v3999
  %v4018 = vld [vmem:[#allocation2] sm:$0xff]
  %v4019 = vld [vmem:[#allocation2 + $0x8] sm:$0xff]
  %v4020 = vld [vmem:[#allocation2 + $0x10] sm:$0xff]
  %v4021 = vld [vmem:[#allocation2 + $0x18] sm:$0xff]
  %v4022 = vld [vmem:[#allocation2 + $0x20] sm:$0xff]
  %v4023 = vld [vmem:[#allocation2 + $0x28] sm:$0xff]
  %v4024 = vld [vmem:[#allocation2 + $0x30] sm:$0xff]
  %v4025 = vld [vmem:[#allocation2 + $0x38] sm:$0xff]
  %v4026 = vld [vmem:[#allocation2 + $0x40] sm:$0xff]
  %v4027 = vld [vmem:[#allocation2 + $0x48] sm:$0xff]
  %v4028 = vld [vmem:[#allocation2 + $0x50] sm:$0xff]
  %v4029 = vld [vmem:[#allocation2 + $0x58] sm:$0xff]
  %v4030 = vld [vmem:[#allocation2 + $0x60] sm:$0xff]
  %v4031 = vld [vmem:[#allocation2 + $0x68] sm:$0xff]
  %v4032 = vld [vmem:[#allocation2 + $0x70] sm:$0xff]
  %v4033 = vld [vmem:[#allocation2 + $0x78] sm:$0xff]
  %v4034 = vld [vmem:[#allocation2 + $0x80] sm:$0xff]
  %v4035 = vld [vmem:[#allocation2 + $0x88] sm:$0xff]
  %v4036 = vld [vmem:[#allocation2 + $0x90] sm:$0xff]
  %v4037 = vld [vmem:[#allocation2 + $0x98] sm:$0xff]
  %v4038 = vld [vmem:[#allocation2 + $0xa0] sm:$0xff]
  %v4039 = vld [vmem:[#allocation2 + $0xa8] sm:$0xff]
  %v4040 = vld [vmem:[#allocation2 + $0xb0] sm:$0xff]
  %v4041 = vld [vmem:[#allocation2 + $0xb8] sm:$0xff]
  %v4042 = vld [vmem:[#allocation2 + $0xc0] sm:$0xff]
  %v4043 = vld [vmem:[#allocation2 + $0xc8] sm:$0xff]
  %v4044 = vld [vmem:[#allocation2 + $0xd0] sm:$0xff]
  %v4045 = vld [vmem:[#allocation2 + $0xd8] sm:$0xff]
  %v4046 = vld [vmem:[#allocation2 + $0xe0] sm:$0xff]
  %v4047 = vld [vmem:[#allocation2 + $0xe8] sm:$0xff]
  %v4048 = vld [vmem:[#allocation2 + $0xf0] sm:$0xff]
  %v4049 = vld [vmem:[#allocation2 + $0xf8] sm:$0xff]
  %v4050 = vld [vmem:[#allocation2 + $0x100] sm:$0xff]
  %v4051 = vld [vmem:[#allocation2 + $0x108] sm:$0xff]
  %v4052 = vld [vmem:[#allocation2 + $0x110] sm:$0xff]
  %v4053 = vld [vmem:[#allocation2 + $0x118] sm:$0xff]
  %v4054 = vld [vmem:[#allocation2 + $0x120] sm:$0xff]
  %v4055 = vld [vmem:[#allocation2 + $0x128] sm:$0xff]
  %v4056 = vld [vmem:[#allocation2 + $0x130] sm:$0xff]
  %v4057 = vld [vmem:[#allocation2 + $0x138] sm:$0xff]
  %v4058 = vld [vmem:[#allocation2 + $0x140] sm:$0xff]
  %v4059 = vld [vmem:[#allocation2 + $0x148] sm:$0xff]
  %v4060 = vld [vmem:[#allocation2 + $0x150] sm:$0xff]
  %v4061 = vld [vmem:[#allocation2 + $0x158] sm:$0xff]
  %v4062 = vld [vmem:[#allocation2 + $0x160] sm:$0xff]
  %v4063 = vld [vmem:[#allocation2 + $0x168] sm:$0xff]
  %v4064 = vld [vmem:[#allocation2 + $0x170] sm:$0xff]
  %v4065 = vld [vmem:[#allocation2 + $0x178] sm:$0xff]
  %v4066 = vld [vmem:[#allocation2 + $0x180] sm:$0x3]
  %v4067 = vld [vmem:[#allocation2 + $0x188] sm:$0x3]
  %v4068 = vld [vmem:[#allocation2 + $0x190] sm:$0x3]
  %v4069 = vld [vmem:[#allocation2 + $0x198] sm:$0x3]
  %v4070 = vld [vmem:[%s4] sm:$0xff]
  %v4071 = vld [vmem:[%s4 + $0x8] sm:$0xff]
  %v4072 = vld [vmem:[%s4 + $0x10] sm:$0xff]
  %v4073 = vld [vmem:[%s4 + $0x18] sm:$0xff]
  %v4074 = vld [vmem:[%s4 + $0x20] sm:$0xff]
  %v4075 = vld [vmem:[%s4 + $0x28] sm:$0xff]
  %v4076 = vld [vmem:[%s4 + $0x30] sm:$0xff]
  %v4077 = vld [vmem:[%s4 + $0x38] sm:$0xff]
  %v4078 = vld [vmem:[%s4 + $0x40] sm:$0xff]
  %v4079 = vld [vmem:[%s4 + $0x48] sm:$0xff]
  %v4080 = vld [vmem:[%s4 + $0x50] sm:$0xff]
  %v4081 = vld [vmem:[%s4 + $0x58] sm:$0xff]
  %v4082 = vld [vmem:[%s4 + $0x60] sm:$0xff]
  %v4083 = vld [vmem:[%s4 + $0x68] sm:$0xff]
  %v4084 = vld [vmem:[%s4 + $0x70] sm:$0xff]
  %v4085 = vld [vmem:[%s4 + $0x78] sm:$0xff]
  %v4086 = vld [vmem:[%s4 + $0x80] sm:$0xff]
  %v4087 = vld [vmem:[%s4 + $0x88] sm:$0xff]
  %v4088 = vld [vmem:[%s4 + $0x90] sm:$0xff]
  %v4089 = vld [vmem:[%s4 + $0x98] sm:$0xff]
  %v4090 = vld [vmem:[%s4 + $0xa0] sm:$0xff]
  %v4091 = vld [vmem:[%s4 + $0xa8] sm:$0xff]
  %v4092 = vld [vmem:[%s4 + $0xb0] sm:$0xff]
  %v4093 = vld [vmem:[%s4 + $0xb8] sm:$0xff]
  %v4094 = vld [vmem:[%s4 + $0xc0] sm:$0xff]
  %v4095 = vld [vmem:[%s4 + $0xc8] sm:$0xff]
  %v4096 = vld [vmem:[%s4 + $0xd0] sm:$0xff]
  %v4097 = vld [vmem:[%s4 + $0xd8] sm:$0xff]
  %v4098 = vld [vmem:[%s4 + $0xe0] sm:$0xff]
  %v4099 = vld [vmem:[%s4 + $0xe8] sm:$0xff]
  %v4100 = vld [vmem:[%s4 + $0xf0] sm:$0xff]
  %v4101 = vld [vmem:[%s4 + $0xf8] sm:$0xff]
  %v4102 = vld [vmem:[%s4 + $0x100] sm:$0xff]
  %v4103 = vld [vmem:[%s4 + $0x108] sm:$0xff]
  %v4104 = vld [vmem:[%s4 + $0x110] sm:$0xff]
  %v4105 = vld [vmem:[%s4 + $0x118] sm:$0xff]
  %v4106 = vld [vmem:[%s4 + $0x120] sm:$0xff]
  %v4107 = vld [vmem:[%s4 + $0x128] sm:$0xff]
  %v4108 = vld [vmem:[%s4 + $0x130] sm:$0xff]
  %v4109 = vld [vmem:[%s4 + $0x138] sm:$0xff]
  %v4110 = vld [vmem:[%s4 + $0x140] sm:$0xff]
  %v4111 = vld [vmem:[%s4 + $0x148] sm:$0xff]
  %v4112 = vld [vmem:[%s4 + $0x150] sm:$0xff]
  %v4113 = vld [vmem:[%s4 + $0x158] sm:$0xff]
  %v4114 = vld [vmem:[%s4 + $0x160] sm:$0xff]
  %v4115 = vld [vmem:[%s4 + $0x168] sm:$0xff]
  %v4116 = vld [vmem:[%s4 + $0x170] sm:$0xff]
  %v4117 = vld [vmem:[%s4 + $0x178] sm:$0xff]
  %v4118 = vld [vmem:[%s4 + $0x180] sm:$0xff]
  %v4119 = vld [vmem:[%s4 + $0x188] sm:$0xff]
  %v4120 = vld [vmem:[%s5] sm:$0x1]
  %v4122 = vlaneseq
  %v4123 = vshrl.u32 %v4122, 7
  %v4124 = vsub.s32 0, %v4123
  %v4125 = vrot.slane %v4120, %v4124
  %v4128 = vsel %vm256, %v4021, 0
  %v4131 = vsel %vm256, %v4025, 0
  %v4134 = vsel %vm256, %v4029, 0
  %v4137 = vsel %vm256, %v4033, 0
  %v4140 = vsel %vm256, %v4037, 0
  %v4143 = vsel %vm256, %v4041, 0
  %v4146 = vsel %vm256, %v4045, 0
  %v4149 = vsel %vm256, %v4049, 0
  %v4152 = vsel %vm256, %v4053, 0
  %v4155 = vsel %vm256, %v4057, 0
  %v4158 = vsel %vm256, %v4061, 0
  %v4161 = vsel %vm256, %v4065, 0
  %v4164 = vsel %vm256, %v4069, 0
  %4166 = vmatprep.subr.mxu0 0.0
  %4167 = vmatpush1.msra.mxu0 %v4070
  %4168 = vmatprep.subr.mxu0 0.0
  %4169 = vmatpush1.msra.mxu0 %v4071
  %4170 = vmatprep.subr.mxu0 0.0
  %4171 = vmatpush1.msra.mxu0 %v4072
  %4172 = vmatprep.subr.mxu0 0.0
  %4173 = vmatpush1.msra.mxu0 %v4073
  %4174 = vmatprep.subr.mxu0 0.0
  %4175 = vmatpush1.msra.mxu0 %v4074
  %4176 = vmatprep.subr.mxu0 0.0
  %4177 = vmatpush1.msra.mxu0 %v4075
  %4178 = vmatprep.subr.mxu0 0.0
  %4179 = vmatpush1.msra.mxu0 %v4076
  %4180 = vmatprep.subr.mxu0 0.0
  %4181 = vmatpush1.msra.mxu0 %v4077
  %4182 = vmatprep.subr.mxu0 0.0
  %4183 = vmatpush1.msra.mxu0 %v4078
  %4184 = vmatprep.subr.mxu0 0.0
  %4185 = vmatpush1.msra.mxu0 %v4079
  %4186 = vmatprep.subr.mxu0 0.0
  %4187 = vmatpush1.msra.mxu0 %v4080
  %4188 = vmatprep.subr.mxu0 0.0
  %4189 = vmatpush1.msra.mxu0 %v4081
  %4190 = vmatprep.subr.mxu0 0.0
  %4191 = vmatpush1.msra.mxu0 %v4082
  %4192 = vmatprep.subr.mxu0 0.0
  %4193 = vmatpush1.msra.mxu0 %v4083
  %4194 = vmatprep.subr.mxu0 0.0
  %4195 = vmatpush1.msra.mxu0 %v4084
  %4196 = vmatprep.subr.mxu0 0.0
  %4197 = vmatpush1.msra.mxu0 %v4085
  %4198 = vmatprep.subr.mxu0 0.0
  %4199 = vmatpush1.msra.mxu0 %v4086
  %4200 = vmatprep.subr.mxu0 0.0
  %4201 = vmatpush1.msra.mxu0 %v4087
  %4202 = vmatprep.subr.mxu0 0.0
  %4203 = vmatpush1.msra.mxu0 %v4088
  %4204 = vmatprep.subr.mxu0 0.0
  %4205 = vmatpush1.msra.mxu0 %v4089
  %4206 = vmatprep.subr.mxu0 0.0
  %4207 = vmatpush1.msra.mxu0 %v4090
  %4208 = vmatprep.subr.mxu0 0.0
  %4209 = vmatpush1.msra.mxu0 %v4091
  %4210 = vmatprep.subr.mxu0 0.0
  %4211 = vmatpush1.msra.mxu0 %v4092
  %4212 = vmatprep.subr.mxu0 0.0
  %4213 = vmatpush1.msra.mxu0 %v4093
  %4214 = vmatprep.subr.mxu0 0.0
  %4215 = vmatpush1.msra.mxu0 %v4094
  %4216 = vmatprep.subr.mxu0 0.0
  %4217 = vmatpush1.msra.mxu0 %v4095
  %4218 = vmatprep.subr.mxu0 0.0
  %4219 = vmatpush1.msra.mxu0 %v4096
  %4220 = vmatprep.subr.mxu0 0.0
  %4221 = vmatpush1.msra.mxu0 %v4097
  %4222 = vmatprep.subr.mxu0 0.0
  %4223 = vmatpush1.msra.mxu0 %v4098
  %4224 = vmatprep.subr.mxu0 0.0
  %4225 = vmatpush1.msra.mxu0 %v4099
  %4226 = vmatprep.subr.mxu0 0.0
  %4227 = vmatpush1.msra.mxu0 %v4100
  %4228 = vmatprep.subr.mxu0 0.0
  %4229 = vmatpush1.msra.mxu0 %v4101
  %4230 = vmatprep.mubr.f32.mxu0 %v4019
  %4231 = vmatmul.mubr.f32.gmra.mrb[0].mxu0 %v4018
  %v4232 = vpop.f32.mrb[0].mxu0
  %v4233 = vadd.f32 %v4125, %v4232
  %v4234 = vpop.f32.mrb[0].mxu0
  %4235 = vmatprep.mubr.f32.mxu0 %v4023
  %4236 = vmatmul.mubr.f32.gmra.mrb[0].mxu0 %v4022
  %v4237 = vpop.f32.mrb[0].mxu0
  %v4238 = vadd.f32 %v4125, %v4237
  %v4239 = vpop.f32.mrb[0].mxu0
  %4240 = vmatprep.mubr.f32.mxu0 %v4027
  %4241 = vmatmul.mubr.f32.gmra.mrb[0].mxu0 %v4026
  %v4242 = vpop.f32.mrb[0].mxu0
  %v4243 = vadd.f32 %v4125, %v4242
  %v4244 = vpop.f32.mrb[0].mxu0
  %4245 = vmatprep.mubr.f32.mxu0 %v4031
  %4246 = vmatmul.mubr.f32.gmra.mrb[0].mxu0 %v4030
  %v4247 = vpop.f32.mrb[0].mxu0
  %v4248 = vadd.f32 %v4125, %v4247
  %v4249 = vpop.f32.mrb[0].mxu0
  %4250 = vmatprep.mubr.f32.mxu0 %v4035
  %4251 = vmatmul.mubr.f32.gmra.mrb[0].mxu0 %v4034
  %v4252 = vpop.f32.mrb[0].mxu0
  %v4253 = vadd.f32 %v4125, %v4252
  %v4254 = vpop.f32.mrb[0].mxu0
  %4255 = vmatprep.mubr.f32.mxu0 %v4039
  %4256 = vmatmul.mubr.f32.gmra.mrb[0].mxu0 %v4038
  %v4257 = vpop.f32.mrb[0].mxu0
  %v4258 = vadd.f32 %v4125, %v4257
  %v4259 = vpop.f32.mrb[0].mxu0
  %4260 = vmatprep.mubr.f32.mxu0 %v4043
  %4261 = vmatmul.mubr.f32.gmra.mrb[0].mxu0 %v4042
  %v4262 = vpop.f32.mrb[0].mxu0
  %v4263 = vadd.f32 %v4125, %v4262
  %v4264 = vpop.f32.mrb[0].mxu0
  %4265 = vmatprep.mubr.f32.mxu0 %v4047
  %4266 = vmatmul.mubr.f32.gmra.mrb[0].mxu0 %v4046
  %v4267 = vpop.f32.mrb[0].mxu0
  %v4268 = vadd.f32 %v4125, %v4267
  %v4269 = vpop.f32.mrb[0].mxu0
  %4270 = vmatprep.mubr.f32.mxu0 %v4051
  %4271 = vmatmul.mubr.f32.gmra.mrb[0].mxu0 %v4050
  %v4272 = vpop.f32.mrb[0].mxu0
  %v4273 = vadd.f32 %v4125, %v4272
  %v4274 = vpop.f32.mrb[0].mxu0
  %4275 = vmatprep.mubr.f32.mxu0 %v4055
  %4276 = vmatmul.mubr.f32.gmra.mrb[0].mxu0 %v4054
  %v4277 = vpop.f32.mrb[0].mxu0
  %v4278 = vadd.f32 %v4125, %v4277
  %v4279 = vpop.f32.mrb[0].mxu0
  %4280 = vmatprep.mubr.f32.mxu0 %v4059
  %4281 = vmatmul.mubr.f32.gmra.mrb[0].mxu0 %v4058
  %v4282 = vpop.f32.mrb[0].mxu0
  %v4283 = vadd.f32 %v4125, %v4282
  %v4284 = vpop.f32.mrb[0].mxu0
  %4285 = vmatprep.mubr.f32.mxu0 %v4063
  %4286 = vmatmul.mubr.f32.gmra.mrb[0].mxu0 %v4062
  %v4287 = vpop.f32.mrb[0].mxu0
  %v4288 = vadd.f32 %v4125, %v4287
  %v4289 = vpop.f32.mrb[0].mxu0
  %4290 = vmatprep.mubr.f32.mxu0 %v4067
  %4291 = vmatmul.mubr.f32.gmra.mrb[0].mxu0 %v4066
  %v4292 = vpop.f32.mrb[0].mxu0
  %v4293 = vadd.f32 %v4125, %v4292
  %v4294 = vpop.f32.mrb[0].mxu0
  %4295 = vdwg.mxu0
  %4296 = vmatprep.subr.mxu0 0.0
  %4297 = vmatpush1.msra.mxu0 %v4102
  %4298 = vmatprep.subr.mxu0 0.0
  %4299 = vmatpush1.msra.mxu0 %v4103
  %4300 = vmatprep.subr.mxu0 0.0
  %4301 = vmatpush1.msra.mxu0 %v4104
  %4302 = vmatprep.subr.mxu0 0.0
  %4303 = vmatpush1.msra.mxu0 %v4105
  %4304 = vmatprep.subr.mxu0 0.0
  %4305 = vmatpush1.msra.mxu0 %v4106
  %4306 = vmatprep.subr.mxu0 0.0
  %4307 = vmatpush1.msra.mxu0 %v4107
  %4308 = vmatprep.subr.mxu0 0.0
  %4309 = vmatpush1.msra.mxu0 %v4108
  %4310 = vmatprep.subr.mxu0 0.0
  %4311 = vmatpush1.msra.mxu0 %v4109
  %4312 = vmatprep.subr.mxu0 0.0
  %4313 = vmatpush1.msra.mxu0 %v4110
  %4314 = vmatprep.subr.mxu0 0.0
  %4315 = vmatpush1.msra.mxu0 %v4111
  %4316 = vmatprep.subr.mxu0 0.0
  %4317 = vmatpush1.msra.mxu0 %v4112
  %4318 = vmatprep.subr.mxu0 0.0
  %4319 = vmatpush1.msra.mxu0 %v4113
  %4320 = vmatprep.subr.mxu0 0.0
  %4321 = vmatpush1.msra.mxu0 %v4114
  %4322 = vmatprep.subr.mxu0 0.0
  %4323 = vmatpush1.msra.mxu0 %v4115
  %4324 = vmatprep.subr.mxu0 0.0
  %4325 = vmatpush1.msra.mxu0 %v4116
  %4326 = vmatprep.subr.mxu0 0.0
  %4327 = vmatpush1.msra.mxu0 %v4117
  %4328 = vmatprep.subr.mxu0 0.0
  %4329 = vmatpush1.msra.mxu0 %v4118
  %4330 = vmatprep.subr.mxu0 0.0
  %4331 = vmatpush1.msra.mxu0 %v4119
  %4332 = vmatprep.subr.mxu0 0.0
  %4333 = vmatpush1.msra.mxu0 0.0
  %4334 = vmatprep.subr.mxu0 0.0
  %4335 = vmatpush1.msra.mxu0 0.0
  %4336 = vmatprep.subr.mxu0 0.0
  %4337 = vmatpush1.msra.mxu0 0.0
  %4338 = vmatprep.subr.mxu0 0.0
  %4339 = vmatpush1.msra.mxu0 0.0
  %4340 = vmatprep.subr.mxu0 0.0
  %4341 = vmatpush1.msra.mxu0 0.0
  %4342 = vmatprep.subr.mxu0 0.0
  %4343 = vmatpush1.msra.mxu0 0.0
  %4344 = vmatprep.subr.mxu0 0.0
  %4345 = vmatpush1.msra.mxu0 0.0
  %4346 = vmatprep.subr.mxu0 0.0
  %4347 = vmatpush1.msra.mxu0 0.0
  %4348 = vmatprep.subr.mxu0 0.0
  %4349 = vmatpush1.msra.mxu0 0.0
  %4350 = vmatprep.subr.mxu0 0.0
  %4351 = vmatpush1.msra.mxu0 0.0
  %4352 = vmatprep.subr.mxu0 0.0
  %4353 = vmatpush1.msra.mxu0 0.0
  %4354 = vmatprep.subr.mxu0 0.0
  %4355 = vmatpush1.msra.mxu0 0.0
  %4356 = vmatprep.subr.mxu0 0.0
  %4357 = vmatpush1.msra.mxu0 0.0
  %4358 = vmatprep.subr.mxu0 0.0
  %4359 = vmatpush1.msra.mxu0 0.0
  %4360 = vmatprep.mubr.f32.mxu0 %v4128
  %4361 = vmatmul.mubr.f32.gmra.mrb[0].mxu0 %v4020
  %v4362 = vpop.f32.mrb[0].mxu0
  %v4363 = vadd.f32 %v4233, %v4362
  %v4364 = vpop.f32.mrb[0].mxu0
  %4365 = vmatprep.mubr.f32.mxu0 %v4131
  %4366 = vmatmul.mubr.f32.gmra.mrb[0].mxu0 %v4024
  %v4367 = vpop.f32.mrb[0].mxu0
  %v4368 = vadd.f32 %v4238, %v4367
  %v4369 = vpop.f32.mrb[0].mxu0
  %4370 = vmatprep.mubr.f32.mxu0 %v4134
  %4371 = vmatmul.mubr.f32.gmra.mrb[0].mxu0 %v4028
  %v4372 = vpop.f32.mrb[0].mxu0
  %v4373 = vadd.f32 %v4243, %v4372
  %v4374 = vpop.f32.mrb[0].mxu0
  %4375 = vmatprep.mubr.f32.mxu0 %v4137
  %4376 = vmatmul.mubr.f32.gmra.mrb[0].mxu0 %v4032
  %v4377 = vpop.f32.mrb[0].mxu0
  %v4378 = vadd.f32 %v4248, %v4377
  %v4379 = vpop.f32.mrb[0].mxu0
  %4380 = vmatprep.mubr.f32.mxu0 %v4140
  %4381 = vmatmul.mubr.f32.gmra.mrb[0].mxu0 %v4036
  %v4382 = vpop.f32.mrb[0].mxu0
  %v4383 = vadd.f32 %v4253, %v4382
  %v4384 = vpop.f32.mrb[0].mxu0
  %4385 = vmatprep.mubr.f32.mxu0 %v4143
  %4386 = vmatmul.mubr.f32.gmra.mrb[0].mxu0 %v4040
  %v4387 = vpop.f32.mrb[0].mxu0
  %v4388 = vadd.f32 %v4258, %v4387
  %v4389 = vpop.f32.mrb[0].mxu0
  %4390 = vmatprep.mubr.f32.mxu0 %v4146
  %4391 = vmatmul.mubr.f32.gmra.mrb[0].mxu0 %v4044
  %v4392 = vpop.f32.mrb[0].mxu0
  %v4393 = vadd.f32 %v4263, %v4392
  %v4394 = vpop.f32.mrb[0].mxu0
  %4395 = vmatprep.mubr.f32.mxu0 %v4149
  %4396 = vmatmul.mubr.f32.gmra.mrb[0].mxu0 %v4048
  %v4397 = vpop.f32.mrb[0].mxu0
  %v4398 = vadd.f32 %v4268, %v4397
  %v4399 = vpop.f32.mrb[0].mxu0
  %4400 = vmatprep.mubr.f32.mxu0 %v4152
  %4401 = vmatmul.mubr.f32.gmra.mrb[0].mxu0 %v4052
  %v4402 = vpop.f32.mrb[0].mxu0
  %v4403 = vadd.f32 %v4273, %v4402
  %v4404 = vpop.f32.mrb[0].mxu0
  %4405 = vmatprep.mubr.f32.mxu0 %v4155
  %4406 = vmatmul.mubr.f32.gmra.mrb[0].mxu0 %v4056
  %v4407 = vpop.f32.mrb[0].mxu0
  %v4408 = vadd.f32 %v4278, %v4407
  %v4409 = vpop.f32.mrb[0].mxu0
  %4410 = vmatprep.mubr.f32.mxu0 %v4158
  %4411 = vmatmul.mubr.f32.gmra.mrb[0].mxu0 %v4060
  %v4412 = vpop.f32.mrb[0].mxu0
  %v4413 = vadd.f32 %v4283, %v4412
  %v4414 = vpop.f32.mrb[0].mxu0
  %4415 = vmatprep.mubr.f32.mxu0 %v4161
  %4416 = vmatmul.mubr.f32.gmra.mrb[0].mxu0 %v4064
  %v4417 = vpop.f32.mrb[0].mxu0
  %v4418 = vadd.f32 %v4288, %v4417
  %v4419 = vpop.f32.mrb[0].mxu0
  %4420 = vmatprep.mubr.f32.mxu0 %v4164
  %4421 = vmatmul.mubr.f32.gmra.mrb[0].mxu0 %v4068
  %v4422 = vpop.f32.mrb[0].mxu0
  %v4423 = vadd.f32 %v4293, %v4422
  %v4424 = vpop.f32.mrb[0].mxu0
  %4425 = vdwg.mxu0
  %v4426 = vmax.f32 %v4363, 0.0
  %v4427 = vmax.f32 %v4368, 0.0
  %v4428 = vmax.f32 %v4373, 0.0
  %v4429 = vmax.f32 %v4378, 0.0
  %v4430 = vmax.f32 %v4383, 0.0
  %v4431 = vmax.f32 %v4388, 0.0
  %v4432 = vmax.f32 %v4393, 0.0
  %v4433 = vmax.f32 %v4398, 0.0
  %v4434 = vmax.f32 %v4403, 0.0
  %v4435 = vmax.f32 %v4408, 0.0
  %v4436 = vmax.f32 %v4413, 0.0
  %v4437 = vmax.f32 %v4418, 0.0
  %v4438 = vmax.f32 %v4423, 0.0
  %vm4439 = vcmask 254976
  %4440 = vst.msk [vmem:[#allocation3] sm:$0x3] %vm4439, %v240
  %v4443 = vunpack.c.l.s4 1983009808
  %v4444 = vunpack.c.0.s8 %v4443
  %v4445 = vlaneseq
  %v4446 = vshrl.u32 %v4445, 7
  %v4447 = vsub.s32 %v4444, %v4446
  %v4448 = vrot.slane %v4426, %v4447
  %4449 = vrot.lane.b32.xlu0 %v4448, 32
  %v4450 = vpop.permute.xlu0 %4449
  %vm4452 = vcmask 517376
  %4453 = vst.msk [vmem:[#allocation3 + $0x18] sm:$0x3] %vm4452, %v4450
  %v4456 = vunpack.c.l.s4 1983009808
  %v4457 = vunpack.c.0.s8 %v4456
  %v4458 = vlaneseq
  %v4459 = vshrl.u32 %v4458, 7
  %v4460 = vsub.s32 %v4457, %v4459
  %v4461 = vrot.slane %v240, %v4460
  %v4462 = vcombine.high %v4461, %v4461
  %4463 = vrot.lane.b32.xlu0 %v4462, 32
  %v4464 = vpop.permute.xlu0 %4463
  %4466 = vst.msk [vmem:[#allocation3] sm:$0x3] %vm4452, %v4464
  %v4467 = vcombine.high %v4448, %v4448
  %4468 = vrot.lane.b32.xlu0 %v4467, 64
  %v4469 = vpop.permute.xlu0 %4468
  %vm4471 = vcmask 779776
  %4472 = vst.msk [vmem:[#allocation3 + $0x18] sm:$0x3] %vm4471, %v4469
  %v4473 = vcombine.high %v240, %v240
  %v4475 = vunpack.c.l.s4 1983009808
  %v4476 = vunpack.c.0.s8 %v4475
  %v4477 = vlaneseq
  %v4478 = vshrl.u32 %v4477, 7
  %v4479 = vsub.s32 %v4476, %v4478
  %v4480 = vrot.slane %v4473, %v4479
  %4481 = vrot.lane.b32.xlu0 %v4480, 64
  %v4482 = vpop.permute.xlu0 %4481
  %4484 = vst.msk [vmem:[#allocation3] sm:$0x3] %vm4471, %v4482
  %v4485 = vcombine.high %v4426, %v4426
  %v4487 = vunpack.c.l.s4 1983009808
  %v4488 = vunpack.c.0.s8 %v4487
  %v4489 = vlaneseq
  %v4490 = vshrl.u32 %v4489, 7
  %v4491 = vsub.s32 %v4488, %v4490
  %v4492 = vrot.slane %v4485, %v4491
  %4493 = vrot.lane.b32.xlu0 %v4492, 96
  %v4494 = vpop.permute.xlu0 %4493
  %vm4496 = vcmask 1042176
  %4497 = vst.msk [vmem:[#allocation3 + $0x18] sm:$0x3] %vm4496, %v4494
  %v4498 = vcombine.high %v4480, %v4480
  %4499 = vrot.lane.b32.xlu0 %v4498, 96
  %v4500 = vpop.permute.xlu0 %4499
  %4502 = vst.msk [vmem:[#allocation3] sm:$0x3] %vm4496, %v4500
  %v4503 = vcombine.high %v4492, %v4492
  %4505 = vst.msk [vmem:[#allocation3 + $0x1a] sm:$0x3] %vm4439, %v4503
  %4506 = vst.msk [vmem:[#allocation3 + $0x2] sm:$0x3] %vm4439, %v241
  %v4509 = vunpack.c.l.s4 1983009808
  %v4510 = vunpack.c.0.s8 %v4509
  %v4511 = vlaneseq
  %v4512 = vshrl.u32 %v4511, 7
  %v4513 = vsub.s32 %v4510, %v4512
  %v4514 = vrot.slane %v4427, %v4513
  %4515 = vrot.lane.b32.xlu0 %v4514, 32
  %v4516 = vpop.permute.xlu0 %4515
  %4518 = vst.msk [vmem:[#allocation3 + $0x1a] sm:$0x3] %vm4452, %v4516
  %v4521 = vunpack.c.l.s4 1983009808
  %v4522 = vunpack.c.0.s8 %v4521
  %v4523 = vlaneseq
  %v4524 = vshrl.u32 %v4523, 7
  %v4525 = vsub.s32 %v4522, %v4524
  %v4526 = vrot.slane %v241, %v4525
  %v4527 = vcombine.high %v4526, %v4526
  %4528 = vrot.lane.b32.xlu0 %v4527, 32
  %v4529 = vpop.permute.xlu0 %4528
  %4531 = vst.msk [vmem:[#allocation3 + $0x2] sm:$0x3] %vm4452, %v4529
  %v4532 = vcombine.high %v4514, %v4514
  %4533 = vrot.lane.b32.xlu0 %v4532, 64
  %v4534 = vpop.permute.xlu0 %4533
  %4536 = vst.msk [vmem:[#allocation3 + $0x1a] sm:$0x3] %vm4471, %v4534
  %v4537 = vcombine.high %v241, %v241
  %v4539 = vunpack.c.l.s4 1983009808
  %v4540 = vunpack.c.0.s8 %v4539
  %v4541 = vlaneseq
  %v4542 = vshrl.u32 %v4541, 7
  %v4543 = vsub.s32 %v4540, %v4542
  %v4544 = vrot.slane %v4537, %v4543
  %4545 = vrot.lane.b32.xlu0 %v4544, 64
  %v4546 = vpop.permute.xlu0 %4545
  %4548 = vst.msk [vmem:[#allocation3 + $0x2] sm:$0x3] %vm4471, %v4546
  %v4549 = vcombine.high %v4427, %v4427
  %v4551 = vunpack.c.l.s4 1983009808
  %v4552 = vunpack.c.0.s8 %v4551
  %v4553 = vlaneseq
  %v4554 = vshrl.u32 %v4553, 7
  %v4555 = vsub.s32 %v4552, %v4554
  %v4556 = vrot.slane %v4549, %v4555
  %4557 = vrot.lane.b32.xlu0 %v4556, 96
  %v4558 = vpop.permute.xlu0 %4557
  %4560 = vst.msk [vmem:[#allocation3 + $0x1a] sm:$0x3] %vm4496, %v4558
  %v4561 = vcombine.high %v4544, %v4544
  %4562 = vrot.lane.b32.xlu0 %v4561, 96
  %v4563 = vpop.permute.xlu0 %4562
  %4565 = vst.msk [vmem:[#allocation3 + $0x2] sm:$0x3] %vm4496, %v4563
  %v4566 = vcombine.high %v4556, %v4556
  %4568 = vst.msk [vmem:[#allocation3 + $0x1c] sm:$0x3] %vm4439, %v4566
  %4569 = vst.msk [vmem:[#allocation3 + $0x4] sm:$0x3] %vm4439, %v242
  %v4572 = vunpack.c.l.s4 1983009808
  %v4573 = vunpack.c.0.s8 %v4572
  %v4574 = vlaneseq
  %v4575 = vshrl.u32 %v4574, 7
  %v4576 = vsub.s32 %v4573, %v4575
  %v4577 = vrot.slane %v4428, %v4576
  %4578 = vrot.lane.b32.xlu0 %v4577, 32
  %v4579 = vpop.permute.xlu0 %4578
  %4581 = vst.msk [vmem:[#allocation3 + $0x1c] sm:$0x3] %vm4452, %v4579
  %v4584 = vunpack.c.l.s4 1983009808
  %v4585 = vunpack.c.0.s8 %v4584
  %v4586 = vlaneseq
  %v4587 = vshrl.u32 %v4586, 7
  %v4588 = vsub.s32 %v4585, %v4587
  %v4589 = vrot.slane %v242, %v4588
  %v4590 = vcombine.high %v4589, %v4589
  %4591 = vrot.lane.b32.xlu0 %v4590, 32
  %v4592 = vpop.permute.xlu0 %4591
  %4594 = vst.msk [vmem:[#allocation3 + $0x4] sm:$0x3] %vm4452, %v4592
  %v4595 = vcombine.high %v4577, %v4577
  %4596 = vrot.lane.b32.xlu0 %v4595, 64
  %v4597 = vpop.permute.xlu0 %4596
  %4599 = vst.msk [vmem:[#allocation3 + $0x1c] sm:$0x3] %vm4471, %v4597
  %v4600 = vcombine.high %v242, %v242
  %v4602 = vunpack.c.l.s4 1983009808
  %v4603 = vunpack.c.0.s8 %v4602
  %v4604 = vlaneseq
  %v4605 = vshrl.u32 %v4604, 7
  %v4606 = vsub.s32 %v4603, %v4605
  %v4607 = vrot.slane %v4600, %v4606
  %4608 = vrot.lane.b32.xlu0 %v4607, 64
  %v4609 = vpop.permute.xlu0 %4608
  %4611 = vst.msk [vmem:[#allocation3 + $0x4] sm:$0x3] %vm4471, %v4609
  %v4612 = vcombine.high %v4428, %v4428
  %v4614 = vunpack.c.l.s4 1983009808
  %v4615 = vunpack.c.0.s8 %v4614
  %v4616 = vlaneseq
  %v4617 = vshrl.u32 %v4616, 7
  %v4618 = vsub.s32 %v4615, %v4617
  %v4619 = vrot.slane %v4612, %v4618
  %4620 = vrot.lane.b32.xlu0 %v4619, 96
  %v4621 = vpop.permute.xlu0 %4620
  %4623 = vst.msk [vmem:[#allocation3 + $0x1c] sm:$0x3] %vm4496, %v4621
  %v4624 = vcombine.high %v4607, %v4607
  %4625 = vrot.lane.b32.xlu0 %v4624, 96
  %v4626 = vpop.permute.xlu0 %4625
  %4628 = vst.msk [vmem:[#allocation3 + $0x4] sm:$0x3] %vm4496, %v4626
  %v4629 = vcombine.high %v4619, %v4619
  %4631 = vst.msk [vmem:[#allocation3 + $0x1e] sm:$0x3] %vm4439, %v4629
  %4632 = vst.msk [vmem:[#allocation3 + $0x6] sm:$0x3] %vm4439, %v243
  %v4635 = vunpack.c.l.s4 1983009808
  %v4636 = vunpack.c.0.s8 %v4635
  %v4637 = vlaneseq
  %v4638 = vshrl.u32 %v4637, 7
  %v4639 = vsub.s32 %v4636, %v4638
  %v4640 = vrot.slane %v4429, %v4639
  %4641 = vrot.lane.b32.xlu0 %v4640, 32
  %v4642 = vpop.permute.xlu0 %4641
  %4644 = vst.msk [vmem:[#allocation3 + $0x1e] sm:$0x3] %vm4452, %v4642
  %v4647 = vunpack.c.l.s4 1983009808
  %v4648 = vunpack.c.0.s8 %v4647
  %v4649 = vlaneseq
  %v4650 = vshrl.u32 %v4649, 7
  %v4651 = vsub.s32 %v4648, %v4650
  %v4652 = vrot.slane %v243, %v4651
  %v4653 = vcombine.high %v4652, %v4652
  %4654 = vrot.lane.b32.xlu0 %v4653, 32
  %v4655 = vpop.permute.xlu0 %4654
  %4657 = vst.msk [vmem:[#allocation3 + $0x6] sm:$0x3] %vm4452, %v4655
  %v4658 = vcombine.high %v4640, %v4640
  %4659 = vrot.lane.b32.xlu0 %v4658, 64
  %v4660 = vpop.permute.xlu0 %4659
  %4662 = vst.msk [vmem:[#allocation3 + $0x1e] sm:$0x3] %vm4471, %v4660
  %v4663 = vcombine.high %v243, %v243
  %v4665 = vunpack.c.l.s4 1983009808
  %v4666 = vunpack.c.0.s8 %v4665
  %v4667 = vlaneseq
  %v4668 = vshrl.u32 %v4667, 7
  %v4669 = vsub.s32 %v4666, %v4668
  %v4670 = vrot.slane %v4663, %v4669
  %4671 = vrot.lane.b32.xlu0 %v4670, 64
  %v4672 = vpop.permute.xlu0 %4671
  %4674 = vst.msk [vmem:[#allocation3 + $0x6] sm:$0x3] %vm4471, %v4672
  %v4675 = vcombine.high %v4429, %v4429
  %v4677 = vunpack.c.l.s4 1983009808
  %v4678 = vunpack.c.0.s8 %v4677
  %v4679 = vlaneseq
  %v4680 = vshrl.u32 %v4679, 7
  %v4681 = vsub.s32 %v4678, %v4680
  %v4682 = vrot.slane %v4675, %v4681
  %4683 = vrot.lane.b32.xlu0 %v4682, 96
  %v4684 = vpop.permute.xlu0 %4683
  %4686 = vst.msk [vmem:[#allocation3 + $0x1e] sm:$0x3] %vm4496, %v4684
  %v4687 = vcombine.high %v4670, %v4670
  %4688 = vrot.lane.b32.xlu0 %v4687, 96
  %v4689 = vpop.permute.xlu0 %4688
  %4691 = vst.msk [vmem:[#allocation3 + $0x6] sm:$0x3] %vm4496, %v4689
  %v4692 = vcombine.high %v4682, %v4682
  %4694 = vst.msk [vmem:[#allocation3 + $0x20] sm:$0x3] %vm4439, %v4692
  %4695 = vst.msk [vmem:[#allocation3 + $0x8] sm:$0x3] %vm4439, %v244
  %v4698 = vunpack.c.l.s4 1983009808
  %v4699 = vunpack.c.0.s8 %v4698
  %v4700 = vlaneseq
  %v4701 = vshrl.u32 %v4700, 7
  %v4702 = vsub.s32 %v4699, %v4701
  %v4703 = vrot.slane %v4430, %v4702
  %4704 = vrot.lane.b32.xlu0 %v4703, 32
  %v4705 = vpop.permute.xlu0 %4704
  %4707 = vst.msk [vmem:[#allocation3 + $0x20] sm:$0x3] %vm4452, %v4705
  %v4710 = vunpack.c.l.s4 1983009808
  %v4711 = vunpack.c.0.s8 %v4710
  %v4712 = vlaneseq
  %v4713 = vshrl.u32 %v4712, 7
  %v4714 = vsub.s32 %v4711, %v4713
  %v4715 = vrot.slane %v244, %v4714
  %v4716 = vcombine.high %v4715, %v4715
  %4717 = vrot.lane.b32.xlu0 %v4716, 32
  %v4718 = vpop.permute.xlu0 %4717
  %4720 = vst.msk [vmem:[#allocation3 + $0x8] sm:$0x3] %vm4452, %v4718
  %v4721 = vcombine.high %v4703, %v4703
  %4722 = vrot.lane.b32.xlu0 %v4721, 64
  %v4723 = vpop.permute.xlu0 %4722
  %4725 = vst.msk [vmem:[#allocation3 + $0x20] sm:$0x3] %vm4471, %v4723
  %v4726 = vcombine.high %v244, %v244
  %v4728 = vunpack.c.l.s4 1983009808
  %v4729 = vunpack.c.0.s8 %v4728
  %v4730 = vlaneseq
  %v4731 = vshrl.u32 %v4730, 7
  %v4732 = vsub.s32 %v4729, %v4731
  %v4733 = vrot.slane %v4726, %v4732
  %4734 = vrot.lane.b32.xlu0 %v4733, 64
  %v4735 = vpop.permute.xlu0 %4734
  %4737 = vst.msk [vmem:[#allocation3 + $0x8] sm:$0x3] %vm4471, %v4735
  %v4738 = vcombine.high %v4430, %v4430
  %v4740 = vunpack.c.l.s4 1983009808
  %v4741 = vunpack.c.0.s8 %v4740
  %v4742 = vlaneseq
  %v4743 = vshrl.u32 %v4742, 7
  %v4744 = vsub.s32 %v4741, %v4743
  %v4745 = vrot.slane %v4738, %v4744
  %4746 = vrot.lane.b32.xlu0 %v4745, 96
  %v4747 = vpop.permute.xlu0 %4746
  %4749 = vst.msk [vmem:[#allocation3 + $0x20] sm:$0x3] %vm4496, %v4747
  %v4750 = vcombine.high %v4733, %v4733
  %4751 = vrot.lane.b32.xlu0 %v4750, 96
  %v4752 = vpop.permute.xlu0 %4751
  %4754 = vst.msk [vmem:[#allocation3 + $0x8] sm:$0x3] %vm4496, %v4752
  %v4755 = vcombine.high %v4745, %v4745
  %4757 = vst.msk [vmem:[#allocation3 + $0x22] sm:$0x3] %vm4439, %v4755
  %4758 = vst.msk [vmem:[#allocation3 + $0xa] sm:$0x3] %vm4439, %v245
  %v4761 = vunpack.c.l.s4 1983009808
  %v4762 = vunpack.c.0.s8 %v4761
  %v4763 = vlaneseq
  %v4764 = vshrl.u32 %v4763, 7
  %v4765 = vsub.s32 %v4762, %v4764
  %v4766 = vrot.slane %v4431, %v4765
  %4767 = vrot.lane.b32.xlu0 %v4766, 32
  %v4768 = vpop.permute.xlu0 %4767
  %4770 = vst.msk [vmem:[#allocation3 + $0x22] sm:$0x3] %vm4452, %v4768
  %v4773 = vunpack.c.l.s4 1983009808
  %v4774 = vunpack.c.0.s8 %v4773
  %v4775 = vlaneseq
  %v4776 = vshrl.u32 %v4775, 7
  %v4777 = vsub.s32 %v4774, %v4776
  %v4778 = vrot.slane %v245, %v4777
  %v4779 = vcombine.high %v4778, %v4778
  %4780 = vrot.lane.b32.xlu0 %v4779, 32
  %v4781 = vpop.permute.xlu0 %4780
  %4783 = vst.msk [vmem:[#allocation3 + $0xa] sm:$0x3] %vm4452, %v4781
  %v4784 = vcombine.high %v4766, %v4766
  %4785 = vrot.lane.b32.xlu0 %v4784, 64
  %v4786 = vpop.permute.xlu0 %4785
  %4788 = vst.msk [vmem:[#allocation3 + $0x22] sm:$0x3] %vm4471, %v4786
  %v4789 = vcombine.high %v245, %v245
  %v4791 = vunpack.c.l.s4 1983009808
  %v4792 = vunpack.c.0.s8 %v4791
  %v4793 = vlaneseq
  %v4794 = vshrl.u32 %v4793, 7
  %v4795 = vsub.s32 %v4792, %v4794
  %v4796 = vrot.slane %v4789, %v4795
  %4797 = vrot.lane.b32.xlu0 %v4796, 64
  %v4798 = vpop.permute.xlu0 %4797
  %4800 = vst.msk [vmem:[#allocation3 + $0xa] sm:$0x3] %vm4471, %v4798
  %v4801 = vcombine.high %v4431, %v4431
  %v4803 = vunpack.c.l.s4 1983009808
  %v4804 = vunpack.c.0.s8 %v4803
  %v4805 = vlaneseq
  %v4806 = vshrl.u32 %v4805, 7
  %v4807 = vsub.s32 %v4804, %v4806
  %v4808 = vrot.slane %v4801, %v4807
  %4809 = vrot.lane.b32.xlu0 %v4808, 96
  %v4810 = vpop.permute.xlu0 %4809
  %4812 = vst.msk [vmem:[#allocation3 + $0x22] sm:$0x3] %vm4496, %v4810
  %v4813 = vcombine.high %v4796, %v4796
  %4814 = vrot.lane.b32.xlu0 %v4813, 96
  %v4815 = vpop.permute.xlu0 %4814
  %4817 = vst.msk [vmem:[#allocation3 + $0xa] sm:$0x3] %vm4496, %v4815
  %v4818 = vcombine.high %v4808, %v4808
  %4820 = vst.msk [vmem:[#allocation3 + $0x24] sm:$0x3] %vm4439, %v4818
  %4821 = vst.msk [vmem:[#allocation3 + $0xc] sm:$0x3] %vm4439, %v246
  %v4824 = vunpack.c.l.s4 1983009808
  %v4825 = vunpack.c.0.s8 %v4824
  %v4826 = vlaneseq
  %v4827 = vshrl.u32 %v4826, 7
  %v4828 = vsub.s32 %v4825, %v4827
  %v4829 = vrot.slane %v4432, %v4828
  %4830 = vrot.lane.b32.xlu0 %v4829, 32
  %v4831 = vpop.permute.xlu0 %4830
  %4833 = vst.msk [vmem:[#allocation3 + $0x24] sm:$0x3] %vm4452, %v4831
  %v4836 = vunpack.c.l.s4 1983009808
  %v4837 = vunpack.c.0.s8 %v4836
  %v4838 = vlaneseq
  %v4839 = vshrl.u32 %v4838, 7
  %v4840 = vsub.s32 %v4837, %v4839
  %v4841 = vrot.slane %v246, %v4840
  %v4842 = vcombine.high %v4841, %v4841
  %4843 = vrot.lane.b32.xlu0 %v4842, 32
  %v4844 = vpop.permute.xlu0 %4843
  %4846 = vst.msk [vmem:[#allocation3 + $0xc] sm:$0x3] %vm4452, %v4844
  %v4847 = vcombine.high %v4829, %v4829
  %4848 = vrot.lane.b32.xlu0 %v4847, 64
  %v4849 = vpop.permute.xlu0 %4848
  %4851 = vst.msk [vmem:[#allocation3 + $0x24] sm:$0x3] %vm4471, %v4849
  %v4852 = vcombine.high %v246, %v246
  %v4854 = vunpack.c.l.s4 1983009808
  %v4855 = vunpack.c.0.s8 %v4854
  %v4856 = vlaneseq
  %v4857 = vshrl.u32 %v4856, 7
  %v4858 = vsub.s32 %v4855, %v4857
  %v4859 = vrot.slane %v4852, %v4858
  %4860 = vrot.lane.b32.xlu0 %v4859, 64
  %v4861 = vpop.permute.xlu0 %4860
  %4863 = vst.msk [vmem:[#allocation3 + $0xc] sm:$0x3] %vm4471, %v4861
  %v4864 = vcombine.high %v4432, %v4432
  %v4866 = vunpack.c.l.s4 1983009808
  %v4867 = vunpack.c.0.s8 %v4866
  %v4868 = vlaneseq
  %v4869 = vshrl.u32 %v4868, 7
  %v4870 = vsub.s32 %v4867, %v4869
  %v4871 = vrot.slane %v4864, %v4870
  %4872 = vrot.lane.b32.xlu0 %v4871, 96
  %v4873 = vpop.permute.xlu0 %4872
  %4875 = vst.msk [vmem:[#allocation3 + $0x24] sm:$0x3] %vm4496, %v4873
  %v4876 = vcombine.high %v4859, %v4859
  %4877 = vrot.lane.b32.xlu0 %v4876, 96
  %v4878 = vpop.permute.xlu0 %4877
  %4880 = vst.msk [vmem:[#allocation3 + $0xc] sm:$0x3] %vm4496, %v4878
  %v4881 = vcombine.high %v4871, %v4871
  %4883 = vst.msk [vmem:[#allocation3 + $0x26] sm:$0x3] %vm4439, %v4881
  %4884 = vst.msk [vmem:[#allocation3 + $0xe] sm:$0x3] %vm4439, %v247
  %v4887 = vunpack.c.l.s4 1983009808
  %v4888 = vunpack.c.0.s8 %v4887
  %v4889 = vlaneseq
  %v4890 = vshrl.u32 %v4889, 7
  %v4891 = vsub.s32 %v4888, %v4890
  %v4892 = vrot.slane %v4433, %v4891
  %4893 = vrot.lane.b32.xlu0 %v4892, 32
  %v4894 = vpop.permute.xlu0 %4893
  %4896 = vst.msk [vmem:[#allocation3 + $0x26] sm:$0x3] %vm4452, %v4894
  %v4899 = vunpack.c.l.s4 1983009808
  %v4900 = vunpack.c.0.s8 %v4899
  %v4901 = vlaneseq
  %v4902 = vshrl.u32 %v4901, 7
  %v4903 = vsub.s32 %v4900, %v4902
  %v4904 = vrot.slane %v247, %v4903
  %v4905 = vcombine.high %v4904, %v4904
  %4906 = vrot.lane.b32.xlu0 %v4905, 32
  %v4907 = vpop.permute.xlu0 %4906
  %4909 = vst.msk [vmem:[#allocation3 + $0xe] sm:$0x3] %vm4452, %v4907
  %v4910 = vcombine.high %v4892, %v4892
  %4911 = vrot.lane.b32.xlu0 %v4910, 64
  %v4912 = vpop.permute.xlu0 %4911
  %4914 = vst.msk [vmem:[#allocation3 + $0x26] sm:$0x3] %vm4471, %v4912
  %v4915 = vcombine.high %v247, %v247
  %v4917 = vunpack.c.l.s4 1983009808
  %v4918 = vunpack.c.0.s8 %v4917
  %v4919 = vlaneseq
  %v4920 = vshrl.u32 %v4919, 7
  %v4921 = vsub.s32 %v4918, %v4920
  %v4922 = vrot.slane %v4915, %v4921
  %4923 = vrot.lane.b32.xlu0 %v4922, 64
  %v4924 = vpop.permute.xlu0 %4923
  %4926 = vst.msk [vmem:[#allocation3 + $0xe] sm:$0x3] %vm4471, %v4924
  %v4927 = vcombine.high %v4433, %v4433
  %v4929 = vunpack.c.l.s4 1983009808
  %v4930 = vunpack.c.0.s8 %v4929
  %v4931 = vlaneseq
  %v4932 = vshrl.u32 %v4931, 7
  %v4933 = vsub.s32 %v4930, %v4932
  %v4934 = vrot.slane %v4927, %v4933
  %4935 = vrot.lane.b32.xlu0 %v4934, 96
  %v4936 = vpop.permute.xlu0 %4935
  %4938 = vst.msk [vmem:[#allocation3 + $0x26] sm:$0x3] %vm4496, %v4936
  %v4939 = vcombine.high %v4922, %v4922
  %4940 = vrot.lane.b32.xlu0 %v4939, 96
  %v4941 = vpop.permute.xlu0 %4940
  %4943 = vst.msk [vmem:[#allocation3 + $0xe] sm:$0x3] %vm4496, %v4941
  %v4944 = vcombine.high %v4934, %v4934
  %4946 = vst.msk [vmem:[#allocation3 + $0x28] sm:$0x3] %vm4439, %v4944
  %4947 = vst.msk [vmem:[#allocation3 + $0x10] sm:$0x3] %vm4439, %v248
  %v4950 = vunpack.c.l.s4 1983009808
  %v4951 = vunpack.c.0.s8 %v4950
  %v4952 = vlaneseq
  %v4953 = vshrl.u32 %v4952, 7
  %v4954 = vsub.s32 %v4951, %v4953
  %v4955 = vrot.slane %v4434, %v4954
  %4956 = vrot.lane.b32.xlu0 %v4955, 32
  %v4957 = vpop.permute.xlu0 %4956
  %4959 = vst.msk [vmem:[#allocation3 + $0x28] sm:$0x3] %vm4452, %v4957
  %v4962 = vunpack.c.l.s4 1983009808
  %v4963 = vunpack.c.0.s8 %v4962
  %v4964 = vlaneseq
  %v4965 = vshrl.u32 %v4964, 7
  %v4966 = vsub.s32 %v4963, %v4965
  %v4967 = vrot.slane %v248, %v4966
  %v4968 = vcombine.high %v4967, %v4967
  %4969 = vrot.lane.b32.xlu0 %v4968, 32
  %v4970 = vpop.permute.xlu0 %4969
  %4972 = vst.msk [vmem:[#allocation3 + $0x10] sm:$0x3] %vm4452, %v4970
  %v4973 = vcombine.high %v4955, %v4955
  %4974 = vrot.lane.b32.xlu0 %v4973, 64
  %v4975 = vpop.permute.xlu0 %4974
  %4977 = vst.msk [vmem:[#allocation3 + $0x28] sm:$0x3] %vm4471, %v4975
  %v4978 = vcombine.high %v248, %v248
  %v4980 = vunpack.c.l.s4 1983009808
  %v4981 = vunpack.c.0.s8 %v4980
  %v4982 = vlaneseq
  %v4983 = vshrl.u32 %v4982, 7
  %v4984 = vsub.s32 %v4981, %v4983
  %v4985 = vrot.slane %v4978, %v4984
  %4986 = vrot.lane.b32.xlu0 %v4985, 64
  %v4987 = vpop.permute.xlu0 %4986
  %4989 = vst.msk [vmem:[#allocation3 + $0x10] sm:$0x3] %vm4471, %v4987
  %v4990 = vcombine.high %v4434, %v4434
  %v4992 = vunpack.c.l.s4 1983009808
  %v4993 = vunpack.c.0.s8 %v4992
  %v4994 = vlaneseq
  %v4995 = vshrl.u32 %v4994, 7
  %v4996 = vsub.s32 %v4993, %v4995
  %v4997 = vrot.slane %v4990, %v4996
  %4998 = vrot.lane.b32.xlu0 %v4997, 96
  %v4999 = vpop.permute.xlu0 %4998
  %5001 = vst.msk [vmem:[#allocation3 + $0x28] sm:$0x3] %vm4496, %v4999
  %v5002 = vcombine.high %v4985, %v4985
  %5003 = vrot.lane.b32.xlu0 %v5002, 96
  %v5004 = vpop.permute.xlu0 %5003
  %5006 = vst.msk [vmem:[#allocation3 + $0x10] sm:$0x3] %vm4496, %v5004
  %v5007 = vcombine.high %v4997, %v4997
  %5009 = vst.msk [vmem:[#allocation3 + $0x2a] sm:$0x3] %vm4439, %v5007
  %5010 = vst.msk [vmem:[#allocation3 + $0x12] sm:$0x3] %vm4439, %v249
  %v5013 = vunpack.c.l.s4 1983009808
  %v5014 = vunpack.c.0.s8 %v5013
  %v5015 = vlaneseq
  %v5016 = vshrl.u32 %v5015, 7
  %v5017 = vsub.s32 %v5014, %v5016
  %v5018 = vrot.slane %v4435, %v5017
  %5019 = vrot.lane.b32.xlu0 %v5018, 32
  %v5020 = vpop.permute.xlu0 %5019
  %5022 = vst.msk [vmem:[#allocation3 + $0x2a] sm:$0x3] %vm4452, %v5020
  %v5025 = vunpack.c.l.s4 1983009808
  %v5026 = vunpack.c.0.s8 %v5025
  %v5027 = vlaneseq
  %v5028 = vshrl.u32 %v5027, 7
  %v5029 = vsub.s32 %v5026, %v5028
  %v5030 = vrot.slane %v249, %v5029
  %v5031 = vcombine.high %v5030, %v5030
  %5032 = vrot.lane.b32.xlu0 %v5031, 32
  %v5033 = vpop.permute.xlu0 %5032
  %5035 = vst.msk [vmem:[#allocation3 + $0x12] sm:$0x3] %vm4452, %v5033
  %v5036 = vcombine.high %v5018, %v5018
  %5037 = vrot.lane.b32.xlu0 %v5036, 64
  %v5038 = vpop.permute.xlu0 %5037
  %5040 = vst.msk [vmem:[#allocation3 + $0x2a] sm:$0x3] %vm4471, %v5038
  %v5041 = vcombine.high %v249, %v249
  %v5043 = vunpack.c.l.s4 1983009808
  %v5044 = vunpack.c.0.s8 %v5043
  %v5045 = vlaneseq
  %v5046 = vshrl.u32 %v5045, 7
  %v5047 = vsub.s32 %v5044, %v5046
  %v5048 = vrot.slane %v5041, %v5047
  %5049 = vrot.lane.b32.xlu0 %v5048, 64
  %v5050 = vpop.permute.xlu0 %5049
  %5052 = vst.msk [vmem:[#allocation3 + $0x12] sm:$0x3] %vm4471, %v5050
  %v5053 = vcombine.high %v4435, %v4435
  %v5055 = vunpack.c.l.s4 1983009808
  %v5056 = vunpack.c.0.s8 %v5055
  %v5057 = vlaneseq
  %v5058 = vshrl.u32 %v5057, 7
  %v5059 = vsub.s32 %v5056, %v5058
  %v5060 = vrot.slane %v5053, %v5059
  %5061 = vrot.lane.b32.xlu0 %v5060, 96
  %v5062 = vpop.permute.xlu0 %5061
  %5064 = vst.msk [vmem:[#allocation3 + $0x2a] sm:$0x3] %vm4496, %v5062
  %v5065 = vcombine.high %v5048, %v5048
  %5066 = vrot.lane.b32.xlu0 %v5065, 96
  %v5067 = vpop.permute.xlu0 %5066
  %5069 = vst.msk [vmem:[#allocation3 + $0x12] sm:$0x3] %vm4496, %v5067
  %v5070 = vcombine.high %v5060, %v5060
  %5072 = vst.msk [vmem:[#allocation3 + $0x2c] sm:$0x3] %vm4439, %v5070
  %5073 = vst.msk [vmem:[#allocation3 + $0x14] sm:$0x3] %vm4439, %v250
  %v5076 = vunpack.c.l.s4 1983009808
  %v5077 = vunpack.c.0.s8 %v5076
  %v5078 = vlaneseq
  %v5079 = vshrl.u32 %v5078, 7
  %v5080 = vsub.s32 %v5077, %v5079
  %v5081 = vrot.slane %v4436, %v5080
  %5082 = vrot.lane.b32.xlu0 %v5081, 32
  %v5083 = vpop.permute.xlu0 %5082
  %5085 = vst.msk [vmem:[#allocation3 + $0x2c] sm:$0x3] %vm4452, %v5083
  %v5088 = vunpack.c.l.s4 1983009808
  %v5089 = vunpack.c.0.s8 %v5088
  %v5090 = vlaneseq
  %v5091 = vshrl.u32 %v5090, 7
  %v5092 = vsub.s32 %v5089, %v5091
  %v5093 = vrot.slane %v250, %v5092
  %v5094 = vcombine.high %v5093, %v5093
  %5095 = vrot.lane.b32.xlu0 %v5094, 32
  %v5096 = vpop.permute.xlu0 %5095
  %5098 = vst.msk [vmem:[#allocation3 + $0x14] sm:$0x3] %vm4452, %v5096
  %v5099 = vcombine.high %v5081, %v5081
  %5100 = vrot.lane.b32.xlu0 %v5099, 64
  %v5101 = vpop.permute.xlu0 %5100
  %5103 = vst.msk [vmem:[#allocation3 + $0x2c] sm:$0x3] %vm4471, %v5101
  %v5104 = vcombine.high %v250, %v250
  %v5106 = vunpack.c.l.s4 1983009808
  %v5107 = vunpack.c.0.s8 %v5106
  %v5108 = vlaneseq
  %v5109 = vshrl.u32 %v5108, 7
  %v5110 = vsub.s32 %v5107, %v5109
  %v5111 = vrot.slane %v5104, %v5110
  %5112 = vrot.lane.b32.xlu0 %v5111, 64
  %v5113 = vpop.permute.xlu0 %5112
  %5115 = vst.msk [vmem:[#allocation3 + $0x14] sm:$0x3] %vm4471, %v5113
  %v5116 = vcombine.high %v4436, %v4436
  %v5118 = vunpack.c.l.s4 1983009808
  %v5119 = vunpack.c.0.s8 %v5118
  %v5120 = vlaneseq
  %v5121 = vshrl.u32 %v5120, 7
  %v5122 = vsub.s32 %v5119, %v5121
  %v5123 = vrot.slane %v5116, %v5122
  %5124 = vrot.lane.b32.xlu0 %v5123, 96
  %v5125 = vpop.permute.xlu0 %5124
  %5127 = vst.msk [vmem:[#allocation3 + $0x2c] sm:$0x3] %vm4496, %v5125
  %v5128 = vcombine.high %v5111, %v5111
  %5129 = vrot.lane.b32.xlu0 %v5128, 96
  %v5130 = vpop.permute.xlu0 %5129
  %5132 = vst.msk [vmem:[#allocation3 + $0x14] sm:$0x3] %vm4496, %v5130
  %v5133 = vcombine.high %v5123, %v5123
  %5135 = vst.msk [vmem:[#allocation3 + $0x2e] sm:$0x3] %vm4439, %v5133
  %5136 = vst.msk [vmem:[#allocation3 + $0x16] sm:$0x3] %vm4439, %v251
  %v5139 = vunpack.c.l.s4 1983009808
  %v5140 = vunpack.c.0.s8 %v5139
  %v5141 = vlaneseq
  %v5142 = vshrl.u32 %v5141, 7
  %v5143 = vsub.s32 %v5140, %v5142
  %v5144 = vrot.slane %v4437, %v5143
  %5145 = vrot.lane.b32.xlu0 %v5144, 32
  %v5146 = vpop.permute.xlu0 %5145
  %5148 = vst.msk [vmem:[#allocation3 + $0x2e] sm:$0x3] %vm4452, %v5146
  %v5151 = vunpack.c.l.s4 1983009808
  %v5152 = vunpack.c.0.s8 %v5151
  %v5153 = vlaneseq
  %v5154 = vshrl.u32 %v5153, 7
  %v5155 = vsub.s32 %v5152, %v5154
  %v5156 = vrot.slane %v251, %v5155
  %v5157 = vcombine.high %v5156, %v5156
  %5158 = vrot.lane.b32.xlu0 %v5157, 32
  %v5159 = vpop.permute.xlu0 %5158
  %5161 = vst.msk [vmem:[#allocation3 + $0x16] sm:$0x3] %vm4452, %v5159
  %v5162 = vcombine.high %v5144, %v5144
  %5163 = vrot.lane.b32.xlu0 %v5162, 64
  %v5164 = vpop.permute.xlu0 %5163
  %5166 = vst.msk [vmem:[#allocation3 + $0x2e] sm:$0x3] %vm4471, %v5164
  %v5167 = vcombine.high %v251, %v251
  %v5169 = vunpack.c.l.s4 1983009808
  %v5170 = vunpack.c.0.s8 %v5169
  %v5171 = vlaneseq
  %v5172 = vshrl.u32 %v5171, 7
  %v5173 = vsub.s32 %v5170, %v5172
  %v5174 = vrot.slane %v5167, %v5173
  %5175 = vrot.lane.b32.xlu0 %v5174, 64
  %v5176 = vpop.permute.xlu0 %5175
  %5178 = vst.msk [vmem:[#allocation3 + $0x16] sm:$0x3] %vm4471, %v5176
  %v5179 = vcombine.high %v4437, %v4437
  %v5181 = vunpack.c.l.s4 1983009808
  %v5182 = vunpack.c.0.s8 %v5181
  %v5183 = vlaneseq
  %v5184 = vshrl.u32 %v5183, 7
  %v5185 = vsub.s32 %v5182, %v5184
  %v5186 = vrot.slane %v5179, %v5185
  %5187 = vrot.lane.b32.xlu0 %v5186, 96
  %v5188 = vpop.permute.xlu0 %5187
  %5190 = vst.msk [vmem:[#allocation3 + $0x2e] sm:$0x3] %vm4496, %v5188
  %v5191 = vcombine.high %v5174, %v5174
  %5192 = vrot.lane.b32.xlu0 %v5191, 96
  %v5193 = vpop.permute.xlu0 %5192
  %5195 = vst.msk [vmem:[#allocation3 + $0x16] sm:$0x3] %vm4496, %v5193
  %v5196 = vcombine.high %v5186, %v5186
  %5198 = vst.msk [vmem:[#allocation3 + $0x30] sm:$0x3] %vm4439, %v5196
  %5199 = vst.msk [vmem:[#allocation3 + $0x18] sm:$0x3] %vm4439, %v252
  %v5202 = vunpack.c.l.s4 1983009808
  %v5203 = vunpack.c.0.s8 %v5202
  %v5204 = vlaneseq
  %v5205 = vshrl.u32 %v5204, 7
  %v5206 = vsub.s32 %v5203, %v5205
  %v5207 = vrot.slane %v4438, %v5206
  %5208 = vrot.lane.b32.xlu0 %v5207, 32
  %v5209 = vpop.permute.xlu0 %5208
  %5211 = vst.msk [vmem:[#allocation3 + $0x30] sm:$0x3] %vm4452, %v5209
  %v5212 = vld [vmem:[#allocation3] sm:$0xff]
  %v5213 = vld [vmem:[#allocation3 + $0x8] sm:$0xff]
  %v5214 = vld [vmem:[#allocation3 + $0x10] sm:$0xff]
  %v5215 = vld [vmem:[#allocation3 + $0x18] sm:$0xff]
  %v5216 = vld [vmem:[#allocation3 + $0x20] sm:$0xff]
  %v5217 = vld [vmem:[#allocation3 + $0x28] sm:$0xff]
  %v5218 = vld [vmem:[#allocation3 + $0x30] sm:$0x3]
  %v5219 = vld [vmem:[%s6] sm:$0xff]
  %v5220 = vld [vmem:[%s6 + $0x8] sm:$0xff]
  %v5221 = vld [vmem:[%s6 + $0x10] sm:$0xff]
  %v5222 = vld [vmem:[%s6 + $0x18] sm:$0xff]
  %v5223 = vld [vmem:[%s6 + $0x20] sm:$0xff]
  %v5224 = vld [vmem:[%s6 + $0x28] sm:$0xff]
  %v5225 = vld [vmem:[%s6 + $0x30] sm:$0xff]
  %v5226 = vld [vmem:[%s6 + $0x38] sm:$0xff]
  %v5227 = vld [vmem:[%s6 + $0x40] sm:$0xff]
  %v5228 = vld [vmem:[%s6 + $0x48] sm:$0xff]
  %v5229 = vld [vmem:[%s6 + $0x50] sm:$0xff]
  %v5230 = vld [vmem:[%s6 + $0x58] sm:$0xff]
  %v5231 = vld [vmem:[%s6 + $0x60] sm:$0xff]
  %v5232 = vld [vmem:[%s6 + $0x68] sm:$0xff]
  %v5233 = vld [vmem:[%s6 + $0x70] sm:$0xff]
  %v5234 = vld [vmem:[%s6 + $0x78] sm:$0xff]
  %v5235 = vld [vmem:[%s6 + $0x80] sm:$0xff]
  %v5236 = vld [vmem:[%s6 + $0x88] sm:$0xff]
  %v5237 = vld [vmem:[%s6 + $0x90] sm:$0xff]
  %v5238 = vld [vmem:[%s6 + $0x98] sm:$0xff]
  %v5239 = vld [vmem:[%s6 + $0xa0] sm:$0xff]
  %v5240 = vld [vmem:[%s6 + $0xa8] sm:$0xff]
  %v5241 = vld [vmem:[%s6 + $0xb0] sm:$0xff]
  %v5242 = vld [vmem:[%s6 + $0xb8] sm:$0xff]
  %v5243 = vld [vmem:[%s6 + $0xc0] sm:$0xff]
  %v5244 = vld [vmem:[%s6 + $0xc8] sm:$0xff]
  %v5245 = vld [vmem:[%s6 + $0xd0] sm:$0xff]
  %v5246 = vld [vmem:[%s6 + $0xd8] sm:$0xff]
  %v5247 = vld [vmem:[%s6 + $0xe0] sm:$0xff]
  %v5248 = vld [vmem:[%s6 + $0xe8] sm:$0xff]
  %v5249 = vld [vmem:[%s6 + $0xf0] sm:$0xff]
  %v5250 = vld [vmem:[%s6 + $0xf8] sm:$0xff]
  %v5251 = vld [vmem:[%s6 + $0x100] sm:$0xff]
  %v5252 = vld [vmem:[%s6 + $0x108] sm:$0xff]
  %v5253 = vld [vmem:[%s6 + $0x110] sm:$0xff]
  %v5254 = vld [vmem:[%s6 + $0x118] sm:$0xff]
  %v5255 = vld [vmem:[%s6 + $0x120] sm:$0xff]
  %v5256 = vld [vmem:[%s6 + $0x128] sm:$0xff]
  %v5257 = vld [vmem:[%s6 + $0x130] sm:$0xff]
  %v5258 = vld [vmem:[%s6 + $0x138] sm:$0xff]
  %v5259 = vld [vmem:[%s6 + $0x140] sm:$0xff]
  %v5260 = vld [vmem:[%s6 + $0x148] sm:$0xff]
  %v5261 = vld [vmem:[%s6 + $0x150] sm:$0xff]
  %v5262 = vld [vmem:[%s6 + $0x158] sm:$0xff]
  %v5263 = vld [vmem:[%s6 + $0x160] sm:$0xff]
  %v5264 = vld [vmem:[%s6 + $0x168] sm:$0xff]
  %v5265 = vld [vmem:[%s6 + $0x170] sm:$0xff]
  %v5266 = vld [vmem:[%s6 + $0x178] sm:$0xff]
  %v5267 = vld [vmem:[%s6 + $0x180] sm:$0xff]
  %v5268 = vld [vmem:[%s6 + $0x188] sm:$0xff]
  %v5269 = vld [vmem:[%s6 + $0x190] sm:$0xff]
  %v5270 = vld [vmem:[%s6 + $0x198] sm:$0xff]
  %v5271 = vld [vmem:[%s6 + $0x1a0] sm:$0xff]
  %v5272 = vld [vmem:[%s6 + $0x1a8] sm:$0xff]
  %v5273 = vld [vmem:[%s6 + $0x1b0] sm:$0xff]
  %v5274 = vld [vmem:[%s6 + $0x1b8] sm:$0xff]
  %v5275 = vld [vmem:[%s6 + $0x1c0] sm:$0xff]
  %v5276 = vld [vmem:[%s6 + $0x1c8] sm:$0xff]
  %v5277 = vld [vmem:[%s6 + $0x1d0] sm:$0xff]
  %v5278 = vld [vmem:[%s6 + $0x1d8] sm:$0xff]
  %v5279 = vld [vmem:[%s6 + $0x1e0] sm:$0xff]
  %v5280 = vld [vmem:[%s6 + $0x1e8] sm:$0xff]
  %v5281 = vld [vmem:[%s6 + $0x1f0] sm:$0xff]
  %v5282 = vld [vmem:[%s6 + $0x1f8] sm:$0xff]
  %v5283 = vld [vmem:[%s6 + $0x200] sm:$0xff]
  %v5284 = vld [vmem:[%s6 + $0x208] sm:$0xff]
  %v5285 = vld [vmem:[%s6 + $0x210] sm:$0xff]
  %v5286 = vld [vmem:[%s6 + $0x218] sm:$0xff]
  %v5287 = vld [vmem:[%s6 + $0x220] sm:$0xff]
  %v5288 = vld [vmem:[%s6 + $0x228] sm:$0xff]
  %v5289 = vld [vmem:[%s6 + $0x230] sm:$0xff]
  %v5290 = vld [vmem:[%s6 + $0x238] sm:$0xff]
  %v5291 = vld [vmem:[%s6 + $0x240] sm:$0xff]
  %v5292 = vld [vmem:[%s6 + $0x248] sm:$0xff]
  %v5293 = vld [vmem:[%s6 + $0x250] sm:$0xff]
  %v5294 = vld [vmem:[%s6 + $0x258] sm:$0xff]
  %v5295 = vld [vmem:[%s6 + $0x260] sm:$0xff]
  %v5296 = vld [vmem:[%s6 + $0x268] sm:$0xff]
  %v5297 = vld [vmem:[%s6 + $0x270] sm:$0xff]
  %v5298 = vld [vmem:[%s6 + $0x278] sm:$0xff]
  %v5299 = vld [vmem:[%s6 + $0x280] sm:$0xff]
  %v5300 = vld [vmem:[%s6 + $0x288] sm:$0xff]
  %v5301 = vld [vmem:[%s6 + $0x290] sm:$0xff]
  %v5302 = vld [vmem:[%s6 + $0x298] sm:$0xff]
  %v5303 = vld [vmem:[%s6 + $0x2a0] sm:$0xff]
  %v5304 = vld [vmem:[%s6 + $0x2a8] sm:$0xff]
  %v5305 = vld [vmem:[%s6 + $0x2b0] sm:$0xff]
  %v5306 = vld [vmem:[%s6 + $0x2b8] sm:$0xff]
  %v5307 = vld [vmem:[%s6 + $0x2c0] sm:$0xff]
  %v5308 = vld [vmem:[%s6 + $0x2c8] sm:$0xff]
  %v5309 = vld [vmem:[%s6 + $0x2d0] sm:$0xff]
  %v5310 = vld [vmem:[%s6 + $0x2d8] sm:$0xff]
  %v5311 = vld [vmem:[%s6 + $0x2e0] sm:$0xff]
  %v5312 = vld [vmem:[%s6 + $0x2e8] sm:$0xff]
  %v5313 = vld [vmem:[%s6 + $0x2f0] sm:$0xff]
  %v5314 = vld [vmem:[%s6 + $0x2f8] sm:$0xff]
  %v5315 = vld [vmem:[%s6 + $0x300] sm:$0xff]
  %v5316 = vld [vmem:[%s6 + $0x308] sm:$0xff]
  %v5317 = vld [vmem:[%s6 + $0x310] sm:$0xff]
  %v5318 = vld [vmem:[%s6 + $0x318] sm:$0xff]
  %v5319 = vld [vmem:[%s6 + $0x320] sm:$0xff]
  %v5320 = vld [vmem:[%s6 + $0x328] sm:$0xff]
  %v5321 = vld [vmem:[%s6 + $0x330] sm:$0xff]
  %v5322 = vld [vmem:[%s6 + $0x338] sm:$0xff]
  %v5323 = vld [vmem:[%s6 + $0x340] sm:$0xff]
  %v5324 = vld [vmem:[%s6 + $0x348] sm:$0xff]
  %v5325 = vld [vmem:[%s6 + $0x350] sm:$0xff]
  %v5326 = vld [vmem:[%s6 + $0x358] sm:$0xff]
  %v5327 = vld [vmem:[%s6 + $0x360] sm:$0xff]
  %v5328 = vld [vmem:[%s6 + $0x368] sm:$0xff]
  %v5329 = vld [vmem:[%s6 + $0x370] sm:$0xff]
  %v5330 = vld [vmem:[%s6 + $0x378] sm:$0xff]
  %v5331 = vld [vmem:[%s6 + $0x380] sm:$0xff]
  %v5332 = vld [vmem:[%s6 + $0x388] sm:$0xff]
  %v5333 = vld [vmem:[%s6 + $0x390] sm:$0xff]
  %v5334 = vld [vmem:[%s6 + $0x398] sm:$0xff]
  %v5335 = vld [vmem:[%s6 + $0x3a0] sm:$0xff]
  %v5336 = vld [vmem:[%s6 + $0x3a8] sm:$0xff]
  %v5337 = vld [vmem:[%s6 + $0x3b0] sm:$0xff]
  %v5338 = vld [vmem:[%s6 + $0x3b8] sm:$0xff]
  %v5339 = vld [vmem:[%s6 + $0x3c0] sm:$0xff]
  %v5340 = vld [vmem:[%s6 + $0x3c8] sm:$0xff]
  %v5341 = vld [vmem:[%s6 + $0x3d0] sm:$0xff]
  %v5342 = vld [vmem:[%s6 + $0x3d8] sm:$0xff]
  %v5343 = vld [vmem:[%s6 + $0x3e0] sm:$0xff]
  %v5344 = vld [vmem:[%s6 + $0x3e8] sm:$0xff]
  %v5345 = vld [vmem:[%s6 + $0x3f0] sm:$0xff]
  %v5346 = vld [vmem:[%s6 + $0x3f8] sm:$0xff]
  %v5347 = vld [vmem:[%s6 + $0x400] sm:$0xff]
  %v5348 = vld [vmem:[%s6 + $0x408] sm:$0xff]
  %v5349 = vld [vmem:[%s6 + $0x410] sm:$0xff]
  %v5350 = vld [vmem:[%s6 + $0x418] sm:$0xff]
  %v5351 = vld [vmem:[%s6 + $0x420] sm:$0xff]
  %v5352 = vld [vmem:[%s6 + $0x428] sm:$0xff]
  %v5353 = vld [vmem:[%s6 + $0x430] sm:$0xff]
  %v5354 = vld [vmem:[%s6 + $0x438] sm:$0xff]
  %v5355 = vld [vmem:[%s6 + $0x440] sm:$0xff]
  %v5356 = vld [vmem:[%s6 + $0x448] sm:$0xff]
  %v5357 = vld [vmem:[%s6 + $0x450] sm:$0xff]
  %v5358 = vld [vmem:[%s6 + $0x458] sm:$0xff]
  %v5359 = vld [vmem:[%s6 + $0x460] sm:$0xff]
  %v5360 = vld [vmem:[%s6 + $0x468] sm:$0xff]
  %v5361 = vld [vmem:[%s6 + $0x470] sm:$0xff]
  %v5362 = vld [vmem:[%s6 + $0x478] sm:$0xff]
  %v5363 = vld [vmem:[%s6 + $0x480] sm:$0xff]
  %v5364 = vld [vmem:[%s6 + $0x488] sm:$0xff]
  %v5365 = vld [vmem:[%s6 + $0x490] sm:$0xff]
  %v5366 = vld [vmem:[%s6 + $0x498] sm:$0xff]
  %v5367 = vld [vmem:[%s6 + $0x4a0] sm:$0xff]
  %v5368 = vld [vmem:[%s6 + $0x4a8] sm:$0xff]
  %v5369 = vld [vmem:[%s6 + $0x4b0] sm:$0xff]
  %v5370 = vld [vmem:[%s6 + $0x4b8] sm:$0xff]
  %v5371 = vld [vmem:[%s6 + $0x4c0] sm:$0xff]
  %v5372 = vld [vmem:[%s6 + $0x4c8] sm:$0xff]
  %v5373 = vld [vmem:[%s6 + $0x4d0] sm:$0xff]
  %v5374 = vld [vmem:[%s6 + $0x4d8] sm:$0xff]
  %v5375 = vld [vmem:[%s6 + $0x4e0] sm:$0xff]
  %v5376 = vld [vmem:[%s6 + $0x4e8] sm:$0xff]
  %v5377 = vld [vmem:[%s6 + $0x4f0] sm:$0xff]
  %v5378 = vld [vmem:[%s6 + $0x4f8] sm:$0xff]
  %v5379 = vld [vmem:[%s6 + $0x500] sm:$0xff]
  %v5380 = vld [vmem:[%s6 + $0x508] sm:$0xff]
  %v5381 = vld [vmem:[%s6 + $0x510] sm:$0xff]
  %v5382 = vld [vmem:[%s6 + $0x518] sm:$0xff]
  %v5383 = vld [vmem:[%s6 + $0x520] sm:$0xff]
  %v5384 = vld [vmem:[%s6 + $0x528] sm:$0xff]
  %v5385 = vld [vmem:[%s6 + $0x530] sm:$0xff]
  %v5386 = vld [vmem:[%s6 + $0x538] sm:$0xff]
  %v5387 = vld [vmem:[%s6 + $0x540] sm:$0xff]
  %v5388 = vld [vmem:[%s6 + $0x548] sm:$0xff]
  %v5389 = vld [vmem:[%s6 + $0x550] sm:$0xff]
  %v5390 = vld [vmem:[%s6 + $0x558] sm:$0xff]
  %v5391 = vld [vmem:[%s6 + $0x560] sm:$0xff]
  %v5392 = vld [vmem:[%s6 + $0x568] sm:$0xff]
  %v5393 = vld [vmem:[%s6 + $0x570] sm:$0xff]
  %v5394 = vld [vmem:[%s6 + $0x578] sm:$0xff]
  %v5395 = vld [vmem:[%s6 + $0x580] sm:$0xff]
  %v5396 = vld [vmem:[%s6 + $0x588] sm:$0xff]
  %v5397 = vld [vmem:[%s6 + $0x590] sm:$0xff]
  %v5398 = vld [vmem:[%s6 + $0x598] sm:$0xff]
  %v5399 = vld [vmem:[%s6 + $0x5a0] sm:$0xff]
  %v5400 = vld [vmem:[%s6 + $0x5a8] sm:$0xff]
  %v5401 = vld [vmem:[%s6 + $0x5b0] sm:$0xff]
  %v5402 = vld [vmem:[%s6 + $0x5b8] sm:$0xff]
  %v5403 = vld [vmem:[%s6 + $0x5c0] sm:$0xff]
  %v5404 = vld [vmem:[%s6 + $0x5c8] sm:$0xff]
  %v5405 = vld [vmem:[%s6 + $0x5d0] sm:$0xff]
  %v5406 = vld [vmem:[%s6 + $0x5d8] sm:$0xff]
  %v5407 = vld [vmem:[%s6 + $0x5e0] sm:$0xff]
  %v5408 = vld [vmem:[%s6 + $0x5e8] sm:$0xff]
  %v5409 = vld [vmem:[%s6 + $0x5f0] sm:$0xff]
  %v5410 = vld [vmem:[%s6 + $0x5f8] sm:$0xff]
  %v5411 = vld [vmem:[%s6 + $0x600] sm:$0xff]
  %v5412 = vld [vmem:[%s6 + $0x608] sm:$0xff]
  %v5413 = vld [vmem:[%s6 + $0x610] sm:$0xff]
  %v5414 = vld [vmem:[%s6 + $0x618] sm:$0xff]
  %v5415 = vld [vmem:[%s6 + $0x620] sm:$0xff]
  %v5416 = vld [vmem:[%s6 + $0x628] sm:$0xff]
  %v5417 = vld [vmem:[%s6 + $0x630] sm:$0xff]
  %v5418 = vld [vmem:[%s6 + $0x638] sm:$0xff]
  %v5419 = vld [vmem:[%s6 + $0x640] sm:$0xff]
  %v5420 = vld [vmem:[%s6 + $0x648] sm:$0xff]
  %v5421 = vld [vmem:[%s6 + $0x650] sm:$0xff]
  %v5422 = vld [vmem:[%s6 + $0x658] sm:$0xff]
  %v5423 = vld [vmem:[%s6 + $0x660] sm:$0xff]
  %v5424 = vld [vmem:[%s6 + $0x668] sm:$0xff]
  %v5425 = vld [vmem:[%s6 + $0x670] sm:$0xff]
  %v5426 = vld [vmem:[%s6 + $0x678] sm:$0xff]
  %v5427 = vld [vmem:[%s6 + $0x680] sm:$0xff]
  %v5428 = vld [vmem:[%s6 + $0x688] sm:$0xff]
  %v5429 = vld [vmem:[%s6 + $0x690] sm:$0xff]
  %v5430 = vld [vmem:[%s6 + $0x698] sm:$0xff]
  %v5431 = vld [vmem:[%s6 + $0x6a0] sm:$0xff]
  %v5432 = vld [vmem:[%s6 + $0x6a8] sm:$0xff]
  %v5433 = vld [vmem:[%s6 + $0x6b0] sm:$0xff]
  %v5434 = vld [vmem:[%s6 + $0x6b8] sm:$0xff]
  %v5435 = vld [vmem:[%s6 + $0x6c0] sm:$0xff]
  %v5436 = vld [vmem:[%s6 + $0x6c8] sm:$0xff]
  %v5437 = vld [vmem:[%s6 + $0x6d0] sm:$0xff]
  %v5438 = vld [vmem:[%s6 + $0x6d8] sm:$0xff]
  %v5439 = vld [vmem:[%s6 + $0x6e0] sm:$0xff]
  %v5440 = vld [vmem:[%s6 + $0x6e8] sm:$0xff]
  %v5441 = vld [vmem:[%s6 + $0x6f0] sm:$0xff]
  %v5442 = vld [vmem:[%s6 + $0x6f8] sm:$0xff]
  %v5443 = vld [vmem:[%s6 + $0x700] sm:$0xff]
  %v5444 = vld [vmem:[%s6 + $0x708] sm:$0xff]
  %v5445 = vld [vmem:[%s6 + $0x710] sm:$0xff]
  %v5446 = vld [vmem:[%s6 + $0x718] sm:$0xff]
  %v5447 = vld [vmem:[%s6 + $0x720] sm:$0xff]
  %v5448 = vld [vmem:[%s6 + $0x728] sm:$0xff]
  %v5449 = vld [vmem:[%s6 + $0x730] sm:$0xff]
  %v5450 = vld [vmem:[%s6 + $0x738] sm:$0xff]
  %v5451 = vld [vmem:[%s6 + $0x740] sm:$0xff]
  %v5452 = vld [vmem:[%s6 + $0x748] sm:$0xff]
  %v5453 = vld [vmem:[%s6 + $0x750] sm:$0xff]
  %v5454 = vld [vmem:[%s6 + $0x758] sm:$0xff]
  %v5455 = vld [vmem:[%s6 + $0x760] sm:$0xff]
  %v5456 = vld [vmem:[%s6 + $0x768] sm:$0xff]
  %v5457 = vld [vmem:[%s6 + $0x770] sm:$0xff]
  %v5458 = vld [vmem:[%s6 + $0x778] sm:$0xff]
  %v5459 = vld [vmem:[%s6 + $0x780] sm:$0xff]
  %v5460 = vld [vmem:[%s6 + $0x788] sm:$0xff]
  %v5461 = vld [vmem:[%s6 + $0x790] sm:$0xff]
  %v5462 = vld [vmem:[%s6 + $0x798] sm:$0xff]
  %v5463 = vld [vmem:[%s6 + $0x7a0] sm:$0xff]
  %v5464 = vld [vmem:[%s6 + $0x7a8] sm:$0xff]
  %v5465 = vld [vmem:[%s6 + $0x7b0] sm:$0xff]
  %v5466 = vld [vmem:[%s6 + $0x7b8] sm:$0xff]
  %v5467 = vld [vmem:[%s6 + $0x7c0] sm:$0xff]
  %v5468 = vld [vmem:[%s6 + $0x7c8] sm:$0xff]
  %v5469 = vld [vmem:[%s6 + $0x7d0] sm:$0xff]
  %v5470 = vld [vmem:[%s6 + $0x7d8] sm:$0xff]
  %v5471 = vld [vmem:[%s6 + $0x7e0] sm:$0xff]
  %v5472 = vld [vmem:[%s6 + $0x7e8] sm:$0xff]
  %v5473 = vld [vmem:[%s6 + $0x7f0] sm:$0xff]
  %v5474 = vld [vmem:[%s6 + $0x7f8] sm:$0xff]
  %v5475 = vld [vmem:[%s6 + $0x800] sm:$0xff]
  %v5476 = vld [vmem:[%s6 + $0x808] sm:$0xff]
  %v5477 = vld [vmem:[%s6 + $0x810] sm:$0xff]
  %v5478 = vld [vmem:[%s6 + $0x818] sm:$0xff]
  %v5479 = vld [vmem:[%s6 + $0x820] sm:$0xff]
  %v5480 = vld [vmem:[%s6 + $0x828] sm:$0xff]
  %v5481 = vld [vmem:[%s6 + $0x830] sm:$0xff]
  %v5482 = vld [vmem:[%s6 + $0x838] sm:$0xff]
  %v5483 = vld [vmem:[%s6 + $0x840] sm:$0xff]
  %v5484 = vld [vmem:[%s6 + $0x848] sm:$0xff]
  %v5485 = vld [vmem:[%s6 + $0x850] sm:$0xff]
  %v5486 = vld [vmem:[%s6 + $0x858] sm:$0xff]
  %v5487 = vld [vmem:[%s6 + $0x860] sm:$0xff]
  %v5488 = vld [vmem:[%s6 + $0x868] sm:$0xff]
  %v5489 = vld [vmem:[%s6 + $0x870] sm:$0xff]
  %v5490 = vld [vmem:[%s6 + $0x878] sm:$0xff]
  %v5491 = vld [vmem:[%s6 + $0x880] sm:$0xff]
  %v5492 = vld [vmem:[%s6 + $0x888] sm:$0xff]
  %v5493 = vld [vmem:[%s6 + $0x890] sm:$0xff]
  %v5494 = vld [vmem:[%s6 + $0x898] sm:$0xff]
  %v5495 = vld [vmem:[%s6 + $0x8a0] sm:$0xff]
  %v5496 = vld [vmem:[%s6 + $0x8a8] sm:$0xff]
  %v5497 = vld [vmem:[%s6 + $0x8b0] sm:$0xff]
  %v5498 = vld [vmem:[%s6 + $0x8b8] sm:$0xff]
  %v5499 = vld [vmem:[%s6 + $0x8c0] sm:$0xff]
  %v5500 = vld [vmem:[%s6 + $0x8c8] sm:$0xff]
  %v5501 = vld [vmem:[%s6 + $0x8d0] sm:$0xff]
  %v5502 = vld [vmem:[%s6 + $0x8d8] sm:$0xff]
  %v5503 = vld [vmem:[%s6 + $0x8e0] sm:$0xff]
  %v5504 = vld [vmem:[%s6 + $0x8e8] sm:$0xff]
  %v5505 = vld [vmem:[%s6 + $0x8f0] sm:$0xff]
  %v5506 = vld [vmem:[%s6 + $0x8f8] sm:$0xff]
  %v5507 = vld [vmem:[%s6 + $0x900] sm:$0xff]
  %v5508 = vld [vmem:[%s6 + $0x908] sm:$0xff]
  %v5509 = vld [vmem:[%s6 + $0x910] sm:$0xff]
  %v5510 = vld [vmem:[%s6 + $0x918] sm:$0xff]
  %v5511 = vld [vmem:[%s6 + $0x920] sm:$0xff]
  %v5512 = vld [vmem:[%s6 + $0x928] sm:$0xff]
  %v5513 = vld [vmem:[%s6 + $0x930] sm:$0xff]
  %v5514 = vld [vmem:[%s6 + $0x938] sm:$0xff]
  %v5515 = vld [vmem:[%s6 + $0x940] sm:$0xff]
  %v5516 = vld [vmem:[%s6 + $0x948] sm:$0xff]
  %v5517 = vld [vmem:[%s6 + $0x950] sm:$0xff]
  %v5518 = vld [vmem:[%s6 + $0x958] sm:$0xff]
  %v5519 = vld [vmem:[%s6 + $0x960] sm:$0xff]
  %v5520 = vld [vmem:[%s6 + $0x968] sm:$0xff]
  %v5521 = vld [vmem:[%s6 + $0x970] sm:$0xff]
  %v5522 = vld [vmem:[%s6 + $0x978] sm:$0xff]
  %v5523 = vld [vmem:[%s6 + $0x980] sm:$0xff]
  %v5524 = vld [vmem:[%s6 + $0x988] sm:$0xff]
  %v5525 = vld [vmem:[%s6 + $0x990] sm:$0xff]
  %v5526 = vld [vmem:[%s6 + $0x998] sm:$0xff]
  %v5527 = vld [vmem:[%s6 + $0x9a0] sm:$0xff]
  %v5528 = vld [vmem:[%s6 + $0x9a8] sm:$0xff]
  %v5529 = vld [vmem:[%s6 + $0x9b0] sm:$0xff]
  %v5530 = vld [vmem:[%s6 + $0x9b8] sm:$0xff]
  %v5531 = vld [vmem:[%s6 + $0x9c0] sm:$0xff]
  %v5532 = vld [vmem:[%s6 + $0x9c8] sm:$0xff]
  %v5533 = vld [vmem:[%s6 + $0x9d0] sm:$0xff]
  %v5534 = vld [vmem:[%s6 + $0x9d8] sm:$0xff]
  %v5535 = vld [vmem:[%s6 + $0x9e0] sm:$0xff]
  %v5536 = vld [vmem:[%s6 + $0x9e8] sm:$0xff]
  %v5537 = vld [vmem:[%s6 + $0x9f0] sm:$0xff]
  %v5538 = vld [vmem:[%s6 + $0x9f8] sm:$0xff]
  %v5539 = vld [vmem:[%s6 + $0xa00] sm:$0xff]
  %v5540 = vld [vmem:[%s6 + $0xa08] sm:$0xff]
  %v5541 = vld [vmem:[%s6 + $0xa10] sm:$0xff]
  %v5542 = vld [vmem:[%s6 + $0xa18] sm:$0xff]
  %v5543 = vld [vmem:[%s6 + $0xa20] sm:$0xff]
  %v5544 = vld [vmem:[%s6 + $0xa28] sm:$0xff]
  %v5545 = vld [vmem:[%s6 + $0xa30] sm:$0xff]
  %v5546 = vld [vmem:[%s6 + $0xa38] sm:$0xff]
  %v5547 = vld [vmem:[%s6 + $0xa40] sm:$0xff]
  %v5548 = vld [vmem:[%s6 + $0xa48] sm:$0xff]
  %v5549 = vld [vmem:[%s6 + $0xa50] sm:$0xff]
  %v5550 = vld [vmem:[%s6 + $0xa58] sm:$0xff]
  %v5551 = vld [vmem:[%s6 + $0xa60] sm:$0xff]
  %v5552 = vld [vmem:[%s6 + $0xa68] sm:$0xff]
  %v5553 = vld [vmem:[%s6 + $0xa70] sm:$0xff]
  %v5554 = vld [vmem:[%s6 + $0xa78] sm:$0xff]
  %v5555 = vld [vmem:[%s6 + $0xa80] sm:$0xff]
  %v5556 = vld [vmem:[%s6 + $0xa88] sm:$0xff]
  %v5557 = vld [vmem:[%s6 + $0xa90] sm:$0xff]
  %v5558 = vld [vmem:[%s6 + $0xa98] sm:$0xff]
  %v5559 = vld [vmem:[%s6 + $0xaa0] sm:$0xff]
  %v5560 = vld [vmem:[%s6 + $0xaa8] sm:$0xff]
  %v5561 = vld [vmem:[%s6 + $0xab0] sm:$0xff]
  %v5562 = vld [vmem:[%s6 + $0xab8] sm:$0xff]
  %v5563 = vld [vmem:[%s6 + $0xac0] sm:$0xff]
  %v5564 = vld [vmem:[%s6 + $0xac8] sm:$0xff]
  %v5565 = vld [vmem:[%s6 + $0xad0] sm:$0xff]
  %v5566 = vld [vmem:[%s6 + $0xad8] sm:$0xff]
  %v5567 = vld [vmem:[%s6 + $0xae0] sm:$0xff]
  %v5568 = vld [vmem:[%s6 + $0xae8] sm:$0xff]
  %v5569 = vld [vmem:[%s6 + $0xaf0] sm:$0xff]
  %v5570 = vld [vmem:[%s6 + $0xaf8] sm:$0xff]
  %v5571 = vld [vmem:[%s6 + $0xb00] sm:$0xff]
  %v5572 = vld [vmem:[%s6 + $0xb08] sm:$0xff]
  %v5573 = vld [vmem:[%s6 + $0xb10] sm:$0xff]
  %v5574 = vld [vmem:[%s6 + $0xb18] sm:$0xff]
  %v5575 = vld [vmem:[%s6 + $0xb20] sm:$0xff]
  %v5576 = vld [vmem:[%s6 + $0xb28] sm:$0xff]
  %v5577 = vld [vmem:[%s6 + $0xb30] sm:$0xff]
  %v5578 = vld [vmem:[%s6 + $0xb38] sm:$0xff]
  %v5579 = vld [vmem:[%s6 + $0xb40] sm:$0xff]
  %v5580 = vld [vmem:[%s6 + $0xb48] sm:$0xff]
  %v5581 = vld [vmem:[%s6 + $0xb50] sm:$0xff]
  %v5582 = vld [vmem:[%s6 + $0xb58] sm:$0xff]
  %v5583 = vld [vmem:[%s6 + $0xb60] sm:$0xff]
  %v5584 = vld [vmem:[%s6 + $0xb68] sm:$0xff]
  %v5585 = vld [vmem:[%s6 + $0xb70] sm:$0xff]
  %v5586 = vld [vmem:[%s6 + $0xb78] sm:$0xff]
  %v5587 = vld [vmem:[%s6 + $0xb80] sm:$0xff]
  %v5588 = vld [vmem:[%s6 + $0xb88] sm:$0xff]
  %v5589 = vld [vmem:[%s6 + $0xb90] sm:$0xff]
  %v5590 = vld [vmem:[%s6 + $0xb98] sm:$0xff]
  %v5591 = vld [vmem:[%s6 + $0xba0] sm:$0xff]
  %v5592 = vld [vmem:[%s6 + $0xba8] sm:$0xff]
  %v5593 = vld [vmem:[%s6 + $0xbb0] sm:$0xff]
  %v5594 = vld [vmem:[%s6 + $0xbb8] sm:$0xff]
  %v5595 = vld [vmem:[%s6 + $0xbc0] sm:$0xff]
  %v5596 = vld [vmem:[%s6 + $0xbc8] sm:$0xff]
  %v5597 = vld [vmem:[%s6 + $0xbd0] sm:$0xff]
  %v5598 = vld [vmem:[%s6 + $0xbd8] sm:$0xff]
  %v5599 = vld [vmem:[%s6 + $0xbe0] sm:$0xff]
  %v5600 = vld [vmem:[%s6 + $0xbe8] sm:$0xff]
  %v5601 = vld [vmem:[%s6 + $0xbf0] sm:$0xff]
  %v5602 = vld [vmem:[%s6 + $0xbf8] sm:$0xff]
  %v5603 = vld [vmem:[%s6 + $0xc00] sm:$0xff]
  %v5604 = vld [vmem:[%s6 + $0xc08] sm:$0xff]
  %v5605 = vld [vmem:[%s6 + $0xc10] sm:$0xff]
  %v5606 = vld [vmem:[%s6 + $0xc18] sm:$0xff]
  %v5607 = vld [vmem:[%s6 + $0xc20] sm:$0xff]
  %v5608 = vld [vmem:[%s6 + $0xc28] sm:$0xff]
  %v5609 = vld [vmem:[%s6 + $0xc30] sm:$0xff]
  %v5610 = vld [vmem:[%s6 + $0xc38] sm:$0xff]
  %v5611 = vld [vmem:[%s7] sm:$0x1]
  %v5613 = vlaneseq
  %v5614 = vshrl.u32 %v5613, 7
  %v5615 = vsub.s32 0, %v5614
  %v5616 = vrot.slane %v5611, %v5615
  %v5625 = vcombine.high %v5212, %v5212
  %v5627 = vunpack.c.l.s4 1983009808
  %v5628 = vunpack.c.0.s8 %v5627
  %v5629 = vlaneseq
  %v5630 = vshrl.u32 %v5629, 7
  %v5631 = vsub.s32 %v5628, %v5630
  %v5632 = vrot.slane %v5212, %v5631
  %v5634 = vunpack.c.l.s4 1983009808
  %v5635 = vunpack.c.0.s8 %v5634
  %v5636 = vlaneseq
  %v5637 = vshrl.u32 %v5636, 7
  %v5638 = vsub.s32 %v5635, %v5637
  %v5639 = vrot.slane %v5625, %v5638
  %v5640 = vcombine.high %v5632, %v5632
  %v5641 = vcombine.high %v5639, %v5639
  %v5642 = vcombine.high %v5213, %v5213
  %v5644 = vunpack.c.l.s4 1983009808
  %v5645 = vunpack.c.0.s8 %v5644
  %v5646 = vlaneseq
  %v5647 = vshrl.u32 %v5646, 7
  %v5648 = vsub.s32 %v5645, %v5647
  %v5649 = vrot.slane %v5213, %v5648
  %v5651 = vunpack.c.l.s4 1983009808
  %v5652 = vunpack.c.0.s8 %v5651
  %v5653 = vlaneseq
  %v5654 = vshrl.u32 %v5653, 7
  %v5655 = vsub.s32 %v5652, %v5654
  %v5656 = vrot.slane %v5642, %v5655
  %v5657 = vcombine.high %v5649, %v5649
  %v5658 = vcombine.high %v5656, %v5656
  %v5659 = vcombine.high %v5214, %v5214
  %v5661 = vunpack.c.l.s4 1983009808
  %v5662 = vunpack.c.0.s8 %v5661
  %v5663 = vlaneseq
  %v5664 = vshrl.u32 %v5663, 7
  %v5665 = vsub.s32 %v5662, %v5664
  %v5666 = vrot.slane %v5214, %v5665
  %v5668 = vunpack.c.l.s4 1983009808
  %v5669 = vunpack.c.0.s8 %v5668
  %v5670 = vlaneseq
  %v5671 = vshrl.u32 %v5670, 7
  %v5672 = vsub.s32 %v5669, %v5671
  %v5673 = vrot.slane %v5659, %v5672
  %v5674 = vcombine.high %v5666, %v5666
  %v5675 = vcombine.high %v5673, %v5673
  %v5676 = vcombine.high %v5215, %v5215
  %v5678 = vunpack.c.l.s4 1983009808
  %v5679 = vunpack.c.0.s8 %v5678
  %v5680 = vlaneseq
  %v5681 = vshrl.u32 %v5680, 7
  %v5682 = vsub.s32 %v5679, %v5681
  %v5683 = vrot.slane %v5215, %v5682
  %v5685 = vunpack.c.l.s4 1983009808
  %v5686 = vunpack.c.0.s8 %v5685
  %v5687 = vlaneseq
  %v5688 = vshrl.u32 %v5687, 7
  %v5689 = vsub.s32 %v5686, %v5688
  %v5690 = vrot.slane %v5676, %v5689
  %v5691 = vcombine.high %v5683, %v5683
  %v5692 = vcombine.high %v5690, %v5690
  %v5693 = vcombine.high %v5216, %v5216
  %v5695 = vunpack.c.l.s4 1983009808
  %v5696 = vunpack.c.0.s8 %v5695
  %v5697 = vlaneseq
  %v5698 = vshrl.u32 %v5697, 7
  %v5699 = vsub.s32 %v5696, %v5698
  %v5700 = vrot.slane %v5216, %v5699
  %v5702 = vunpack.c.l.s4 1983009808
  %v5703 = vunpack.c.0.s8 %v5702
  %v5704 = vlaneseq
  %v5705 = vshrl.u32 %v5704, 7
  %v5706 = vsub.s32 %v5703, %v5705
  %v5707 = vrot.slane %v5693, %v5706
  %v5708 = vcombine.high %v5700, %v5700
  %v5709 = vcombine.high %v5707, %v5707
  %v5710 = vcombine.high %v5217, %v5217
  %v5712 = vunpack.c.l.s4 1983009808
  %v5713 = vunpack.c.0.s8 %v5712
  %v5714 = vlaneseq
  %v5715 = vshrl.u32 %v5714, 7
  %v5716 = vsub.s32 %v5713, %v5715
  %v5717 = vrot.slane %v5217, %v5716
  %v5719 = vunpack.c.l.s4 1983009808
  %v5720 = vunpack.c.0.s8 %v5719
  %v5721 = vlaneseq
  %v5722 = vshrl.u32 %v5721, 7
  %v5723 = vsub.s32 %v5720, %v5722
  %v5724 = vrot.slane %v5710, %v5723
  %v5725 = vcombine.high %v5717, %v5717
  %v5726 = vcombine.high %v5724, %v5724
  %v5728 = vunpack.c.l.s4 1983009808
  %v5729 = vunpack.c.0.s8 %v5728
  %v5730 = vlaneseq
  %v5731 = vshrl.u32 %v5730, 7
  %v5732 = vsub.s32 %v5729, %v5731
  %v5733 = vrot.slane %v5218, %v5732
  %vm5758 = vcmask 523264
  %v5759 = vsel %vm5758, %v5733, 0
  %5761 = vmatprep.subr.mxu0 0.0
  %5762 = vmatpush1.msra.mxu0 %v5219
  %5763 = vmatprep.subr.mxu0 0.0
  %5764 = vmatpush1.msra.mxu0 %v5220
  %5765 = vmatprep.subr.mxu0 0.0
  %5766 = vmatpush1.msra.mxu0 %v5221
  %5767 = vmatprep.subr.mxu0 0.0
  %5768 = vmatpush1.msra.mxu0 %v5222
  %5769 = vmatprep.subr.mxu0 0.0
  %5770 = vmatpush1.msra.mxu0 %v5223
  %5771 = vmatprep.subr.mxu0 0.0
  %5772 = vmatpush1.msra.mxu0 %v5224
  %5773 = vmatprep.subr.mxu0 0.0
  %5774 = vmatpush1.msra.mxu0 %v5225
  %5775 = vmatprep.subr.mxu0 0.0
  %5776 = vmatpush1.msra.mxu0 %v5226
  %5777 = vmatprep.subr.mxu0 0.0
  %5778 = vmatpush1.msra.mxu0 %v5227
  %5779 = vmatprep.subr.mxu0 0.0
  %5780 = vmatpush1.msra.mxu0 %v5228
  %5781 = vmatprep.subr.mxu0 0.0
  %5782 = vmatpush1.msra.mxu0 %v5229
  %5783 = vmatprep.subr.mxu0 0.0
  %5784 = vmatpush1.msra.mxu0 %v5230
  %5785 = vmatprep.subr.mxu0 0.0
  %5786 = vmatpush1.msra.mxu0 %v5231
  %5787 = vmatprep.subr.mxu0 0.0
  %5788 = vmatpush1.msra.mxu0 %v5232
  %5789 = vmatprep.subr.mxu0 0.0
  %5790 = vmatpush1.msra.mxu0 %v5233
  %5791 = vmatprep.subr.mxu0 0.0
  %5792 = vmatpush1.msra.mxu0 %v5234
  %5793 = vmatprep.subr.mxu0 0.0
  %5794 = vmatpush1.msra.mxu0 %v5235
  %5795 = vmatprep.subr.mxu0 0.0
  %5796 = vmatpush1.msra.mxu0 %v5236
  %5797 = vmatprep.subr.mxu0 0.0
  %5798 = vmatpush1.msra.mxu0 %v5237
  %5799 = vmatprep.subr.mxu0 0.0
  %5800 = vmatpush1.msra.mxu0 %v5238
  %5801 = vmatprep.subr.mxu0 0.0
  %5802 = vmatpush1.msra.mxu0 %v5239
  %5803 = vmatprep.subr.mxu0 0.0
  %5804 = vmatpush1.msra.mxu0 %v5240
  %5805 = vmatprep.subr.mxu0 0.0
  %5806 = vmatpush1.msra.mxu0 %v5241
  %5807 = vmatprep.subr.mxu0 0.0
  %5808 = vmatpush1.msra.mxu0 %v5242
  %5809 = vmatprep.subr.mxu0 0.0
  %5810 = vmatpush1.msra.mxu0 %v5243
  %5811 = vmatprep.subr.mxu0 0.0
  %5812 = vmatpush1.msra.mxu0 %v5244
  %5813 = vmatprep.subr.mxu0 0.0
  %5814 = vmatpush1.msra.mxu0 %v5245
  %5815 = vmatprep.subr.mxu0 0.0
  %5816 = vmatpush1.msra.mxu0 %v5246
  %5817 = vmatprep.subr.mxu0 0.0
  %5818 = vmatpush1.msra.mxu0 %v5247
  %5819 = vmatprep.subr.mxu0 0.0
  %5820 = vmatpush1.msra.mxu0 %v5248
  %5821 = vmatprep.subr.mxu0 0.0
  %5822 = vmatpush1.msra.mxu0 %v5249
  %5823 = vmatprep.subr.mxu0 0.0
  %5824 = vmatpush1.msra.mxu0 %v5250
  %5825 = vmatprep.mubr.f32.mxu0 %v5640
  %5826 = vmatmul.mubr.f32.gmra.mrb[0].mxu0 %v5632
  %v5827 = vpop.f32.mrb[0].mxu0
  %v5828 = vadd.f32 %v5616, %v5827
  %v5829 = vpop.f32.mrb[0].mxu0
  %5830 = vdwg.mxu0
  %5831 = vmatprep.subr.mxu0 0.0
  %5832 = vmatpush1.msra.mxu0 %v5251
  %5833 = vmatprep.subr.mxu0 0.0
  %5834 = vmatpush1.msra.mxu0 %v5252
  %5835 = vmatprep.subr.mxu0 0.0
  %5836 = vmatpush1.msra.mxu0 %v5253
  %5837 = vmatprep.subr.mxu0 0.0
  %5838 = vmatpush1.msra.mxu0 %v5254
  %5839 = vmatprep.subr.mxu0 0.0
  %5840 = vmatpush1.msra.mxu0 %v5255
  %5841 = vmatprep.subr.mxu0 0.0
  %5842 = vmatpush1.msra.mxu0 %v5256
  %5843 = vmatprep.subr.mxu0 0.0
  %5844 = vmatpush1.msra.mxu0 %v5257
  %5845 = vmatprep.subr.mxu0 0.0
  %5846 = vmatpush1.msra.mxu0 %v5258
  %5847 = vmatprep.subr.mxu0 0.0
  %5848 = vmatpush1.msra.mxu0 %v5259
  %5849 = vmatprep.subr.mxu0 0.0
  %5850 = vmatpush1.msra.mxu0 %v5260
  %5851 = vmatprep.subr.mxu0 0.0
  %5852 = vmatpush1.msra.mxu0 %v5261
  %5853 = vmatprep.subr.mxu0 0.0
  %5854 = vmatpush1.msra.mxu0 %v5262
  %5855 = vmatprep.subr.mxu0 0.0
  %5856 = vmatpush1.msra.mxu0 %v5263
  %5857 = vmatprep.subr.mxu0 0.0
  %5858 = vmatpush1.msra.mxu0 %v5264
  %5859 = vmatprep.subr.mxu0 0.0
  %5860 = vmatpush1.msra.mxu0 %v5265
  %5861 = vmatprep.subr.mxu0 0.0
  %5862 = vmatpush1.msra.mxu0 %v5266
  %5863 = vmatprep.subr.mxu0 0.0
  %5864 = vmatpush1.msra.mxu0 %v5267
  %5865 = vmatprep.subr.mxu0 0.0
  %5866 = vmatpush1.msra.mxu0 %v5268
  %5867 = vmatprep.subr.mxu0 0.0
  %5868 = vmatpush1.msra.mxu0 %v5269
  %5869 = vmatprep.subr.mxu0 0.0
  %5870 = vmatpush1.msra.mxu0 %v5270
  %5871 = vmatprep.subr.mxu0 0.0
  %5872 = vmatpush1.msra.mxu0 %v5271
  %5873 = vmatprep.subr.mxu0 0.0
  %5874 = vmatpush1.msra.mxu0 %v5272
  %5875 = vmatprep.subr.mxu0 0.0
  %5876 = vmatpush1.msra.mxu0 %v5273
  %5877 = vmatprep.subr.mxu0 0.0
  %5878 = vmatpush1.msra.mxu0 %v5274
  %5879 = vmatprep.subr.mxu0 0.0
  %5880 = vmatpush1.msra.mxu0 %v5275
  %5881 = vmatprep.subr.mxu0 0.0
  %5882 = vmatpush1.msra.mxu0 %v5276
  %5883 = vmatprep.subr.mxu0 0.0
  %5884 = vmatpush1.msra.mxu0 %v5277
  %5885 = vmatprep.subr.mxu0 0.0
  %5886 = vmatpush1.msra.mxu0 %v5278
  %5887 = vmatprep.subr.mxu0 0.0
  %5888 = vmatpush1.msra.mxu0 %v5279
  %5889 = vmatprep.subr.mxu0 0.0
  %5890 = vmatpush1.msra.mxu0 %v5280
  %5891 = vmatprep.subr.mxu0 0.0
  %5892 = vmatpush1.msra.mxu0 %v5281
  %5893 = vmatprep.subr.mxu0 0.0
  %5894 = vmatpush1.msra.mxu0 %v5282
  %5895 = vmatprep.mubr.f32.mxu0 %v5641
  %5896 = vmatmul.mubr.f32.gmra.mrb[0].mxu0 %v5639
  %v5897 = vpop.f32.mrb[0].mxu0
  %v5898 = vadd.f32 %v5828, %v5897
  %v5899 = vpop.f32.mrb[0].mxu0
  %5900 = vdwg.mxu0
  %5901 = vmatprep.subr.mxu0 0.0
  %5902 = vmatpush1.msra.mxu0 %v5283
  %5903 = vmatprep.subr.mxu0 0.0
  %5904 = vmatpush1.msra.mxu0 %v5284
  %5905 = vmatprep.subr.mxu0 0.0
  %5906 = vmatpush1.msra.mxu0 %v5285
  %5907 = vmatprep.subr.mxu0 0.0
  %5908 = vmatpush1.msra.mxu0 %v5286
  %5909 = vmatprep.subr.mxu0 0.0
  %5910 = vmatpush1.msra.mxu0 %v5287
  %5911 = vmatprep.subr.mxu0 0.0
  %5912 = vmatpush1.msra.mxu0 %v5288
  %5913 = vmatprep.subr.mxu0 0.0
  %5914 = vmatpush1.msra.mxu0 %v5289
  %5915 = vmatprep.subr.mxu0 0.0
  %5916 = vmatpush1.msra.mxu0 %v5290
  %5917 = vmatprep.subr.mxu0 0.0
  %5918 = vmatpush1.msra.mxu0 %v5291
  %5919 = vmatprep.subr.mxu0 0.0
  %5920 = vmatpush1.msra.mxu0 %v5292
  %5921 = vmatprep.subr.mxu0 0.0
  %5922 = vmatpush1.msra.mxu0 %v5293
  %5923 = vmatprep.subr.mxu0 0.0
  %5924 = vmatpush1.msra.mxu0 %v5294
  %5925 = vmatprep.subr.mxu0 0.0
  %5926 = vmatpush1.msra.mxu0 %v5295
  %5927 = vmatprep.subr.mxu0 0.0
  %5928 = vmatpush1.msra.mxu0 %v5296
  %5929 = vmatprep.subr.mxu0 0.0
  %5930 = vmatpush1.msra.mxu0 %v5297
  %5931 = vmatprep.subr.mxu0 0.0
  %5932 = vmatpush1.msra.mxu0 %v5298
  %5933 = vmatprep.subr.mxu0 0.0
  %5934 = vmatpush1.msra.mxu0 %v5299
  %5935 = vmatprep.subr.mxu0 0.0
  %5936 = vmatpush1.msra.mxu0 %v5300
  %5937 = vmatprep.subr.mxu0 0.0
  %5938 = vmatpush1.msra.mxu0 %v5301
  %5939 = vmatprep.subr.mxu0 0.0
  %5940 = vmatpush1.msra.mxu0 %v5302
  %5941 = vmatprep.subr.mxu0 0.0
  %5942 = vmatpush1.msra.mxu0 %v5303
  %5943 = vmatprep.subr.mxu0 0.0
  %5944 = vmatpush1.msra.mxu0 %v5304
  %5945 = vmatprep.subr.mxu0 0.0
  %5946 = vmatpush1.msra.mxu0 %v5305
  %5947 = vmatprep.subr.mxu0 0.0
  %5948 = vmatpush1.msra.mxu0 %v5306
  %5949 = vmatprep.subr.mxu0 0.0
  %5950 = vmatpush1.msra.mxu0 %v5307
  %5951 = vmatprep.subr.mxu0 0.0
  %5952 = vmatpush1.msra.mxu0 %v5308
  %5953 = vmatprep.subr.mxu0 0.0
  %5954 = vmatpush1.msra.mxu0 %v5309
  %5955 = vmatprep.subr.mxu0 0.0
  %5956 = vmatpush1.msra.mxu0 %v5310
  %5957 = vmatprep.subr.mxu0 0.0
  %5958 = vmatpush1.msra.mxu0 %v5311
  %5959 = vmatprep.subr.mxu0 0.0
  %5960 = vmatpush1.msra.mxu0 %v5312
  %5961 = vmatprep.subr.mxu0 0.0
  %5962 = vmatpush1.msra.mxu0 %v5313
  %5963 = vmatprep.subr.mxu0 0.0
  %5964 = vmatpush1.msra.mxu0 %v5314
  %5965 = vmatprep.mubr.f32.mxu0 %v5657
  %5966 = vmatmul.mubr.f32.gmra.mrb[0].mxu0 %v5649
  %v5967 = vpop.f32.mrb[0].mxu0
  %v5968 = vadd.f32 %v5898, %v5967
  %v5969 = vpop.f32.mrb[0].mxu0
  %5970 = vdwg.mxu0
  %5971 = vmatprep.subr.mxu0 0.0
  %5972 = vmatpush1.msra.mxu0 %v5315
  %5973 = vmatprep.subr.mxu0 0.0
  %5974 = vmatpush1.msra.mxu0 %v5316
  %5975 = vmatprep.subr.mxu0 0.0
  %5976 = vmatpush1.msra.mxu0 %v5317
  %5977 = vmatprep.subr.mxu0 0.0
  %5978 = vmatpush1.msra.mxu0 %v5318
  %5979 = vmatprep.subr.mxu0 0.0
  %5980 = vmatpush1.msra.mxu0 %v5319
  %5981 = vmatprep.subr.mxu0 0.0
  %5982 = vmatpush1.msra.mxu0 %v5320
  %5983 = vmatprep.subr.mxu0 0.0
  %5984 = vmatpush1.msra.mxu0 %v5321
  %5985 = vmatprep.subr.mxu0 0.0
  %5986 = vmatpush1.msra.mxu0 %v5322
  %5987 = vmatprep.subr.mxu0 0.0
  %5988 = vmatpush1.msra.mxu0 %v5323
  %5989 = vmatprep.subr.mxu0 0.0
  %5990 = vmatpush1.msra.mxu0 %v5324
  %5991 = vmatprep.subr.mxu0 0.0
  %5992 = vmatpush1.msra.mxu0 %v5325
  %5993 = vmatprep.subr.mxu0 0.0
  %5994 = vmatpush1.msra.mxu0 %v5326
  %5995 = vmatprep.subr.mxu0 0.0
  %5996 = vmatpush1.msra.mxu0 %v5327
  %5997 = vmatprep.subr.mxu0 0.0
  %5998 = vmatpush1.msra.mxu0 %v5328
  %5999 = vmatprep.subr.mxu0 0.0
  %6000 = vmatpush1.msra.mxu0 %v5329
  %6001 = vmatprep.subr.mxu0 0.0
  %6002 = vmatpush1.msra.mxu0 %v5330
  %6003 = vmatprep.subr.mxu0 0.0
  %6004 = vmatpush1.msra.mxu0 %v5331
  %6005 = vmatprep.subr.mxu0 0.0
  %6006 = vmatpush1.msra.mxu0 %v5332
  %6007 = vmatprep.subr.mxu0 0.0
  %6008 = vmatpush1.msra.mxu0 %v5333
  %6009 = vmatprep.subr.mxu0 0.0
  %6010 = vmatpush1.msra.mxu0 %v5334
  %6011 = vmatprep.subr.mxu0 0.0
  %6012 = vmatpush1.msra.mxu0 %v5335
  %6013 = vmatprep.subr.mxu0 0.0
  %6014 = vmatpush1.msra.mxu0 %v5336
  %6015 = vmatprep.subr.mxu0 0.0
  %6016 = vmatpush1.msra.mxu0 %v5337
  %6017 = vmatprep.subr.mxu0 0.0
  %6018 = vmatpush1.msra.mxu0 %v5338
  %6019 = vmatprep.subr.mxu0 0.0
  %6020 = vmatpush1.msra.mxu0 %v5339
  %6021 = vmatprep.subr.mxu0 0.0
  %6022 = vmatpush1.msra.mxu0 %v5340
  %6023 = vmatprep.subr.mxu0 0.0
  %6024 = vmatpush1.msra.mxu0 %v5341
  %6025 = vmatprep.subr.mxu0 0.0
  %6026 = vmatpush1.msra.mxu0 %v5342
  %6027 = vmatprep.subr.mxu0 0.0
  %6028 = vmatpush1.msra.mxu0 %v5343
  %6029 = vmatprep.subr.mxu0 0.0
  %6030 = vmatpush1.msra.mxu0 %v5344
  %6031 = vmatprep.subr.mxu0 0.0
  %6032 = vmatpush1.msra.mxu0 %v5345
  %6033 = vmatprep.subr.mxu0 0.0
  %6034 = vmatpush1.msra.mxu0 %v5346
  %6035 = vmatprep.mubr.f32.mxu0 %v5658
  %6036 = vmatmul.mubr.f32.gmra.mrb[0].mxu0 %v5656
  %v6037 = vpop.f32.mrb[0].mxu0
  %v6038 = vadd.f32 %v5968, %v6037
  %v6039 = vpop.f32.mrb[0].mxu0
  %6040 = vdwg.mxu0
  %6041 = vmatprep.subr.mxu0 0.0
  %6042 = vmatpush1.msra.mxu0 %v5347
  %6043 = vmatprep.subr.mxu0 0.0
  %6044 = vmatpush1.msra.mxu0 %v5348
  %6045 = vmatprep.subr.mxu0 0.0
  %6046 = vmatpush1.msra.mxu0 %v5349
  %6047 = vmatprep.subr.mxu0 0.0
  %6048 = vmatpush1.msra.mxu0 %v5350
  %6049 = vmatprep.subr.mxu0 0.0
  %6050 = vmatpush1.msra.mxu0 %v5351
  %6051 = vmatprep.subr.mxu0 0.0
  %6052 = vmatpush1.msra.mxu0 %v5352
  %6053 = vmatprep.subr.mxu0 0.0
  %6054 = vmatpush1.msra.mxu0 %v5353
  %6055 = vmatprep.subr.mxu0 0.0
  %6056 = vmatpush1.msra.mxu0 %v5354
  %6057 = vmatprep.subr.mxu0 0.0
  %6058 = vmatpush1.msra.mxu0 %v5355
  %6059 = vmatprep.subr.mxu0 0.0
  %6060 = vmatpush1.msra.mxu0 %v5356
  %6061 = vmatprep.subr.mxu0 0.0
  %6062 = vmatpush1.msra.mxu0 %v5357
  %6063 = vmatprep.subr.mxu0 0.0
  %6064 = vmatpush1.msra.mxu0 %v5358
  %6065 = vmatprep.subr.mxu0 0.0
  %6066 = vmatpush1.msra.mxu0 %v5359
  %6067 = vmatprep.subr.mxu0 0.0
  %6068 = vmatpush1.msra.mxu0 %v5360
  %6069 = vmatprep.subr.mxu0 0.0
  %6070 = vmatpush1.msra.mxu0 %v5361
  %6071 = vmatprep.subr.mxu0 0.0
  %6072 = vmatpush1.msra.mxu0 %v5362
  %6073 = vmatprep.subr.mxu0 0.0
  %6074 = vmatpush1.msra.mxu0 %v5363
  %6075 = vmatprep.subr.mxu0 0.0
  %6076 = vmatpush1.msra.mxu0 %v5364
  %6077 = vmatprep.subr.mxu0 0.0
  %6078 = vmatpush1.msra.mxu0 %v5365
  %6079 = vmatprep.subr.mxu0 0.0
  %6080 = vmatpush1.msra.mxu0 %v5366
  %6081 = vmatprep.subr.mxu0 0.0
  %6082 = vmatpush1.msra.mxu0 %v5367
  %6083 = vmatprep.subr.mxu0 0.0
  %6084 = vmatpush1.msra.mxu0 %v5368
  %6085 = vmatprep.subr.mxu0 0.0
  %6086 = vmatpush1.msra.mxu0 %v5369
  %6087 = vmatprep.subr.mxu0 0.0
  %6088 = vmatpush1.msra.mxu0 %v5370
  %6089 = vmatprep.subr.mxu0 0.0
  %6090 = vmatpush1.msra.mxu0 %v5371
  %6091 = vmatprep.subr.mxu0 0.0
  %6092 = vmatpush1.msra.mxu0 %v5372
  %6093 = vmatprep.subr.mxu0 0.0
  %6094 = vmatpush1.msra.mxu0 %v5373
  %6095 = vmatprep.subr.mxu0 0.0
  %6096 = vmatpush1.msra.mxu0 %v5374
  %6097 = vmatprep.subr.mxu0 0.0
  %6098 = vmatpush1.msra.mxu0 %v5375
  %6099 = vmatprep.subr.mxu0 0.0
  %6100 = vmatpush1.msra.mxu0 %v5376
  %6101 = vmatprep.subr.mxu0 0.0
  %6102 = vmatpush1.msra.mxu0 %v5377
  %6103 = vmatprep.subr.mxu0 0.0
  %6104 = vmatpush1.msra.mxu0 %v5378
  %6105 = vmatprep.mubr.f32.mxu0 %v5674
  %6106 = vmatmul.mubr.f32.gmra.mrb[0].mxu0 %v5666
  %v6107 = vpop.f32.mrb[0].mxu0
  %v6108 = vadd.f32 %v6038, %v6107
  %v6109 = vpop.f32.mrb[0].mxu0
  %6110 = vdwg.mxu0
  %6111 = vmatprep.subr.mxu0 0.0
  %6112 = vmatpush1.msra.mxu0 %v5379
  %6113 = vmatprep.subr.mxu0 0.0
  %6114 = vmatpush1.msra.mxu0 %v5380
  %6115 = vmatprep.subr.mxu0 0.0
  %6116 = vmatpush1.msra.mxu0 %v5381
  %6117 = vmatprep.subr.mxu0 0.0
  %6118 = vmatpush1.msra.mxu0 %v5382
  %6119 = vmatprep.subr.mxu0 0.0
  %6120 = vmatpush1.msra.mxu0 %v5383
  %6121 = vmatprep.subr.mxu0 0.0
  %6122 = vmatpush1.msra.mxu0 %v5384
  %6123 = vmatprep.subr.mxu0 0.0
  %6124 = vmatpush1.msra.mxu0 %v5385
  %6125 = vmatprep.subr.mxu0 0.0
  %6126 = vmatpush1.msra.mxu0 %v5386
  %6127 = vmatprep.subr.mxu0 0.0
  %6128 = vmatpush1.msra.mxu0 %v5387
  %6129 = vmatprep.subr.mxu0 0.0
  %6130 = vmatpush1.msra.mxu0 %v5388
  %6131 = vmatprep.subr.mxu0 0.0
  %6132 = vmatpush1.msra.mxu0 %v5389
  %6133 = vmatprep.subr.mxu0 0.0
  %6134 = vmatpush1.msra.mxu0 %v5390
  %6135 = vmatprep.subr.mxu0 0.0
  %6136 = vmatpush1.msra.mxu0 %v5391
  %6137 = vmatprep.subr.mxu0 0.0
  %6138 = vmatpush1.msra.mxu0 %v5392
  %6139 = vmatprep.subr.mxu0 0.0
  %6140 = vmatpush1.msra.mxu0 %v5393
  %6141 = vmatprep.subr.mxu0 0.0
  %6142 = vmatpush1.msra.mxu0 %v5394
  %6143 = vmatprep.subr.mxu0 0.0
  %6144 = vmatpush1.msra.mxu0 %v5395
  %6145 = vmatprep.subr.mxu0 0.0
  %6146 = vmatpush1.msra.mxu0 %v5396
  %6147 = vmatprep.subr.mxu0 0.0
  %6148 = vmatpush1.msra.mxu0 %v5397
  %6149 = vmatprep.subr.mxu0 0.0
  %6150 = vmatpush1.msra.mxu0 %v5398
  %6151 = vmatprep.subr.mxu0 0.0
  %6152 = vmatpush1.msra.mxu0 %v5399
  %6153 = vmatprep.subr.mxu0 0.0
  %6154 = vmatpush1.msra.mxu0 %v5400
  %6155 = vmatprep.subr.mxu0 0.0
  %6156 = vmatpush1.msra.mxu0 %v5401
  %6157 = vmatprep.subr.mxu0 0.0
  %6158 = vmatpush1.msra.mxu0 %v5402
  %6159 = vmatprep.subr.mxu0 0.0
  %6160 = vmatpush1.msra.mxu0 %v5403
  %6161 = vmatprep.subr.mxu0 0.0
  %6162 = vmatpush1.msra.mxu0 %v5404
  %6163 = vmatprep.subr.mxu0 0.0
  %6164 = vmatpush1.msra.mxu0 %v5405
  %6165 = vmatprep.subr.mxu0 0.0
  %6166 = vmatpush1.msra.mxu0 %v5406
  %6167 = vmatprep.subr.mxu0 0.0
  %6168 = vmatpush1.msra.mxu0 %v5407
  %6169 = vmatprep.subr.mxu0 0.0
  %6170 = vmatpush1.msra.mxu0 %v5408
  %6171 = vmatprep.subr.mxu0 0.0
  %6172 = vmatpush1.msra.mxu0 %v5409
  %6173 = vmatprep.subr.mxu0 0.0
  %6174 = vmatpush1.msra.mxu0 %v5410
  %6175 = vmatprep.mubr.f32.mxu0 %v5675
  %6176 = vmatmul.mubr.f32.gmra.mrb[0].mxu0 %v5673
  %v6177 = vpop.f32.mrb[0].mxu0
  %v6178 = vadd.f32 %v6108, %v6177
  %v6179 = vpop.f32.mrb[0].mxu0
  %6180 = vdwg.mxu0
  %6181 = vmatprep.subr.mxu0 0.0
  %6182 = vmatpush1.msra.mxu0 %v5411
  %6183 = vmatprep.subr.mxu0 0.0
  %6184 = vmatpush1.msra.mxu0 %v5412
  %6185 = vmatprep.subr.mxu0 0.0
  %6186 = vmatpush1.msra.mxu0 %v5413
  %6187 = vmatprep.subr.mxu0 0.0
  %6188 = vmatpush1.msra.mxu0 %v5414
  %6189 = vmatprep.subr.mxu0 0.0
  %6190 = vmatpush1.msra.mxu0 %v5415
  %6191 = vmatprep.subr.mxu0 0.0
  %6192 = vmatpush1.msra.mxu0 %v5416
  %6193 = vmatprep.subr.mxu0 0.0
  %6194 = vmatpush1.msra.mxu0 %v5417
  %6195 = vmatprep.subr.mxu0 0.0
  %6196 = vmatpush1.msra.mxu0 %v5418
  %6197 = vmatprep.subr.mxu0 0.0
  %6198 = vmatpush1.msra.mxu0 %v5419
  %6199 = vmatprep.subr.mxu0 0.0
  %6200 = vmatpush1.msra.mxu0 %v5420
  %6201 = vmatprep.subr.mxu0 0.0
  %6202 = vmatpush1.msra.mxu0 %v5421
  %6203 = vmatprep.subr.mxu0 0.0
  %6204 = vmatpush1.msra.mxu0 %v5422
  %6205 = vmatprep.subr.mxu0 0.0
  %6206 = vmatpush1.msra.mxu0 %v5423
  %6207 = vmatprep.subr.mxu0 0.0
  %6208 = vmatpush1.msra.mxu0 %v5424
  %6209 = vmatprep.subr.mxu0 0.0
  %6210 = vmatpush1.msra.mxu0 %v5425
  %6211 = vmatprep.subr.mxu0 0.0
  %6212 = vmatpush1.msra.mxu0 %v5426
  %6213 = vmatprep.subr.mxu0 0.0
  %6214 = vmatpush1.msra.mxu0 %v5427
  %6215 = vmatprep.subr.mxu0 0.0
  %6216 = vmatpush1.msra.mxu0 %v5428
  %6217 = vmatprep.subr.mxu0 0.0
  %6218 = vmatpush1.msra.mxu0 %v5429
  %6219 = vmatprep.subr.mxu0 0.0
  %6220 = vmatpush1.msra.mxu0 %v5430
  %6221 = vmatprep.subr.mxu0 0.0
  %6222 = vmatpush1.msra.mxu0 %v5431
  %6223 = vmatprep.subr.mxu0 0.0
  %6224 = vmatpush1.msra.mxu0 %v5432
  %6225 = vmatprep.subr.mxu0 0.0
  %6226 = vmatpush1.msra.mxu0 %v5433
  %6227 = vmatprep.subr.mxu0 0.0
  %6228 = vmatpush1.msra.mxu0 %v5434
  %6229 = vmatprep.subr.mxu0 0.0
  %6230 = vmatpush1.msra.mxu0 %v5435
  %6231 = vmatprep.subr.mxu0 0.0
  %6232 = vmatpush1.msra.mxu0 %v5436
  %6233 = vmatprep.subr.mxu0 0.0
  %6234 = vmatpush1.msra.mxu0 %v5437
  %6235 = vmatprep.subr.mxu0 0.0
  %6236 = vmatpush1.msra.mxu0 %v5438
  %6237 = vmatprep.subr.mxu0 0.0
  %6238 = vmatpush1.msra.mxu0 %v5439
  %6239 = vmatprep.subr.mxu0 0.0
  %6240 = vmatpush1.msra.mxu0 %v5440
  %6241 = vmatprep.subr.mxu0 0.0
  %6242 = vmatpush1.msra.mxu0 %v5441
  %6243 = vmatprep.subr.mxu0 0.0
  %6244 = vmatpush1.msra.mxu0 %v5442
  %6245 = vmatprep.mubr.f32.mxu0 %v5691
  %6246 = vmatmul.mubr.f32.gmra.mrb[0].mxu0 %v5683
  %v6247 = vpop.f32.mrb[0].mxu0
  %v6248 = vadd.f32 %v6178, %v6247
  %v6249 = vpop.f32.mrb[0].mxu0
  %6250 = vdwg.mxu0
  %6251 = vmatprep.subr.mxu0 0.0
  %6252 = vmatpush1.msra.mxu0 %v5443
  %6253 = vmatprep.subr.mxu0 0.0
  %6254 = vmatpush1.msra.mxu0 %v5444
  %6255 = vmatprep.subr.mxu0 0.0
  %6256 = vmatpush1.msra.mxu0 %v5445
  %6257 = vmatprep.subr.mxu0 0.0
  %6258 = vmatpush1.msra.mxu0 %v5446
  %6259 = vmatprep.subr.mxu0 0.0
  %6260 = vmatpush1.msra.mxu0 %v5447
  %6261 = vmatprep.subr.mxu0 0.0
  %6262 = vmatpush1.msra.mxu0 %v5448
  %6263 = vmatprep.subr.mxu0 0.0
  %6264 = vmatpush1.msra.mxu0 %v5449
  %6265 = vmatprep.subr.mxu0 0.0
  %6266 = vmatpush1.msra.mxu0 %v5450
  %6267 = vmatprep.subr.mxu0 0.0
  %6268 = vmatpush1.msra.mxu0 %v5451
  %6269 = vmatprep.subr.mxu0 0.0
  %6270 = vmatpush1.msra.mxu0 %v5452
  %6271 = vmatprep.subr.mxu0 0.0
  %6272 = vmatpush1.msra.mxu0 %v5453
  %6273 = vmatprep.subr.mxu0 0.0
  %6274 = vmatpush1.msra.mxu0 %v5454
  %6275 = vmatprep.subr.mxu0 0.0
  %6276 = vmatpush1.msra.mxu0 %v5455
  %6277 = vmatprep.subr.mxu0 0.0
  %6278 = vmatpush1.msra.mxu0 %v5456
  %6279 = vmatprep.subr.mxu0 0.0
  %6280 = vmatpush1.msra.mxu0 %v5457
  %6281 = vmatprep.subr.mxu0 0.0
  %6282 = vmatpush1.msra.mxu0 %v5458
  %6283 = vmatprep.subr.mxu0 0.0
  %6284 = vmatpush1.msra.mxu0 %v5459
  %6285 = vmatprep.subr.mxu0 0.0
  %6286 = vmatpush1.msra.mxu0 %v5460
  %6287 = vmatprep.subr.mxu0 0.0
  %6288 = vmatpush1.msra.mxu0 %v5461
  %6289 = vmatprep.subr.mxu0 0.0
  %6290 = vmatpush1.msra.mxu0 %v5462
  %6291 = vmatprep.subr.mxu0 0.0
  %6292 = vmatpush1.msra.mxu0 %v5463
  %6293 = vmatprep.subr.mxu0 0.0
  %6294 = vmatpush1.msra.mxu0 %v5464
  %6295 = vmatprep.subr.mxu0 0.0
  %6296 = vmatpush1.msra.mxu0 %v5465
  %6297 = vmatprep.subr.mxu0 0.0
  %6298 = vmatpush1.msra.mxu0 %v5466
  %6299 = vmatprep.subr.mxu0 0.0
  %6300 = vmatpush1.msra.mxu0 %v5467
  %6301 = vmatprep.subr.mxu0 0.0
  %6302 = vmatpush1.msra.mxu0 %v5468
  %6303 = vmatprep.subr.mxu0 0.0
  %6304 = vmatpush1.msra.mxu0 %v5469
  %6305 = vmatprep.subr.mxu0 0.0
  %6306 = vmatpush1.msra.mxu0 %v5470
  %6307 = vmatprep.subr.mxu0 0.0
  %6308 = vmatpush1.msra.mxu0 %v5471
  %6309 = vmatprep.subr.mxu0 0.0
  %6310 = vmatpush1.msra.mxu0 %v5472
  %6311 = vmatprep.subr.mxu0 0.0
  %6312 = vmatpush1.msra.mxu0 %v5473
  %6313 = vmatprep.subr.mxu0 0.0
  %6314 = vmatpush1.msra.mxu0 %v5474
  %6315 = vmatprep.mubr.f32.mxu0 %v5692
  %6316 = vmatmul.mubr.f32.gmra.mrb[0].mxu0 %v5690
  %v6317 = vpop.f32.mrb[0].mxu0
  %v6318 = vadd.f32 %v6248, %v6317
  %v6319 = vpop.f32.mrb[0].mxu0
  %6320 = vdwg.mxu0
  %6321 = vmatprep.subr.mxu0 0.0
  %6322 = vmatpush1.msra.mxu0 %v5475
  %6323 = vmatprep.subr.mxu0 0.0
  %6324 = vmatpush1.msra.mxu0 %v5476
  %6325 = vmatprep.subr.mxu0 0.0
  %6326 = vmatpush1.msra.mxu0 %v5477
  %6327 = vmatprep.subr.mxu0 0.0
  %6328 = vmatpush1.msra.mxu0 %v5478
  %6329 = vmatprep.subr.mxu0 0.0
  %6330 = vmatpush1.msra.mxu0 %v5479
  %6331 = vmatprep.subr.mxu0 0.0
  %6332 = vmatpush1.msra.mxu0 %v5480
  %6333 = vmatprep.subr.mxu0 0.0
  %6334 = vmatpush1.msra.mxu0 %v5481
  %6335 = vmatprep.subr.mxu0 0.0
  %6336 = vmatpush1.msra.mxu0 %v5482
  %6337 = vmatprep.subr.mxu0 0.0
  %6338 = vmatpush1.msra.mxu0 %v5483
  %6339 = vmatprep.subr.mxu0 0.0
  %6340 = vmatpush1.msra.mxu0 %v5484
  %6341 = vmatprep.subr.mxu0 0.0
  %6342 = vmatpush1.msra.mxu0 %v5485
  %6343 = vmatprep.subr.mxu0 0.0
  %6344 = vmatpush1.msra.mxu0 %v5486
  %6345 = vmatprep.subr.mxu0 0.0
  %6346 = vmatpush1.msra.mxu0 %v5487
  %6347 = vmatprep.subr.mxu0 0.0
  %6348 = vmatpush1.msra.mxu0 %v5488
  %6349 = vmatprep.subr.mxu0 0.0
  %6350 = vmatpush1.msra.mxu0 %v5489
  %6351 = vmatprep.subr.mxu0 0.0
  %6352 = vmatpush1.msra.mxu0 %v5490
  %6353 = vmatprep.subr.mxu0 0.0
  %6354 = vmatpush1.msra.mxu0 %v5491
  %6355 = vmatprep.subr.mxu0 0.0
  %6356 = vmatpush1.msra.mxu0 %v5492
  %6357 = vmatprep.subr.mxu0 0.0
  %6358 = vmatpush1.msra.mxu0 %v5493
  %6359 = vmatprep.subr.mxu0 0.0
  %6360 = vmatpush1.msra.mxu0 %v5494
  %6361 = vmatprep.subr.mxu0 0.0
  %6362 = vmatpush1.msra.mxu0 %v5495
  %6363 = vmatprep.subr.mxu0 0.0
  %6364 = vmatpush1.msra.mxu0 %v5496
  %6365 = vmatprep.subr.mxu0 0.0
  %6366 = vmatpush1.msra.mxu0 %v5497
  %6367 = vmatprep.subr.mxu0 0.0
  %6368 = vmatpush1.msra.mxu0 %v5498
  %6369 = vmatprep.subr.mxu0 0.0
  %6370 = vmatpush1.msra.mxu0 %v5499
  %6371 = vmatprep.subr.mxu0 0.0
  %6372 = vmatpush1.msra.mxu0 %v5500
  %6373 = vmatprep.subr.mxu0 0.0
  %6374 = vmatpush1.msra.mxu0 %v5501
  %6375 = vmatprep.subr.mxu0 0.0
  %6376 = vmatpush1.msra.mxu0 %v5502
  %6377 = vmatprep.subr.mxu0 0.0
  %6378 = vmatpush1.msra.mxu0 %v5503
  %6379 = vmatprep.subr.mxu0 0.0
  %6380 = vmatpush1.msra.mxu0 %v5504
  %6381 = vmatprep.subr.mxu0 0.0
  %6382 = vmatpush1.msra.mxu0 %v5505
  %6383 = vmatprep.subr.mxu0 0.0
  %6384 = vmatpush1.msra.mxu0 %v5506
  %6385 = vmatprep.mubr.f32.mxu0 %v5708
  %6386 = vmatmul.mubr.f32.gmra.mrb[0].mxu0 %v5700
  %v6387 = vpop.f32.mrb[0].mxu0
  %v6388 = vadd.f32 %v6318, %v6387
  %v6389 = vpop.f32.mrb[0].mxu0
  %6390 = vdwg.mxu0
  %6391 = vmatprep.subr.mxu0 0.0
  %6392 = vmatpush1.msra.mxu0 %v5507
  %6393 = vmatprep.subr.mxu0 0.0
  %6394 = vmatpush1.msra.mxu0 %v5508
  %6395 = vmatprep.subr.mxu0 0.0
  %6396 = vmatpush1.msra.mxu0 %v5509
  %6397 = vmatprep.subr.mxu0 0.0
  %6398 = vmatpush1.msra.mxu0 %v5510
  %6399 = vmatprep.subr.mxu0 0.0
  %6400 = vmatpush1.msra.mxu0 %v5511
  %6401 = vmatprep.subr.mxu0 0.0
  %6402 = vmatpush1.msra.mxu0 %v5512
  %6403 = vmatprep.subr.mxu0 0.0
  %6404 = vmatpush1.msra.mxu0 %v5513
  %6405 = vmatprep.subr.mxu0 0.0
  %6406 = vmatpush1.msra.mxu0 %v5514
  %6407 = vmatprep.subr.mxu0 0.0
  %6408 = vmatpush1.msra.mxu0 %v5515
  %6409 = vmatprep.subr.mxu0 0.0
  %6410 = vmatpush1.msra.mxu0 %v5516
  %6411 = vmatprep.subr.mxu0 0.0
  %6412 = vmatpush1.msra.mxu0 %v5517
  %6413 = vmatprep.subr.mxu0 0.0
  %6414 = vmatpush1.msra.mxu0 %v5518
  %6415 = vmatprep.subr.mxu0 0.0
  %6416 = vmatpush1.msra.mxu0 %v5519
  %6417 = vmatprep.subr.mxu0 0.0
  %6418 = vmatpush1.msra.mxu0 %v5520
  %6419 = vmatprep.subr.mxu0 0.0
  %6420 = vmatpush1.msra.mxu0 %v5521
  %6421 = vmatprep.subr.mxu0 0.0
  %6422 = vmatpush1.msra.mxu0 %v5522
  %6423 = vmatprep.subr.mxu0 0.0
  %6424 = vmatpush1.msra.mxu0 %v5523
  %6425 = vmatprep.subr.mxu0 0.0
  %6426 = vmatpush1.msra.mxu0 %v5524
  %6427 = vmatprep.subr.mxu0 0.0
  %6428 = vmatpush1.msra.mxu0 %v5525
  %6429 = vmatprep.subr.mxu0 0.0
  %6430 = vmatpush1.msra.mxu0 %v5526
  %6431 = vmatprep.subr.mxu0 0.0
  %6432 = vmatpush1.msra.mxu0 %v5527
  %6433 = vmatprep.subr.mxu0 0.0
  %6434 = vmatpush1.msra.mxu0 %v5528
  %6435 = vmatprep.subr.mxu0 0.0
  %6436 = vmatpush1.msra.mxu0 %v5529
  %6437 = vmatprep.subr.mxu0 0.0
  %6438 = vmatpush1.msra.mxu0 %v5530
  %6439 = vmatprep.subr.mxu0 0.0
  %6440 = vmatpush1.msra.mxu0 %v5531
  %6441 = vmatprep.subr.mxu0 0.0
  %6442 = vmatpush1.msra.mxu0 %v5532
  %6443 = vmatprep.subr.mxu0 0.0
  %6444 = vmatpush1.msra.mxu0 %v5533
  %6445 = vmatprep.subr.mxu0 0.0
  %6446 = vmatpush1.msra.mxu0 %v5534
  %6447 = vmatprep.subr.mxu0 0.0
  %6448 = vmatpush1.msra.mxu0 %v5535
  %6449 = vmatprep.subr.mxu0 0.0
  %6450 = vmatpush1.msra.mxu0 %v5536
  %6451 = vmatprep.subr.mxu0 0.0
  %6452 = vmatpush1.msra.mxu0 %v5537
  %6453 = vmatprep.subr.mxu0 0.0
  %6454 = vmatpush1.msra.mxu0 %v5538
  %6455 = vmatprep.mubr.f32.mxu0 %v5709
  %6456 = vmatmul.mubr.f32.gmra.mrb[0].mxu0 %v5707
  %v6457 = vpop.f32.mrb[0].mxu0
  %v6458 = vadd.f32 %v6388, %v6457
  %v6459 = vpop.f32.mrb[0].mxu0
  %6460 = vdwg.mxu0
  %6461 = vmatprep.subr.mxu0 0.0
  %6462 = vmatpush1.msra.mxu0 %v5539
  %6463 = vmatprep.subr.mxu0 0.0
  %6464 = vmatpush1.msra.mxu0 %v5540
  %6465 = vmatprep.subr.mxu0 0.0
  %6466 = vmatpush1.msra.mxu0 %v5541
  %6467 = vmatprep.subr.mxu0 0.0
  %6468 = vmatpush1.msra.mxu0 %v5542
  %6469 = vmatprep.subr.mxu0 0.0
  %6470 = vmatpush1.msra.mxu0 %v5543
  %6471 = vmatprep.subr.mxu0 0.0
  %6472 = vmatpush1.msra.mxu0 %v5544
  %6473 = vmatprep.subr.mxu0 0.0
  %6474 = vmatpush1.msra.mxu0 %v5545
  %6475 = vmatprep.subr.mxu0 0.0
  %6476 = vmatpush1.msra.mxu0 %v5546
  %6477 = vmatprep.subr.mxu0 0.0
  %6478 = vmatpush1.msra.mxu0 %v5547
  %6479 = vmatprep.subr.mxu0 0.0
  %6480 = vmatpush1.msra.mxu0 %v5548
  %6481 = vmatprep.subr.mxu0 0.0
  %6482 = vmatpush1.msra.mxu0 %v5549
  %6483 = vmatprep.subr.mxu0 0.0
  %6484 = vmatpush1.msra.mxu0 %v5550
  %6485 = vmatprep.subr.mxu0 0.0
  %6486 = vmatpush1.msra.mxu0 %v5551
  %6487 = vmatprep.subr.mxu0 0.0
  %6488 = vmatpush1.msra.mxu0 %v5552
  %6489 = vmatprep.subr.mxu0 0.0
  %6490 = vmatpush1.msra.mxu0 %v5553
  %6491 = vmatprep.subr.mxu0 0.0
  %6492 = vmatpush1.msra.mxu0 %v5554
  %6493 = vmatprep.subr.mxu0 0.0
  %6494 = vmatpush1.msra.mxu0 %v5555
  %6495 = vmatprep.subr.mxu0 0.0
  %6496 = vmatpush1.msra.mxu0 %v5556
  %6497 = vmatprep.subr.mxu0 0.0
  %6498 = vmatpush1.msra.mxu0 %v5557
  %6499 = vmatprep.subr.mxu0 0.0
  %6500 = vmatpush1.msra.mxu0 %v5558
  %6501 = vmatprep.subr.mxu0 0.0
  %6502 = vmatpush1.msra.mxu0 %v5559
  %6503 = vmatprep.subr.mxu0 0.0
  %6504 = vmatpush1.msra.mxu0 %v5560
  %6505 = vmatprep.subr.mxu0 0.0
  %6506 = vmatpush1.msra.mxu0 %v5561
  %6507 = vmatprep.subr.mxu0 0.0
  %6508 = vmatpush1.msra.mxu0 %v5562
  %6509 = vmatprep.subr.mxu0 0.0
  %6510 = vmatpush1.msra.mxu0 %v5563
  %6511 = vmatprep.subr.mxu0 0.0
  %6512 = vmatpush1.msra.mxu0 %v5564
  %6513 = vmatprep.subr.mxu0 0.0
  %6514 = vmatpush1.msra.mxu0 %v5565
  %6515 = vmatprep.subr.mxu0 0.0
  %6516 = vmatpush1.msra.mxu0 %v5566
  %6517 = vmatprep.subr.mxu0 0.0
  %6518 = vmatpush1.msra.mxu0 %v5567
  %6519 = vmatprep.subr.mxu0 0.0
  %6520 = vmatpush1.msra.mxu0 %v5568
  %6521 = vmatprep.subr.mxu0 0.0
  %6522 = vmatpush1.msra.mxu0 %v5569
  %6523 = vmatprep.subr.mxu0 0.0
  %6524 = vmatpush1.msra.mxu0 %v5570
  %6525 = vmatprep.mubr.f32.mxu0 %v5725
  %6526 = vmatmul.mubr.f32.gmra.mrb[0].mxu0 %v5717
  %v6527 = vpop.f32.mrb[0].mxu0
  %v6528 = vadd.f32 %v6458, %v6527
  %v6529 = vpop.f32.mrb[0].mxu0
  %6530 = vdwg.mxu0
  %6531 = vmatprep.subr.mxu0 0.0
  %6532 = vmatpush1.msra.mxu0 %v5571
  %6533 = vmatprep.subr.mxu0 0.0
  %6534 = vmatpush1.msra.mxu0 %v5572
  %6535 = vmatprep.subr.mxu0 0.0
  %6536 = vmatpush1.msra.mxu0 %v5573
  %6537 = vmatprep.subr.mxu0 0.0
  %6538 = vmatpush1.msra.mxu0 %v5574
  %6539 = vmatprep.subr.mxu0 0.0
  %6540 = vmatpush1.msra.mxu0 %v5575
  %6541 = vmatprep.subr.mxu0 0.0
  %6542 = vmatpush1.msra.mxu0 %v5576
  %6543 = vmatprep.subr.mxu0 0.0
  %6544 = vmatpush1.msra.mxu0 %v5577
  %6545 = vmatprep.subr.mxu0 0.0
  %6546 = vmatpush1.msra.mxu0 %v5578
  %6547 = vmatprep.subr.mxu0 0.0
  %6548 = vmatpush1.msra.mxu0 %v5579
  %6549 = vmatprep.subr.mxu0 0.0
  %6550 = vmatpush1.msra.mxu0 %v5580
  %6551 = vmatprep.subr.mxu0 0.0
  %6552 = vmatpush1.msra.mxu0 %v5581
  %6553 = vmatprep.subr.mxu0 0.0
  %6554 = vmatpush1.msra.mxu0 %v5582
  %6555 = vmatprep.subr.mxu0 0.0
  %6556 = vmatpush1.msra.mxu0 %v5583
  %6557 = vmatprep.subr.mxu0 0.0
  %6558 = vmatpush1.msra.mxu0 %v5584
  %6559 = vmatprep.subr.mxu0 0.0
  %6560 = vmatpush1.msra.mxu0 %v5585
  %6561 = vmatprep.subr.mxu0 0.0
  %6562 = vmatpush1.msra.mxu0 %v5586
  %6563 = vmatprep.subr.mxu0 0.0
  %6564 = vmatpush1.msra.mxu0 %v5587
  %6565 = vmatprep.subr.mxu0 0.0
  %6566 = vmatpush1.msra.mxu0 %v5588
  %6567 = vmatprep.subr.mxu0 0.0
  %6568 = vmatpush1.msra.mxu0 %v5589
  %6569 = vmatprep.subr.mxu0 0.0
  %6570 = vmatpush1.msra.mxu0 %v5590
  %6571 = vmatprep.subr.mxu0 0.0
  %6572 = vmatpush1.msra.mxu0 %v5591
  %6573 = vmatprep.subr.mxu0 0.0
  %6574 = vmatpush1.msra.mxu0 %v5592
  %6575 = vmatprep.subr.mxu0 0.0
  %6576 = vmatpush1.msra.mxu0 %v5593
  %6577 = vmatprep.subr.mxu0 0.0
  %6578 = vmatpush1.msra.mxu0 %v5594
  %6579 = vmatprep.subr.mxu0 0.0
  %6580 = vmatpush1.msra.mxu0 %v5595
  %6581 = vmatprep.subr.mxu0 0.0
  %6582 = vmatpush1.msra.mxu0 %v5596
  %6583 = vmatprep.subr.mxu0 0.0
  %6584 = vmatpush1.msra.mxu0 %v5597
  %6585 = vmatprep.subr.mxu0 0.0
  %6586 = vmatpush1.msra.mxu0 %v5598
  %6587 = vmatprep.subr.mxu0 0.0
  %6588 = vmatpush1.msra.mxu0 %v5599
  %6589 = vmatprep.subr.mxu0 0.0
  %6590 = vmatpush1.msra.mxu0 %v5600
  %6591 = vmatprep.subr.mxu0 0.0
  %6592 = vmatpush1.msra.mxu0 %v5601
  %6593 = vmatprep.subr.mxu0 0.0
  %6594 = vmatpush1.msra.mxu0 %v5602
  %6595 = vmatprep.mubr.f32.mxu0 %v5726
  %6596 = vmatmul.mubr.f32.gmra.mrb[0].mxu0 %v5724
  %v6597 = vpop.f32.mrb[0].mxu0
  %v6598 = vadd.f32 %v6528, %v6597
  %v6599 = vpop.f32.mrb[0].mxu0
  %6600 = vdwg.mxu0
  %6601 = vmatprep.subr.mxu0 0.0
  %6602 = vmatpush1.msra.mxu0 %v5603
  %6603 = vmatprep.subr.mxu0 0.0
  %6604 = vmatpush1.msra.mxu0 %v5604
  %6605 = vmatprep.subr.mxu0 0.0
  %6606 = vmatpush1.msra.mxu0 %v5605
  %6607 = vmatprep.subr.mxu0 0.0
  %6608 = vmatpush1.msra.mxu0 %v5606
  %6609 = vmatprep.subr.mxu0 0.0
  %6610 = vmatpush1.msra.mxu0 %v5607
  %6611 = vmatprep.subr.mxu0 0.0
  %6612 = vmatpush1.msra.mxu0 %v5608
  %6613 = vmatprep.subr.mxu0 0.0
  %6614 = vmatpush1.msra.mxu0 %v5609
  %6615 = vmatprep.subr.mxu0 0.0
  %6616 = vmatpush1.msra.mxu0 %v5610
  %6617 = vmatprep.subr.mxu0 0.0
  %6618 = vmatpush1.msra.mxu0 0.0
  %6619 = vmatprep.subr.mxu0 0.0
  %6620 = vmatpush1.msra.mxu0 0.0
  %6621 = vmatprep.subr.mxu0 0.0
  %6622 = vmatpush1.msra.mxu0 0.0
  %6623 = vmatprep.subr.mxu0 0.0
  %6624 = vmatpush1.msra.mxu0 0.0
  %6625 = vmatprep.subr.mxu0 0.0
  %6626 = vmatpush1.msra.mxu0 0.0
  %6627 = vmatprep.subr.mxu0 0.0
  %6628 = vmatpush1.msra.mxu0 0.0
  %6629 = vmatprep.subr.mxu0 0.0
  %6630 = vmatpush1.msra.mxu0 0.0
  %6631 = vmatprep.subr.mxu0 0.0
  %6632 = vmatpush1.msra.mxu0 0.0
  %6633 = vmatprep.subr.mxu0 0.0
  %6634 = vmatpush1.msra.mxu0 0.0
  %6635 = vmatprep.subr.mxu0 0.0
  %6636 = vmatpush1.msra.mxu0 0.0
  %6637 = vmatprep.subr.mxu0 0.0
  %6638 = vmatpush1.msra.mxu0 0.0
  %6639 = vmatprep.subr.mxu0 0.0
  %6640 = vmatpush1.msra.mxu0 0.0
  %6641 = vmatprep.subr.mxu0 0.0
  %6642 = vmatpush1.msra.mxu0 0.0
  %6643 = vmatprep.subr.mxu0 0.0
  %6644 = vmatpush1.msra.mxu0 0.0
  %6645 = vmatprep.subr.mxu0 0.0
  %6646 = vmatpush1.msra.mxu0 0.0
  %6647 = vmatprep.subr.mxu0 0.0
  %6648 = vmatpush1.msra.mxu0 0.0
  %6649 = vmatprep.subr.mxu0 0.0
  %6650 = vmatpush1.msra.mxu0 0.0
  %6651 = vmatprep.subr.mxu0 0.0
  %6652 = vmatpush1.msra.mxu0 0.0
  %6653 = vmatprep.subr.mxu0 0.0
  %6654 = vmatpush1.msra.mxu0 0.0
  %6655 = vmatprep.subr.mxu0 0.0
  %6656 = vmatpush1.msra.mxu0 0.0
  %6657 = vmatprep.subr.mxu0 0.0
  %6658 = vmatpush1.msra.mxu0 0.0
  %6659 = vmatprep.subr.mxu0 0.0
  %6660 = vmatpush1.msra.mxu0 0.0
  %6661 = vmatprep.subr.mxu0 0.0
  %6662 = vmatpush1.msra.mxu0 0.0
  %6663 = vmatprep.subr.mxu0 0.0
  %6664 = vmatpush1.msra.mxu0 0.0
  %6665 = vmatprep.mubr.f32.mxu0 0.0
  %6666 = vmatmul.mubr.f32.gmra.mrb[0].mxu0 %v5759
  %v6667 = vpop.f32.mrb[0].mxu0
  %v6668 = vadd.f32 %v6598, %v6667
  %v6669 = vpop.f32.mrb[0].mxu0
  %6670 = vdwg.mxu0
  %v6671 = vmax.f32 %v6668, 0.0
  %v6672 = vld [vmem:[%s8] sm:$0xff]
  %v6673 = vld [vmem:[%s8 + $0x8] sm:$0xff]
  %v6674 = vld [vmem:[%s8 + $0x10] sm:$0xff]
  %v6675 = vld [vmem:[%s8 + $0x18] sm:$0xff]
  %v6676 = vld [vmem:[%s8 + $0x20] sm:$0xff]
  %v6677 = vld [vmem:[%s8 + $0x28] sm:$0xff]
  %v6678 = vld [vmem:[%s8 + $0x30] sm:$0xff]
  %v6679 = vld [vmem:[%s8 + $0x38] sm:$0xff]
  %v6680 = vld [vmem:[%s8 + $0x40] sm:$0xff]
  %v6681 = vld [vmem:[%s8 + $0x48] sm:$0xff]
  %v6682 = vld [vmem:[%s8 + $0x50] sm:$0xff]
  %v6683 = vld [vmem:[%s8 + $0x58] sm:$0xff]
  %v6684 = vld [vmem:[%s8 + $0x60] sm:$0xff]
  %v6685 = vld [vmem:[%s8 + $0x68] sm:$0xff]
  %v6686 = vld [vmem:[%s8 + $0x70] sm:$0xff]
  %v6687 = vld [vmem:[%s8 + $0x78] sm:$0xff]
  %v6688 = vld [vmem:[%s9] sm:$0x1]
  %v6690 = vlaneseq
  %v6691 = vshrl.u32 %v6690, 7
  %v6692 = vsub.s32 0, %v6691
  %v6693 = vrot.slane %v6688, %v6692
  %6695 = vmatprep.subr.mxu0 0.0
  %6696 = vmatpush1.msra.mxu0 %v6672
  %6697 = vmatprep.subr.mxu0 0.0
  %6698 = vmatpush1.msra.mxu0 %v6673
  %6699 = vmatprep.subr.mxu0 0.0
  %6700 = vmatpush1.msra.mxu0 %v6674
  %6701 = vmatprep.subr.mxu0 0.0
  %6702 = vmatpush1.msra.mxu0 %v6675
  %6703 = vmatprep.subr.mxu0 0.0
  %6704 = vmatpush1.msra.mxu0 %v6676
  %6705 = vmatprep.subr.mxu0 0.0
  %6706 = vmatpush1.msra.mxu0 %v6677
  %6707 = vmatprep.subr.mxu0 0.0
  %6708 = vmatpush1.msra.mxu0 %v6678
  %6709 = vmatprep.subr.mxu0 0.0
  %6710 = vmatpush1.msra.mxu0 %v6679
  %6711 = vmatprep.subr.mxu0 0.0
  %6712 = vmatpush1.msra.mxu0 %v6680
  %6713 = vmatprep.subr.mxu0 0.0
  %6714 = vmatpush1.msra.mxu0 %v6681
  %6715 = vmatprep.subr.mxu0 0.0
  %6716 = vmatpush1.msra.mxu0 %v6682
  %6717 = vmatprep.subr.mxu0 0.0
  %6718 = vmatpush1.msra.mxu0 %v6683
  %6719 = vmatprep.subr.mxu0 0.0
  %6720 = vmatpush1.msra.mxu0 %v6684
  %6721 = vmatprep.subr.mxu0 0.0
  %6722 = vmatpush1.msra.mxu0 %v6685
  %6723 = vmatprep.subr.mxu0 0.0
  %6724 = vmatpush1.msra.mxu0 %v6686
  %6725 = vmatprep.subr.mxu0 0.0
  %6726 = vmatpush1.msra.mxu0 %v6687
  %6727 = vmatprep.subr.mxu0 0.0
  %6728 = vmatpush1.msra.mxu0 0.0
  %6729 = vmatprep.subr.mxu0 0.0
  %6730 = vmatpush1.msra.mxu0 0.0
  %6731 = vmatprep.subr.mxu0 0.0
  %6732 = vmatpush1.msra.mxu0 0.0
  %6733 = vmatprep.subr.mxu0 0.0
  %6734 = vmatpush1.msra.mxu0 0.0
  %6735 = vmatprep.subr.mxu0 0.0
  %6736 = vmatpush1.msra.mxu0 0.0
  %6737 = vmatprep.subr.mxu0 0.0
  %6738 = vmatpush1.msra.mxu0 0.0
  %6739 = vmatprep.subr.mxu0 0.0
  %6740 = vmatpush1.msra.mxu0 0.0
  %6741 = vmatprep.subr.mxu0 0.0
  %6742 = vmatpush1.msra.mxu0 0.0
  %6743 = vmatprep.subr.mxu0 0.0
  %6744 = vmatpush1.msra.mxu0 0.0
  %6745 = vmatprep.subr.mxu0 0.0
  %6746 = vmatpush1.msra.mxu0 0.0
  %6747 = vmatprep.subr.mxu0 0.0
  %6748 = vmatpush1.msra.mxu0 0.0
  %6749 = vmatprep.subr.mxu0 0.0
  %6750 = vmatpush1.msra.mxu0 0.0
  %6751 = vmatprep.subr.mxu0 0.0
  %6752 = vmatpush1.msra.mxu0 0.0
  %6753 = vmatprep.subr.mxu0 0.0
  %6754 = vmatpush1.msra.mxu0 0.0
  %6755 = vmatprep.subr.mxu0 0.0
  %6756 = vmatpush1.msra.mxu0 0.0
  %6757 = vmatprep.subr.mxu0 0.0
  %6758 = vmatpush1.msra.mxu0 0.0
  %6759 = vmatprep.mubr.f32.mxu0 0.0
  %6760 = vmatmul.mubr.f32.gmra.mrb[0].mxu0 %v6671
  %v6761 = vpop.f32.mrb[0].mxu0
  %v6762 = vadd.f32 %v6693, %v6761
  %v6763 = vpop.f32.mrb[0].mxu0
  %6764 = vdwg.mxu0
  %v6765 = vmax.f32 %v6762, 0.0
  %v6766 = vld [vmem:[%s10] sm:$0xff]
  %v6767 = vld [vmem:[%s10 + $0x8] sm:$0xff]
  %v6768 = vld [vmem:[%s10 + $0x10] sm:$0xff]
  %v6769 = vld [vmem:[%s10 + $0x18] sm:$0xff]
  %v6770 = vld [vmem:[%s10 + $0x20] sm:$0xff]
  %v6771 = vld [vmem:[%s10 + $0x28] sm:$0xff]
  %v6772 = vld [vmem:[%s10 + $0x30] sm:$0xff]
  %v6773 = vld [vmem:[%s10 + $0x38] sm:$0xff]
  %v6774 = vld [vmem:[%s11] sm:$0x1]
  %v6776 = vlaneseq
  %v6777 = vshrl.u32 %v6776, 7
  %v6778 = vsub.s32 0, %v6777
  %v6779 = vrot.slane %v6774, %v6778
  %v6782 = vsel %vm5758, %v6765, 0
  %6784 = vmatprep.subr.mxu0 0.0
  %6785 = vmatpush1.msra.mxu0 %v6766
  %6786 = vmatprep.subr.mxu0 0.0
  %6787 = vmatpush1.msra.mxu0 %v6767
  %6788 = vmatprep.subr.mxu0 0.0
  %6789 = vmatpush1.msra.mxu0 %v6768
  %6790 = vmatprep.subr.mxu0 0.0
  %6791 = vmatpush1.msra.mxu0 %v6769
  %6792 = vmatprep.subr.mxu0 0.0
  %6793 = vmatpush1.msra.mxu0 %v6770
  %6794 = vmatprep.subr.mxu0 0.0
  %6795 = vmatpush1.msra.mxu0 %v6771
  %6796 = vmatprep.subr.mxu0 0.0
  %6797 = vmatpush1.msra.mxu0 %v6772
  %6798 = vmatprep.subr.mxu0 0.0
  %6799 = vmatpush1.msra.mxu0 %v6773
  %6800 = vmatprep.subr.mxu0 0.0
  %6801 = vmatpush1.msra.mxu0 0.0
  %6802 = vmatprep.subr.mxu0 0.0
  %6803 = vmatpush1.msra.mxu0 0.0
  %6804 = vmatprep.subr.mxu0 0.0
  %6805 = vmatpush1.msra.mxu0 0.0
  %6806 = vmatprep.subr.mxu0 0.0
  %6807 = vmatpush1.msra.mxu0 0.0
  %6808 = vmatprep.subr.mxu0 0.0
  %6809 = vmatpush1.msra.mxu0 0.0
  %6810 = vmatprep.subr.mxu0 0.0
  %6811 = vmatpush1.msra.mxu0 0.0
  %6812 = vmatprep.subr.mxu0 0.0
  %6813 = vmatpush1.msra.mxu0 0.0
  %6814 = vmatprep.subr.mxu0 0.0
  %6815 = vmatpush1.msra.mxu0 0.0
  %6816 = vmatprep.subr.mxu0 0.0
  %6817 = vmatpush1.msra.mxu0 0.0
  %6818 = vmatprep.subr.mxu0 0.0
  %6819 = vmatpush1.msra.mxu0 0.0
  %6820 = vmatprep.subr.mxu0 0.0
  %6821 = vmatpush1.msra.mxu0 0.0
  %6822 = vmatprep.subr.mxu0 0.0
  %6823 = vmatpush1.msra.mxu0 0.0
  %6824 = vmatprep.subr.mxu0 0.0
  %6825 = vmatpush1.msra.mxu0 0.0
  %6826 = vmatprep.subr.mxu0 0.0
  %6827 = vmatpush1.msra.mxu0 0.0
  %6828 = vmatprep.subr.mxu0 0.0
  %6829 = vmatpush1.msra.mxu0 0.0
  %6830 = vmatprep.subr.mxu0 0.0
  %6831 = vmatpush1.msra.mxu0 0.0
  %6832 = vmatprep.subr.mxu0 0.0
  %6833 = vmatpush1.msra.mxu0 0.0
  %6834 = vmatprep.subr.mxu0 0.0
  %6835 = vmatpush1.msra.mxu0 0.0
  %6836 = vmatprep.subr.mxu0 0.0
  %6837 = vmatpush1.msra.mxu0 0.0
  %6838 = vmatprep.subr.mxu0 0.0
  %6839 = vmatpush1.msra.mxu0 0.0
  %6840 = vmatprep.subr.mxu0 0.0
  %6841 = vmatpush1.msra.mxu0 0.0
  %6842 = vmatprep.subr.mxu0 0.0
  %6843 = vmatpush1.msra.mxu0 0.0
  %6844 = vmatprep.subr.mxu0 0.0
  %6845 = vmatpush1.msra.mxu0 0.0
  %6846 = vmatprep.subr.mxu0 0.0
  %6847 = vmatpush1.msra.mxu0 0.0
  %6848 = vmatprep.mubr.f32.mxu0 0.0
  %6849 = vmatmul.mubr.f32.gmra.mrb[0].mxu0 %v6782
  %v6850 = vpop.f32.mrb[0].mxu0
  %v6851 = vadd.f32 %v6779, %v6850
  %v6852 = vpop.f32.mrb[0].mxu0
  %6853 = vdwg.mxu0
  %vm6854 = vcmask 9216
  %6855 = vst.msk [vmem:[%s12] sm:$0x3] %vm6854, %v6851
  %v6856 = vsub.f32 0.0, %v6851
  %v6857 = vmul.f32 %v6856, 1.442695
  %v6858 = vpow.pop %v6857
  %v6859 = vadd.f32 %v6858, 1.0
  %v6860 = vrcp.pop %v6859
  %v6861 = vmul.f32 1.0, %v6860
  %vm6862 = vcmask 17424
  %6863 = vst.msk [vmem:[%s12] sm:$0x3] %vm6862, %v6861
  // Predicated region
  $region50: #{rgc2sc_forward.1} parent=0 // pred_check
    _
  $region51: #{rgc2sc_forward.1} parent=0 // pred_check_branch
    %6865 = sbr.rel (0) target = $region53
  $region52: #{rgc2sc_forward.1} parent=0 // pred_region
    _
  $region53: #{rgc2sc_forward.1} parent=0 // pred_fallthru
    _
  // Predicated region
  $region54: #{rgc2sc_forward.1} parent=0 // pred_check
    _
  $region55: #{rgc2sc_forward.1} parent=0 // pred_check_branch
    %6867 = sbr.rel (0) target = $region57
  $region56: #{rgc2sc_forward.1} parent=0 // pred_region
    _
  $region57: #{rgc2sc_forward.1} parent=0 // pred_fallthru
    _

</llo_original>
